<compile_context>
chip_gen: v7x
topology: tpu7x:2x2x1
jax: 0.10.0
libtpu: 0.0.40
codegen_flags: <defaults>
</compile_context>

<pallas_src>
import jax
import jax.numpy as jnp
from jax import lax
from jax.experimental import pallas as pl
from jax.experimental.pallas import tpu as pltpu

EMB = 64
CONS_NFEATS = 5
EDGE_NFEATS = 1
VAR_NFEATS = 17

NODE_TILE = 128            # node counts padded to a multiple of this (lane-friendly one-hot)
EDGE_TILE = 256            # edges processed per grid step
VMEM_LIMIT = 32 * 1024 * 1024


def _pad_rows(x, multiple, value=0):
    n = x.shape[0]
    pad = (-n) % multiple
    if pad == 0:
        return x
    widths = [(0, pad)] + [(0, 0)] * (x.ndim - 1)
    return jnp.pad(x, widths, constant_values=value)


# ----------------------------------------------------------------------------
# Kernel 1: cons/var embedding (PreNorm folded into w1/b1 by the wrapper).
# ----------------------------------------------------------------------------
def _embed_kernel(x_ref, w1_ref, b1_ref, w2_ref, b2_ref, o_ref):
    h = jnp.dot(x_ref[...], w1_ref[...], preferred_element_type=jnp.float32) + b1_ref[...]
    h = jnp.maximum(h, 0.0)
    h = jnp.dot(h, w2_ref[...], preferred_element_type=jnp.float32) + b2_ref[...]
    o_ref[...] = jnp.maximum(h, 0.0)


def embed(x, p, *, row_tile=NODE_TILE):
    n, nf = x.shape
    assert n % row_tile == 0
    return pl.pallas_call(
        _embed_kernel,
        out_shape=jax.ShapeDtypeStruct((n, EMB), jnp.float32),
        grid=(n // row_tile,),
        in_specs=[
            pl.BlockSpec((row_tile, nf), lambda i: (i, 0)),
            pl.BlockSpec(p["w1"].shape, lambda i: (0, 0)),
            pl.BlockSpec(p["b1"].shape, lambda i: (0, 0)),
            pl.BlockSpec(p["w2"].shape, lambda i: (0, 0)),
            pl.BlockSpec(p["b2"].shape, lambda i: (0, 0)),
        ],
        out_specs=pl.BlockSpec((row_tile, EMB), lambda i: (i, 0)),
        compiler_params=pltpu.CompilerParams(
            dimension_semantics=("parallel",),
            vmem_limit_bytes=VMEM_LIMIT),
    )(x, p["w1"], p["b1"], p["w2"], p["b2"])


# ----------------------------------------------------------------------------
# Kernel 2: BipartiteGraphConvolution, edge-tiled, optional fused output head.
#   grid = (num_edge_tiles,)  -- reduction axis ("arbitrary")
#   k == 0     : build per-node feature tables + zero the aggregation accumulator
#   every k    : per-edge messages for this edge tile + scatter-add into accumulator
#   k == last  : output MLP (and, for the second conv, the policy head) on all right nodes
# ----------------------------------------------------------------------------
def _make_biconv_kernel(with_head):
    def kernel(*refs):
        if with_head:
            (left_ref, right_ref, ef_ref, src_ref, tgt_ref,
             wfl_ref, bfl_ref, wfe_ref, wfr_ref, wfin_ref, bfin_ref,
             wo1a_ref, wo1b_ref, bo1_ref, wo2_ref, bo2_ref,
             wh1_ref, bh1_ref, wh2_ref,
             o_ref, fi_ref, fo_ref, fj_ref, agg_ref) = refs
        else:
            (left_ref, right_ref, ef_ref, src_ref, tgt_ref,
             wfl_ref, bfl_ref, wfe_ref, wfr_ref, wfin_ref, bfin_ref,
             wo1a_ref, wo1b_ref, bo1_ref, wo2_ref, bo2_ref,
             o_ref, fi_ref, fo_ref, fj_ref, agg_ref) = refs
            wh1_ref = bh1_ref = wh2_ref = None

        k = pl.program_id(0)
        te = ef_ref.shape[0]
        nL = left_ref.shape[0]
        nR = right_ref.shape[0]

        @pl.when(k == 0)
        def _init():
            # per-node feature tables, computed ONCE (not per edge)
            fi_ref[...] = jnp.dot(right_ref[...], wfl_ref[...],
                                  preferred_element_type=jnp.float32) + bfl_ref[...]
            fo_ref[...] = jnp.dot(right_ref[...], wo1b_ref[...],
                                  preferred_element_type=jnp.float32)
            fj_ref[...] = jnp.dot(left_ref[...], wfr_ref[...],
                                  preferred_element_type=jnp.float32)
            agg_ref[...] = jnp.zeros_like(agg_ref)

        # ---- per edge-tile message + add-aggregation ----
        tgt = tgt_ref[...]   # [TE, 1] int32  (-1 for padded edges)
        src = src_ref[...]   # [TE, 1] int32
        gat_t = (tgt == lax.broadcasted_iota(jnp.int32, (te, nR), 1)).astype(jnp.float32)
        gat_s = (src == lax.broadcasted_iota(jnp.int32, (te, nL), 1)).astype(jnp.float32)

        gi = jnp.dot(gat_t, fi_ref[...], preferred_element_type=jnp.float32)   # feat_i[tgt]
        gj = jnp.dot(gat_s, fj_ref[...], preferred_element_type=jnp.float32)   # feat_j[src]
        fe = ef_ref[...] * wfe_ref[...]                                          # edge term [TE,64]
        # feature_module_final: PreNorm scale folded into wfin; ReLU; Linear
        msg = jnp.dot(jnp.maximum(gi + gj + fe, 0.0), wfin_ref[...],
                      preferred_element_type=jnp.float32) + bfin_ref[...]
        # scatter-add onto target nodes: one_hot(tgt)^T @ msg (padded edges contribute 0)
        agg_ref[...] += lax.dot_general(gat_t, msg, (((0,), (0,)), ((), ())),
                                        preferred_element_type=jnp.float32)

        @pl.when(k == pl.num_programs(0) - 1)
        def _final():
            # post_conv scale folded into wo1a; output_module over cat([agg, right])
            h = jnp.maximum(
                jnp.dot(agg_ref[...], wo1a_ref[...], preferred_element_type=jnp.float32)
                + fo_ref[...] + bo1_ref[...], 0.0)
            conv = jnp.dot(h, wo2_ref[...], preferred_element_type=jnp.float32) + bo2_ref[...]
            if with_head:
                hh = jnp.maximum(
                    jnp.dot(conv, wh1_ref[...], preferred_element_type=jnp.float32)
                    + bh1_ref[...], 0.0)
                o_ref[...] = jnp.dot(hh, wh2_ref[...], preferred_element_type=jnp.float32)
            else:
                o_ref[...] = conv

    return kernel


def bipartite_conv(left, right, ef, src_idx, tgt_idx, p, head=None, *, edge_tile=EDGE_TILE):
    nL = left.shape[0]
    nR = right.shape[0]
    nE = ef.shape[0]
    assert nE % edge_tile == 0
    n_tiles = nE // edge_tile

    weights = [p["wfl"], p["bfl"], p["wfe"], p["wfr"], p["wfin"], p["bfin"],
               p["wo1a"], p["wo1b"], p["bo1"], p["wo2"], p["bo2"]]
    if head is not None:
        weights += [head["w1"], head["b1"], head["w2"]]
        out_w = 1
    else:
        out_w = EMB

    def resident(shape):
        return pl.BlockSpec(shape, lambda k: (0, 0))

    in_specs = [
        resident((nL, EMB)),                              # left node table (VMEM resident)
        resident((nR, EMB)),                              # right node table (VMEM resident)
        pl.BlockSpec((edge_tile, 1), lambda k: (k, 0)),   # edge features (streamed)
        pl.BlockSpec((edge_tile, 1), lambda k: (k, 0)),   # src indices  (streamed)
        pl.BlockSpec((edge_tile, 1), lambda k: (k, 0)),   # tgt indices  (streamed)
    ] + [resident(w.shape) for w in weights]

    return pl.pallas_call(
        _make_biconv_kernel(head is not None),
        out_shape=jax.ShapeDtypeStruct((nR, out_w), jnp.float32),
        grid=(n_tiles,),
        in_specs=in_specs,
        out_specs=pl.BlockSpec((nR, out_w), lambda k: (0, 0)),
        scratch_shapes=[
            pltpu.VMEM((nR, EMB), jnp.float32),   # fi : feature_module_left(right) + bias
            pltpu.VMEM((nR, EMB), jnp.float32),   # fo : right @ Wo1b
            pltpu.VMEM((nL, EMB), jnp.float32),   # fj : feature_module_right(left)
            pltpu.VMEM((nR, EMB), jnp.float32),   # agg: add-aggregation accumulator
        ],
        compiler_params=pltpu.CompilerParams(
            dimension_semantics=("arbitrary",),
            vmem_limit_bytes=VMEM_LIMIT),
    )(left, right, ef, src_idx, tgt_idx, *weights)


# ----------------------------------------------------------------------------
# Parameter construction (PyTorch-Linear-style uniform init) + kernel-param folding
# ----------------------------------------------------------------------------
def _linear(key, fan_in, fan_out, bias=True):
    kw, kb = jax.random.split(key)
    bound = 1.0 / float(fan_in) ** 0.5
    w = jax.random.uniform(kw, (fan_in, fan_out), jnp.float32, -bound, bound)
    if bias:
        b = jax.random.uniform(kb, (1, fan_out), jnp.float32, -bound, bound)
        return w, b
    return w, None


def make_params(key):
    keys = jax.random.split(key, 20)
    ki = iter(keys)

    def embed_params(nfeat):
        w1, b1 = _linear(next(ki), nfeat, EMB)
        w2, b2 = _linear(next(ki), EMB, EMB)
        return {"shift": jnp.zeros((1, nfeat), jnp.float32),
                "scale": jnp.ones((1, nfeat), jnp.float32),
                "w1": w1, "b1": b1, "w2": w2, "b2": b2}

    def conv_params():
        wfl, bfl = _linear(next(ki), EMB, EMB)             # feature_module_left
        wfe, _ = _linear(next(ki), 1, EMB, bias=False)     # feature_module_edge
        wfr, _ = _linear(next(ki), EMB, EMB, bias=False)   # feature_module_right
        wfin, bfin = _linear(next(ki), EMB, EMB)           # feature_module_final Linear
        wo1, bo1 = _linear(next(ki), 2 * EMB, EMB)         # output_module Linear(128,64)
        wo2, bo2 = _linear(next(ki), EMB, EMB)             # output_module Linear(64,64)
        return {"wfl": wfl, "bfl": bfl, "wfe": wfe, "wfr": wfr,
                "wfin": wfin, "bfin": bfin,
                "wo1a": wo1[:EMB], "wo1b": wo1[EMB:], "bo1": bo1,
                "wo2": wo2, "bo2": bo2,
                # PreNormLayer(1, shift=False) scales inside the conv (identity at init)
                "fscale": jnp.ones((1, 1), jnp.float32),
                "pscale": jnp.ones((1, 1), jnp.float32)}

    params = {
        "cons_embedding": embed_params(CONS_NFEATS),
        "edge_embedding": {"shift": jnp.zeros((1, EDGE_NFEATS), jnp.float32),
                           "scale": jnp.ones((1, EDGE_NFEATS), jnp.float32)},
        "var_embedding": embed_params(VAR_NFEATS),
        "conv_v_to_c": conv_params(),
        "conv_c_to_v": conv_params(),
    }
    w1, b1 = _linear(next(ki), EMB, EMB)
    w2, _ = _linear(next(ki), EMB, 1, bias=False)
    params["output_module"] = {"w1": w1, "b1": b1, "w2": w2}
    return params
    # TODO(synk): PreNormLayer pre-training statistics path (PreNormException /
    # start_updates / stop_updates) is training-only and not implemented.


def prepare_params(params):
    """Fold PreNorm shift/scale into adjacent linear weights."""
    def fold_embed(p):
        scale, shift = p["scale"], p["shift"]                  # [1, nf]
        w1 = p["w1"] * scale.reshape(-1, 1)                    # row-wise scale
        b1 = p["b1"] + (shift * scale) @ p["w1"]
        return {"w1": w1, "b1": b1, "w2": p["w2"], "b2": p["b2"]}

    e_shift = params["edge_embedding"]["shift"]                # [1,1]
    e_scale = params["edge_embedding"]["scale"]                # [1,1]

    def fold_conv(p):
        wfe = p["wfe"] * e_scale                               # fold edge scale
        bfl = p["bfl"] + (e_shift * e_scale) * p["wfe"]        # fold edge shift (per real edge)
        wfin = p["wfin"] * p["fscale"]   # ReLU(s*x)@W = ReLU(x)@(s*W) for s>0
        wo1a = p["wo1a"] * p["pscale"]   # post_conv scale applies to agg only
        return {"wfl": p["wfl"], "bfl": bfl, "wfe": wfe, "wfr": p["wfr"],
                "wfin": wfin, "bfin": p["bfin"],
                "wo1a": wo1a, "wo1b": p["wo1b"], "bo1": p["bo1"],
                "wo2": p["wo2"], "bo2": p["bo2"]}

    return {
        "cons_embedding": fold_embed(params["cons_embedding"]),
        "var_embedding": fold_embed(params["var_embedding"]),
        "conv_v_to_c": fold_conv(params["conv_v_to_c"]),
        "conv_c_to_v": fold_conv(params["conv_c_to_v"]),
        "output_module": params["output_module"],
    }


# ----------------------------------------------------------------------------
# GNNPolicy.forward
# ----------------------------------------------------------------------------
def gnn_policy_forward(params, constraint_features, edge_indices, edge_features,
                       variable_features):
    kp = prepare_params(params)
    n_vars = variable_features.shape[0]

    cons_p = _pad_rows(constraint_features.astype(jnp.float32), NODE_TILE)
    var_p = _pad_rows(variable_features.astype(jnp.float32), NODE_TILE)
    ef_p = _pad_rows(edge_features.astype(jnp.float32), EDGE_TILE)
    cons_idx = _pad_rows(edge_indices[0].astype(jnp.int32).reshape(-1, 1), EDGE_TILE, value=-1)
    var_idx = _pad_rows(edge_indices[1].astype(jnp.int32).reshape(-1, 1), EDGE_TILE, value=-1)

    cons_e = embed(cons_p, kp["cons_embedding"])
    var_e = embed(var_p, kp["var_embedding"])

    # conv_v_to_c: source = variables (left), target = constraints (right)
    cons_e = bipartite_conv(var_e, cons_e, ef_p, var_idx, cons_idx, kp["conv_v_to_c"])
    # conv_c_to_v: source = constraints (left), target = variables (right); head fused
    logits = bipartite_conv(cons_e, var_e, ef_p, cons_idx, var_idx, kp["conv_c_to_v"],
                            head=kp["output_module"])
    return logits[:n_vars, 0]


# ----------------------------------------------------------------------------
# Pure-JAX reference (mirrors the PyTorch module, no folding / no padding)
# ----------------------------------------------------------------------------
def _ref_embed(x, p):
    x = (x + p["shift"]) * p["scale"]
    h = jnp.maximum(x @ p["w1"] + p["b1"], 0.0)
    return jnp.maximum(h @ p["w2"] + p["b2"], 0.0)


def _ref_biconv(left, right, ef, src, tgt, p):
    feat_i = right @ p["wfl"] + p["bfl"]
    feat_j = left @ p["wfr"]
    feat_e = ef * p["wfe"]
    msg_in = feat_i[tgt] + feat_e + feat_j[src]
    msg = jnp.maximum(p["fscale"] * msg_in, 0.0) @ p["wfin"] + p["bfin"]
    agg = jnp.zeros_like(right).at[tgt].add(msg)
    agg = p["pscale"] * agg
    h = jnp.maximum(agg @ p["wo1a"] + right @ p["wo1b"] + p["bo1"], 0.0)
    return h @ p["wo2"] + p["bo2"]


def _ref_forward(params, cons_f, edge_idx, edge_f, var_f):
    cons_idx = edge_idx[0].astype(jnp.int32)
    var_idx = edge_idx[1].astype(jnp.int32)
    cons = _ref_embed(cons_f, params["cons_embedding"])
    var = _ref_embed(var_f, params["var_embedding"])
    ef = (edge_f + params["edge_embedding"]["shift"]) * params["edge_embedding"]["scale"]
    cons = _ref_biconv(var, cons, ef, var_idx, cons_idx, params["conv_v_to_c"])
    var = _ref_biconv(cons, var, ef, cons_idx, var_idx, params["conv_c_to_v"])
    p = params["output_module"]
    h = jnp.maximum(var @ p["w1"] + p["b1"], 0.0)
    return (h @ p["w2"])[:, 0]


def _randomize_prenorm(params, key):
    """Give the PreNorm buffers non-trivial values to exercise the folding path."""
    params = {k: dict(v) for k, v in params.items()}
    ks = jax.random.split(key, 10)
    params["cons_embedding"]["shift"] = 0.1 * jax.random.normal(ks[0], (1, CONS_NFEATS), jnp.float32)
    params["cons_embedding"]["scale"] = jax.random.uniform(ks[1], (1, CONS_NFEATS), jnp.float32, 0.5, 1.5)
    params["var_embedding"]["shift"] = 0.1 * jax.random.normal(ks[2], (1, VAR_NFEATS), jnp.float32)
    params["var_embedding"]["scale"] = jax.random.uniform(ks[3], (1, VAR_NFEATS), jnp.float32, 0.5, 1.5)
    params["edge_embedding"]["shift"] = 0.1 * jax.random.normal(ks[4], (1, EDGE_NFEATS), jnp.float32)
    params["edge_embedding"]["scale"] = jax.random.uniform(ks[5], (1, EDGE_NFEATS), jnp.float32, 0.5, 1.5)
    params["conv_v_to_c"]["fscale"] = jax.random.uniform(ks[6], (1, 1), jnp.float32, 0.5, 1.5)
    params["conv_v_to_c"]["pscale"] = jax.random.uniform(ks[7], (1, 1), jnp.float32, 0.5, 1.5)
    params["conv_c_to_v"]["fscale"] = jax.random.uniform(ks[8], (1, 1), jnp.float32, 0.5, 1.5)
    params["conv_c_to_v"]["pscale"] = jax.random.uniform(ks[9], (1, 1), jnp.float32, 0.5, 1.5)
    return params


if __name__ == "__main__":
    key = jax.random.PRNGKey(0)
    k_params, k_cons, k_var, k_edge, k_ci, k_vi, k_pn = jax.random.split(key, 7)

    n_cons, n_vars, n_edges = 12, 20, 32
    params = make_params(k_params)

    constraint_features = jax.random.normal(k_cons, (n_cons, CONS_NFEATS), jnp.float32)
    variable_features = jax.random.normal(k_var, (n_vars, VAR_NFEATS), jnp.float32)
    edge_features = jax.random.normal(k_edge, (n_edges, EDGE_NFEATS), jnp.float32)
    edge_indices = jnp.stack([
        jax.random.randint(k_ci, (n_edges,), 0, n_cons),
        jax.random.randint(k_vi, (n_edges,), 0, n_vars),
    ], axis=0).astype(jnp.int32)

    forward = jax.jit(gnn_policy_forward)

    out = forward(params, constraint_features, edge_indices, edge_features, variable_features)
    out = jax.block_until_ready(out)
    assert out.shape == (n_vars,), out.shape

    ref = _ref_forward(params, constraint_features, edge_indices, edge_features, variable_features)
    assert jnp.allclose(out, ref, atol=1e-3, rtol=1e-3), (out, ref)

    # second check: non-trivial PreNorm buffers (exercises the weight folding; reuses jit cache)
    params2 = _randomize_prenorm(params, k_pn)
    out2 = jax.block_until_ready(
        forward(params2, constraint_features, edge_indices, edge_features, variable_features))
    ref2 = _ref_forward(params2, constraint_features, edge_indices, edge_features, variable_features)
    assert jnp.allclose(out2, ref2, atol=1e-3, rtol=1e-3), (out2, ref2)

    print("KERNEL_OK")
</pallas_src>

<mosaic_0001>
module attributes {stable_mosaic.version = 11 : i64} {
  func.func @_embed_kernel(%arg0: i32, %arg1: memref<128x17xf32, #tpu.memory_space<vmem>>, %arg2: memref<17x64xf32, #tpu.memory_space<vmem>>, %arg3: memref<1x64xf32, #tpu.memory_space<vmem>>, %arg4: memref<64x64xf32, #tpu.memory_space<vmem>>, %arg5: memref<1x64xf32, #tpu.memory_space<vmem>>, %arg6: memref<128x64xf32, #tpu.memory_space<vmem>>) attributes {dimension_semantics = [#tpu.dimension_semantics<parallel>], iteration_bounds = array<i64: 1>, scalar_prefetch = 0 : i64, scratch_operands = 0 : i64, tpu.core_type = #tpu.core_type<tc>, window_params = [{transform_indices = @transform_0, window_bounds = array<i64: 128, 17>}, {pipeline_mode = #tpu.pipeline_mode<synchronous>, transform_indices = @transform_1, window_bounds = array<i64: 17, 64>}, {pipeline_mode = #tpu.pipeline_mode<synchronous>, transform_indices = @transform_2, window_bounds = array<i64: 1, 64>}, {pipeline_mode = #tpu.pipeline_mode<synchronous>, transform_indices = @transform_3, window_bounds = array<i64: 64, 64>}, {pipeline_mode = #tpu.pipeline_mode<synchronous>, transform_indices = @transform_4, window_bounds = array<i64: 1, 64>}, {transform_indices = @transform_5, window_bounds = array<i64: 128, 64>}]} {
    %c0 = arith.constant 0 : index
    %c0_0 = arith.constant 0 : index
    %0 = vector.load %arg1[%c0, %c0_0] : memref<128x17xf32, #tpu.memory_space<vmem>>, vector<128x17xf32>
    %c0_1 = arith.constant 0 : index
    %c0_2 = arith.constant 0 : index
    %1 = vector.load %arg2[%c0_1, %c0_2] : memref<17x64xf32, #tpu.memory_space<vmem>>, vector<17x64xf32>
    %cst = arith.constant dense<0.000000e+00> : vector<128x64xf32>
    %2 = tpu.matmul %0, %1, %cst {dimension_numbers = #tpu.dot_dimension_numbers<[1], [0], [0], [1], [0, 0, 1, 1], [], []>} : vector<128x17xf32>, vector<17x64xf32>, vector<128x64xf32> -> vector<128x64xf32>
    %c0_3 = arith.constant 0 : index
    %c0_4 = arith.constant 0 : index
    %3 = vector.load %arg3[%c0_3, %c0_4] : memref<1x64xf32, #tpu.memory_space<vmem>>, vector<1x64xf32>
    %4 = vector.broadcast %3 : vector<1x64xf32> to vector<128x64xf32>
    %5 = arith.addf %2, %4 : vector<128x64xf32>
    %cst_5 = arith.constant 0.000000e+00 : f32
    %6 = vector.broadcast %cst_5 : f32 to vector<128x64xf32>
    %7 = arith.maximumf %5, %6 : vector<128x64xf32>
    %c0_6 = arith.constant 0 : index
    %c0_7 = arith.constant 0 : index
    %8 = vector.load %arg4[%c0_6, %c0_7] : memref<64x64xf32, #tpu.memory_space<vmem>>, vector<64x64xf32>
    %cst_8 = arith.constant dense<0.000000e+00> : vector<128x64xf32>
    %9 = tpu.matmul %7, %8, %cst_8 {dimension_numbers = #tpu.dot_dimension_numbers<[1], [0], [0], [1], [0, 0, 1, 1], [], []>} : vector<128x64xf32>, vector<64x64xf32>, vector<128x64xf32> -> vector<128x64xf32>
    %c0_9 = arith.constant 0 : index
    %c0_10 = arith.constant 0 : index
    %10 = vector.load %arg5[%c0_9, %c0_10] : memref<1x64xf32, #tpu.memory_space<vmem>>, vector<1x64xf32>
    %11 = vector.broadcast %10 : vector<1x64xf32> to vector<128x64xf32>
    %12 = arith.addf %9, %11 : vector<128x64xf32>
    %cst_11 = arith.constant 0.000000e+00 : f32
    %13 = vector.broadcast %cst_11 : f32 to vector<128x64xf32>
    %14 = arith.maximumf %12, %13 : vector<128x64xf32>
    %c0_12 = arith.constant 0 : index
    %c0_13 = arith.constant 0 : index
    %15 = vector.load %arg6[%c0_12, %c0_13] : memref<128x64xf32, #tpu.memory_space<vmem>>, vector<128x64xf32>
    tpu.vector_store %arg6[%c0_12, %c0_13], %14 {strides = array<i32>} : memref<128x64xf32, #tpu.memory_space<vmem>>, vector<128x64xf32>,
    return
  }
  func.func @transform_0(%arg0: i32) -> (i32, i32) {
    %c0_i32 = arith.constant 0 : i32
    %c0_i32_0 = arith.constant 0 : i32
    return %arg0, %c0_i32 : i32, i32
  }
  func.func @transform_1(%arg0: i32) -> (i32, i32) {
    %c0_i32 = arith.constant 0 : i32
    %c0_i32_0 = arith.constant 0 : i32
    %c0_i32_1 = arith.constant 0 : i32
    return %c0_i32, %c0_i32_0 : i32, i32
  }
  func.func @transform_2(%arg0: i32) -> (i32, i32) {
    %c0_i32 = arith.constant 0 : i32
    %c0_i32_0 = arith.constant 0 : i32
    %c0_i32_1 = arith.constant 0 : i32
    return %c0_i32, %c0_i32_0 : i32, i32
  }
  func.func @transform_3(%arg0: i32) -> (i32, i32) {
    %c0_i32 = arith.constant 0 : i32
    %c0_i32_0 = arith.constant 0 : i32
    %c0_i32_1 = arith.constant 0 : i32
    return %c0_i32, %c0_i32_0 : i32, i32
  }
  func.func @transform_4(%arg0: i32) -> (i32, i32) {
    %c0_i32 = arith.constant 0 : i32
    %c0_i32_0 = arith.constant 0 : i32
    %c0_i32_1 = arith.constant 0 : i32
    return %c0_i32, %c0_i32_0 : i32, i32
  }
  func.func @transform_5(%arg0: i32) -> (i32, i32) {
    %c0_i32 = arith.constant 0 : i32
    %c0_i32_0 = arith.constant 0 : i32
    return %arg0, %c0_i32 : i32, i32
  }
}

module attributes {stable_mosaic.version = 11 : i64} {
  func.func @_embed_kernel(%arg0: i32, %arg1: memref<128x5xf32, #tpu.memory_space<vmem>>, %arg2: memref<5x64xf32, #tpu.memory_space<vmem>>, %arg3: memref<1x64xf32, #tpu.memory_space<vmem>>, %arg4: memref<64x64xf32, #tpu.memory_space<vmem>>, %arg5: memref<1x64xf32, #tpu.memory_space<vmem>>, %arg6: memref<128x64xf32, #tpu.memory_space<vmem>>) attributes {dimension_semantics = [#tpu.dimension_semantics<parallel>], iteration_bounds = array<i64: 1>, scalar_prefetch = 0 : i64, scratch_operands = 0 : i64, tpu.core_type = #tpu.core_type<tc>, window_params = [{transform_indices = @transform_0, window_bounds = array<i64: 128, 5>}, {pipeline_mode = #tpu.pipeline_mode<synchronous>, transform_indices = @transform_1, window_bounds = array<i64: 5, 64>}, {pipeline_mode = #tpu.pipeline_mode<synchronous>, transform_indices = @transform_2, window_bounds = array<i64: 1, 64>}, {pipeline_mode = #tpu.pipeline_mode<synchronous>, transform_indices = @transform_3, window_bounds = array<i64: 64, 64>}, {pipeline_mode = #tpu.pipeline_mode<synchronous>, transform_indices = @transform_4, window_bounds = array<i64: 1, 64>}, {transform_indices = @transform_5, window_bounds = array<i64: 128, 64>}]} {
    %c0 = arith.constant 0 : index
    %c0_0 = arith.constant 0 : index
    %0 = vector.load %arg1[%c0, %c0_0] : memref<128x5xf32, #tpu.memory_space<vmem>>, vector<128x5xf32>
    %c0_1 = arith.constant 0 : index
    %c0_2 = arith.constant 0 : index
    %1 = vector.load %arg2[%c0_1, %c0_2] : memref<5x64xf32, #tpu.memory_space<vmem>>, vector<5x64xf32>
    %cst = arith.constant dense<0.000000e+00> : vector<128x64xf32>
    %2 = tpu.matmul %0, %1, %cst {dimension_numbers = #tpu.dot_dimension_numbers<[1], [0], [0], [1], [0, 0, 1, 1], [], []>} : vector<128x5xf32>, vector<5x64xf32>, vector<128x64xf32> -> vector<128x64xf32>
    %c0_3 = arith.constant 0 : index
    %c0_4 = arith.constant 0 : index
    %3 = vector.load %arg3[%c0_3, %c0_4] : memref<1x64xf32, #tpu.memory_space<vmem>>, vector<1x64xf32>
    %4 = vector.broadcast %3 : vector<1x64xf32> to vector<128x64xf32>
    %5 = arith.addf %2, %4 : vector<128x64xf32>
    %cst_5 = arith.constant 0.000000e+00 : f32
    %6 = vector.broadcast %cst_5 : f32 to vector<128x64xf32>
    %7 = arith.maximumf %5, %6 : vector<128x64xf32>
    %c0_6 = arith.constant 0 : index
    %c0_7 = arith.constant 0 : index
    %8 = vector.load %arg4[%c0_6, %c0_7] : memref<64x64xf32, #tpu.memory_space<vmem>>, vector<64x64xf32>
    %cst_8 = arith.constant dense<0.000000e+00> : vector<128x64xf32>
    %9 = tpu.matmul %7, %8, %cst_8 {dimension_numbers = #tpu.dot_dimension_numbers<[1], [0], [0], [1], [0, 0, 1, 1], [], []>} : vector<128x64xf32>, vector<64x64xf32>, vector<128x64xf32> -> vector<128x64xf32>
    %c0_9 = arith.constant 0 : index
    %c0_10 = arith.constant 0 : index
    %10 = vector.load %arg5[%c0_9, %c0_10] : memref<1x64xf32, #tpu.memory_space<vmem>>, vector<1x64xf32>
    %11 = vector.broadcast %10 : vector<1x64xf32> to vector<128x64xf32>
    %12 = arith.addf %9, %11 : vector<128x64xf32>
    %cst_11 = arith.constant 0.000000e+00 : f32
    %13 = vector.broadcast %cst_11 : f32 to vector<128x64xf32>
    %14 = arith.maximumf %12, %13 : vector<128x64xf32>
    %c0_12 = arith.constant 0 : index
    %c0_13 = arith.constant 0 : index
    %15 = vector.load %arg6[%c0_12, %c0_13] : memref<128x64xf32, #tpu.memory_space<vmem>>, vector<128x64xf32>
    tpu.vector_store %arg6[%c0_12, %c0_13], %14 {strides = array<i32>} : memref<128x64xf32, #tpu.memory_space<vmem>>, vector<128x64xf32>,
    return
  }
  func.func @transform_0(%arg0: i32) -> (i32, i32) {
    %c0_i32 = arith.constant 0 : i32
    %c0_i32_0 = arith.constant 0 : i32
    return %arg0, %c0_i32 : i32, i32
  }
  func.func @transform_1(%arg0: i32) -> (i32, i32) {
    %c0_i32 = arith.constant 0 : i32
    %c0_i32_0 = arith.constant 0 : i32
    %c0_i32_1 = arith.constant 0 : i32
    return %c0_i32, %c0_i32_0 : i32, i32
  }
  func.func @transform_2(%arg0: i32) -> (i32, i32) {
    %c0_i32 = arith.constant 0 : i32
    %c0_i32_0 = arith.constant 0 : i32
    %c0_i32_1 = arith.constant 0 : i32
    return %c0_i32, %c0_i32_0 : i32, i32
  }
  func.func @transform_3(%arg0: i32) -> (i32, i32) {
    %c0_i32 = arith.constant 0 : i32
    %c0_i32_0 = arith.constant 0 : i32
    %c0_i32_1 = arith.constant 0 : i32
    return %c0_i32, %c0_i32_0 : i32, i32
  }
  func.func @transform_4(%arg0: i32) -> (i32, i32) {
    %c0_i32 = arith.constant 0 : i32
    %c0_i32_0 = arith.constant 0 : i32
    %c0_i32_1 = arith.constant 0 : i32
    return %c0_i32, %c0_i32_0 : i32, i32
  }
  func.func @transform_5(%arg0: i32) -> (i32, i32) {
    %c0_i32 = arith.constant 0 : i32
    %c0_i32_0 = arith.constant 0 : i32
    return %arg0, %c0_i32 : i32, i32
  }
}

module attributes {stable_mosaic.version = 11 : i64} {
  func.func @kernel(%arg0: i32, %arg1: memref<128x64xf32, #tpu.memory_space<vmem>>, %arg2: memref<128x64xf32, #tpu.memory_space<vmem>>, %arg3: memref<256x1xf32, #tpu.memory_space<vmem>>, %arg4: memref<256x1xi32, #tpu.memory_space<vmem>>, %arg5: memref<256x1xi32, #tpu.memory_space<vmem>>, %arg6: memref<64x64xf32, #tpu.memory_space<vmem>>, %arg7: memref<1x64xf32, #tpu.memory_space<vmem>>, %arg8: memref<1x64xf32, #tpu.memory_space<vmem>>, %arg9: memref<64x64xf32, #tpu.memory_space<vmem>>, %arg10: memref<64x64xf32, #tpu.memory_space<vmem>>, %arg11: memref<1x64xf32, #tpu.memory_space<vmem>>, %arg12: memref<64x64xf32, #tpu.memory_space<vmem>>, %arg13: memref<64x64xf32, #tpu.memory_space<vmem>>, %arg14: memref<1x64xf32, #tpu.memory_space<vmem>>, %arg15: memref<64x64xf32, #tpu.memory_space<vmem>>, %arg16: memref<1x64xf32, #tpu.memory_space<vmem>>, %arg17: memref<128x64xf32, #tpu.memory_space<vmem>>, %arg18: memref<128x64xf32, #tpu.memory_space<vmem>>, %arg19: memref<128x64xf32, #tpu.memory_space<vmem>>, %arg20: memref<128x64xf32, #tpu.memory_space<vmem>>, %arg21: memref<128x64xf32, #tpu.memory_space<vmem>>) attributes {dimension_semantics = [#tpu.dimension_semantics<arbitrary>], iteration_bounds = array<i64: 1>, scalar_prefetch = 0 : i64, scratch_operands = 4 : i64, tpu.core_type = #tpu.core_type<tc>, window_params = [{pipeline_mode = #tpu.pipeline_mode<synchronous>, transform_indices = @transform_0, window_bounds = array<i64: 128, 64>}, {pipeline_mode = #tpu.pipeline_mode<synchronous>, transform_indices = @transform_1, window_bounds = array<i64: 128, 64>}, {transform_indices = @transform_2, window_bounds = array<i64: 256, 1>}, {transform_indices = @transform_3, window_bounds = array<i64: 256, 1>}, {transform_indices = @transform_4, window_bounds = array<i64: 256, 1>}, {pipeline_mode = #tpu.pipeline_mode<synchronous>, transform_indices = @transform_5, window_bounds = array<i64: 64, 64>}, {pipeline_mode = #tpu.pipeline_mode<synchronous>, transform_indices = @transform_6, window_bounds = array<i64: 1, 64>}, {pipeline_mode = #tpu.pipeline_mode<synchronous>, transform_indices = @transform_7, window_bounds = array<i64: 1, 64>}, {pipeline_mode = #tpu.pipeline_mode<synchronous>, transform_indices = @transform_8, window_bounds = array<i64: 64, 64>}, {pipeline_mode = #tpu.pipeline_mode<synchronous>, transform_indices = @transform_9, window_bounds = array<i64: 64, 64>}, {pipeline_mode = #tpu.pipeline_mode<synchronous>, transform_indices = @transform_10, window_bounds = array<i64: 1, 64>}, {pipeline_mode = #tpu.pipeline_mode<synchronous>, transform_indices = @transform_11, window_bounds = array<i64: 64, 64>}, {pipeline_mode = #tpu.pipeline_mode<synchronous>, transform_indices = @transform_12, window_bounds = array<i64: 64, 64>}, {pipeline_mode = #tpu.pipeline_mode<synchronous>, transform_indices = @transform_13, window_bounds = array<i64: 1, 64>}, {pipeline_mode = #tpu.pipeline_mode<synchronous>, transform_indices = @transform_14, window_bounds = array<i64: 64, 64>}, {pipeline_mode = #tpu.pipeline_mode<synchronous>, transform_indices = @transform_15, window_bounds = array<i64: 1, 64>}, {pipeline_mode = #tpu.pipeline_mode<synchronous>, transform_indices = @transform_16, window_bounds = array<i64: 128, 64>}]} {
    %c0_i32 = arith.constant 0 : i32
    %0 = arith.cmpi eq, %arg0, %c0_i32 : i32
    %1 = arith.extui %0 : i1 to i32
    %c0_i32_0 = arith.constant 0 : i32
    %2 = arith.cmpi ne, %1, %c0_i32_0 : i32
    scf.if %2 {
      %c0_26 = arith.constant 0 : index
      %c0_27 = arith.constant 0 : index
      %40 = vector.load %arg2[%c0_26, %c0_27] : memref<128x64xf32, #tpu.memory_space<vmem>>, vector<128x64xf32>
      %c0_28 = arith.constant 0 : index
      %c0_29 = arith.constant 0 : index
      %41 = vector.load %arg6[%c0_28, %c0_29] : memref<64x64xf32, #tpu.memory_space<vmem>>, vector<64x64xf32>
      %cst_30 = arith.constant dense<0.000000e+00> : vector<128x64xf32>
      %42 = tpu.matmul %40, %41, %cst_30 {dimension_numbers = #tpu.dot_dimension_numbers<[1], [0], [0], [1], [0, 0, 1, 1], [], []>} : vector<128x64xf32>, vector<64x64xf32>, vector<128x64xf32> -> vector<128x64xf32>
      %c0_31 = arith.constant 0 : index
      %c0_32 = arith.constant 0 : index
      %43 = vector.load %arg7[%c0_31, %c0_32] : memref<1x64xf32, #tpu.memory_space<vmem>>, vector<1x64xf32>
      %44 = vector.broadcast %43 : vector<1x64xf32> to vector<128x64xf32>
      %45 = arith.addf %42, %44 : vector<128x64xf32>
      %c0_33 = arith.constant 0 : index
      %c0_34 = arith.constant 0 : index
      %46 = vector.load %arg18[%c0_33, %c0_34] : memref<128x64xf32, #tpu.memory_space<vmem>>, vector<128x64xf32>
      tpu.vector_store %arg18[%c0_33, %c0_34], %45 {strides = array<i32>} : memref<128x64xf32, #tpu.memory_space<vmem>>, vector<128x64xf32>,
      %c0_35 = arith.constant 0 : index
      %c0_36 = arith.constant 0 : index
      %47 = vector.load %arg2[%c0_35, %c0_36] : memref<128x64xf32, #tpu.memory_space<vmem>>, vector<128x64xf32>
      %c0_37 = arith.constant 0 : index
      %c0_38 = arith.constant 0 : index
      %48 = vector.load %arg13[%c0_37, %c0_38] : memref<64x64xf32, #tpu.memory_space<vmem>>, vector<64x64xf32>
      %cst_39 = arith.constant dense<0.000000e+00> : vector<128x64xf32>
      %49 = tpu.matmul %47, %48, %cst_39 {dimension_numbers = #tpu.dot_dimension_numbers<[1], [0], [0], [1], [0, 0, 1, 1], [], []>} : vector<128x64xf32>, vector<64x64xf32>, vector<128x64xf32> -> vector<128x64xf32>
      %c0_40 = arith.constant 0 : index
      %c0_41 = arith.constant 0 : index
      %50 = vector.load %arg19[%c0_40, %c0_41] : memref<128x64xf32, #tpu.memory_space<vmem>>, vector<128x64xf32>
      tpu.vector_store %arg19[%c0_40, %c0_41], %49 {strides = array<i32>} : memref<128x64xf32, #tpu.memory_space<vmem>>, vector<128x64xf32>,
      %c0_42 = arith.constant 0 : index
      %c0_43 = arith.constant 0 : index
      %51 = vector.load %arg1[%c0_42, %c0_43] : memref<128x64xf32, #tpu.memory_space<vmem>>, vector<128x64xf32>
      %c0_44 = arith.constant 0 : index
      %c0_45 = arith.constant 0 : index
      %52 = vector.load %arg9[%c0_44, %c0_45] : memref<64x64xf32, #tpu.memory_space<vmem>>, vector<64x64xf32>
      %cst_46 = arith.constant dense<0.000000e+00> : vector<128x64xf32>
      %53 = tpu.matmul %51, %52, %cst_46 {dimension_numbers = #tpu.dot_dimension_numbers<[1], [0], [0], [1], [0, 0, 1, 1], [], []>} : vector<128x64xf32>, vector<64x64xf32>, vector<128x64xf32> -> vector<128x64xf32>
      %c0_47 = arith.constant 0 : index
      %c0_48 = arith.constant 0 : index
      %54 = vector.load %arg20[%c0_47, %c0_48] : memref<128x64xf32, #tpu.memory_space<vmem>>, vector<128x64xf32>
      tpu.vector_store %arg20[%c0_47, %c0_48], %53 {strides = array<i32>} : memref<128x64xf32, #tpu.memory_space<vmem>>, vector<128x64xf32>,
      %cst_49 = arith.constant 0.000000e+00 : f32
      %55 = vector.broadcast %cst_49 : f32 to vector<128x64xf32>
      %c0_50 = arith.constant 0 : index
      %c0_51 = arith.constant 0 : index
      %56 = vector.load %arg21[%c0_50, %c0_51] : memref<128x64xf32, #tpu.memory_space<vmem>>, vector<128x64xf32>
      tpu.vector_store %arg21[%c0_50, %c0_51], %55 {strides = array<i32>} : memref<128x64xf32, #tpu.memory_space<vmem>>, vector<128x64xf32>,
    } else {
    }
    %c0 = arith.constant 0 : index
    %c0_1 = arith.constant 0 : index
    %3 = vector.load %arg5[%c0, %c0_1] : memref<256x1xi32, #tpu.memory_space<vmem>>, vector<256x1xi32>
    %c0_2 = arith.constant 0 : index
    %c0_3 = arith.constant 0 : index
    %4 = vector.load %arg4[%c0_2, %c0_3] : memref<256x1xi32, #tpu.memory_space<vmem>>, vector<256x1xi32>
    %5 = tpu.iota {dimensions = array<i32: 1>} : vector<256x128xi32>
    %6 = vector.broadcast %3 : vector<256x1xi32> to vector<256x128xi32>
    %7 = arith.cmpi eq, %6, %5 : vector<256x128xi32>
    %8 = arith.extui %7 : vector<256x128xi1> to vector<256x128xi32>
    %9 = arith.sitofp %8 : vector<256x128xi32> to vector<256x128xf32>
    %10 = tpu.iota {dimensions = array<i32: 1>} : vector<256x128xi32>
    %11 = vector.broadcast %4 : vector<256x1xi32> to vector<256x128xi32>
    %12 = arith.cmpi eq, %11, %10 : vector<256x128xi32>
    %13 = arith.extui %12 : vector<256x128xi1> to vector<256x128xi32>
    %14 = arith.sitofp %13 : vector<256x128xi32> to vector<256x128xf32>
    %c0_4 = arith.constant 0 : index
    %c0_5 = arith.constant 0 : index
    %15 = vector.load %arg18[%c0_4, %c0_5] : memref<128x64xf32, #tpu.memory_space<vmem>>, vector<128x64xf32>
    %cst = arith.constant dense<0.000000e+00> : vector<256x64xf32>
    %16 = tpu.matmul %9, %15, %cst {dimension_numbers = #tpu.dot_dimension_numbers<[1], [0], [0], [1], [0, 0, 1, 1], [], []>} : vector<256x128xf32>, vector<128x64xf32>, vector<256x64xf32> -> vector<256x64xf32>
    %c0_6 = arith.constant 0 : index
    %c0_7 = arith.constant 0 : index
    %17 = vector.load %arg20[%c0_6, %c0_7] : memref<128x64xf32, #tpu.memory_space<vmem>>, vector<128x64xf32>
    %cst_8 = arith.constant dense<0.000000e+00> : vector<256x64xf32>
    %18 = tpu.matmul %14, %17, %cst_8 {dimension_numbers = #tpu.dot_dimension_numbers<[1], [0], [0], [1], [0, 0, 1, 1], [], []>} : vector<256x128xf32>, vector<128x64xf32>, vector<256x64xf32> -> vector<256x64xf32>
    %c0_9 = arith.constant 0 : index
    %c0_10 = arith.constant 0 : index
    %19 = vector.load %arg3[%c0_9, %c0_10] : memref<256x1xf32, #tpu.memory_space<vmem>>, vector<256x1xf32>
    %c0_11 = arith.constant 0 : index
    %c0_12 = arith.constant 0 : index
    %20 = vector.load %arg8[%c0_11, %c0_12] : memref<1x64xf32, #tpu.memory_space<vmem>>, vector<1x64xf32>
    %21 = vector.broadcast %19 : vector<256x1xf32> to vector<256x64xf32>
    %22 = vector.broadcast %20 : vector<1x64xf32> to vector<256x64xf32>
    %23 = arith.mulf %21, %22 : vector<256x64xf32>
    %24 = arith.addf %16, %18 : vector<256x64xf32>
    %25 = arith.addf %24, %23 : vector<256x64xf32>
    %cst_13 = arith.constant 0.000000e+00 : f32
    %26 = vector.broadcast %cst_13 : f32 to vector<256x64xf32>
    %27 = arith.maximumf %25, %26 : vector<256x64xf32>
    %c0_14 = arith.constant 0 : index
    %c0_15 = arith.constant 0 : index
    %28 = vector.load %arg10[%c0_14, %c0_15] : memref<64x64xf32, #tpu.memory_space<vmem>>, vector<64x64xf32>
    %cst_16 = arith.constant dense<0.000000e+00> : vector<256x64xf32>
    %29 = tpu.matmul %27, %28, %cst_16 {dimension_numbers = #tpu.dot_dimension_numbers<[1], [0], [0], [1], [0, 0, 1, 1], [], []>} : vector<256x64xf32>, vector<64x64xf32>, vector<256x64xf32> -> vector<256x64xf32>
    %c0_17 = arith.constant 0 : index
    %c0_18 = arith.constant 0 : index
    %30 = vector.load %arg11[%c0_17, %c0_18] : memref<1x64xf32, #tpu.memory_space<vmem>>, vector<1x64xf32>
    %31 = vector.broadcast %30 : vector<1x64xf32> to vector<256x64xf32>
    %32 = arith.addf %29, %31 : vector<256x64xf32>
    %c0_19 = arith.constant 0 : index
    %c0_20 = arith.constant 0 : index
    %33 = vector.load %arg21[%c0_19, %c0_20] : memref<128x64xf32, #tpu.memory_space<vmem>>, vector<128x64xf32>
    %cst_21 = arith.constant dense<0.000000e+00> : vector<128x64xf32>
    %34 = tpu.matmul %9, %32, %cst_21 {dimension_numbers = #tpu.dot_dimension_numbers<[0], [0], [1], [1], [0, 1, 1, 1], [], []>} : vector<256x128xf32>, vector<256x64xf32>, vector<128x64xf32> -> vector<128x64xf32>
    %35 = arith.addf %33, %34 : vector<128x64xf32>
    %c0_22 = arith.constant 0 : index
    %c0_23 = arith.constant 0 : index
    %36 = vector.load %arg21[%c0_22, %c0_23] : memref<128x64xf32, #tpu.memory_space<vmem>>, vector<128x64xf32>
    tpu.vector_store %arg21[%c0_22, %c0_23], %35 {strides = array<i32>} : memref<128x64xf32, #tpu.memory_space<vmem>>, vector<128x64xf32>,
    %c0_i32_24 = arith.constant 0 : i32
    %37 = arith.cmpi eq, %arg0, %c0_i32_24 : i32
    %38 = arith.extui %37 : i1 to i32
    %c0_i32_25 = arith.constant 0 : i32
    %39 = arith.cmpi ne, %38, %c0_i32_25 : i32
    scf.if %39 {
      %c0_26 = arith.constant 0 : index
      %c0_27 = arith.constant 0 : index
      %40 = vector.load %arg21[%c0_26, %c0_27] : memref<128x64xf32, #tpu.memory_space<vmem>>, vector<128x64xf32>
      %c0_28 = arith.constant 0 : index
      %c0_29 = arith.constant 0 : index
      %41 = vector.load %arg12[%c0_28, %c0_29] : memref<64x64xf32, #tpu.memory_space<vmem>>, vector<64x64xf32>
      %cst_30 = arith.constant dense<0.000000e+00> : vector<128x64xf32>
      %42 = tpu.matmul %40, %41, %cst_30 {dimension_numbers = #tpu.dot_dimension_numbers<[1], [0], [0], [1], [0, 0, 1, 1], [], []>} : vector<128x64xf32>, vector<64x64xf32>, vector<128x64xf32> -> vector<128x64xf32>
      %c0_31 = arith.constant 0 : index
      %c0_32 = arith.constant 0 : index
      %43 = vector.load %arg19[%c0_31, %c0_32] : memref<128x64xf32, #tpu.memory_space<vmem>>, vector<128x64xf32>
      %44 = arith.addf %42, %43 : vector<128x64xf32>
      %c0_33 = arith.constant 0 : index
      %c0_34 = arith.constant 0 : index
      %45 = vector.load %arg14[%c0_33, %c0_34] : memref<1x64xf32, #tpu.memory_space<vmem>>, vector<1x64xf32>
      %46 = vector.broadcast %45 : vector<1x64xf32> to vector<128x64xf32>
      %47 = arith.addf %44, %46 : vector<128x64xf32>
      %cst_35 = arith.constant 0.000000e+00 : f32
      %48 = vector.broadcast %cst_35 : f32 to vector<128x64xf32>
      %49 = arith.maximumf %47, %48 : vector<128x64xf32>
      %c0_36 = arith.constant 0 : index
      %c0_37 = arith.constant 0 : index
      %50 = vector.load %arg15[%c0_36, %c0_37] : memref<64x64xf32, #tpu.memory_space<vmem>>, vector<64x64xf32>
      %cst_38 = arith.constant dense<0.000000e+00> : vector<128x64xf32>
      %51 = tpu.matmul %49, %50, %cst_38 {dimension_numbers = #tpu.dot_dimension_numbers<[1], [0], [0], [1], [0, 0, 1, 1], [], []>} : vector<128x64xf32>, vector<64x64xf32>, vector<128x64xf32> -> vector<128x64xf32>
      %c0_39 = arith.constant 0 : index
      %c0_40 = arith.constant 0 : index
      %52 = vector.load %arg16[%c0_39, %c0_40] : memref<1x64xf32, #tpu.memory_space<vmem>>, vector<1x64xf32>
      %53 = vector.broadcast %52 : vector<1x64xf32> to vector<128x64xf32>
      %54 = arith.addf %51, %53 : vector<128x64xf32>
      %c0_41 = arith.constant 0 : index
      %c0_42 = arith.constant 0 : index
      %55 = vector.load %arg17[%c0_41, %c0_42] : memref<128x64xf32, #tpu.memory_space<vmem>>, vector<128x64xf32>
      tpu.vector_store %arg17[%c0_41, %c0_42], %54 {strides = array<i32>} : memref<128x64xf32, #tpu.memory_space<vmem>>, vector<128x64xf32>,
    } else {
    }
    return
  }
  func.func @transform_0(%arg0: i32) -> (i32, i32) {
    %c0_i32 = arith.constant 0 : i32
    %c0_i32_0 = arith.constant 0 : i32
    %c0_i32_1 = arith.constant 0 : i32
    return %c0_i32, %c0_i32_0 : i32, i32
  }
  func.func @transform_1(%arg0: i32) -> (i32, i32) {
    %c0_i32 = arith.constant 0 : i32
    %c0_i32_0 = arith.constant 0 : i32
    %c0_i32_1 = arith.constant 0 : i32
    return %c0_i32, %c0_i32_0 : i32, i32
  }
  func.func @transform_2(%arg0: i32) -> (i32, i32) {
    %c0_i32 = arith.constant 0 : i32
    %c0_i32_0 = arith.constant 0 : i32
    return %arg0, %c0_i32 : i32, i32
  }
  func.func @transform_3(%arg0: i32) -> (i32, i32) {
    %c0_i32 = arith.constant 0 : i32
    %c0_i32_0 = arith.constant 0 : i32
    return %arg0, %c0_i32 : i32, i32
  }
  func.func @transform_4(%arg0: i32) -> (i32, i32) {
    %c0_i32 = arith.constant 0 : i32
    %c0_i32_0 = arith.constant 0 : i32
    return %arg0, %c0_i32 : i32, i32
  }
  func.func @transform_5(%arg0: i32) -> (i32, i32) {
    %c0_i32 = arith.constant 0 : i32
    %c0_i32_0 = arith.constant 0 : i32
    %c0_i32_1 = arith.constant 0 : i32
    return %c0_i32, %c0_i32_0 : i32, i32
  }
  func.func @transform_6(%arg0: i32) -> (i32, i32) {
    %c0_i32 = arith.constant 0 : i32
    %c0_i32_0 = arith.constant 0 : i32
    %c0_i32_1 = arith.constant 0 : i32
    return %c0_i32, %c0_i32_0 : i32, i32
  }
  func.func @transform_7(%arg0: i32) -> (i32, i32) {
    %c0_i32 = arith.constant 0 : i32
    %c0_i32_0 = arith.constant 0 : i32
    %c0_i32_1 = arith.constant 0 : i32
    return %c0_i32, %c0_i32_0 : i32, i32
  }
  func.func @transform_8(%arg0: i32) -> (i32, i32) {
    %c0_i32 = arith.constant 0 : i32
    %c0_i32_0 = arith.constant 0 : i32
    %c0_i32_1 = arith.constant 0 : i32
    return %c0_i32, %c0_i32_0 : i32, i32
  }
  func.func @transform_9(%arg0: i32) -> (i32, i32) {
    %c0_i32 = arith.constant 0 : i32
    %c0_i32_0 = arith.constant 0 : i32
    %c0_i32_1 = arith.constant 0 : i32
    return %c0_i32, %c0_i32_0 : i32, i32
  }
  func.func @transform_10(%arg0: i32) -> (i32, i32) {
    %c0_i32 = arith.constant 0 : i32
    %c0_i32_0 = arith.constant 0 : i32
    %c0_i32_1 = arith.constant 0 : i32
    return %c0_i32, %c0_i32_0 : i32, i32
  }
  func.func @transform_11(%arg0: i32) -> (i32, i32) {
    %c0_i32 = arith.constant 0 : i32
    %c0_i32_0 = arith.constant 0 : i32
    %c0_i32_1 = arith.constant 0 : i32
    return %c0_i32, %c0_i32_0 : i32, i32
  }
  func.func @transform_12(%arg0: i32) -> (i32, i32) {
    %c0_i32 = arith.constant 0 : i32
    %c0_i32_0 = arith.constant 0 : i32
    %c0_i32_1 = arith.constant 0 : i32
    return %c0_i32, %c0_i32_0 : i32, i32
  }
  func.func @transform_13(%arg0: i32) -> (i32, i32) {
    %c0_i32 = arith.constant 0 : i32
    %c0_i32_0 = arith.constant 0 : i32
    %c0_i32_1 = arith.constant 0 : i32
    return %c0_i32, %c0_i32_0 : i32, i32
  }
  func.func @transform_14(%arg0: i32) -> (i32, i32) {
    %c0_i32 = arith.constant 0 : i32
    %c0_i32_0 = arith.constant 0 : i32
    %c0_i32_1 = arith.constant 0 : i32
    return %c0_i32, %c0_i32_0 : i32, i32
  }
  func.func @transform_15(%arg0: i32) -> (i32, i32) {
    %c0_i32 = arith.constant 0 : i32
    %c0_i32_0 = arith.constant 0 : i32
    %c0_i32_1 = arith.constant 0 : i32
    return %c0_i32, %c0_i32_0 : i32, i32
  }
  func.func @transform_16(%arg0: i32) -> (i32, i32) {
    %c0_i32 = arith.constant 0 : i32
    %c0_i32_0 = arith.constant 0 : i32
    %c0_i32_1 = arith.constant 0 : i32
    return %c0_i32, %c0_i32_0 : i32, i32
  }
}

module attributes {stable_mosaic.version = 11 : i64} {
  func.func @kernel(%arg0: i32, %arg1: memref<128x64xf32, #tpu.memory_space<vmem>>, %arg2: memref<128x64xf32, #tpu.memory_space<vmem>>, %arg3: memref<256x1xf32, #tpu.memory_space<vmem>>, %arg4: memref<256x1xi32, #tpu.memory_space<vmem>>, %arg5: memref<256x1xi32, #tpu.memory_space<vmem>>, %arg6: memref<64x64xf32, #tpu.memory_space<vmem>>, %arg7: memref<1x64xf32, #tpu.memory_space<vmem>>, %arg8: memref<1x64xf32, #tpu.memory_space<vmem>>, %arg9: memref<64x64xf32, #tpu.memory_space<vmem>>, %arg10: memref<64x64xf32, #tpu.memory_space<vmem>>, %arg11: memref<1x64xf32, #tpu.memory_space<vmem>>, %arg12: memref<64x64xf32, #tpu.memory_space<vmem>>, %arg13: memref<64x64xf32, #tpu.memory_space<vmem>>, %arg14: memref<1x64xf32, #tpu.memory_space<vmem>>, %arg15: memref<64x64xf32, #tpu.memory_space<vmem>>, %arg16: memref<1x64xf32, #tpu.memory_space<vmem>>, %arg17: memref<64x64xf32, #tpu.memory_space<vmem>>, %arg18: memref<1x64xf32, #tpu.memory_space<vmem>>, %arg19: memref<64x1xf32, #tpu.memory_space<vmem>>, %arg20: memref<128x1xf32, #tpu.memory_space<vmem>>, %arg21: memref<128x64xf32, #tpu.memory_space<vmem>>, %arg22: memref<128x64xf32, #tpu.memory_space<vmem>>, %arg23: memref<128x64xf32, #tpu.memory_space<vmem>>, %arg24: memref<128x64xf32, #tpu.memory_space<vmem>>) attributes {dimension_semantics = [#tpu.dimension_semantics<arbitrary>], iteration_bounds = array<i64: 1>, scalar_prefetch = 0 : i64, scratch_operands = 4 : i64, tpu.core_type = #tpu.core_type<tc>, window_params = [{pipeline_mode = #tpu.pipeline_mode<synchronous>, transform_indices = @transform_0, window_bounds = array<i64: 128, 64>}, {pipeline_mode = #tpu.pipeline_mode<synchronous>, transform_indices = @transform_1, window_bounds = array<i64: 128, 64>}, {transform_indices = @transform_2, window_bounds = array<i64: 256, 1>}, {transform_indices = @transform_3, window_bounds = array<i64: 256, 1>}, {transform_indices = @transform_4, window_bounds = array<i64: 256, 1>}, {pipeline_mode = #tpu.pipeline_mode<synchronous>, transform_indices = @transform_5, window_bounds = array<i64: 64, 64>}, {pipeline_mode = #tpu.pipeline_mode<synchronous>, transform_indices = @transform_6, window_bounds = array<i64: 1, 64>}, {pipeline_mode = #tpu.pipeline_mode<synchronous>, transform_indices = @transform_7, window_bounds = array<i64: 1, 64>}, {pipeline_mode = #tpu.pipeline_mode<synchronous>, transform_indices = @transform_8, window_bounds = array<i64: 64, 64>}, {pipeline_mode = #tpu.pipeline_mode<synchronous>, transform_indices = @transform_9, window_bounds = array<i64: 64, 64>}, {pipeline_mode = #tpu.pipeline_mode<synchronous>, transform_indices = @transform_10, window_bounds = array<i64: 1, 64>}, {pipeline_mode = #tpu.pipeline_mode<synchronous>, transform_indices = @transform_11, window_bounds = array<i64: 64, 64>}, {pipeline_mode = #tpu.pipeline_mode<synchronous>, transform_indices = @transform_12, window_bounds = array<i64: 64, 64>}, {pipeline_mode = #tpu.pipeline_mode<synchronous>, transform_indices = @transform_13, window_bounds = array<i64: 1, 64>}, {pipeline_mode = #tpu.pipeline_mode<synchronous>, transform_indices = @transform_14, window_bounds = array<i64: 64, 64>}, {pipeline_mode = #tpu.pipeline_mode<synchronous>, transform_indices = @transform_15, window_bounds = array<i64: 1, 64>}, {pipeline_mode = #tpu.pipeline_mode<synchronous>, transform_indices = @transform_16, window_bounds = array<i64: 64, 64>}, {pipeline_mode = #tpu.pipeline_mode<synchronous>, transform_indices = @transform_17, window_bounds = array<i64: 1, 64>}, {pipeline_mode = #tpu.pipeline_mode<synchronous>, transform_indices = @transform_18, window_bounds = array<i64: 64, 1>}, {pipeline_mode = #tpu.pipeline_mode<synchronous>, transform_indices = @transform_19, window_bounds = array<i64: 128, 1>}]} {
    %c0_i32 = arith.constant 0 : i32
    %0 = arith.cmpi eq, %arg0, %c0_i32 : i32
    %1 = arith.extui %0 : i1 to i32
    %c0_i32_0 = arith.constant 0 : i32
    %2 = arith.cmpi ne, %1, %c0_i32_0 : i32
    scf.if %2 {
      %c0_26 = arith.constant 0 : index
      %c0_27 = arith.constant 0 : index
      %40 = vector.load %arg2[%c0_26, %c0_27] : memref<128x64xf32, #tpu.memory_space<vmem>>, vector<128x64xf32>
      %c0_28 = arith.constant 0 : index
      %c0_29 = arith.constant 0 : index
      %41 = vector.load %arg6[%c0_28, %c0_29] : memref<64x64xf32, #tpu.memory_space<vmem>>, vector<64x64xf32>
      %cst_30 = arith.constant dense<0.000000e+00> : vector<128x64xf32>
      %42 = tpu.matmul %40, %41, %cst_30 {dimension_numbers = #tpu.dot_dimension_numbers<[1], [0], [0], [1], [0, 0, 1, 1], [], []>} : vector<128x64xf32>, vector<64x64xf32>, vector<128x64xf32> -> vector<128x64xf32>
      %c0_31 = arith.constant 0 : index
      %c0_32 = arith.constant 0 : index
      %43 = vector.load %arg7[%c0_31, %c0_32] : memref<1x64xf32, #tpu.memory_space<vmem>>, vector<1x64xf32>
      %44 = vector.broadcast %43 : vector<1x64xf32> to vector<128x64xf32>
      %45 = arith.addf %42, %44 : vector<128x64xf32>
      %c0_33 = arith.constant 0 : index
      %c0_34 = arith.constant 0 : index
      %46 = vector.load %arg21[%c0_33, %c0_34] : memref<128x64xf32, #tpu.memory_space<vmem>>, vector<128x64xf32>
      tpu.vector_store %arg21[%c0_33, %c0_34], %45 {strides = array<i32>} : memref<128x64xf32, #tpu.memory_space<vmem>>, vector<128x64xf32>,
      %c0_35 = arith.constant 0 : index
      %c0_36 = arith.constant 0 : index
      %47 = vector.load %arg2[%c0_35, %c0_36] : memref<128x64xf32, #tpu.memory_space<vmem>>, vector<128x64xf32>
      %c0_37 = arith.constant 0 : index
      %c0_38 = arith.constant 0 : index
      %48 = vector.load %arg13[%c0_37, %c0_38] : memref<64x64xf32, #tpu.memory_space<vmem>>, vector<64x64xf32>
      %cst_39 = arith.constant dense<0.000000e+00> : vector<128x64xf32>
      %49 = tpu.matmul %47, %48, %cst_39 {dimension_numbers = #tpu.dot_dimension_numbers<[1], [0], [0], [1], [0, 0, 1, 1], [], []>} : vector<128x64xf32>, vector<64x64xf32>, vector<128x64xf32> -> vector<128x64xf32>
      %c0_40 = arith.constant 0 : index
      %c0_41 = arith.constant 0 : index
      %50 = vector.load %arg22[%c0_40, %c0_41] : memref<128x64xf32, #tpu.memory_space<vmem>>, vector<128x64xf32>
      tpu.vector_store %arg22[%c0_40, %c0_41], %49 {strides = array<i32>} : memref<128x64xf32, #tpu.memory_space<vmem>>, vector<128x64xf32>,
      %c0_42 = arith.constant 0 : index
      %c0_43 = arith.constant 0 : index
      %51 = vector.load %arg1[%c0_42, %c0_43] : memref<128x64xf32, #tpu.memory_space<vmem>>, vector<128x64xf32>
      %c0_44 = arith.constant 0 : index
      %c0_45 = arith.constant 0 : index
      %52 = vector.load %arg9[%c0_44, %c0_45] : memref<64x64xf32, #tpu.memory_space<vmem>>, vector<64x64xf32>
      %cst_46 = arith.constant dense<0.000000e+00> : vector<128x64xf32>
      %53 = tpu.matmul %51, %52, %cst_46 {dimension_numbers = #tpu.dot_dimension_numbers<[1], [0], [0], [1], [0, 0, 1, 1], [], []>} : vector<128x64xf32>, vector<64x64xf32>, vector<128x64xf32> -> vector<128x64xf32>
      %c0_47 = arith.constant 0 : index
      %c0_48 = arith.constant 0 : index
      %54 = vector.load %arg23[%c0_47, %c0_48] : memref<128x64xf32, #tpu.memory_space<vmem>>, vector<128x64xf32>
      tpu.vector_store %arg23[%c0_47, %c0_48], %53 {strides = array<i32>} : memref<128x64xf32, #tpu.memory_space<vmem>>, vector<128x64xf32>,
      %cst_49 = arith.constant 0.000000e+00 : f32
      %55 = vector.broadcast %cst_49 : f32 to vector<128x64xf32>
      %c0_50 = arith.constant 0 : index
      %c0_51 = arith.constant 0 : index
      %56 = vector.load %arg24[%c0_50, %c0_51] : memref<128x64xf32, #tpu.memory_space<vmem>>, vector<128x64xf32>
      tpu.vector_store %arg24[%c0_50, %c0_51], %55 {strides = array<i32>} : memref<128x64xf32, #tpu.memory_space<vmem>>, vector<128x64xf32>,
    } else {
    }
    %c0 = arith.constant 0 : index
    %c0_1 = arith.constant 0 : index
    %3 = vector.load %arg5[%c0, %c0_1] : memref<256x1xi32, #tpu.memory_space<vmem>>, vector<256x1xi32>
    %c0_2 = arith.constant 0 : index
    %c0_3 = arith.constant 0 : index
    %4 = vector.load %arg4[%c0_2, %c0_3] : memref<256x1xi32, #tpu.memory_space<vmem>>, vector<256x1xi32>
    %5 = tpu.iota {dimensions = array<i32: 1>} : vector<256x128xi32>
    %6 = vector.broadcast %3 : vector<256x1xi32> to vector<256x128xi32>
    %7 = arith.cmpi eq, %6, %5 : vector<256x128xi32>
    %8 = arith.extui %7 : vector<256x128xi1> to vector<256x128xi32>
    %9 = arith.sitofp %8 : vector<256x128xi32> to vector<256x128xf32>
    %10 = tpu.iota {dimensions = array<i32: 1>} : vector<256x128xi32>
    %11 = vector.broadcast %4 : vector<256x1xi32> to vector<256x128xi32>
    %12 = arith.cmpi eq, %11, %10 : vector<256x128xi32>
    %13 = arith.extui %12 : vector<256x128xi1> to vector<256x128xi32>
    %14 = arith.sitofp %13 : vector<256x128xi32> to vector<256x128xf32>
    %c0_4 = arith.constant 0 : index
    %c0_5 = arith.constant 0 : index
    %15 = vector.load %arg21[%c0_4, %c0_5] : memref<128x64xf32, #tpu.memory_space<vmem>>, vector<128x64xf32>
    %cst = arith.constant dense<0.000000e+00> : vector<256x64xf32>
    %16 = tpu.matmul %9, %15, %cst {dimension_numbers = #tpu.dot_dimension_numbers<[1], [0], [0], [1], [0, 0, 1, 1], [], []>} : vector<256x128xf32>, vector<128x64xf32>, vector<256x64xf32> -> vector<256x64xf32>
    %c0_6 = arith.constant 0 : index
    %c0_7 = arith.constant 0 : index
    %17 = vector.load %arg23[%c0_6, %c0_7] : memref<128x64xf32, #tpu.memory_space<vmem>>, vector<128x64xf32>
    %cst_8 = arith.constant dense<0.000000e+00> : vector<256x64xf32>
    %18 = tpu.matmul %14, %17, %cst_8 {dimension_numbers = #tpu.dot_dimension_numbers<[1], [0], [0], [1], [0, 0, 1, 1], [], []>} : vector<256x128xf32>, vector<128x64xf32>, vector<256x64xf32> -> vector<256x64xf32>
    %c0_9 = arith.constant 0 : index
    %c0_10 = arith.constant 0 : index
    %19 = vector.load %arg3[%c0_9, %c0_10] : memref<256x1xf32, #tpu.memory_space<vmem>>, vector<256x1xf32>
    %c0_11 = arith.constant 0 : index
    %c0_12 = arith.constant 0 : index
    %20 = vector.load %arg8[%c0_11, %c0_12] : memref<1x64xf32, #tpu.memory_space<vmem>>, vector<1x64xf32>
    %21 = vector.broadcast %19 : vector<256x1xf32> to vector<256x64xf32>
    %22 = vector.broadcast %20 : vector<1x64xf32> to vector<256x64xf32>
    %23 = arith.mulf %21, %22 : vector<256x64xf32>
    %24 = arith.addf %16, %18 : vector<256x64xf32>
    %25 = arith.addf %24, %23 : vector<256x64xf32>
    %cst_13 = arith.constant 0.000000e+00 : f32
    %26 = vector.broadcast %cst_13 : f32 to vector<256x64xf32>
    %27 = arith.maximumf %25, %26 : vector<256x64xf32>
    %c0_14 = arith.constant 0 : index
    %c0_15 = arith.constant 0 : index
    %28 = vector.load %arg10[%c0_14, %c0_15] : memref<64x64xf32, #tpu.memory_space<vmem>>, vector<64x64xf32>
    %cst_16 = arith.constant dense<0.000000e+00> : vector<256x64xf32>
    %29 = tpu.matmul %27, %28, %cst_16 {dimension_numbers = #tpu.dot_dimension_numbers<[1], [0], [0], [1], [0, 0, 1, 1], [], []>} : vector<256x64xf32>, vector<64x64xf32>, vector<256x64xf32> -> vector<256x64xf32>
    %c0_17 = arith.constant 0 : index
    %c0_18 = arith.constant 0 : index
    %30 = vector.load %arg11[%c0_17, %c0_18] : memref<1x64xf32, #tpu.memory_space<vmem>>, vector<1x64xf32>
    %31 = vector.broadcast %30 : vector<1x64xf32> to vector<256x64xf32>
    %32 = arith.addf %29, %31 : vector<256x64xf32>
    %c0_19 = arith.constant 0 : index
    %c0_20 = arith.constant 0 : index
    %33 = vector.load %arg24[%c0_19, %c0_20] : memref<128x64xf32, #tpu.memory_space<vmem>>, vector<128x64xf32>
    %cst_21 = arith.constant dense<0.000000e+00> : vector<128x64xf32>
    %34 = tpu.matmul %9, %32, %cst_21 {dimension_numbers = #tpu.dot_dimension_numbers<[0], [0], [1], [1], [0, 1, 1, 1], [], []>} : vector<256x128xf32>, vector<256x64xf32>, vector<128x64xf32> -> vector<128x64xf32>
    %35 = arith.addf %33, %34 : vector<128x64xf32>
    %c0_22 = arith.constant 0 : index
    %c0_23 = arith.constant 0 : index
    %36 = vector.load %arg24[%c0_22, %c0_23] : memref<128x64xf32, #tpu.memory_space<vmem>>, vector<128x64xf32>
    tpu.vector_store %arg24[%c0_22, %c0_23], %35 {strides = array<i32>} : memref<128x64xf32, #tpu.memory_space<vmem>>, vector<128x64xf32>,
    %c0_i32_24 = arith.constant 0 : i32
    %37 = arith.cmpi eq, %arg0, %c0_i32_24 : i32
    %38 = arith.extui %37 : i1 to i32
    %c0_i32_25 = arith.constant 0 : i32
    %39 = arith.cmpi ne, %38, %c0_i32_25 : i32
    scf.if %39 {
      %c0_26 = arith.constant 0 : index
      %c0_27 = arith.constant 0 : index
      %40 = vector.load %arg24[%c0_26, %c0_27] : memref<128x64xf32, #tpu.memory_space<vmem>>, vector<128x64xf32>
      %c0_28 = arith.constant 0 : index
      %c0_29 = arith.constant 0 : index
      %41 = vector.load %arg12[%c0_28, %c0_29] : memref<64x64xf32, #tpu.memory_space<vmem>>, vector<64x64xf32>
      %cst_30 = arith.constant dense<0.000000e+00> : vector<128x64xf32>
      %42 = tpu.matmul %40, %41, %cst_30 {dimension_numbers = #tpu.dot_dimension_numbers<[1], [0], [0], [1], [0, 0, 1, 1], [], []>} : vector<128x64xf32>, vector<64x64xf32>, vector<128x64xf32> -> vector<128x64xf32>
      %c0_31 = arith.constant 0 : index
      %c0_32 = arith.constant 0 : index
      %43 = vector.load %arg22[%c0_31, %c0_32] : memref<128x64xf32, #tpu.memory_space<vmem>>, vector<128x64xf32>
      %44 = arith.addf %42, %43 : vector<128x64xf32>
      %c0_33 = arith.constant 0 : index
      %c0_34 = arith.constant 0 : index
      %45 = vector.load %arg14[%c0_33, %c0_34] : memref<1x64xf32, #tpu.memory_space<vmem>>, vector<1x64xf32>
      %46 = vector.broadcast %45 : vector<1x64xf32> to vector<128x64xf32>
      %47 = arith.addf %44, %46 : vector<128x64xf32>
      %cst_35 = arith.constant 0.000000e+00 : f32
      %48 = vector.broadcast %cst_35 : f32 to vector<128x64xf32>
      %49 = arith.maximumf %47, %48 : vector<128x64xf32>
      %c0_36 = arith.constant 0 : index
      %c0_37 = arith.constant 0 : index
      %50 = vector.load %arg15[%c0_36, %c0_37] : memref<64x64xf32, #tpu.memory_space<vmem>>, vector<64x64xf32>
      %cst_38 = arith.constant dense<0.000000e+00> : vector<128x64xf32>
      %51 = tpu.matmul %49, %50, %cst_38 {dimension_numbers = #tpu.dot_dimension_numbers<[1], [0], [0], [1], [0, 0, 1, 1], [], []>} : vector<128x64xf32>, vector<64x64xf32>, vector<128x64xf32> -> vector<128x64xf32>
      %c0_39 = arith.constant 0 : index
      %c0_40 = arith.constant 0 : index
      %52 = vector.load %arg16[%c0_39, %c0_40] : memref<1x64xf32, #tpu.memory_space<vmem>>, vector<1x64xf32>
      %53 = vector.broadcast %52 : vector<1x64xf32> to vector<128x64xf32>
      %54 = arith.addf %51, %53 : vector<128x64xf32>
      %c0_41 = arith.constant 0 : index
      %c0_42 = arith.constant 0 : index
      %55 = vector.load %arg17[%c0_41, %c0_42] : memref<64x64xf32, #tpu.memory_space<vmem>>, vector<64x64xf32>
      %cst_43 = arith.constant dense<0.000000e+00> : vector<128x64xf32>
      %56 = tpu.matmul %54, %55, %cst_43 {dimension_numbers = #tpu.dot_dimension_numbers<[1], [0], [0], [1], [0, 0, 1, 1], [], []>} : vector<128x64xf32>, vector<64x64xf32>, vector<128x64xf32> -> vector<128x64xf32>
      %c0_44 = arith.constant 0 : index
      %c0_45 = arith.constant 0 : index
      %57 = vector.load %arg18[%c0_44, %c0_45] : memref<1x64xf32, #tpu.memory_space<vmem>>, vector<1x64xf32>
      %58 = vector.broadcast %57 : vector<1x64xf32> to vector<128x64xf32>
      %59 = arith.addf %56, %58 : vector<128x64xf32>
      %cst_46 = arith.constant 0.000000e+00 : f32
      %60 = vector.broadcast %cst_46 : f32 to vector<128x64xf32>
      %61 = arith.maximumf %59, %60 : vector<128x64xf32>
      %c0_47 = arith.constant 0 : index
      %c0_48 = arith.constant 0 : index
      %62 = vector.load %arg19[%c0_47, %c0_48] : memref<64x1xf32, #tpu.memory_space<vmem>>, vector<64x1xf32>
      %cst_49 = arith.constant dense<0.000000e+00> : vector<128x1xf32>
      %63 = tpu.matmul %61, %62, %cst_49 {dimension_numbers = #tpu.dot_dimension_numbers<[1], [0], [0], [1], [0, 0, 1, 1], [], []>} : vector<128x64xf32>, vector<64x1xf32>, vector<128x1xf32> -> vector<128x1xf32>
      %c0_50 = arith.constant 0 : index
      %c0_51 = arith.constant 0 : index
      %64 = vector.load %arg20[%c0_50, %c0_51] : memref<128x1xf32, #tpu.memory_space<vmem>>, vector<128x1xf32>
      tpu.vector_store %arg20[%c0_50, %c0_51], %63 {strides = array<i32>} : memref<128x1xf32, #tpu.memory_space<vmem>>, vector<128x1xf32>,
    } else {
    }
    return
  }
  func.func @transform_0(%arg0: i32) -> (i32, i32) {
    %c0_i32 = arith.constant 0 : i32
    %c0_i32_0 = arith.constant 0 : i32
    %c0_i32_1 = arith.constant 0 : i32
    return %c0_i32, %c0_i32_0 : i32, i32
  }
  func.func @transform_1(%arg0: i32) -> (i32, i32) {
    %c0_i32 = arith.constant 0 : i32
    %c0_i32_0 = arith.constant 0 : i32
    %c0_i32_1 = arith.constant 0 : i32
    return %c0_i32, %c0_i32_0 : i32, i32
  }
  func.func @transform_2(%arg0: i32) -> (i32, i32) {
    %c0_i32 = arith.constant 0 : i32
    %c0_i32_0 = arith.constant 0 : i32
    return %arg0, %c0_i32 : i32, i32
  }
  func.func @transform_3(%arg0: i32) -> (i32, i32) {
    %c0_i32 = arith.constant 0 : i32
    %c0_i32_0 = arith.constant 0 : i32
    return %arg0, %c0_i32 : i32, i32
  }
  func.func @transform_4(%arg0: i32) -> (i32, i32) {
    %c0_i32 = arith.constant 0 : i32
    %c0_i32_0 = arith.constant 0 : i32
    return %arg0, %c0_i32 : i32, i32
  }
  func.func @transform_5(%arg0: i32) -> (i32, i32) {
    %c0_i32 = arith.constant 0 : i32
    %c0_i32_0 = arith.constant 0 : i32
    %c0_i32_1 = arith.constant 0 : i32
    return %c0_i32, %c0_i32_0 : i32, i32
  }
  func.func @transform_6(%arg0: i32) -> (i32, i32) {
    %c0_i32 = arith.constant 0 : i32
    %c0_i32_0 = arith.constant 0 : i32
    %c0_i32_1 = arith.constant 0 : i32
    return %c0_i32, %c0_i32_0 : i32, i32
  }
  func.func @transform_7(%arg0: i32) -> (i32, i32) {
    %c0_i32 = arith.constant 0 : i32
    %c0_i32_0 = arith.constant 0 : i32
    %c0_i32_1 = arith.constant 0 : i32
    return %c0_i32, %c0_i32_0 : i32, i32
  }
  func.func @transform_8(%arg0: i32) -> (i32, i32) {
    %c0_i32 = arith.constant 0 : i32
    %c0_i32_0 = arith.constant 0 : i32
    %c0_i32_1 = arith.constant 0 : i32
    return %c0_i32, %c0_i32_0 : i32, i32
  }
  func.func @transform_9(%arg0: i32) -> (i32, i32) {
    %c0_i32 = arith.constant 0 : i32
    %c0_i32_0 = arith.constant 0 : i32
    %c0_i32_1 = arith.constant 0 : i32
    return %c0_i32, %c0_i32_0 : i32, i32
  }
  func.func @transform_10(%arg0: i32) -> (i32, i32) {
    %c0_i32 = arith.constant 0 : i32
    %c0_i32_0 = arith.constant 0 : i32
    %c0_i32_1 = arith.constant 0 : i32
    return %c0_i32, %c0_i32_0 : i32, i32
  }
  func.func @transform_11(%arg0: i32) -> (i32, i32) {
    %c0_i32 = arith.constant 0 : i32
    %c0_i32_0 = arith.constant 0 : i32
    %c0_i32_1 = arith.constant 0 : i32
    return %c0_i32, %c0_i32_0 : i32, i32
  }
  func.func @transform_12(%arg0: i32) -> (i32, i32) {
    %c0_i32 = arith.constant 0 : i32
    %c0_i32_0 = arith.constant 0 : i32
    %c0_i32_1 = arith.constant 0 : i32
    return %c0_i32, %c0_i32_0 : i32, i32
  }
  func.func @transform_13(%arg0: i32) -> (i32, i32) {
    %c0_i32 = arith.constant 0 : i32
    %c0_i32_0 = arith.constant 0 : i32
    %c0_i32_1 = arith.constant 0 : i32
    return %c0_i32, %c0_i32_0 : i32, i32
  }
  func.func @transform_14(%arg0: i32) -> (i32, i32) {
    %c0_i32 = arith.constant 0 : i32
    %c0_i32_0 = arith.constant 0 : i32
    %c0_i32_1 = arith.constant 0 : i32
    return %c0_i32, %c0_i32_0 : i32, i32
  }
  func.func @transform_15(%arg0: i32) -> (i32, i32) {
    %c0_i32 = arith.constant 0 : i32
    %c0_i32_0 = arith.constant 0 : i32
    %c0_i32_1 = arith.constant 0 : i32
    return %c0_i32, %c0_i32_0 : i32, i32
  }
  func.func @transform_16(%arg0: i32) -> (i32, i32) {
    %c0_i32 = arith.constant 0 : i32
    %c0_i32_0 = arith.constant 0 : i32
    %c0_i32_1 = arith.constant 0 : i32
    return %c0_i32, %c0_i32_0 : i32, i32
  }
  func.func @transform_17(%arg0: i32) -> (i32, i32) {
    %c0_i32 = arith.constant 0 : i32
    %c0_i32_0 = arith.constant 0 : i32
    %c0_i32_1 = arith.constant 0 : i32
    return %c0_i32, %c0_i32_0 : i32, i32
  }
  func.func @transform_18(%arg0: i32) -> (i32, i32) {
    %c0_i32 = arith.constant 0 : i32
    %c0_i32_0 = arith.constant 0 : i32
    %c0_i32_1 = arith.constant 0 : i32
    return %c0_i32, %c0_i32_0 : i32, i32
  }
  func.func @transform_19(%arg0: i32) -> (i32, i32) {
    %c0_i32 = arith.constant 0 : i32
    %c0_i32_0 = arith.constant 0 : i32
    %c0_i32_1 = arith.constant 0 : i32
    return %c0_i32, %c0_i32_0 : i32, i32
  }
}

</mosaic_0001>

<llo_original>
// kernel: gnn_policy_forward.5
$region0: #{gnn_policy_forward.5}
  #allocation0 [shape = 'u32[]', space=smem, size = 0x4, offset = 0x4, fixed_abs, tag = 'smem constant byte address 0x4 - core index']
  #allocation1 [shape = 'u32[144,128]{1,0:T(1,128)}', space=vmem, size = 0x12000, scoped, tag = 'internal scratch']
  %s0 = inlined_call_operand.vmem [shape: f32[128,17], index: 0, kind: input, shape index: {}]
  %s1 = inlined_call_operand.vmem [shape: f32[17,64], index: 1, kind: input, shape index: {}]
  %s2 = inlined_call_operand.vmem [shape: f32[1,64], index: 2, kind: input, shape index: {}]
  %s3 = inlined_call_operand.vmem [shape: f32[64,64], index: 3, kind: input, shape index: {}]
  %s4 = inlined_call_operand.vmem [shape: f32[1,64], index: 4, kind: input, shape index: {}]
  %s5 = inlined_call_operand.vmem [shape: f32[128,64], index: 5, kind: output, shape index: {}]
  %s6 = sld [smem:[#allocation0]]
  $region30: #{gnn_policy_forward.5} parent=0
    _
  %s8 = ssub.s32 1, %s6
  %s9 = scalar_select 0, %s8, %s6
  // Predicated region
  $region2: #{gnn_policy_forward.5} parent=0 // pred_check
    _
  $region3: #{gnn_policy_forward.5} parent=0 // pred_check_branch
    %11 = sbr.rel (0) target = $region5
  $region4: #{gnn_policy_forward.5} parent=0 // pred_region
    _
  $region5: #{gnn_policy_forward.5} parent=0 // pred_fallthru
    _
  // Predicated region
  $region6: #{gnn_policy_forward.5} parent=0 // pred_check
    _
  $region7: #{gnn_policy_forward.5} parent=0 // pred_check_branch
    %13 = sbr.rel (0) target = $region9
  $region8: #{gnn_policy_forward.5} parent=0 // pred_region
    _
  $region9: #{gnn_policy_forward.5} parent=0 // pred_fallthru
    _
  // Predicated region
  $region10: #{gnn_policy_forward.5} parent=0 // pred_check
    _
  $region11: #{gnn_policy_forward.5} parent=0 // pred_check_branch
    %15 = sbr.rel (0) target = $region13
  $region12: #{gnn_policy_forward.5} parent=0 // pred_region
    _
  $region13: #{gnn_policy_forward.5} parent=0 // pred_fallthru
    _
  // Predicated region
  $region14: #{gnn_policy_forward.5} parent=0 // pred_check
    _
  $region15: #{gnn_policy_forward.5} parent=0 // pred_check_branch
    %17 = sbr.rel (0) target = $region17
  $region16: #{gnn_policy_forward.5} parent=0 // pred_region
    _
  $region17: #{gnn_policy_forward.5} parent=0 // pred_fallthru
    _
  // Predicated region
  $region18: #{gnn_policy_forward.5} parent=0 // pred_check
    _
  $region19: #{gnn_policy_forward.5} parent=0 // pred_check_branch
    %19 = sbr.rel (0) target = $region21
  $region20: #{gnn_policy_forward.5} parent=0 // pred_region
    _
  $region21: #{gnn_policy_forward.5} parent=0 // pred_fallthru
    _
  %v20 = vld [vmem:[%s0] sm:$0xff]
  %v21 = vld [vmem:[%s0 + $0x8] sm:$0xff]
  %v22 = vld [vmem:[%s0 + $0x10] sm:$0xff]
  %v23 = vld [vmem:[%s0 + $0x18] sm:$0xff]
  %v24 = vld [vmem:[%s0 + $0x20] sm:$0xff]
  %v25 = vld [vmem:[%s0 + $0x28] sm:$0xff]
  %v26 = vld [vmem:[%s0 + $0x30] sm:$0xff]
  %v27 = vld [vmem:[%s0 + $0x38] sm:$0xff]
  %v28 = vld [vmem:[%s0 + $0x40] sm:$0xff]
  %v29 = vld [vmem:[%s0 + $0x48] sm:$0xff]
  %v30 = vld [vmem:[%s0 + $0x50] sm:$0xff]
  %v31 = vld [vmem:[%s0 + $0x58] sm:$0xff]
  %v32 = vld [vmem:[%s0 + $0x60] sm:$0xff]
  %v33 = vld [vmem:[%s0 + $0x68] sm:$0xff]
  %v34 = vld [vmem:[%s0 + $0x70] sm:$0xff]
  %v35 = vld [vmem:[%s0 + $0x78] sm:$0xff]
  %v36 = vld [vmem:[%s1] sm:$0xff]
  %v37 = vld [vmem:[%s1 + $0x8] sm:$0xff]
  %v38 = vld [vmem:[%s1 + $0x10] sm:$0x1]
  %v39 = vld [vmem:[%s2] sm:$0x1]
  %v41 = vlaneseq
  %v42 = vshrl.u32 %v41, 7
  %v43 = vsub.s32 0, %v42
  %v44 = vrot.slane %v39, %v43
  %vm46 = vcmask 138240
  %v48 = vsel %vm46, %v20, 0
  %v51 = vsel %vm46, %v21, 0
  %v54 = vsel %vm46, %v22, 0
  %v57 = vsel %vm46, %v23, 0
  %v60 = vsel %vm46, %v24, 0
  %v63 = vsel %vm46, %v25, 0
  %v66 = vsel %vm46, %v26, 0
  %v69 = vsel %vm46, %v27, 0
  %v72 = vsel %vm46, %v28, 0
  %v75 = vsel %vm46, %v29, 0
  %v78 = vsel %vm46, %v30, 0
  %v81 = vsel %vm46, %v31, 0
  %v84 = vsel %vm46, %v32, 0
  %v87 = vsel %vm46, %v33, 0
  %v90 = vsel %vm46, %v34, 0
  %v93 = vsel %vm46, %v35, 0
  %vm95 = vcmask 1040384
  %v97 = vsel %vm95, %v38, 0
  %99 = vmatprep.subr.mxu0 0.0
  %100 = vmatpush1.msra.mxu0 %v36
  %101 = vmatprep.subr.mxu0 0.0
  %102 = vmatpush1.msra.mxu0 %v37
  %103 = vmatprep.subr.mxu0 0.0
  %104 = vmatpush1.msra.mxu0 %v97
  %105 = vmatprep.subr.mxu0 0.0
  %106 = vmatpush1.msra.mxu0 0.0
  %107 = vmatprep.subr.mxu0 0.0
  %108 = vmatpush1.msra.mxu0 0.0
  %109 = vmatprep.subr.mxu0 0.0
  %110 = vmatpush1.msra.mxu0 0.0
  %111 = vmatprep.subr.mxu0 0.0
  %112 = vmatpush1.msra.mxu0 0.0
  %113 = vmatprep.subr.mxu0 0.0
  %114 = vmatpush1.msra.mxu0 0.0
  %115 = vmatprep.subr.mxu0 0.0
  %116 = vmatpush1.msra.mxu0 0.0
  %117 = vmatprep.subr.mxu0 0.0
  %118 = vmatpush1.msra.mxu0 0.0
  %119 = vmatprep.subr.mxu0 0.0
  %120 = vmatpush1.msra.mxu0 0.0
  %121 = vmatprep.subr.mxu0 0.0
  %122 = vmatpush1.msra.mxu0 0.0
  %123 = vmatprep.subr.mxu0 0.0
  %124 = vmatpush1.msra.mxu0 0.0
  %125 = vmatprep.subr.mxu0 0.0
  %126 = vmatpush1.msra.mxu0 0.0
  %127 = vmatprep.subr.mxu0 0.0
  %128 = vmatpush1.msra.mxu0 0.0
  %129 = vmatprep.subr.mxu0 0.0
  %130 = vmatpush1.msra.mxu0 0.0
  %131 = vmatprep.subr.mxu0 0.0
  %132 = vmatpush1.msra.mxu0 0.0
  %133 = vmatprep.subr.mxu0 0.0
  %134 = vmatpush1.msra.mxu0 0.0
  %135 = vmatprep.subr.mxu0 0.0
  %136 = vmatpush1.msra.mxu0 0.0
  %137 = vmatprep.subr.mxu0 0.0
  %138 = vmatpush1.msra.mxu0 0.0
  %139 = vmatprep.subr.mxu0 0.0
  %140 = vmatpush1.msra.mxu0 0.0
  %141 = vmatprep.subr.mxu0 0.0
  %142 = vmatpush1.msra.mxu0 0.0
  %143 = vmatprep.subr.mxu0 0.0
  %144 = vmatpush1.msra.mxu0 0.0
  %145 = vmatprep.subr.mxu0 0.0
  %146 = vmatpush1.msra.mxu0 0.0
  %147 = vmatprep.subr.mxu0 0.0
  %148 = vmatpush1.msra.mxu0 0.0
  %149 = vmatprep.subr.mxu0 0.0
  %150 = vmatpush1.msra.mxu0 0.0
  %151 = vmatprep.subr.mxu0 0.0
  %152 = vmatpush1.msra.mxu0 0.0
  %153 = vmatprep.subr.mxu0 0.0
  %154 = vmatpush1.msra.mxu0 0.0
  %155 = vmatprep.subr.mxu0 0.0
  %156 = vmatpush1.msra.mxu0 0.0
  %157 = vmatprep.subr.mxu0 0.0
  %158 = vmatpush1.msra.mxu0 0.0
  %159 = vmatprep.subr.mxu0 0.0
  %160 = vmatpush1.msra.mxu0 0.0
  %161 = vmatprep.subr.mxu0 0.0
  %162 = vmatpush1.msra.mxu0 0.0
  %163 = vmatprep.mubr.f32.mxu0 0.0
  %164 = vmatmul.mubr.f32.gmra.mrb[0].mxu0 %v48
  %v165 = vpop.f32.mrb[0].mxu0
  %v166 = vadd.f32 %v44, %v165
  %v167 = vpop.f32.mrb[0].mxu0
  %168 = vmatprep.mubr.f32.mxu0 0.0
  %169 = vmatmul.mubr.f32.gmra.mrb[0].mxu0 %v51
  %v170 = vpop.f32.mrb[0].mxu0
  %v171 = vadd.f32 %v44, %v170
  %v172 = vpop.f32.mrb[0].mxu0
  %173 = vmatprep.mubr.f32.mxu0 0.0
  %174 = vmatmul.mubr.f32.gmra.mrb[0].mxu0 %v54
  %v175 = vpop.f32.mrb[0].mxu0
  %v176 = vadd.f32 %v44, %v175
  %v177 = vpop.f32.mrb[0].mxu0
  %178 = vmatprep.mubr.f32.mxu0 0.0
  %179 = vmatmul.mubr.f32.gmra.mrb[0].mxu0 %v57
  %v180 = vpop.f32.mrb[0].mxu0
  %v181 = vadd.f32 %v44, %v180
  %v182 = vpop.f32.mrb[0].mxu0
  %183 = vmatprep.mubr.f32.mxu0 0.0
  %184 = vmatmul.mubr.f32.gmra.mrb[0].mxu0 %v60
  %v185 = vpop.f32.mrb[0].mxu0
  %v186 = vadd.f32 %v44, %v185
  %v187 = vpop.f32.mrb[0].mxu0
  %188 = vmatprep.mubr.f32.mxu0 0.0
  %189 = vmatmul.mubr.f32.gmra.mrb[0].mxu0 %v63
  %v190 = vpop.f32.mrb[0].mxu0
  %v191 = vadd.f32 %v44, %v190
  %v192 = vpop.f32.mrb[0].mxu0
  %193 = vmatprep.mubr.f32.mxu0 0.0
  %194 = vmatmul.mubr.f32.gmra.mrb[0].mxu0 %v66
  %v195 = vpop.f32.mrb[0].mxu0
  %v196 = vadd.f32 %v44, %v195
  %v197 = vpop.f32.mrb[0].mxu0
  %198 = vmatprep.mubr.f32.mxu0 0.0
  %199 = vmatmul.mubr.f32.gmra.mrb[0].mxu0 %v69
  %v200 = vpop.f32.mrb[0].mxu0
  %v201 = vadd.f32 %v44, %v200
  %v202 = vpop.f32.mrb[0].mxu0
  %203 = vmatprep.mubr.f32.mxu0 0.0
  %204 = vmatmul.mubr.f32.gmra.mrb[0].mxu0 %v72
  %v205 = vpop.f32.mrb[0].mxu0
  %v206 = vadd.f32 %v44, %v205
  %v207 = vpop.f32.mrb[0].mxu0
  %208 = vmatprep.mubr.f32.mxu0 0.0
  %209 = vmatmul.mubr.f32.gmra.mrb[0].mxu0 %v75
  %v210 = vpop.f32.mrb[0].mxu0
  %v211 = vadd.f32 %v44, %v210
  %v212 = vpop.f32.mrb[0].mxu0
  %213 = vmatprep.mubr.f32.mxu0 0.0
  %214 = vmatmul.mubr.f32.gmra.mrb[0].mxu0 %v78
  %v215 = vpop.f32.mrb[0].mxu0
  %v216 = vadd.f32 %v44, %v215
  %v217 = vpop.f32.mrb[0].mxu0
  %218 = vmatprep.mubr.f32.mxu0 0.0
  %219 = vmatmul.mubr.f32.gmra.mrb[0].mxu0 %v81
  %v220 = vpop.f32.mrb[0].mxu0
  %v221 = vadd.f32 %v44, %v220
  %v222 = vpop.f32.mrb[0].mxu0
  %223 = vmatprep.mubr.f32.mxu0 0.0
  %224 = vmatmul.mubr.f32.gmra.mrb[0].mxu0 %v84
  %v225 = vpop.f32.mrb[0].mxu0
  %v226 = vadd.f32 %v44, %v225
  %v227 = vpop.f32.mrb[0].mxu0
  %228 = vmatprep.mubr.f32.mxu0 0.0
  %229 = vmatmul.mubr.f32.gmra.mrb[0].mxu0 %v87
  %v230 = vpop.f32.mrb[0].mxu0
  %v231 = vadd.f32 %v44, %v230
  %v232 = vpop.f32.mrb[0].mxu0
  %233 = vmatprep.mubr.f32.mxu0 0.0
  %234 = vmatmul.mubr.f32.gmra.mrb[0].mxu0 %v90
  %v235 = vpop.f32.mrb[0].mxu0
  %v236 = vadd.f32 %v44, %v235
  %v237 = vpop.f32.mrb[0].mxu0
  %238 = vmatprep.mubr.f32.mxu0 0.0
  %239 = vmatmul.mubr.f32.gmra.mrb[0].mxu0 %v93
  %v240 = vpop.f32.mrb[0].mxu0
  %v241 = vadd.f32 %v44, %v240
  %v242 = vpop.f32.mrb[0].mxu0
  %243 = vdwg.mxu0
  %v244 = vmax.f32 %v166, 0.0
  %v245 = vmax.f32 %v171, 0.0
  %v246 = vmax.f32 %v176, 0.0
  %v247 = vmax.f32 %v181, 0.0
  %v248 = vmax.f32 %v186, 0.0
  %v249 = vmax.f32 %v191, 0.0
  %v250 = vmax.f32 %v196, 0.0
  %v251 = vmax.f32 %v201, 0.0
  %v252 = vmax.f32 %v206, 0.0
  %v253 = vmax.f32 %v211, 0.0
  %v254 = vmax.f32 %v216, 0.0
  %v255 = vmax.f32 %v221, 0.0
  %v256 = vmax.f32 %v226, 0.0
  %v257 = vmax.f32 %v231, 0.0
  %v258 = vmax.f32 %v236, 0.0
  %v259 = vmax.f32 %v241, 0.0
  %v260 = vld [vmem:[%s3] sm:$0xff]
  %v261 = vld [vmem:[%s3 + $0x8] sm:$0xff]
  %v262 = vld [vmem:[%s3 + $0x10] sm:$0xff]
  %v263 = vld [vmem:[%s3 + $0x18] sm:$0xff]
  %v264 = vld [vmem:[%s3 + $0x20] sm:$0xff]
  %v265 = vld [vmem:[%s3 + $0x28] sm:$0xff]
  %v266 = vld [vmem:[%s3 + $0x30] sm:$0xff]
  %v267 = vld [vmem:[%s3 + $0x38] sm:$0xff]
  %v268 = vld [vmem:[%s4] sm:$0x1]
  %v270 = vlaneseq
  %v271 = vshrl.u32 %v270, 7
  %v272 = vsub.s32 0, %v271
  %v273 = vrot.slane %v268, %v272
  %vm275 = vcmask 523264
  %v277 = vsel %vm275, %v244, 0
  %v280 = vsel %vm275, %v245, 0
  %v283 = vsel %vm275, %v246, 0
  %v286 = vsel %vm275, %v247, 0
  %v289 = vsel %vm275, %v248, 0
  %v292 = vsel %vm275, %v249, 0
  %v295 = vsel %vm275, %v250, 0
  %v298 = vsel %vm275, %v251, 0
  %v301 = vsel %vm275, %v252, 0
  %v304 = vsel %vm275, %v253, 0
  %v307 = vsel %vm275, %v254, 0
  %v310 = vsel %vm275, %v255, 0
  %v313 = vsel %vm275, %v256, 0
  %v316 = vsel %vm275, %v257, 0
  %v319 = vsel %vm275, %v258, 0
  %v322 = vsel %vm275, %v259, 0
  %324 = vmatprep.subr.mxu0 0.0
  %325 = vmatpush1.msra.mxu0 %v260
  %326 = vmatprep.subr.mxu0 0.0
  %327 = vmatpush1.msra.mxu0 %v261
  %328 = vmatprep.subr.mxu0 0.0
  %329 = vmatpush1.msra.mxu0 %v262
  %330 = vmatprep.subr.mxu0 0.0
  %331 = vmatpush1.msra.mxu0 %v263
  %332 = vmatprep.subr.mxu0 0.0
  %333 = vmatpush1.msra.mxu0 %v264
  %334 = vmatprep.subr.mxu0 0.0
  %335 = vmatpush1.msra.mxu0 %v265
  %336 = vmatprep.subr.mxu0 0.0
  %337 = vmatpush1.msra.mxu0 %v266
  %338 = vmatprep.subr.mxu0 0.0
  %339 = vmatpush1.msra.mxu0 %v267
  %340 = vmatprep.subr.mxu0 0.0
  %341 = vmatpush1.msra.mxu0 0.0
  %342 = vmatprep.subr.mxu0 0.0
  %343 = vmatpush1.msra.mxu0 0.0
  %344 = vmatprep.subr.mxu0 0.0
  %345 = vmatpush1.msra.mxu0 0.0
  %346 = vmatprep.subr.mxu0 0.0
  %347 = vmatpush1.msra.mxu0 0.0
  %348 = vmatprep.subr.mxu0 0.0
  %349 = vmatpush1.msra.mxu0 0.0
  %350 = vmatprep.subr.mxu0 0.0
  %351 = vmatpush1.msra.mxu0 0.0
  %352 = vmatprep.subr.mxu0 0.0
  %353 = vmatpush1.msra.mxu0 0.0
  %354 = vmatprep.subr.mxu0 0.0
  %355 = vmatpush1.msra.mxu0 0.0
  %356 = vmatprep.subr.mxu0 0.0
  %357 = vmatpush1.msra.mxu0 0.0
  %358 = vmatprep.subr.mxu0 0.0
  %359 = vmatpush1.msra.mxu0 0.0
  %360 = vmatprep.subr.mxu0 0.0
  %361 = vmatpush1.msra.mxu0 0.0
  %362 = vmatprep.subr.mxu0 0.0
  %363 = vmatpush1.msra.mxu0 0.0
  %364 = vmatprep.subr.mxu0 0.0
  %365 = vmatpush1.msra.mxu0 0.0
  %366 = vmatprep.subr.mxu0 0.0
  %367 = vmatpush1.msra.mxu0 0.0
  %368 = vmatprep.subr.mxu0 0.0
  %369 = vmatpush1.msra.mxu0 0.0
  %370 = vmatprep.subr.mxu0 0.0
  %371 = vmatpush1.msra.mxu0 0.0
  %372 = vmatprep.subr.mxu0 0.0
  %373 = vmatpush1.msra.mxu0 0.0
  %374 = vmatprep.subr.mxu0 0.0
  %375 = vmatpush1.msra.mxu0 0.0
  %376 = vmatprep.subr.mxu0 0.0
  %377 = vmatpush1.msra.mxu0 0.0
  %378 = vmatprep.subr.mxu0 0.0
  %379 = vmatpush1.msra.mxu0 0.0
  %380 = vmatprep.subr.mxu0 0.0
  %381 = vmatpush1.msra.mxu0 0.0
  %382 = vmatprep.subr.mxu0 0.0
  %383 = vmatpush1.msra.mxu0 0.0
  %384 = vmatprep.subr.mxu0 0.0
  %385 = vmatpush1.msra.mxu0 0.0
  %386 = vmatprep.subr.mxu0 0.0
  %387 = vmatpush1.msra.mxu0 0.0
  %388 = vmatprep.mubr.f32.mxu0 0.0
  %389 = vmatmul.mubr.f32.gmra.mrb[0].mxu0 %v277
  %v390 = vpop.f32.mrb[0].mxu0
  %v391 = vadd.f32 %v273, %v390
  %v392 = vpop.f32.mrb[0].mxu0
  %393 = vmatprep.mubr.f32.mxu0 0.0
  %394 = vmatmul.mubr.f32.gmra.mrb[0].mxu0 %v280
  %v395 = vpop.f32.mrb[0].mxu0
  %v396 = vadd.f32 %v273, %v395
  %v397 = vpop.f32.mrb[0].mxu0
  %398 = vmatprep.mubr.f32.mxu0 0.0
  %399 = vmatmul.mubr.f32.gmra.mrb[0].mxu0 %v283
  %v400 = vpop.f32.mrb[0].mxu0
  %v401 = vadd.f32 %v273, %v400
  %v402 = vpop.f32.mrb[0].mxu0
  %403 = vmatprep.mubr.f32.mxu0 0.0
  %404 = vmatmul.mubr.f32.gmra.mrb[0].mxu0 %v286
  %v405 = vpop.f32.mrb[0].mxu0
  %v406 = vadd.f32 %v273, %v405
  %v407 = vpop.f32.mrb[0].mxu0
  %408 = vmatprep.mubr.f32.mxu0 0.0
  %409 = vmatmul.mubr.f32.gmra.mrb[0].mxu0 %v289
  %v410 = vpop.f32.mrb[0].mxu0
  %v411 = vadd.f32 %v273, %v410
  %v412 = vpop.f32.mrb[0].mxu0
  %413 = vmatprep.mubr.f32.mxu0 0.0
  %414 = vmatmul.mubr.f32.gmra.mrb[0].mxu0 %v292
  %v415 = vpop.f32.mrb[0].mxu0
  %v416 = vadd.f32 %v273, %v415
  %v417 = vpop.f32.mrb[0].mxu0
  %418 = vmatprep.mubr.f32.mxu0 0.0
  %419 = vmatmul.mubr.f32.gmra.mrb[0].mxu0 %v295
  %v420 = vpop.f32.mrb[0].mxu0
  %v421 = vadd.f32 %v273, %v420
  %v422 = vpop.f32.mrb[0].mxu0
  %423 = vmatprep.mubr.f32.mxu0 0.0
  %424 = vmatmul.mubr.f32.gmra.mrb[0].mxu0 %v298
  %v425 = vpop.f32.mrb[0].mxu0
  %v426 = vadd.f32 %v273, %v425
  %v427 = vpop.f32.mrb[0].mxu0
  %428 = vmatprep.mubr.f32.mxu0 0.0
  %429 = vmatmul.mubr.f32.gmra.mrb[0].mxu0 %v301
  %v430 = vpop.f32.mrb[0].mxu0
  %v431 = vadd.f32 %v273, %v430
  %v432 = vpop.f32.mrb[0].mxu0
  %433 = vmatprep.mubr.f32.mxu0 0.0
  %434 = vmatmul.mubr.f32.gmra.mrb[0].mxu0 %v304
  %v435 = vpop.f32.mrb[0].mxu0
  %v436 = vadd.f32 %v273, %v435
  %v437 = vpop.f32.mrb[0].mxu0
  %438 = vmatprep.mubr.f32.mxu0 0.0
  %439 = vmatmul.mubr.f32.gmra.mrb[0].mxu0 %v307
  %v440 = vpop.f32.mrb[0].mxu0
  %v441 = vadd.f32 %v273, %v440
  %v442 = vpop.f32.mrb[0].mxu0
  %443 = vmatprep.mubr.f32.mxu0 0.0
  %444 = vmatmul.mubr.f32.gmra.mrb[0].mxu0 %v310
  %v445 = vpop.f32.mrb[0].mxu0
  %v446 = vadd.f32 %v273, %v445
  %v447 = vpop.f32.mrb[0].mxu0
  %448 = vmatprep.mubr.f32.mxu0 0.0
  %449 = vmatmul.mubr.f32.gmra.mrb[0].mxu0 %v313
  %v450 = vpop.f32.mrb[0].mxu0
  %v451 = vadd.f32 %v273, %v450
  %v452 = vpop.f32.mrb[0].mxu0
  %453 = vmatprep.mubr.f32.mxu0 0.0
  %454 = vmatmul.mubr.f32.gmra.mrb[0].mxu0 %v316
  %v455 = vpop.f32.mrb[0].mxu0
  %v456 = vadd.f32 %v273, %v455
  %v457 = vpop.f32.mrb[0].mxu0
  %458 = vmatprep.mubr.f32.mxu0 0.0
  %459 = vmatmul.mubr.f32.gmra.mrb[0].mxu0 %v319
  %v460 = vpop.f32.mrb[0].mxu0
  %v461 = vadd.f32 %v273, %v460
  %v462 = vpop.f32.mrb[0].mxu0
  %463 = vmatprep.mubr.f32.mxu0 0.0
  %464 = vmatmul.mubr.f32.gmra.mrb[0].mxu0 %v322
  %v465 = vpop.f32.mrb[0].mxu0
  %v466 = vadd.f32 %v273, %v465
  %v467 = vpop.f32.mrb[0].mxu0
  %468 = vdwg.mxu0
  %v469 = vmax.f32 %v391, 0.0
  %v470 = vmax.f32 %v396, 0.0
  %v471 = vmax.f32 %v401, 0.0
  %v472 = vmax.f32 %v406, 0.0
  %v473 = vmax.f32 %v411, 0.0
  %v474 = vmax.f32 %v416, 0.0
  %v475 = vmax.f32 %v421, 0.0
  %v476 = vmax.f32 %v426, 0.0
  %v477 = vmax.f32 %v431, 0.0
  %v478 = vmax.f32 %v436, 0.0
  %v479 = vmax.f32 %v441, 0.0
  %v480 = vmax.f32 %v446, 0.0
  %v481 = vmax.f32 %v451, 0.0
  %v482 = vmax.f32 %v456, 0.0
  %v483 = vmax.f32 %v461, 0.0
  %v484 = vmax.f32 %v466, 0.0
  %485 = vst.msk [vmem:[%s5] sm:$0xff] %vm275, %v469
  %486 = vst.msk [vmem:[%s5 + $0x8] sm:$0xff] %vm275, %v470
  %487 = vst.msk [vmem:[%s5 + $0x10] sm:$0xff] %vm275, %v471
  %488 = vst.msk [vmem:[%s5 + $0x18] sm:$0xff] %vm275, %v472
  %489 = vst.msk [vmem:[%s5 + $0x20] sm:$0xff] %vm275, %v473
  %490 = vst.msk [vmem:[%s5 + $0x28] sm:$0xff] %vm275, %v474
  %491 = vst.msk [vmem:[%s5 + $0x30] sm:$0xff] %vm275, %v475
  %492 = vst.msk [vmem:[%s5 + $0x38] sm:$0xff] %vm275, %v476
  %493 = vst.msk [vmem:[%s5 + $0x40] sm:$0xff] %vm275, %v477
  %494 = vst.msk [vmem:[%s5 + $0x48] sm:$0xff] %vm275, %v478
  %495 = vst.msk [vmem:[%s5 + $0x50] sm:$0xff] %vm275, %v479
  %496 = vst.msk [vmem:[%s5 + $0x58] sm:$0xff] %vm275, %v480
  %497 = vst.msk [vmem:[%s5 + $0x60] sm:$0xff] %vm275, %v481
  %498 = vst.msk [vmem:[%s5 + $0x68] sm:$0xff] %vm275, %v482
  %499 = vst.msk [vmem:[%s5 + $0x70] sm:$0xff] %vm275, %v483
  %500 = vst.msk [vmem:[%s5 + $0x78] sm:$0xff] %vm275, %v484
  // Predicated region
  $region22: #{gnn_policy_forward.5} parent=0 // pred_check
    _
  $region23: #{gnn_policy_forward.5} parent=0 // pred_check_branch
    %502 = sbr.rel (0) target = $region25
  $region24: #{gnn_policy_forward.5} parent=0 // pred_region
    _
  $region25: #{gnn_policy_forward.5} parent=0 // pred_fallthru
    _
  // Predicated region
  $region26: #{gnn_policy_forward.5} parent=0 // pred_check
    _
  $region27: #{gnn_policy_forward.5} parent=0 // pred_check_branch
    %504 = sbr.rel (0) target = $region29
  $region28: #{gnn_policy_forward.5} parent=0 // pred_region
    _
  $region29: #{gnn_policy_forward.5} parent=0 // pred_fallthru
    _

// kernel: gnn_policy_forward.4
$region0: #{gnn_policy_forward.4}
  #allocation0 [shape = 'u32[]', space=smem, size = 0x4, offset = 0x4, fixed_abs, tag = 'smem constant byte address 0x4 - core index']
  #allocation1 [shape = 'u32[144,128]{1,0:T(1,128)}', space=vmem, size = 0x12000, scoped, tag = 'internal scratch']
  %s0 = inlined_call_operand.vmem [shape: f32[128,5], index: 0, kind: input, shape index: {}]
  %s1 = inlined_call_operand.vmem [shape: f32[5,64], index: 1, kind: input, shape index: {}]
  %s2 = inlined_call_operand.vmem [shape: f32[1,64], index: 2, kind: input, shape index: {}]
  %s3 = inlined_call_operand.vmem [shape: f32[64,64], index: 3, kind: input, shape index: {}]
  %s4 = inlined_call_operand.vmem [shape: f32[1,64], index: 4, kind: input, shape index: {}]
  %s5 = inlined_call_operand.vmem [shape: f32[128,64], index: 5, kind: output, shape index: {}]
  %s6 = sld [smem:[#allocation0]]
  $region30: #{gnn_policy_forward.4} parent=0
    _
  %s8 = ssub.s32 1, %s6
  %s9 = scalar_select 0, %s8, %s6
  // Predicated region
  $region2: #{gnn_policy_forward.4} parent=0 // pred_check
    _
  $region3: #{gnn_policy_forward.4} parent=0 // pred_check_branch
    %11 = sbr.rel (0) target = $region5
  $region4: #{gnn_policy_forward.4} parent=0 // pred_region
    _
  $region5: #{gnn_policy_forward.4} parent=0 // pred_fallthru
    _
  // Predicated region
  $region6: #{gnn_policy_forward.4} parent=0 // pred_check
    _
  $region7: #{gnn_policy_forward.4} parent=0 // pred_check_branch
    %13 = sbr.rel (0) target = $region9
  $region8: #{gnn_policy_forward.4} parent=0 // pred_region
    _
  $region9: #{gnn_policy_forward.4} parent=0 // pred_fallthru
    _
  // Predicated region
  $region10: #{gnn_policy_forward.4} parent=0 // pred_check
    _
  $region11: #{gnn_policy_forward.4} parent=0 // pred_check_branch
    %15 = sbr.rel (0) target = $region13
  $region12: #{gnn_policy_forward.4} parent=0 // pred_region
    _
  $region13: #{gnn_policy_forward.4} parent=0 // pred_fallthru
    _
  // Predicated region
  $region14: #{gnn_policy_forward.4} parent=0 // pred_check
    _
  $region15: #{gnn_policy_forward.4} parent=0 // pred_check_branch
    %17 = sbr.rel (0) target = $region17
  $region16: #{gnn_policy_forward.4} parent=0 // pred_region
    _
  $region17: #{gnn_policy_forward.4} parent=0 // pred_fallthru
    _
  // Predicated region
  $region18: #{gnn_policy_forward.4} parent=0 // pred_check
    _
  $region19: #{gnn_policy_forward.4} parent=0 // pred_check_branch
    %19 = sbr.rel (0) target = $region21
  $region20: #{gnn_policy_forward.4} parent=0 // pred_region
    _
  $region21: #{gnn_policy_forward.4} parent=0 // pred_fallthru
    _
  %v20 = vld [vmem:[%s0] sm:$0xff]
  %v21 = vld [vmem:[%s0 + $0x8] sm:$0xff]
  %v22 = vld [vmem:[%s0 + $0x10] sm:$0xff]
  %v23 = vld [vmem:[%s0 + $0x18] sm:$0xff]
  %v24 = vld [vmem:[%s0 + $0x20] sm:$0xff]
  %v25 = vld [vmem:[%s0 + $0x28] sm:$0xff]
  %v26 = vld [vmem:[%s0 + $0x30] sm:$0xff]
  %v27 = vld [vmem:[%s0 + $0x38] sm:$0xff]
  %v28 = vld [vmem:[%s0 + $0x40] sm:$0xff]
  %v29 = vld [vmem:[%s0 + $0x48] sm:$0xff]
  %v30 = vld [vmem:[%s0 + $0x50] sm:$0xff]
  %v31 = vld [vmem:[%s0 + $0x58] sm:$0xff]
  %v32 = vld [vmem:[%s0 + $0x60] sm:$0xff]
  %v33 = vld [vmem:[%s0 + $0x68] sm:$0xff]
  %v34 = vld [vmem:[%s0 + $0x70] sm:$0xff]
  %v35 = vld [vmem:[%s0 + $0x78] sm:$0xff]
  %v36 = vld [vmem:[%s1] sm:$0x1f]
  %v37 = vld [vmem:[%s2] sm:$0x1]
  %v39 = vlaneseq
  %v40 = vshrl.u32 %v39, 7
  %v41 = vsub.s32 0, %v40
  %v42 = vrot.slane %v37, %v41
  %vm44 = vcmask 39936
  %v46 = vsel %vm44, %v20, 0
  %v49 = vsel %vm44, %v21, 0
  %v52 = vsel %vm44, %v22, 0
  %v55 = vsel %vm44, %v23, 0
  %v58 = vsel %vm44, %v24, 0
  %v61 = vsel %vm44, %v25, 0
  %v64 = vsel %vm44, %v26, 0
  %v67 = vsel %vm44, %v27, 0
  %v70 = vsel %vm44, %v28, 0
  %v73 = vsel %vm44, %v29, 0
  %v76 = vsel %vm44, %v30, 0
  %v79 = vsel %vm44, %v31, 0
  %v82 = vsel %vm44, %v32, 0
  %v85 = vsel %vm44, %v33, 0
  %v88 = vsel %vm44, %v34, 0
  %v91 = vsel %vm44, %v35, 0
  %vm93 = vcmask 1044480
  %v95 = vsel %vm93, %v36, 0
  %97 = vmatprep.subr.mxu0 0.0
  %98 = vmatpush1.msra.mxu0 %v95
  %99 = vmatprep.subr.mxu0 0.0
  %100 = vmatpush1.msra.mxu0 0.0
  %101 = vmatprep.subr.mxu0 0.0
  %102 = vmatpush1.msra.mxu0 0.0
  %103 = vmatprep.subr.mxu0 0.0
  %104 = vmatpush1.msra.mxu0 0.0
  %105 = vmatprep.subr.mxu0 0.0
  %106 = vmatpush1.msra.mxu0 0.0
  %107 = vmatprep.subr.mxu0 0.0
  %108 = vmatpush1.msra.mxu0 0.0
  %109 = vmatprep.subr.mxu0 0.0
  %110 = vmatpush1.msra.mxu0 0.0
  %111 = vmatprep.subr.mxu0 0.0
  %112 = vmatpush1.msra.mxu0 0.0
  %113 = vmatprep.subr.mxu0 0.0
  %114 = vmatpush1.msra.mxu0 0.0
  %115 = vmatprep.subr.mxu0 0.0
  %116 = vmatpush1.msra.mxu0 0.0
  %117 = vmatprep.subr.mxu0 0.0
  %118 = vmatpush1.msra.mxu0 0.0
  %119 = vmatprep.subr.mxu0 0.0
  %120 = vmatpush1.msra.mxu0 0.0
  %121 = vmatprep.subr.mxu0 0.0
  %122 = vmatpush1.msra.mxu0 0.0
  %123 = vmatprep.subr.mxu0 0.0
  %124 = vmatpush1.msra.mxu0 0.0
  %125 = vmatprep.subr.mxu0 0.0
  %126 = vmatpush1.msra.mxu0 0.0
  %127 = vmatprep.subr.mxu0 0.0
  %128 = vmatpush1.msra.mxu0 0.0
  %129 = vmatprep.subr.mxu0 0.0
  %130 = vmatpush1.msra.mxu0 0.0
  %131 = vmatprep.subr.mxu0 0.0
  %132 = vmatpush1.msra.mxu0 0.0
  %133 = vmatprep.subr.mxu0 0.0
  %134 = vmatpush1.msra.mxu0 0.0
  %135 = vmatprep.subr.mxu0 0.0
  %136 = vmatpush1.msra.mxu0 0.0
  %137 = vmatprep.subr.mxu0 0.0
  %138 = vmatpush1.msra.mxu0 0.0
  %139 = vmatprep.subr.mxu0 0.0
  %140 = vmatpush1.msra.mxu0 0.0
  %141 = vmatprep.subr.mxu0 0.0
  %142 = vmatpush1.msra.mxu0 0.0
  %143 = vmatprep.subr.mxu0 0.0
  %144 = vmatpush1.msra.mxu0 0.0
  %145 = vmatprep.subr.mxu0 0.0
  %146 = vmatpush1.msra.mxu0 0.0
  %147 = vmatprep.subr.mxu0 0.0
  %148 = vmatpush1.msra.mxu0 0.0
  %149 = vmatprep.subr.mxu0 0.0
  %150 = vmatpush1.msra.mxu0 0.0
  %151 = vmatprep.subr.mxu0 0.0
  %152 = vmatpush1.msra.mxu0 0.0
  %153 = vmatprep.subr.mxu0 0.0
  %154 = vmatpush1.msra.mxu0 0.0
  %155 = vmatprep.subr.mxu0 0.0
  %156 = vmatpush1.msra.mxu0 0.0
  %157 = vmatprep.subr.mxu0 0.0
  %158 = vmatpush1.msra.mxu0 0.0
  %159 = vmatprep.subr.mxu0 0.0
  %160 = vmatpush1.msra.mxu0 0.0
  %161 = vmatprep.mubr.f32.mxu0 0.0
  %162 = vmatmul.mubr.f32.gmra.mrb[0].mxu0 %v46
  %v163 = vpop.f32.mrb[0].mxu0
  %v164 = vadd.f32 %v42, %v163
  %v165 = vpop.f32.mrb[0].mxu0
  %166 = vmatprep.mubr.f32.mxu0 0.0
  %167 = vmatmul.mubr.f32.gmra.mrb[0].mxu0 %v49
  %v168 = vpop.f32.mrb[0].mxu0
  %v169 = vadd.f32 %v42, %v168
  %v170 = vpop.f32.mrb[0].mxu0
  %171 = vmatprep.mubr.f32.mxu0 0.0
  %172 = vmatmul.mubr.f32.gmra.mrb[0].mxu0 %v52
  %v173 = vpop.f32.mrb[0].mxu0
  %v174 = vadd.f32 %v42, %v173
  %v175 = vpop.f32.mrb[0].mxu0
  %176 = vmatprep.mubr.f32.mxu0 0.0
  %177 = vmatmul.mubr.f32.gmra.mrb[0].mxu0 %v55
  %v178 = vpop.f32.mrb[0].mxu0
  %v179 = vadd.f32 %v42, %v178
  %v180 = vpop.f32.mrb[0].mxu0
  %181 = vmatprep.mubr.f32.mxu0 0.0
  %182 = vmatmul.mubr.f32.gmra.mrb[0].mxu0 %v58
  %v183 = vpop.f32.mrb[0].mxu0
  %v184 = vadd.f32 %v42, %v183
  %v185 = vpop.f32.mrb[0].mxu0
  %186 = vmatprep.mubr.f32.mxu0 0.0
  %187 = vmatmul.mubr.f32.gmra.mrb[0].mxu0 %v61
  %v188 = vpop.f32.mrb[0].mxu0
  %v189 = vadd.f32 %v42, %v188
  %v190 = vpop.f32.mrb[0].mxu0
  %191 = vmatprep.mubr.f32.mxu0 0.0
  %192 = vmatmul.mubr.f32.gmra.mrb[0].mxu0 %v64
  %v193 = vpop.f32.mrb[0].mxu0
  %v194 = vadd.f32 %v42, %v193
  %v195 = vpop.f32.mrb[0].mxu0
  %196 = vmatprep.mubr.f32.mxu0 0.0
  %197 = vmatmul.mubr.f32.gmra.mrb[0].mxu0 %v67
  %v198 = vpop.f32.mrb[0].mxu0
  %v199 = vadd.f32 %v42, %v198
  %v200 = vpop.f32.mrb[0].mxu0
  %201 = vmatprep.mubr.f32.mxu0 0.0
  %202 = vmatmul.mubr.f32.gmra.mrb[0].mxu0 %v70
  %v203 = vpop.f32.mrb[0].mxu0
  %v204 = vadd.f32 %v42, %v203
  %v205 = vpop.f32.mrb[0].mxu0
  %206 = vmatprep.mubr.f32.mxu0 0.0
  %207 = vmatmul.mubr.f32.gmra.mrb[0].mxu0 %v73
  %v208 = vpop.f32.mrb[0].mxu0
  %v209 = vadd.f32 %v42, %v208
  %v210 = vpop.f32.mrb[0].mxu0
  %211 = vmatprep.mubr.f32.mxu0 0.0
  %212 = vmatmul.mubr.f32.gmra.mrb[0].mxu0 %v76
  %v213 = vpop.f32.mrb[0].mxu0
  %v214 = vadd.f32 %v42, %v213
  %v215 = vpop.f32.mrb[0].mxu0
  %216 = vmatprep.mubr.f32.mxu0 0.0
  %217 = vmatmul.mubr.f32.gmra.mrb[0].mxu0 %v79
  %v218 = vpop.f32.mrb[0].mxu0
  %v219 = vadd.f32 %v42, %v218
  %v220 = vpop.f32.mrb[0].mxu0
  %221 = vmatprep.mubr.f32.mxu0 0.0
  %222 = vmatmul.mubr.f32.gmra.mrb[0].mxu0 %v82
  %v223 = vpop.f32.mrb[0].mxu0
  %v224 = vadd.f32 %v42, %v223
  %v225 = vpop.f32.mrb[0].mxu0
  %226 = vmatprep.mubr.f32.mxu0 0.0
  %227 = vmatmul.mubr.f32.gmra.mrb[0].mxu0 %v85
  %v228 = vpop.f32.mrb[0].mxu0
  %v229 = vadd.f32 %v42, %v228
  %v230 = vpop.f32.mrb[0].mxu0
  %231 = vmatprep.mubr.f32.mxu0 0.0
  %232 = vmatmul.mubr.f32.gmra.mrb[0].mxu0 %v88
  %v233 = vpop.f32.mrb[0].mxu0
  %v234 = vadd.f32 %v42, %v233
  %v235 = vpop.f32.mrb[0].mxu0
  %236 = vmatprep.mubr.f32.mxu0 0.0
  %237 = vmatmul.mubr.f32.gmra.mrb[0].mxu0 %v91
  %v238 = vpop.f32.mrb[0].mxu0
  %v239 = vadd.f32 %v42, %v238
  %v240 = vpop.f32.mrb[0].mxu0
  %241 = vdwg.mxu0
  %v242 = vmax.f32 %v164, 0.0
  %v243 = vmax.f32 %v169, 0.0
  %v244 = vmax.f32 %v174, 0.0
  %v245 = vmax.f32 %v179, 0.0
  %v246 = vmax.f32 %v184, 0.0
  %v247 = vmax.f32 %v189, 0.0
  %v248 = vmax.f32 %v194, 0.0
  %v249 = vmax.f32 %v199, 0.0
  %v250 = vmax.f32 %v204, 0.0
  %v251 = vmax.f32 %v209, 0.0
  %v252 = vmax.f32 %v214, 0.0
  %v253 = vmax.f32 %v219, 0.0
  %v254 = vmax.f32 %v224, 0.0
  %v255 = vmax.f32 %v229, 0.0
  %v256 = vmax.f32 %v234, 0.0
  %v257 = vmax.f32 %v239, 0.0
  %v258 = vld [vmem:[%s3] sm:$0xff]
  %v259 = vld [vmem:[%s3 + $0x8] sm:$0xff]
  %v260 = vld [vmem:[%s3 + $0x10] sm:$0xff]
  %v261 = vld [vmem:[%s3 + $0x18] sm:$0xff]
  %v262 = vld [vmem:[%s3 + $0x20] sm:$0xff]
  %v263 = vld [vmem:[%s3 + $0x28] sm:$0xff]
  %v264 = vld [vmem:[%s3 + $0x30] sm:$0xff]
  %v265 = vld [vmem:[%s3 + $0x38] sm:$0xff]
  %v266 = vld [vmem:[%s4] sm:$0x1]
  %v268 = vlaneseq
  %v269 = vshrl.u32 %v268, 7
  %v270 = vsub.s32 0, %v269
  %v271 = vrot.slane %v266, %v270
  %vm273 = vcmask 523264
  %v275 = vsel %vm273, %v242, 0
  %v278 = vsel %vm273, %v243, 0
  %v281 = vsel %vm273, %v244, 0
  %v284 = vsel %vm273, %v245, 0
  %v287 = vsel %vm273, %v246, 0
  %v290 = vsel %vm273, %v247, 0
  %v293 = vsel %vm273, %v248, 0
  %v296 = vsel %vm273, %v249, 0
  %v299 = vsel %vm273, %v250, 0
  %v302 = vsel %vm273, %v251, 0
  %v305 = vsel %vm273, %v252, 0
  %v308 = vsel %vm273, %v253, 0
  %v311 = vsel %vm273, %v254, 0
  %v314 = vsel %vm273, %v255, 0
  %v317 = vsel %vm273, %v256, 0
  %v320 = vsel %vm273, %v257, 0
  %322 = vmatprep.subr.mxu0 0.0
  %323 = vmatpush1.msra.mxu0 %v258
  %324 = vmatprep.subr.mxu0 0.0
  %325 = vmatpush1.msra.mxu0 %v259
  %326 = vmatprep.subr.mxu0 0.0
  %327 = vmatpush1.msra.mxu0 %v260
  %328 = vmatprep.subr.mxu0 0.0
  %329 = vmatpush1.msra.mxu0 %v261
  %330 = vmatprep.subr.mxu0 0.0
  %331 = vmatpush1.msra.mxu0 %v262
  %332 = vmatprep.subr.mxu0 0.0
  %333 = vmatpush1.msra.mxu0 %v263
  %334 = vmatprep.subr.mxu0 0.0
  %335 = vmatpush1.msra.mxu0 %v264
  %336 = vmatprep.subr.mxu0 0.0
  %337 = vmatpush1.msra.mxu0 %v265
  %338 = vmatprep.subr.mxu0 0.0
  %339 = vmatpush1.msra.mxu0 0.0
  %340 = vmatprep.subr.mxu0 0.0
  %341 = vmatpush1.msra.mxu0 0.0
  %342 = vmatprep.subr.mxu0 0.0
  %343 = vmatpush1.msra.mxu0 0.0
  %344 = vmatprep.subr.mxu0 0.0
  %345 = vmatpush1.msra.mxu0 0.0
  %346 = vmatprep.subr.mxu0 0.0
  %347 = vmatpush1.msra.mxu0 0.0
  %348 = vmatprep.subr.mxu0 0.0
  %349 = vmatpush1.msra.mxu0 0.0
  %350 = vmatprep.subr.mxu0 0.0
  %351 = vmatpush1.msra.mxu0 0.0
  %352 = vmatprep.subr.mxu0 0.0
  %353 = vmatpush1.msra.mxu0 0.0
  %354 = vmatprep.subr.mxu0 0.0
  %355 = vmatpush1.msra.mxu0 0.0
  %356 = vmatprep.subr.mxu0 0.0
  %357 = vmatpush1.msra.mxu0 0.0
  %358 = vmatprep.subr.mxu0 0.0
  %359 = vmatpush1.msra.mxu0 0.0
  %360 = vmatprep.subr.mxu0 0.0
  %361 = vmatpush1.msra.mxu0 0.0
  %362 = vmatprep.subr.mxu0 0.0
  %363 = vmatpush1.msra.mxu0 0.0
  %364 = vmatprep.subr.mxu0 0.0
  %365 = vmatpush1.msra.mxu0 0.0
  %366 = vmatprep.subr.mxu0 0.0
  %367 = vmatpush1.msra.mxu0 0.0
  %368 = vmatprep.subr.mxu0 0.0
  %369 = vmatpush1.msra.mxu0 0.0
  %370 = vmatprep.subr.mxu0 0.0
  %371 = vmatpush1.msra.mxu0 0.0
  %372 = vmatprep.subr.mxu0 0.0
  %373 = vmatpush1.msra.mxu0 0.0
  %374 = vmatprep.subr.mxu0 0.0
  %375 = vmatpush1.msra.mxu0 0.0
  %376 = vmatprep.subr.mxu0 0.0
  %377 = vmatpush1.msra.mxu0 0.0
  %378 = vmatprep.subr.mxu0 0.0
  %379 = vmatpush1.msra.mxu0 0.0
  %380 = vmatprep.subr.mxu0 0.0
  %381 = vmatpush1.msra.mxu0 0.0
  %382 = vmatprep.subr.mxu0 0.0
  %383 = vmatpush1.msra.mxu0 0.0
  %384 = vmatprep.subr.mxu0 0.0
  %385 = vmatpush1.msra.mxu0 0.0
  %386 = vmatprep.mubr.f32.mxu0 0.0
  %387 = vmatmul.mubr.f32.gmra.mrb[0].mxu0 %v275
  %v388 = vpop.f32.mrb[0].mxu0
  %v389 = vadd.f32 %v271, %v388
  %v390 = vpop.f32.mrb[0].mxu0
  %391 = vmatprep.mubr.f32.mxu0 0.0
  %392 = vmatmul.mubr.f32.gmra.mrb[0].mxu0 %v278
  %v393 = vpop.f32.mrb[0].mxu0
  %v394 = vadd.f32 %v271, %v393
  %v395 = vpop.f32.mrb[0].mxu0
  %396 = vmatprep.mubr.f32.mxu0 0.0
  %397 = vmatmul.mubr.f32.gmra.mrb[0].mxu0 %v281
  %v398 = vpop.f32.mrb[0].mxu0
  %v399 = vadd.f32 %v271, %v398
  %v400 = vpop.f32.mrb[0].mxu0
  %401 = vmatprep.mubr.f32.mxu0 0.0
  %402 = vmatmul.mubr.f32.gmra.mrb[0].mxu0 %v284
  %v403 = vpop.f32.mrb[0].mxu0
  %v404 = vadd.f32 %v271, %v403
  %v405 = vpop.f32.mrb[0].mxu0
  %406 = vmatprep.mubr.f32.mxu0 0.0
  %407 = vmatmul.mubr.f32.gmra.mrb[0].mxu0 %v287
  %v408 = vpop.f32.mrb[0].mxu0
  %v409 = vadd.f32 %v271, %v408
  %v410 = vpop.f32.mrb[0].mxu0
  %411 = vmatprep.mubr.f32.mxu0 0.0
  %412 = vmatmul.mubr.f32.gmra.mrb[0].mxu0 %v290
  %v413 = vpop.f32.mrb[0].mxu0
  %v414 = vadd.f32 %v271, %v413
  %v415 = vpop.f32.mrb[0].mxu0
  %416 = vmatprep.mubr.f32.mxu0 0.0
  %417 = vmatmul.mubr.f32.gmra.mrb[0].mxu0 %v293
  %v418 = vpop.f32.mrb[0].mxu0
  %v419 = vadd.f32 %v271, %v418
  %v420 = vpop.f32.mrb[0].mxu0
  %421 = vmatprep.mubr.f32.mxu0 0.0
  %422 = vmatmul.mubr.f32.gmra.mrb[0].mxu0 %v296
  %v423 = vpop.f32.mrb[0].mxu0
  %v424 = vadd.f32 %v271, %v423
  %v425 = vpop.f32.mrb[0].mxu0
  %426 = vmatprep.mubr.f32.mxu0 0.0
  %427 = vmatmul.mubr.f32.gmra.mrb[0].mxu0 %v299
  %v428 = vpop.f32.mrb[0].mxu0
  %v429 = vadd.f32 %v271, %v428
  %v430 = vpop.f32.mrb[0].mxu0
  %431 = vmatprep.mubr.f32.mxu0 0.0
  %432 = vmatmul.mubr.f32.gmra.mrb[0].mxu0 %v302
  %v433 = vpop.f32.mrb[0].mxu0
  %v434 = vadd.f32 %v271, %v433
  %v435 = vpop.f32.mrb[0].mxu0
  %436 = vmatprep.mubr.f32.mxu0 0.0
  %437 = vmatmul.mubr.f32.gmra.mrb[0].mxu0 %v305
  %v438 = vpop.f32.mrb[0].mxu0
  %v439 = vadd.f32 %v271, %v438
  %v440 = vpop.f32.mrb[0].mxu0
  %441 = vmatprep.mubr.f32.mxu0 0.0
  %442 = vmatmul.mubr.f32.gmra.mrb[0].mxu0 %v308
  %v443 = vpop.f32.mrb[0].mxu0
  %v444 = vadd.f32 %v271, %v443
  %v445 = vpop.f32.mrb[0].mxu0
  %446 = vmatprep.mubr.f32.mxu0 0.0
  %447 = vmatmul.mubr.f32.gmra.mrb[0].mxu0 %v311
  %v448 = vpop.f32.mrb[0].mxu0
  %v449 = vadd.f32 %v271, %v448
  %v450 = vpop.f32.mrb[0].mxu0
  %451 = vmatprep.mubr.f32.mxu0 0.0
  %452 = vmatmul.mubr.f32.gmra.mrb[0].mxu0 %v314
  %v453 = vpop.f32.mrb[0].mxu0
  %v454 = vadd.f32 %v271, %v453
  %v455 = vpop.f32.mrb[0].mxu0
  %456 = vmatprep.mubr.f32.mxu0 0.0
  %457 = vmatmul.mubr.f32.gmra.mrb[0].mxu0 %v317
  %v458 = vpop.f32.mrb[0].mxu0
  %v459 = vadd.f32 %v271, %v458
  %v460 = vpop.f32.mrb[0].mxu0
  %461 = vmatprep.mubr.f32.mxu0 0.0
  %462 = vmatmul.mubr.f32.gmra.mrb[0].mxu0 %v320
  %v463 = vpop.f32.mrb[0].mxu0
  %v464 = vadd.f32 %v271, %v463
  %v465 = vpop.f32.mrb[0].mxu0
  %466 = vdwg.mxu0
  %v467 = vmax.f32 %v389, 0.0
  %v468 = vmax.f32 %v394, 0.0
  %v469 = vmax.f32 %v399, 0.0
  %v470 = vmax.f32 %v404, 0.0
  %v471 = vmax.f32 %v409, 0.0
  %v472 = vmax.f32 %v414, 0.0
  %v473 = vmax.f32 %v419, 0.0
  %v474 = vmax.f32 %v424, 0.0
  %v475 = vmax.f32 %v429, 0.0
  %v476 = vmax.f32 %v434, 0.0
  %v477 = vmax.f32 %v439, 0.0
  %v478 = vmax.f32 %v444, 0.0
  %v479 = vmax.f32 %v449, 0.0
  %v480 = vmax.f32 %v454, 0.0
  %v481 = vmax.f32 %v459, 0.0
  %v482 = vmax.f32 %v464, 0.0
  %483 = vst.msk [vmem:[%s5] sm:$0xff] %vm273, %v467
  %484 = vst.msk [vmem:[%s5 + $0x8] sm:$0xff] %vm273, %v468
  %485 = vst.msk [vmem:[%s5 + $0x10] sm:$0xff] %vm273, %v469
  %486 = vst.msk [vmem:[%s5 + $0x18] sm:$0xff] %vm273, %v470
  %487 = vst.msk [vmem:[%s5 + $0x20] sm:$0xff] %vm273, %v471
  %488 = vst.msk [vmem:[%s5 + $0x28] sm:$0xff] %vm273, %v472
  %489 = vst.msk [vmem:[%s5 + $0x30] sm:$0xff] %vm273, %v473
  %490 = vst.msk [vmem:[%s5 + $0x38] sm:$0xff] %vm273, %v474
  %491 = vst.msk [vmem:[%s5 + $0x40] sm:$0xff] %vm273, %v475
  %492 = vst.msk [vmem:[%s5 + $0x48] sm:$0xff] %vm273, %v476
  %493 = vst.msk [vmem:[%s5 + $0x50] sm:$0xff] %vm273, %v477
  %494 = vst.msk [vmem:[%s5 + $0x58] sm:$0xff] %vm273, %v478
  %495 = vst.msk [vmem:[%s5 + $0x60] sm:$0xff] %vm273, %v479
  %496 = vst.msk [vmem:[%s5 + $0x68] sm:$0xff] %vm273, %v480
  %497 = vst.msk [vmem:[%s5 + $0x70] sm:$0xff] %vm273, %v481
  %498 = vst.msk [vmem:[%s5 + $0x78] sm:$0xff] %vm273, %v482
  // Predicated region
  $region22: #{gnn_policy_forward.4} parent=0 // pred_check
    _
  $region23: #{gnn_policy_forward.4} parent=0 // pred_check_branch
    %500 = sbr.rel (0) target = $region25
  $region24: #{gnn_policy_forward.4} parent=0 // pred_region
    _
  $region25: #{gnn_policy_forward.4} parent=0 // pred_fallthru
    _
  // Predicated region
  $region26: #{gnn_policy_forward.4} parent=0 // pred_check
    _
  $region27: #{gnn_policy_forward.4} parent=0 // pred_check_branch
    %502 = sbr.rel (0) target = $region29
  $region28: #{gnn_policy_forward.4} parent=0 // pred_region
    _
  $region29: #{gnn_policy_forward.4} parent=0 // pred_fallthru
    _

// kernel: gnn_policy_forward.6
$region0: #{gnn_policy_forward.6}
  #allocation0 [shape = 'u32[]', space=smem, size = 0x4, offset = 0x4, fixed_abs, tag = 'smem constant byte address 0x4 - core index']
  #allocation1 [shape = 'u32[144,128]{1,0:T(1,128)}', space=vmem, size = 0x12000, scoped, tag = 'internal scratch']
  #allocation2 [shape = 'f32[128,64]{1,0:T(8,128)}', space=vmem, size = 0x10000, scoped, tag = 'scratch operand']
  #allocation3 [shape = 'f32[128,64]{1,0:T(8,128)}', space=vmem, size = 0x10000, scoped, tag = 'scratch operand']
  #allocation4 [shape = 'f32[128,64]{1,0:T(8,128)}', space=vmem, size = 0x10000, scoped, tag = 'scratch operand']
  #allocation5 [shape = 'f32[128,64]{1,0:T(8,128)}', space=vmem, size = 0x10000, scoped, tag = 'scratch operand']
  %s0 = inlined_call_operand.vmem [shape: f32[128,64], index: 0, kind: input, shape index: {}]
  %s1 = inlined_call_operand.vmem [shape: f32[128,64], index: 1, kind: input, shape index: {}]
  %s2 = inlined_call_operand.vmem [shape: f32[256,1], index: 2, kind: input, shape index: {}]
  %s3 = inlined_call_operand.vmem [shape: s32[256,1], index: 3, kind: input, shape index: {}]
  %s4 = inlined_call_operand.vmem [shape: s32[256,1], index: 4, kind: input, shape index: {}]
  %s5 = inlined_call_operand.vmem [shape: f32[64,64], index: 5, kind: input, shape index: {}]
  %s6 = inlined_call_operand.vmem [shape: f32[1,64], index: 6, kind: input, shape index: {}]
  %s7 = inlined_call_operand.vmem [shape: f32[1,64], index: 7, kind: input, shape index: {}]
  %s8 = inlined_call_operand.vmem [shape: f32[64,64], index: 8, kind: input, shape index: {}]
  %s9 = inlined_call_operand.vmem [shape: f32[64,64], index: 9, kind: input, shape index: {}]
  %s10 = inlined_call_operand.vmem [shape: f32[1,64], index: 10, kind: input, shape index: {}]
  %s11 = inlined_call_operand.vmem [shape: f32[64,64], index: 11, kind: input, shape index: {}]
  %s12 = inlined_call_operand.vmem [shape: f32[64,64], index: 12, kind: input, shape index: {}]
  %s13 = inlined_call_operand.vmem [shape: f32[1,64], index: 13, kind: input, shape index: {}]
  %s14 = inlined_call_operand.vmem [shape: f32[64,64], index: 14, kind: input, shape index: {}]
  %s15 = inlined_call_operand.vmem [shape: f32[1,64], index: 15, kind: input, shape index: {}]
  %s16 = inlined_call_operand.vmem [shape: f32[128,64], index: 16, kind: output, shape index: {}]
  %s17 = sld [smem:[#allocation0]]
  $region82: #{gnn_policy_forward.6} parent=0
    _
  %s19 = ssub.s32 1, %s17
  %s20 = scalar_select 0, %s19, %s17
  // Predicated region
  $region2: #{gnn_policy_forward.6} parent=0 // pred_check
    _
  $region3: #{gnn_policy_forward.6} parent=0 // pred_check_branch
    %22 = sbr.rel (0) target = $region5
  $region4: #{gnn_policy_forward.6} parent=0 // pred_region
    _
  $region5: #{gnn_policy_forward.6} parent=0 // pred_fallthru
    _
  // Predicated region
  $region6: #{gnn_policy_forward.6} parent=0 // pred_check
    _
  $region7: #{gnn_policy_forward.6} parent=0 // pred_check_branch
    %24 = sbr.rel (0) target = $region9
  $region8: #{gnn_policy_forward.6} parent=0 // pred_region
    _
  $region9: #{gnn_policy_forward.6} parent=0 // pred_fallthru
    _
  // Predicated region
  $region10: #{gnn_policy_forward.6} parent=0 // pred_check
    _
  $region11: #{gnn_policy_forward.6} parent=0 // pred_check_branch
    %26 = sbr.rel (0) target = $region13
  $region12: #{gnn_policy_forward.6} parent=0 // pred_region
    _
  $region13: #{gnn_policy_forward.6} parent=0 // pred_fallthru
    _
  // Predicated region
  $region14: #{gnn_policy_forward.6} parent=0 // pred_check
    _
  $region15: #{gnn_policy_forward.6} parent=0 // pred_check_branch
    %28 = sbr.rel (0) target = $region17
  $region16: #{gnn_policy_forward.6} parent=0 // pred_region
    _
  $region17: #{gnn_policy_forward.6} parent=0 // pred_fallthru
    _
  // Predicated region
  $region18: #{gnn_policy_forward.6} parent=0 // pred_check
    _
  $region19: #{gnn_policy_forward.6} parent=0 // pred_check_branch
    %30 = sbr.rel (0) target = $region21
  $region20: #{gnn_policy_forward.6} parent=0 // pred_region
    _
  $region21: #{gnn_policy_forward.6} parent=0 // pred_fallthru
    _
  // Predicated region
  $region22: #{gnn_policy_forward.6} parent=0 // pred_check
    _
  $region23: #{gnn_policy_forward.6} parent=0 // pred_check_branch
    %32 = sbr.rel (0) target = $region25
  $region24: #{gnn_policy_forward.6} parent=0 // pred_region
    _
  $region25: #{gnn_policy_forward.6} parent=0 // pred_fallthru
    _
  // Predicated region
  $region26: #{gnn_policy_forward.6} parent=0 // pred_check
    _
  $region27: #{gnn_policy_forward.6} parent=0 // pred_check_branch
    %34 = sbr.rel (0) target = $region29
  $region28: #{gnn_policy_forward.6} parent=0 // pred_region
    _
  $region29: #{gnn_policy_forward.6} parent=0 // pred_fallthru
    _
  // Predicated region
  $region30: #{gnn_policy_forward.6} parent=0 // pred_check
    _
  $region31: #{gnn_policy_forward.6} parent=0 // pred_check_branch
    %36 = sbr.rel (0) target = $region33
  $region32: #{gnn_policy_forward.6} parent=0 // pred_region
    _
  $region33: #{gnn_policy_forward.6} parent=0 // pred_fallthru
    _
  // Predicated region
  $region34: #{gnn_policy_forward.6} parent=0 // pred_check
    _
  $region35: #{gnn_policy_forward.6} parent=0 // pred_check_branch
    %38 = sbr.rel (0) target = $region37
  $region36: #{gnn_policy_forward.6} parent=0 // pred_region
    _
  $region37: #{gnn_policy_forward.6} parent=0 // pred_fallthru
    _
  // Predicated region
  $region38: #{gnn_policy_forward.6} parent=0 // pred_check
    _
  $region39: #{gnn_policy_forward.6} parent=0 // pred_check_branch
    %40 = sbr.rel (0) target = $region41
  $region40: #{gnn_policy_forward.6} parent=0 // pred_region
    _
  $region41: #{gnn_policy_forward.6} parent=0 // pred_fallthru
    _
  // Predicated region
  $region42: #{gnn_policy_forward.6} parent=0 // pred_check
    _
  $region43: #{gnn_policy_forward.6} parent=0 // pred_check_branch
    %42 = sbr.rel (0) target = $region45
  $region44: #{gnn_policy_forward.6} parent=0 // pred_region
    _
  $region45: #{gnn_policy_forward.6} parent=0 // pred_fallthru
    _
  // Predicated region
  $region46: #{gnn_policy_forward.6} parent=0 // pred_check
    _
  $region47: #{gnn_policy_forward.6} parent=0 // pred_check_branch
    %44 = sbr.rel (0) target = $region49
  $region48: #{gnn_policy_forward.6} parent=0 // pred_region
    _
  $region49: #{gnn_policy_forward.6} parent=0 // pred_fallthru
    _
  // Predicated region
  $region50: #{gnn_policy_forward.6} parent=0 // pred_check
    _
  $region51: #{gnn_policy_forward.6} parent=0 // pred_check_branch
    %46 = sbr.rel (0) target = $region53
  $region52: #{gnn_policy_forward.6} parent=0 // pred_region
    _
  $region53: #{gnn_policy_forward.6} parent=0 // pred_fallthru
    _
  // Predicated region
  $region54: #{gnn_policy_forward.6} parent=0 // pred_check
    _
  $region55: #{gnn_policy_forward.6} parent=0 // pred_check_branch
    %48 = sbr.rel (0) target = $region57
  $region56: #{gnn_policy_forward.6} parent=0 // pred_region
    _
  $region57: #{gnn_policy_forward.6} parent=0 // pred_fallthru
    _
  // Predicated region
  $region58: #{gnn_policy_forward.6} parent=0 // pred_check
    _
  $region59: #{gnn_policy_forward.6} parent=0 // pred_check_branch
    %50 = sbr.rel (0) target = $region61
  $region60: #{gnn_policy_forward.6} parent=0 // pred_region
    _
  $region61: #{gnn_policy_forward.6} parent=0 // pred_fallthru
    _
  // Predicated region
  $region62: #{gnn_policy_forward.6} parent=0 // pred_check
    _
  $region63: #{gnn_policy_forward.6} parent=0 // pred_check_branch
    %52 = sbr.rel (0) target = $region65
  $region64: #{gnn_policy_forward.6} parent=0 // pred_region
    _
  $region65: #{gnn_policy_forward.6} parent=0 // pred_fallthru
    _
  %p53 = scmp.eq.s32.totalorder 0, 0
  // Predicated region
  $region66: #{gnn_policy_forward.6} parent=0 // pred_check
    %p54 = pneg %p53
  $region67: #{gnn_policy_forward.6} parent=0 // pred_check_branch
    %56 = sbr.rel (%p54) target = $region69
  $region68: #{gnn_policy_forward.6} parent=0 // pred_region
    %v57 = vld [vmem:[%s1] sm:$0xff]
    %v58 = vld [vmem:[%s1 + $0x8] sm:$0xff]
    %v59 = vld [vmem:[%s1 + $0x10] sm:$0xff]
    %v60 = vld [vmem:[%s1 + $0x18] sm:$0xff]
    %v61 = vld [vmem:[%s1 + $0x20] sm:$0xff]
    %v62 = vld [vmem:[%s1 + $0x28] sm:$0xff]
    %v63 = vld [vmem:[%s1 + $0x30] sm:$0xff]
    %v64 = vld [vmem:[%s1 + $0x38] sm:$0xff]
    %v65 = vld [vmem:[%s1 + $0x40] sm:$0xff]
    %v66 = vld [vmem:[%s1 + $0x48] sm:$0xff]
    %v67 = vld [vmem:[%s1 + $0x50] sm:$0xff]
    %v68 = vld [vmem:[%s1 + $0x58] sm:$0xff]
    %v69 = vld [vmem:[%s1 + $0x60] sm:$0xff]
    %v70 = vld [vmem:[%s1 + $0x68] sm:$0xff]
    %v71 = vld [vmem:[%s1 + $0x70] sm:$0xff]
    %v72 = vld [vmem:[%s1 + $0x78] sm:$0xff]
    %v73 = vld [vmem:[%s5] sm:$0xff]
    %v74 = vld [vmem:[%s5 + $0x8] sm:$0xff]
    %v75 = vld [vmem:[%s5 + $0x10] sm:$0xff]
    %v76 = vld [vmem:[%s5 + $0x18] sm:$0xff]
    %v77 = vld [vmem:[%s5 + $0x20] sm:$0xff]
    %v78 = vld [vmem:[%s5 + $0x28] sm:$0xff]
    %v79 = vld [vmem:[%s5 + $0x30] sm:$0xff]
    %v80 = vld [vmem:[%s5 + $0x38] sm:$0xff]
    %v81 = vld [vmem:[%s6] sm:$0x1]
    %v83 = vlaneseq
    %v84 = vshrl.u32 %v83, 7
    %v85 = vsub.s32 0, %v84
    %v86 = vrot.slane %v81, %v85
    %vm88 = vcmask 523264
    %v90 = vsel %vm88, %v57, 0
    %v93 = vsel %vm88, %v58, 0
    %v96 = vsel %vm88, %v59, 0
    %v99 = vsel %vm88, %v60, 0
    %v102 = vsel %vm88, %v61, 0
    %v105 = vsel %vm88, %v62, 0
    %v108 = vsel %vm88, %v63, 0
    %v111 = vsel %vm88, %v64, 0
    %v114 = vsel %vm88, %v65, 0
    %v117 = vsel %vm88, %v66, 0
    %v120 = vsel %vm88, %v67, 0
    %v123 = vsel %vm88, %v68, 0
    %v126 = vsel %vm88, %v69, 0
    %v129 = vsel %vm88, %v70, 0
    %v132 = vsel %vm88, %v71, 0
    %v135 = vsel %vm88, %v72, 0
    %137 = vmatprep.subr.mxu0 0.0
    %138 = vmatpush1.msra.mxu0 %v73
    %139 = vmatprep.subr.mxu0 0.0
    %140 = vmatpush1.msra.mxu0 %v74
    %141 = vmatprep.subr.mxu0 0.0
    %142 = vmatpush1.msra.mxu0 %v75
    %143 = vmatprep.subr.mxu0 0.0
    %144 = vmatpush1.msra.mxu0 %v76
    %145 = vmatprep.subr.mxu0 0.0
    %146 = vmatpush1.msra.mxu0 %v77
    %147 = vmatprep.subr.mxu0 0.0
    %148 = vmatpush1.msra.mxu0 %v78
    %149 = vmatprep.subr.mxu0 0.0
    %150 = vmatpush1.msra.mxu0 %v79
    %151 = vmatprep.subr.mxu0 0.0
    %152 = vmatpush1.msra.mxu0 %v80
    %153 = vmatprep.subr.mxu0 0.0
    %154 = vmatpush1.msra.mxu0 0.0
    %155 = vmatprep.subr.mxu0 0.0
    %156 = vmatpush1.msra.mxu0 0.0
    %157 = vmatprep.subr.mxu0 0.0
    %158 = vmatpush1.msra.mxu0 0.0
    %159 = vmatprep.subr.mxu0 0.0
    %160 = vmatpush1.msra.mxu0 0.0
    %161 = vmatprep.subr.mxu0 0.0
    %162 = vmatpush1.msra.mxu0 0.0
    %163 = vmatprep.subr.mxu0 0.0
    %164 = vmatpush1.msra.mxu0 0.0
    %165 = vmatprep.subr.mxu0 0.0
    %166 = vmatpush1.msra.mxu0 0.0
    %167 = vmatprep.subr.mxu0 0.0
    %168 = vmatpush1.msra.mxu0 0.0
    %169 = vmatprep.subr.mxu0 0.0
    %170 = vmatpush1.msra.mxu0 0.0
    %171 = vmatprep.subr.mxu0 0.0
    %172 = vmatpush1.msra.mxu0 0.0
    %173 = vmatprep.subr.mxu0 0.0
    %174 = vmatpush1.msra.mxu0 0.0
    %175 = vmatprep.subr.mxu0 0.0
    %176 = vmatpush1.msra.mxu0 0.0
    %177 = vmatprep.subr.mxu0 0.0
    %178 = vmatpush1.msra.mxu0 0.0
    %179 = vmatprep.subr.mxu0 0.0
    %180 = vmatpush1.msra.mxu0 0.0
    %181 = vmatprep.subr.mxu0 0.0
    %182 = vmatpush1.msra.mxu0 0.0
    %183 = vmatprep.subr.mxu0 0.0
    %184 = vmatpush1.msra.mxu0 0.0
    %185 = vmatprep.subr.mxu0 0.0
    %186 = vmatpush1.msra.mxu0 0.0
    %187 = vmatprep.subr.mxu0 0.0
    %188 = vmatpush1.msra.mxu0 0.0
    %189 = vmatprep.subr.mxu0 0.0
    %190 = vmatpush1.msra.mxu0 0.0
    %191 = vmatprep.subr.mxu0 0.0
    %192 = vmatpush1.msra.mxu0 0.0
    %193 = vmatprep.subr.mxu0 0.0
    %194 = vmatpush1.msra.mxu0 0.0
    %195 = vmatprep.subr.mxu0 0.0
    %196 = vmatpush1.msra.mxu0 0.0
    %197 = vmatprep.subr.mxu0 0.0
    %198 = vmatpush1.msra.mxu0 0.0
    %199 = vmatprep.subr.mxu0 0.0
    %200 = vmatpush1.msra.mxu0 0.0
    %201 = vmatprep.mubr.f32.mxu0 0.0
    %202 = vmatmul.mubr.f32.gmra.mrb[0].mxu0 %v90
    %v203 = vpop.f32.mrb[0].mxu0
    %v204 = vadd.f32 %v86, %v203
    %v205 = vpop.f32.mrb[0].mxu0
    %206 = vmatprep.mubr.f32.mxu0 0.0
    %207 = vmatmul.mubr.f32.gmra.mrb[0].mxu0 %v93
    %v208 = vpop.f32.mrb[0].mxu0
    %v209 = vadd.f32 %v86, %v208
    %v210 = vpop.f32.mrb[0].mxu0
    %211 = vmatprep.mubr.f32.mxu0 0.0
    %212 = vmatmul.mubr.f32.gmra.mrb[0].mxu0 %v96
    %v213 = vpop.f32.mrb[0].mxu0
    %v214 = vadd.f32 %v86, %v213
    %v215 = vpop.f32.mrb[0].mxu0
    %216 = vmatprep.mubr.f32.mxu0 0.0
    %217 = vmatmul.mubr.f32.gmra.mrb[0].mxu0 %v99
    %v218 = vpop.f32.mrb[0].mxu0
    %v219 = vadd.f32 %v86, %v218
    %v220 = vpop.f32.mrb[0].mxu0
    %221 = vmatprep.mubr.f32.mxu0 0.0
    %222 = vmatmul.mubr.f32.gmra.mrb[0].mxu0 %v102
    %v223 = vpop.f32.mrb[0].mxu0
    %v224 = vadd.f32 %v86, %v223
    %v225 = vpop.f32.mrb[0].mxu0
    %226 = vmatprep.mubr.f32.mxu0 0.0
    %227 = vmatmul.mubr.f32.gmra.mrb[0].mxu0 %v105
    %v228 = vpop.f32.mrb[0].mxu0
    %v229 = vadd.f32 %v86, %v228
    %v230 = vpop.f32.mrb[0].mxu0
    %231 = vmatprep.mubr.f32.mxu0 0.0
    %232 = vmatmul.mubr.f32.gmra.mrb[0].mxu0 %v108
    %v233 = vpop.f32.mrb[0].mxu0
    %v234 = vadd.f32 %v86, %v233
    %v235 = vpop.f32.mrb[0].mxu0
    %236 = vmatprep.mubr.f32.mxu0 0.0
    %237 = vmatmul.mubr.f32.gmra.mrb[0].mxu0 %v111
    %v238 = vpop.f32.mrb[0].mxu0
    %v239 = vadd.f32 %v86, %v238
    %v240 = vpop.f32.mrb[0].mxu0
    %241 = vmatprep.mubr.f32.mxu0 0.0
    %242 = vmatmul.mubr.f32.gmra.mrb[0].mxu0 %v114
    %v243 = vpop.f32.mrb[0].mxu0
    %v244 = vadd.f32 %v86, %v243
    %v245 = vpop.f32.mrb[0].mxu0
    %246 = vmatprep.mubr.f32.mxu0 0.0
    %247 = vmatmul.mubr.f32.gmra.mrb[0].mxu0 %v117
    %v248 = vpop.f32.mrb[0].mxu0
    %v249 = vadd.f32 %v86, %v248
    %v250 = vpop.f32.mrb[0].mxu0
    %251 = vmatprep.mubr.f32.mxu0 0.0
    %252 = vmatmul.mubr.f32.gmra.mrb[0].mxu0 %v120
    %v253 = vpop.f32.mrb[0].mxu0
    %v254 = vadd.f32 %v86, %v253
    %v255 = vpop.f32.mrb[0].mxu0
    %256 = vmatprep.mubr.f32.mxu0 0.0
    %257 = vmatmul.mubr.f32.gmra.mrb[0].mxu0 %v123
    %v258 = vpop.f32.mrb[0].mxu0
    %v259 = vadd.f32 %v86, %v258
    %v260 = vpop.f32.mrb[0].mxu0
    %261 = vmatprep.mubr.f32.mxu0 0.0
    %262 = vmatmul.mubr.f32.gmra.mrb[0].mxu0 %v126
    %v263 = vpop.f32.mrb[0].mxu0
    %v264 = vadd.f32 %v86, %v263
    %v265 = vpop.f32.mrb[0].mxu0
    %266 = vmatprep.mubr.f32.mxu0 0.0
    %267 = vmatmul.mubr.f32.gmra.mrb[0].mxu0 %v129
    %v268 = vpop.f32.mrb[0].mxu0
    %v269 = vadd.f32 %v86, %v268
    %v270 = vpop.f32.mrb[0].mxu0
    %271 = vmatprep.mubr.f32.mxu0 0.0
    %272 = vmatmul.mubr.f32.gmra.mrb[0].mxu0 %v132
    %v273 = vpop.f32.mrb[0].mxu0
    %v274 = vadd.f32 %v86, %v273
    %v275 = vpop.f32.mrb[0].mxu0
    %276 = vmatprep.mubr.f32.mxu0 0.0
    %277 = vmatmul.mubr.f32.gmra.mrb[0].mxu0 %v135
    %v278 = vpop.f32.mrb[0].mxu0
    %v279 = vadd.f32 %v86, %v278
    %v280 = vpop.f32.mrb[0].mxu0
    %281 = vdwg.mxu0
    %282 = vst.msk [vmem:[#allocation2] sm:$0xff] %vm88, %v204
    %283 = vst.msk [vmem:[#allocation2 + $0x8] sm:$0xff] %vm88, %v209
    %284 = vst.msk [vmem:[#allocation2 + $0x10] sm:$0xff] %vm88, %v214
    %285 = vst.msk [vmem:[#allocation2 + $0x18] sm:$0xff] %vm88, %v219
    %286 = vst.msk [vmem:[#allocation2 + $0x20] sm:$0xff] %vm88, %v224
    %287 = vst.msk [vmem:[#allocation2 + $0x28] sm:$0xff] %vm88, %v229
    %288 = vst.msk [vmem:[#allocation2 + $0x30] sm:$0xff] %vm88, %v234
    %289 = vst.msk [vmem:[#allocation2 + $0x38] sm:$0xff] %vm88, %v239
    %290 = vst.msk [vmem:[#allocation2 + $0x40] sm:$0xff] %vm88, %v244
    %291 = vst.msk [vmem:[#allocation2 + $0x48] sm:$0xff] %vm88, %v249
    %292 = vst.msk [vmem:[#allocation2 + $0x50] sm:$0xff] %vm88, %v254
    %293 = vst.msk [vmem:[#allocation2 + $0x58] sm:$0xff] %vm88, %v259
    %294 = vst.msk [vmem:[#allocation2 + $0x60] sm:$0xff] %vm88, %v264
    %295 = vst.msk [vmem:[#allocation2 + $0x68] sm:$0xff] %vm88, %v269
    %296 = vst.msk [vmem:[#allocation2 + $0x70] sm:$0xff] %vm88, %v274
    %297 = vst.msk [vmem:[#allocation2 + $0x78] sm:$0xff] %vm88, %v279
    %v298 = vld [vmem:[%s1] sm:$0xff]
    %v299 = vld [vmem:[%s1 + $0x8] sm:$0xff]
    %v300 = vld [vmem:[%s1 + $0x10] sm:$0xff]
    %v301 = vld [vmem:[%s1 + $0x18] sm:$0xff]
    %v302 = vld [vmem:[%s1 + $0x20] sm:$0xff]
    %v303 = vld [vmem:[%s1 + $0x28] sm:$0xff]
    %v304 = vld [vmem:[%s1 + $0x30] sm:$0xff]
    %v305 = vld [vmem:[%s1 + $0x38] sm:$0xff]
    %v306 = vld [vmem:[%s1 + $0x40] sm:$0xff]
    %v307 = vld [vmem:[%s1 + $0x48] sm:$0xff]
    %v308 = vld [vmem:[%s1 + $0x50] sm:$0xff]
    %v309 = vld [vmem:[%s1 + $0x58] sm:$0xff]
    %v310 = vld [vmem:[%s1 + $0x60] sm:$0xff]
    %v311 = vld [vmem:[%s1 + $0x68] sm:$0xff]
    %v312 = vld [vmem:[%s1 + $0x70] sm:$0xff]
    %v313 = vld [vmem:[%s1 + $0x78] sm:$0xff]
    %v314 = vld [vmem:[%s12] sm:$0xff]
    %v315 = vld [vmem:[%s12 + $0x8] sm:$0xff]
    %v316 = vld [vmem:[%s12 + $0x10] sm:$0xff]
    %v317 = vld [vmem:[%s12 + $0x18] sm:$0xff]
    %v318 = vld [vmem:[%s12 + $0x20] sm:$0xff]
    %v319 = vld [vmem:[%s12 + $0x28] sm:$0xff]
    %v320 = vld [vmem:[%s12 + $0x30] sm:$0xff]
    %v321 = vld [vmem:[%s12 + $0x38] sm:$0xff]
    %v323 = vsel %vm88, %v298, 0
    %v326 = vsel %vm88, %v299, 0
    %v329 = vsel %vm88, %v300, 0
    %v332 = vsel %vm88, %v301, 0
    %v335 = vsel %vm88, %v302, 0
    %v338 = vsel %vm88, %v303, 0
    %v341 = vsel %vm88, %v304, 0
    %v344 = vsel %vm88, %v305, 0
    %v347 = vsel %vm88, %v306, 0
    %v350 = vsel %vm88, %v307, 0
    %v353 = vsel %vm88, %v308, 0
    %v356 = vsel %vm88, %v309, 0
    %v359 = vsel %vm88, %v310, 0
    %v362 = vsel %vm88, %v311, 0
    %v365 = vsel %vm88, %v312, 0
    %v368 = vsel %vm88, %v313, 0
    %370 = vmatprep.subr.mxu0 0.0
    %371 = vmatpush1.msra.mxu0 %v314
    %372 = vmatprep.subr.mxu0 0.0
    %373 = vmatpush1.msra.mxu0 %v315
    %374 = vmatprep.subr.mxu0 0.0
    %375 = vmatpush1.msra.mxu0 %v316
    %376 = vmatprep.subr.mxu0 0.0
    %377 = vmatpush1.msra.mxu0 %v317
    %378 = vmatprep.subr.mxu0 0.0
    %379 = vmatpush1.msra.mxu0 %v318
    %380 = vmatprep.subr.mxu0 0.0
    %381 = vmatpush1.msra.mxu0 %v319
    %382 = vmatprep.subr.mxu0 0.0
    %383 = vmatpush1.msra.mxu0 %v320
    %384 = vmatprep.subr.mxu0 0.0
    %385 = vmatpush1.msra.mxu0 %v321
    %386 = vmatprep.subr.mxu0 0.0
    %387 = vmatpush1.msra.mxu0 0.0
    %388 = vmatprep.subr.mxu0 0.0
    %389 = vmatpush1.msra.mxu0 0.0
    %390 = vmatprep.subr.mxu0 0.0
    %391 = vmatpush1.msra.mxu0 0.0
    %392 = vmatprep.subr.mxu0 0.0
    %393 = vmatpush1.msra.mxu0 0.0
    %394 = vmatprep.subr.mxu0 0.0
    %395 = vmatpush1.msra.mxu0 0.0
    %396 = vmatprep.subr.mxu0 0.0
    %397 = vmatpush1.msra.mxu0 0.0
    %398 = vmatprep.subr.mxu0 0.0
    %399 = vmatpush1.msra.mxu0 0.0
    %400 = vmatprep.subr.mxu0 0.0
    %401 = vmatpush1.msra.mxu0 0.0
    %402 = vmatprep.subr.mxu0 0.0
    %403 = vmatpush1.msra.mxu0 0.0
    %404 = vmatprep.subr.mxu0 0.0
    %405 = vmatpush1.msra.mxu0 0.0
    %406 = vmatprep.subr.mxu0 0.0
    %407 = vmatpush1.msra.mxu0 0.0
    %408 = vmatprep.subr.mxu0 0.0
    %409 = vmatpush1.msra.mxu0 0.0
    %410 = vmatprep.subr.mxu0 0.0
    %411 = vmatpush1.msra.mxu0 0.0
    %412 = vmatprep.subr.mxu0 0.0
    %413 = vmatpush1.msra.mxu0 0.0
    %414 = vmatprep.subr.mxu0 0.0
    %415 = vmatpush1.msra.mxu0 0.0
    %416 = vmatprep.subr.mxu0 0.0
    %417 = vmatpush1.msra.mxu0 0.0
    %418 = vmatprep.subr.mxu0 0.0
    %419 = vmatpush1.msra.mxu0 0.0
    %420 = vmatprep.subr.mxu0 0.0
    %421 = vmatpush1.msra.mxu0 0.0
    %422 = vmatprep.subr.mxu0 0.0
    %423 = vmatpush1.msra.mxu0 0.0
    %424 = vmatprep.subr.mxu0 0.0
    %425 = vmatpush1.msra.mxu0 0.0
    %426 = vmatprep.subr.mxu0 0.0
    %427 = vmatpush1.msra.mxu0 0.0
    %428 = vmatprep.subr.mxu0 0.0
    %429 = vmatpush1.msra.mxu0 0.0
    %430 = vmatprep.subr.mxu0 0.0
    %431 = vmatpush1.msra.mxu0 0.0
    %432 = vmatprep.subr.mxu0 0.0
    %433 = vmatpush1.msra.mxu0 0.0
    %434 = vmatprep.mubr.f32.mxu0 0.0
    %435 = vmatmul.mubr.f32.gmra.mrb[0].mxu0 %v323
    %v436 = vpop.f32.mrb[0].mxu0
    %v437 = vadd.f32 0.0, %v436
    %v438 = vpop.f32.mrb[0].mxu0
    %439 = vmatprep.mubr.f32.mxu0 0.0
    %440 = vmatmul.mubr.f32.gmra.mrb[0].mxu0 %v326
    %v441 = vpop.f32.mrb[0].mxu0
    %v442 = vadd.f32 0.0, %v441
    %v443 = vpop.f32.mrb[0].mxu0
    %444 = vmatprep.mubr.f32.mxu0 0.0
    %445 = vmatmul.mubr.f32.gmra.mrb[0].mxu0 %v329
    %v446 = vpop.f32.mrb[0].mxu0
    %v447 = vadd.f32 0.0, %v446
    %v448 = vpop.f32.mrb[0].mxu0
    %449 = vmatprep.mubr.f32.mxu0 0.0
    %450 = vmatmul.mubr.f32.gmra.mrb[0].mxu0 %v332
    %v451 = vpop.f32.mrb[0].mxu0
    %v452 = vadd.f32 0.0, %v451
    %v453 = vpop.f32.mrb[0].mxu0
    %454 = vmatprep.mubr.f32.mxu0 0.0
    %455 = vmatmul.mubr.f32.gmra.mrb[0].mxu0 %v335
    %v456 = vpop.f32.mrb[0].mxu0
    %v457 = vadd.f32 0.0, %v456
    %v458 = vpop.f32.mrb[0].mxu0
    %459 = vmatprep.mubr.f32.mxu0 0.0
    %460 = vmatmul.mubr.f32.gmra.mrb[0].mxu0 %v338
    %v461 = vpop.f32.mrb[0].mxu0
    %v462 = vadd.f32 0.0, %v461
    %v463 = vpop.f32.mrb[0].mxu0
    %464 = vmatprep.mubr.f32.mxu0 0.0
    %465 = vmatmul.mubr.f32.gmra.mrb[0].mxu0 %v341
    %v466 = vpop.f32.mrb[0].mxu0
    %v467 = vadd.f32 0.0, %v466
    %v468 = vpop.f32.mrb[0].mxu0
    %469 = vmatprep.mubr.f32.mxu0 0.0
    %470 = vmatmul.mubr.f32.gmra.mrb[0].mxu0 %v344
    %v471 = vpop.f32.mrb[0].mxu0
    %v472 = vadd.f32 0.0, %v471
    %v473 = vpop.f32.mrb[0].mxu0
    %474 = vmatprep.mubr.f32.mxu0 0.0
    %475 = vmatmul.mubr.f32.gmra.mrb[0].mxu0 %v347
    %v476 = vpop.f32.mrb[0].mxu0
    %v477 = vadd.f32 0.0, %v476
    %v478 = vpop.f32.mrb[0].mxu0
    %479 = vmatprep.mubr.f32.mxu0 0.0
    %480 = vmatmul.mubr.f32.gmra.mrb[0].mxu0 %v350
    %v481 = vpop.f32.mrb[0].mxu0
    %v482 = vadd.f32 0.0, %v481
    %v483 = vpop.f32.mrb[0].mxu0
    %484 = vmatprep.mubr.f32.mxu0 0.0
    %485 = vmatmul.mubr.f32.gmra.mrb[0].mxu0 %v353
    %v486 = vpop.f32.mrb[0].mxu0
    %v487 = vadd.f32 0.0, %v486
    %v488 = vpop.f32.mrb[0].mxu0
    %489 = vmatprep.mubr.f32.mxu0 0.0
    %490 = vmatmul.mubr.f32.gmra.mrb[0].mxu0 %v356
    %v491 = vpop.f32.mrb[0].mxu0
    %v492 = vadd.f32 0.0, %v491
    %v493 = vpop.f32.mrb[0].mxu0
    %494 = vmatprep.mubr.f32.mxu0 0.0
    %495 = vmatmul.mubr.f32.gmra.mrb[0].mxu0 %v359
    %v496 = vpop.f32.mrb[0].mxu0
    %v497 = vadd.f32 0.0, %v496
    %v498 = vpop.f32.mrb[0].mxu0
    %499 = vmatprep.mubr.f32.mxu0 0.0
    %500 = vmatmul.mubr.f32.gmra.mrb[0].mxu0 %v362
    %v501 = vpop.f32.mrb[0].mxu0
    %v502 = vadd.f32 0.0, %v501
    %v503 = vpop.f32.mrb[0].mxu0
    %504 = vmatprep.mubr.f32.mxu0 0.0
    %505 = vmatmul.mubr.f32.gmra.mrb[0].mxu0 %v365
    %v506 = vpop.f32.mrb[0].mxu0
    %v507 = vadd.f32 0.0, %v506
    %v508 = vpop.f32.mrb[0].mxu0
    %509 = vmatprep.mubr.f32.mxu0 0.0
    %510 = vmatmul.mubr.f32.gmra.mrb[0].mxu0 %v368
    %v511 = vpop.f32.mrb[0].mxu0
    %v512 = vadd.f32 0.0, %v511
    %v513 = vpop.f32.mrb[0].mxu0
    %514 = vdwg.mxu0
    %515 = vst.msk [vmem:[#allocation3] sm:$0xff] %vm88, %v437
    %516 = vst.msk [vmem:[#allocation3 + $0x8] sm:$0xff] %vm88, %v442
    %517 = vst.msk [vmem:[#allocation3 + $0x10] sm:$0xff] %vm88, %v447
    %518 = vst.msk [vmem:[#allocation3 + $0x18] sm:$0xff] %vm88, %v452
    %519 = vst.msk [vmem:[#allocation3 + $0x20] sm:$0xff] %vm88, %v457
    %520 = vst.msk [vmem:[#allocation3 + $0x28] sm:$0xff] %vm88, %v462
    %521 = vst.msk [vmem:[#allocation3 + $0x30] sm:$0xff] %vm88, %v467
    %522 = vst.msk [vmem:[#allocation3 + $0x38] sm:$0xff] %vm88, %v472
    %523 = vst.msk [vmem:[#allocation3 + $0x40] sm:$0xff] %vm88, %v477
    %524 = vst.msk [vmem:[#allocation3 + $0x48] sm:$0xff] %vm88, %v482
    %525 = vst.msk [vmem:[#allocation3 + $0x50] sm:$0xff] %vm88, %v487
    %526 = vst.msk [vmem:[#allocation3 + $0x58] sm:$0xff] %vm88, %v492
    %527 = vst.msk [vmem:[#allocation3 + $0x60] sm:$0xff] %vm88, %v497
    %528 = vst.msk [vmem:[#allocation3 + $0x68] sm:$0xff] %vm88, %v502
    %529 = vst.msk [vmem:[#allocation3 + $0x70] sm:$0xff] %vm88, %v507
    %530 = vst.msk [vmem:[#allocation3 + $0x78] sm:$0xff] %vm88, %v512
    %v531 = vld [vmem:[%s0] sm:$0xff]
    %v532 = vld [vmem:[%s0 + $0x8] sm:$0xff]
    %v533 = vld [vmem:[%s0 + $0x10] sm:$0xff]
    %v534 = vld [vmem:[%s0 + $0x18] sm:$0xff]
    %v535 = vld [vmem:[%s0 + $0x20] sm:$0xff]
    %v536 = vld [vmem:[%s0 + $0x28] sm:$0xff]
    %v537 = vld [vmem:[%s0 + $0x30] sm:$0xff]
    %v538 = vld [vmem:[%s0 + $0x38] sm:$0xff]
    %v539 = vld [vmem:[%s0 + $0x40] sm:$0xff]
    %v540 = vld [vmem:[%s0 + $0x48] sm:$0xff]
    %v541 = vld [vmem:[%s0 + $0x50] sm:$0xff]
    %v542 = vld [vmem:[%s0 + $0x58] sm:$0xff]
    %v543 = vld [vmem:[%s0 + $0x60] sm:$0xff]
    %v544 = vld [vmem:[%s0 + $0x68] sm:$0xff]
    %v545 = vld [vmem:[%s0 + $0x70] sm:$0xff]
    %v546 = vld [vmem:[%s0 + $0x78] sm:$0xff]
    %v547 = vld [vmem:[%s8] sm:$0xff]
    %v548 = vld [vmem:[%s8 + $0x8] sm:$0xff]
    %v549 = vld [vmem:[%s8 + $0x10] sm:$0xff]
    %v550 = vld [vmem:[%s8 + $0x18] sm:$0xff]
    %v551 = vld [vmem:[%s8 + $0x20] sm:$0xff]
    %v552 = vld [vmem:[%s8 + $0x28] sm:$0xff]
    %v553 = vld [vmem:[%s8 + $0x30] sm:$0xff]
    %v554 = vld [vmem:[%s8 + $0x38] sm:$0xff]
    %v556 = vsel %vm88, %v531, 0
    %v559 = vsel %vm88, %v532, 0
    %v562 = vsel %vm88, %v533, 0
    %v565 = vsel %vm88, %v534, 0
    %v568 = vsel %vm88, %v535, 0
    %v571 = vsel %vm88, %v536, 0
    %v574 = vsel %vm88, %v537, 0
    %v577 = vsel %vm88, %v538, 0
    %v580 = vsel %vm88, %v539, 0
    %v583 = vsel %vm88, %v540, 0
    %v586 = vsel %vm88, %v541, 0
    %v589 = vsel %vm88, %v542, 0
    %v592 = vsel %vm88, %v543, 0
    %v595 = vsel %vm88, %v544, 0
    %v598 = vsel %vm88, %v545, 0
    %v601 = vsel %vm88, %v546, 0
    %603 = vmatprep.subr.mxu0 0.0
    %604 = vmatpush1.msra.mxu0 %v547
    %605 = vmatprep.subr.mxu0 0.0
    %606 = vmatpush1.msra.mxu0 %v548
    %607 = vmatprep.subr.mxu0 0.0
    %608 = vmatpush1.msra.mxu0 %v549
    %609 = vmatprep.subr.mxu0 0.0
    %610 = vmatpush1.msra.mxu0 %v550
    %611 = vmatprep.subr.mxu0 0.0
    %612 = vmatpush1.msra.mxu0 %v551
    %613 = vmatprep.subr.mxu0 0.0
    %614 = vmatpush1.msra.mxu0 %v552
    %615 = vmatprep.subr.mxu0 0.0
    %616 = vmatpush1.msra.mxu0 %v553
    %617 = vmatprep.subr.mxu0 0.0
    %618 = vmatpush1.msra.mxu0 %v554
    %619 = vmatprep.subr.mxu0 0.0
    %620 = vmatpush1.msra.mxu0 0.0
    %621 = vmatprep.subr.mxu0 0.0
    %622 = vmatpush1.msra.mxu0 0.0
    %623 = vmatprep.subr.mxu0 0.0
    %624 = vmatpush1.msra.mxu0 0.0
    %625 = vmatprep.subr.mxu0 0.0
    %626 = vmatpush1.msra.mxu0 0.0
    %627 = vmatprep.subr.mxu0 0.0
    %628 = vmatpush1.msra.mxu0 0.0
    %629 = vmatprep.subr.mxu0 0.0
    %630 = vmatpush1.msra.mxu0 0.0
    %631 = vmatprep.subr.mxu0 0.0
    %632 = vmatpush1.msra.mxu0 0.0
    %633 = vmatprep.subr.mxu0 0.0
    %634 = vmatpush1.msra.mxu0 0.0
    %635 = vmatprep.subr.mxu0 0.0
    %636 = vmatpush1.msra.mxu0 0.0
    %637 = vmatprep.subr.mxu0 0.0
    %638 = vmatpush1.msra.mxu0 0.0
    %639 = vmatprep.subr.mxu0 0.0
    %640 = vmatpush1.msra.mxu0 0.0
    %641 = vmatprep.subr.mxu0 0.0
    %642 = vmatpush1.msra.mxu0 0.0
    %643 = vmatprep.subr.mxu0 0.0
    %644 = vmatpush1.msra.mxu0 0.0
    %645 = vmatprep.subr.mxu0 0.0
    %646 = vmatpush1.msra.mxu0 0.0
    %647 = vmatprep.subr.mxu0 0.0
    %648 = vmatpush1.msra.mxu0 0.0
    %649 = vmatprep.subr.mxu0 0.0
    %650 = vmatpush1.msra.mxu0 0.0
    %651 = vmatprep.subr.mxu0 0.0
    %652 = vmatpush1.msra.mxu0 0.0
    %653 = vmatprep.subr.mxu0 0.0
    %654 = vmatpush1.msra.mxu0 0.0
    %655 = vmatprep.subr.mxu0 0.0
    %656 = vmatpush1.msra.mxu0 0.0
    %657 = vmatprep.subr.mxu0 0.0
    %658 = vmatpush1.msra.mxu0 0.0
    %659 = vmatprep.subr.mxu0 0.0
    %660 = vmatpush1.msra.mxu0 0.0
    %661 = vmatprep.subr.mxu0 0.0
    %662 = vmatpush1.msra.mxu0 0.0
    %663 = vmatprep.subr.mxu0 0.0
    %664 = vmatpush1.msra.mxu0 0.0
    %665 = vmatprep.subr.mxu0 0.0
    %666 = vmatpush1.msra.mxu0 0.0
    %667 = vmatprep.mubr.f32.mxu0 0.0
    %668 = vmatmul.mubr.f32.gmra.mrb[0].mxu0 %v556
    %v669 = vpop.f32.mrb[0].mxu0
    %v670 = vadd.f32 0.0, %v669
    %v671 = vpop.f32.mrb[0].mxu0
    %672 = vmatprep.mubr.f32.mxu0 0.0
    %673 = vmatmul.mubr.f32.gmra.mrb[0].mxu0 %v559
    %v674 = vpop.f32.mrb[0].mxu0
    %v675 = vadd.f32 0.0, %v674
    %v676 = vpop.f32.mrb[0].mxu0
    %677 = vmatprep.mubr.f32.mxu0 0.0
    %678 = vmatmul.mubr.f32.gmra.mrb[0].mxu0 %v562
    %v679 = vpop.f32.mrb[0].mxu0
    %v680 = vadd.f32 0.0, %v679
    %v681 = vpop.f32.mrb[0].mxu0
    %682 = vmatprep.mubr.f32.mxu0 0.0
    %683 = vmatmul.mubr.f32.gmra.mrb[0].mxu0 %v565
    %v684 = vpop.f32.mrb[0].mxu0
    %v685 = vadd.f32 0.0, %v684
    %v686 = vpop.f32.mrb[0].mxu0
    %687 = vmatprep.mubr.f32.mxu0 0.0
    %688 = vmatmul.mubr.f32.gmra.mrb[0].mxu0 %v568
    %v689 = vpop.f32.mrb[0].mxu0
    %v690 = vadd.f32 0.0, %v689
    %v691 = vpop.f32.mrb[0].mxu0
    %692 = vmatprep.mubr.f32.mxu0 0.0
    %693 = vmatmul.mubr.f32.gmra.mrb[0].mxu0 %v571
    %v694 = vpop.f32.mrb[0].mxu0
    %v695 = vadd.f32 0.0, %v694
    %v696 = vpop.f32.mrb[0].mxu0
    %697 = vmatprep.mubr.f32.mxu0 0.0
    %698 = vmatmul.mubr.f32.gmra.mrb[0].mxu0 %v574
    %v699 = vpop.f32.mrb[0].mxu0
    %v700 = vadd.f32 0.0, %v699
    %v701 = vpop.f32.mrb[0].mxu0
    %702 = vmatprep.mubr.f32.mxu0 0.0
    %703 = vmatmul.mubr.f32.gmra.mrb[0].mxu0 %v577
    %v704 = vpop.f32.mrb[0].mxu0
    %v705 = vadd.f32 0.0, %v704
    %v706 = vpop.f32.mrb[0].mxu0
    %707 = vmatprep.mubr.f32.mxu0 0.0
    %708 = vmatmul.mubr.f32.gmra.mrb[0].mxu0 %v580
    %v709 = vpop.f32.mrb[0].mxu0
    %v710 = vadd.f32 0.0, %v709
    %v711 = vpop.f32.mrb[0].mxu0
    %712 = vmatprep.mubr.f32.mxu0 0.0
    %713 = vmatmul.mubr.f32.gmra.mrb[0].mxu0 %v583
    %v714 = vpop.f32.mrb[0].mxu0
    %v715 = vadd.f32 0.0, %v714
    %v716 = vpop.f32.mrb[0].mxu0
    %717 = vmatprep.mubr.f32.mxu0 0.0
    %718 = vmatmul.mubr.f32.gmra.mrb[0].mxu0 %v586
    %v719 = vpop.f32.mrb[0].mxu0
    %v720 = vadd.f32 0.0, %v719
    %v721 = vpop.f32.mrb[0].mxu0
    %722 = vmatprep.mubr.f32.mxu0 0.0
    %723 = vmatmul.mubr.f32.gmra.mrb[0].mxu0 %v589
    %v724 = vpop.f32.mrb[0].mxu0
    %v725 = vadd.f32 0.0, %v724
    %v726 = vpop.f32.mrb[0].mxu0
    %727 = vmatprep.mubr.f32.mxu0 0.0
    %728 = vmatmul.mubr.f32.gmra.mrb[0].mxu0 %v592
    %v729 = vpop.f32.mrb[0].mxu0
    %v730 = vadd.f32 0.0, %v729
    %v731 = vpop.f32.mrb[0].mxu0
    %732 = vmatprep.mubr.f32.mxu0 0.0
    %733 = vmatmul.mubr.f32.gmra.mrb[0].mxu0 %v595
    %v734 = vpop.f32.mrb[0].mxu0
    %v735 = vadd.f32 0.0, %v734
    %v736 = vpop.f32.mrb[0].mxu0
    %737 = vmatprep.mubr.f32.mxu0 0.0
    %738 = vmatmul.mubr.f32.gmra.mrb[0].mxu0 %v598
    %v739 = vpop.f32.mrb[0].mxu0
    %v740 = vadd.f32 0.0, %v739
    %v741 = vpop.f32.mrb[0].mxu0
    %742 = vmatprep.mubr.f32.mxu0 0.0
    %743 = vmatmul.mubr.f32.gmra.mrb[0].mxu0 %v601
    %v744 = vpop.f32.mrb[0].mxu0
    %v745 = vadd.f32 0.0, %v744
    %v746 = vpop.f32.mrb[0].mxu0
    %747 = vdwg.mxu0
    %748 = vst.msk [vmem:[#allocation4] sm:$0xff] %vm88, %v670
    %749 = vst.msk [vmem:[#allocation4 + $0x8] sm:$0xff] %vm88, %v675
    %750 = vst.msk [vmem:[#allocation4 + $0x10] sm:$0xff] %vm88, %v680
    %751 = vst.msk [vmem:[#allocation4 + $0x18] sm:$0xff] %vm88, %v685
    %752 = vst.msk [vmem:[#allocation4 + $0x20] sm:$0xff] %vm88, %v690
    %753 = vst.msk [vmem:[#allocation4 + $0x28] sm:$0xff] %vm88, %v695
    %754 = vst.msk [vmem:[#allocation4 + $0x30] sm:$0xff] %vm88, %v700
    %755 = vst.msk [vmem:[#allocation4 + $0x38] sm:$0xff] %vm88, %v705
    %756 = vst.msk [vmem:[#allocation4 + $0x40] sm:$0xff] %vm88, %v710
    %757 = vst.msk [vmem:[#allocation4 + $0x48] sm:$0xff] %vm88, %v715
    %758 = vst.msk [vmem:[#allocation4 + $0x50] sm:$0xff] %vm88, %v720
    %759 = vst.msk [vmem:[#allocation4 + $0x58] sm:$0xff] %vm88, %v725
    %760 = vst.msk [vmem:[#allocation4 + $0x60] sm:$0xff] %vm88, %v730
    %761 = vst.msk [vmem:[#allocation4 + $0x68] sm:$0xff] %vm88, %v735
    %762 = vst.msk [vmem:[#allocation4 + $0x70] sm:$0xff] %vm88, %v740
    %763 = vst.msk [vmem:[#allocation4 + $0x78] sm:$0xff] %vm88, %v745
    %764 = vst.msk [vmem:[#allocation5] sm:$0xff] %vm88, 0.0
    %765 = vst.msk [vmem:[#allocation5 + $0x8] sm:$0xff] %vm88, 0.0
    %766 = vst.msk [vmem:[#allocation5 + $0x10] sm:$0xff] %vm88, 0.0
    %767 = vst.msk [vmem:[#allocation5 + $0x18] sm:$0xff] %vm88, 0.0
    %768 = vst.msk [vmem:[#allocation5 + $0x20] sm:$0xff] %vm88, 0.0
    %769 = vst.msk [vmem:[#allocation5 + $0x28] sm:$0xff] %vm88, 0.0
    %770 = vst.msk [vmem:[#allocation5 + $0x30] sm:$0xff] %vm88, 0.0
    %771 = vst.msk [vmem:[#allocation5 + $0x38] sm:$0xff] %vm88, 0.0
    %772 = vst.msk [vmem:[#allocation5 + $0x40] sm:$0xff] %vm88, 0.0
    %773 = vst.msk [vmem:[#allocation5 + $0x48] sm:$0xff] %vm88, 0.0
    %774 = vst.msk [vmem:[#allocation5 + $0x50] sm:$0xff] %vm88, 0.0
    %775 = vst.msk [vmem:[#allocation5 + $0x58] sm:$0xff] %vm88, 0.0
    %776 = vst.msk [vmem:[#allocation5 + $0x60] sm:$0xff] %vm88, 0.0
    %777 = vst.msk [vmem:[#allocation5 + $0x68] sm:$0xff] %vm88, 0.0
    %778 = vst.msk [vmem:[#allocation5 + $0x70] sm:$0xff] %vm88, 0.0
    %779 = vst.msk [vmem:[#allocation5 + $0x78] sm:$0xff] %vm88, 0.0
  $region69: #{gnn_policy_forward.6} parent=0 // pred_fallthru
    _
  %v780 = vld [vmem:[%s4] sm:$0xff]
  %v781 = vld [vmem:[%s4 + $0x8] sm:$0xff]
  %v782 = vld [vmem:[%s4 + $0x10] sm:$0xff]
  %v783 = vld [vmem:[%s4 + $0x18] sm:$0xff]
  %v784 = vld [vmem:[%s4 + $0x20] sm:$0xff]
  %v785 = vld [vmem:[%s4 + $0x28] sm:$0xff]
  %v786 = vld [vmem:[%s4 + $0x30] sm:$0xff]
  %v787 = vld [vmem:[%s4 + $0x38] sm:$0xff]
  %v788 = vld [vmem:[%s4 + $0x40] sm:$0xff]
  %v789 = vld [vmem:[%s4 + $0x48] sm:$0xff]
  %v790 = vld [vmem:[%s4 + $0x50] sm:$0xff]
  %v791 = vld [vmem:[%s4 + $0x58] sm:$0xff]
  %v792 = vld [vmem:[%s4 + $0x60] sm:$0xff]
  %v793 = vld [vmem:[%s4 + $0x68] sm:$0xff]
  %v794 = vld [vmem:[%s4 + $0x70] sm:$0xff]
  %v795 = vld [vmem:[%s4 + $0x78] sm:$0xff]
  %v796 = vld [vmem:[%s4 + $0x80] sm:$0xff]
  %v797 = vld [vmem:[%s4 + $0x88] sm:$0xff]
  %v798 = vld [vmem:[%s4 + $0x90] sm:$0xff]
  %v799 = vld [vmem:[%s4 + $0x98] sm:$0xff]
  %v800 = vld [vmem:[%s4 + $0xa0] sm:$0xff]
  %v801 = vld [vmem:[%s4 + $0xa8] sm:$0xff]
  %v802 = vld [vmem:[%s4 + $0xb0] sm:$0xff]
  %v803 = vld [vmem:[%s4 + $0xb8] sm:$0xff]
  %v804 = vld [vmem:[%s4 + $0xc0] sm:$0xff]
  %v805 = vld [vmem:[%s4 + $0xc8] sm:$0xff]
  %v806 = vld [vmem:[%s4 + $0xd0] sm:$0xff]
  %v807 = vld [vmem:[%s4 + $0xd8] sm:$0xff]
  %v808 = vld [vmem:[%s4 + $0xe0] sm:$0xff]
  %v809 = vld [vmem:[%s4 + $0xe8] sm:$0xff]
  %v810 = vld [vmem:[%s4 + $0xf0] sm:$0xff]
  %v811 = vld [vmem:[%s4 + $0xf8] sm:$0xff]
  %v812 = vld [vmem:[%s3] sm:$0xff]
  %v813 = vld [vmem:[%s3 + $0x8] sm:$0xff]
  %v814 = vld [vmem:[%s3 + $0x10] sm:$0xff]
  %v815 = vld [vmem:[%s3 + $0x18] sm:$0xff]
  %v816 = vld [vmem:[%s3 + $0x20] sm:$0xff]
  %v817 = vld [vmem:[%s3 + $0x28] sm:$0xff]
  %v818 = vld [vmem:[%s3 + $0x30] sm:$0xff]
  %v819 = vld [vmem:[%s3 + $0x38] sm:$0xff]
  %v820 = vld [vmem:[%s3 + $0x40] sm:$0xff]
  %v821 = vld [vmem:[%s3 + $0x48] sm:$0xff]
  %v822 = vld [vmem:[%s3 + $0x50] sm:$0xff]
  %v823 = vld [vmem:[%s3 + $0x58] sm:$0xff]
  %v824 = vld [vmem:[%s3 + $0x60] sm:$0xff]
  %v825 = vld [vmem:[%s3 + $0x68] sm:$0xff]
  %v826 = vld [vmem:[%s3 + $0x70] sm:$0xff]
  %v827 = vld [vmem:[%s3 + $0x78] sm:$0xff]
  %v828 = vld [vmem:[%s3 + $0x80] sm:$0xff]
  %v829 = vld [vmem:[%s3 + $0x88] sm:$0xff]
  %v830 = vld [vmem:[%s3 + $0x90] sm:$0xff]
  %v831 = vld [vmem:[%s3 + $0x98] sm:$0xff]
  %v832 = vld [vmem:[%s3 + $0xa0] sm:$0xff]
  %v833 = vld [vmem:[%s3 + $0xa8] sm:$0xff]
  %v834 = vld [vmem:[%s3 + $0xb0] sm:$0xff]
  %v835 = vld [vmem:[%s3 + $0xb8] sm:$0xff]
  %v836 = vld [vmem:[%s3 + $0xc0] sm:$0xff]
  %v837 = vld [vmem:[%s3 + $0xc8] sm:$0xff]
  %v838 = vld [vmem:[%s3 + $0xd0] sm:$0xff]
  %v839 = vld [vmem:[%s3 + $0xd8] sm:$0xff]
  %v840 = vld [vmem:[%s3 + $0xe0] sm:$0xff]
  %v841 = vld [vmem:[%s3 + $0xe8] sm:$0xff]
  %v842 = vld [vmem:[%s3 + $0xf0] sm:$0xff]
  %v843 = vld [vmem:[%s3 + $0xf8] sm:$0xff]
  %v844 = vlaneseq
  %v845 = vand.u32 %v844, 127
  %846 = vset.pattern.permute.xlu0 0
  %847 = vperm.xlu0 %846, %v780
  %v848 = vpop.permute.xlu0 %847
  %849 = vset.pattern.permute.xlu0 0
  %850 = vperm.xlu0 %849, %v781
  %v851 = vpop.permute.xlu0 %850
  %852 = vset.pattern.permute.xlu0 0
  %853 = vperm.xlu0 %852, %v782
  %v854 = vpop.permute.xlu0 %853
  %855 = vset.pattern.permute.xlu0 0
  %856 = vperm.xlu0 %855, %v783
  %v857 = vpop.permute.xlu0 %856
  %858 = vset.pattern.permute.xlu0 0
  %859 = vperm.xlu0 %858, %v784
  %v860 = vpop.permute.xlu0 %859
  %861 = vset.pattern.permute.xlu0 0
  %862 = vperm.xlu0 %861, %v785
  %v863 = vpop.permute.xlu0 %862
  %864 = vset.pattern.permute.xlu0 0
  %865 = vperm.xlu0 %864, %v786
  %v866 = vpop.permute.xlu0 %865
  %867 = vset.pattern.permute.xlu0 0
  %868 = vperm.xlu0 %867, %v787
  %v869 = vpop.permute.xlu0 %868
  %870 = vset.pattern.permute.xlu0 0
  %871 = vperm.xlu0 %870, %v788
  %v872 = vpop.permute.xlu0 %871
  %873 = vset.pattern.permute.xlu0 0
  %874 = vperm.xlu0 %873, %v789
  %v875 = vpop.permute.xlu0 %874
  %876 = vset.pattern.permute.xlu0 0
  %877 = vperm.xlu0 %876, %v790
  %v878 = vpop.permute.xlu0 %877
  %879 = vset.pattern.permute.xlu0 0
  %880 = vperm.xlu0 %879, %v791
  %v881 = vpop.permute.xlu0 %880
  %882 = vset.pattern.permute.xlu0 0
  %883 = vperm.xlu0 %882, %v792
  %v884 = vpop.permute.xlu0 %883
  %885 = vset.pattern.permute.xlu0 0
  %886 = vperm.xlu0 %885, %v793
  %v887 = vpop.permute.xlu0 %886
  %888 = vset.pattern.permute.xlu0 0
  %889 = vperm.xlu0 %888, %v794
  %v890 = vpop.permute.xlu0 %889
  %891 = vset.pattern.permute.xlu0 0
  %892 = vperm.xlu0 %891, %v795
  %v893 = vpop.permute.xlu0 %892
  %894 = vset.pattern.permute.xlu0 0
  %895 = vperm.xlu0 %894, %v796
  %v896 = vpop.permute.xlu0 %895
  %897 = vset.pattern.permute.xlu0 0
  %898 = vperm.xlu0 %897, %v797
  %v899 = vpop.permute.xlu0 %898
  %900 = vset.pattern.permute.xlu0 0
  %901 = vperm.xlu0 %900, %v798
  %v902 = vpop.permute.xlu0 %901
  %903 = vset.pattern.permute.xlu0 0
  %904 = vperm.xlu0 %903, %v799
  %v905 = vpop.permute.xlu0 %904
  %906 = vset.pattern.permute.xlu0 0
  %907 = vperm.xlu0 %906, %v800
  %v908 = vpop.permute.xlu0 %907
  %909 = vset.pattern.permute.xlu0 0
  %910 = vperm.xlu0 %909, %v801
  %v911 = vpop.permute.xlu0 %910
  %912 = vset.pattern.permute.xlu0 0
  %913 = vperm.xlu0 %912, %v802
  %v914 = vpop.permute.xlu0 %913
  %915 = vset.pattern.permute.xlu0 0
  %916 = vperm.xlu0 %915, %v803
  %v917 = vpop.permute.xlu0 %916
  %918 = vset.pattern.permute.xlu0 0
  %919 = vperm.xlu0 %918, %v804
  %v920 = vpop.permute.xlu0 %919
  %921 = vset.pattern.permute.xlu0 0
  %922 = vperm.xlu0 %921, %v805
  %v923 = vpop.permute.xlu0 %922
  %924 = vset.pattern.permute.xlu0 0
  %925 = vperm.xlu0 %924, %v806
  %v926 = vpop.permute.xlu0 %925
  %927 = vset.pattern.permute.xlu0 0
  %928 = vperm.xlu0 %927, %v807
  %v929 = vpop.permute.xlu0 %928
  %930 = vset.pattern.permute.xlu0 0
  %931 = vperm.xlu0 %930, %v808
  %v932 = vpop.permute.xlu0 %931
  %933 = vset.pattern.permute.xlu0 0
  %934 = vperm.xlu0 %933, %v809
  %v935 = vpop.permute.xlu0 %934
  %936 = vset.pattern.permute.xlu0 0
  %937 = vperm.xlu0 %936, %v810
  %v938 = vpop.permute.xlu0 %937
  %939 = vset.pattern.permute.xlu0 0
  %940 = vperm.xlu0 %939, %v811
  %v941 = vpop.permute.xlu0 %940
  %vm942 = vcmp.eq.s32.totalorder %v848, %v845
  %vm943 = vcmp.eq.s32.totalorder %v851, %v845
  %vm944 = vcmp.eq.s32.totalorder %v854, %v845
  %vm945 = vcmp.eq.s32.totalorder %v857, %v845
  %vm946 = vcmp.eq.s32.totalorder %v860, %v845
  %vm947 = vcmp.eq.s32.totalorder %v863, %v845
  %vm948 = vcmp.eq.s32.totalorder %v866, %v845
  %vm949 = vcmp.eq.s32.totalorder %v869, %v845
  %vm950 = vcmp.eq.s32.totalorder %v872, %v845
  %vm951 = vcmp.eq.s32.totalorder %v875, %v845
  %vm952 = vcmp.eq.s32.totalorder %v878, %v845
  %vm953 = vcmp.eq.s32.totalorder %v881, %v845
  %vm954 = vcmp.eq.s32.totalorder %v884, %v845
  %vm955 = vcmp.eq.s32.totalorder %v887, %v845
  %vm956 = vcmp.eq.s32.totalorder %v890, %v845
  %vm957 = vcmp.eq.s32.totalorder %v893, %v845
  %vm958 = vcmp.eq.s32.totalorder %v896, %v845
  %vm959 = vcmp.eq.s32.totalorder %v899, %v845
  %vm960 = vcmp.eq.s32.totalorder %v902, %v845
  %vm961 = vcmp.eq.s32.totalorder %v905, %v845
  %vm962 = vcmp.eq.s32.totalorder %v908, %v845
  %vm963 = vcmp.eq.s32.totalorder %v911, %v845
  %vm964 = vcmp.eq.s32.totalorder %v914, %v845
  %vm965 = vcmp.eq.s32.totalorder %v917, %v845
  %vm966 = vcmp.eq.s32.totalorder %v920, %v845
  %vm967 = vcmp.eq.s32.totalorder %v923, %v845
  %vm968 = vcmp.eq.s32.totalorder %v926, %v845
  %vm969 = vcmp.eq.s32.totalorder %v929, %v845
  %vm970 = vcmp.eq.s32.totalorder %v932, %v845
  %vm971 = vcmp.eq.s32.totalorder %v935, %v845
  %vm972 = vcmp.eq.s32.totalorder %v938, %v845
  %vm973 = vcmp.eq.s32.totalorder %v941, %v845
  %v974 = vsel %vm942, 1, 0
  %v975 = vsel %vm943, 1, 0
  %v976 = vsel %vm944, 1, 0
  %v977 = vsel %vm945, 1, 0
  %v978 = vsel %vm946, 1, 0
  %v979 = vsel %vm947, 1, 0
  %v980 = vsel %vm948, 1, 0
  %v981 = vsel %vm949, 1, 0
  %v982 = vsel %vm950, 1, 0
  %v983 = vsel %vm951, 1, 0
  %v984 = vsel %vm952, 1, 0
  %v985 = vsel %vm953, 1, 0
  %v986 = vsel %vm954, 1, 0
  %v987 = vsel %vm955, 1, 0
  %v988 = vsel %vm956, 1, 0
  %v989 = vsel %vm957, 1, 0
  %v990 = vsel %vm958, 1, 0
  %v991 = vsel %vm959, 1, 0
  %v992 = vsel %vm960, 1, 0
  %v993 = vsel %vm961, 1, 0
  %v994 = vsel %vm962, 1, 0
  %v995 = vsel %vm963, 1, 0
  %v996 = vsel %vm964, 1, 0
  %v997 = vsel %vm965, 1, 0
  %v998 = vsel %vm966, 1, 0
  %v999 = vsel %vm967, 1, 0
  %v1000 = vsel %vm968, 1, 0
  %v1001 = vsel %vm969, 1, 0
  %v1002 = vsel %vm970, 1, 0
  %v1003 = vsel %vm971, 1, 0
  %v1004 = vsel %vm972, 1, 0
  %v1005 = vsel %vm973, 1, 0
  %v1006 = vcvt.s32.f32 %v974
  %v1007 = vcvt.s32.f32 %v975
  %v1008 = vcvt.s32.f32 %v976
  %v1009 = vcvt.s32.f32 %v977
  %v1010 = vcvt.s32.f32 %v978
  %v1011 = vcvt.s32.f32 %v979
  %v1012 = vcvt.s32.f32 %v980
  %v1013 = vcvt.s32.f32 %v981
  %v1014 = vcvt.s32.f32 %v982
  %v1015 = vcvt.s32.f32 %v983
  %v1016 = vcvt.s32.f32 %v984
  %v1017 = vcvt.s32.f32 %v985
  %v1018 = vcvt.s32.f32 %v986
  %v1019 = vcvt.s32.f32 %v987
  %v1020 = vcvt.s32.f32 %v988
  %v1021 = vcvt.s32.f32 %v989
  %v1022 = vcvt.s32.f32 %v990
  %v1023 = vcvt.s32.f32 %v991
  %v1024 = vcvt.s32.f32 %v992
  %v1025 = vcvt.s32.f32 %v993
  %v1026 = vcvt.s32.f32 %v994
  %v1027 = vcvt.s32.f32 %v995
  %v1028 = vcvt.s32.f32 %v996
  %v1029 = vcvt.s32.f32 %v997
  %v1030 = vcvt.s32.f32 %v998
  %v1031 = vcvt.s32.f32 %v999
  %v1032 = vcvt.s32.f32 %v1000
  %v1033 = vcvt.s32.f32 %v1001
  %v1034 = vcvt.s32.f32 %v1002
  %v1035 = vcvt.s32.f32 %v1003
  %v1036 = vcvt.s32.f32 %v1004
  %v1037 = vcvt.s32.f32 %v1005
  %1038 = vset.pattern.permute.xlu0 0
  %1039 = vperm.xlu0 %1038, %v812
  %v1040 = vpop.permute.xlu0 %1039
  %1041 = vset.pattern.permute.xlu0 0
  %1042 = vperm.xlu0 %1041, %v813
  %v1043 = vpop.permute.xlu0 %1042
  %1044 = vset.pattern.permute.xlu0 0
  %1045 = vperm.xlu0 %1044, %v814
  %v1046 = vpop.permute.xlu0 %1045
  %1047 = vset.pattern.permute.xlu0 0
  %1048 = vperm.xlu0 %1047, %v815
  %v1049 = vpop.permute.xlu0 %1048
  %1050 = vset.pattern.permute.xlu0 0
  %1051 = vperm.xlu0 %1050, %v816
  %v1052 = vpop.permute.xlu0 %1051
  %1053 = vset.pattern.permute.xlu0 0
  %1054 = vperm.xlu0 %1053, %v817
  %v1055 = vpop.permute.xlu0 %1054
  %1056 = vset.pattern.permute.xlu0 0
  %1057 = vperm.xlu0 %1056, %v818
  %v1058 = vpop.permute.xlu0 %1057
  %1059 = vset.pattern.permute.xlu0 0
  %1060 = vperm.xlu0 %1059, %v819
  %v1061 = vpop.permute.xlu0 %1060
  %1062 = vset.pattern.permute.xlu0 0
  %1063 = vperm.xlu0 %1062, %v820
  %v1064 = vpop.permute.xlu0 %1063
  %1065 = vset.pattern.permute.xlu0 0
  %1066 = vperm.xlu0 %1065, %v821
  %v1067 = vpop.permute.xlu0 %1066
  %1068 = vset.pattern.permute.xlu0 0
  %1069 = vperm.xlu0 %1068, %v822
  %v1070 = vpop.permute.xlu0 %1069
  %1071 = vset.pattern.permute.xlu0 0
  %1072 = vperm.xlu0 %1071, %v823
  %v1073 = vpop.permute.xlu0 %1072
  %1074 = vset.pattern.permute.xlu0 0
  %1075 = vperm.xlu0 %1074, %v824
  %v1076 = vpop.permute.xlu0 %1075
  %1077 = vset.pattern.permute.xlu0 0
  %1078 = vperm.xlu0 %1077, %v825
  %v1079 = vpop.permute.xlu0 %1078
  %1080 = vset.pattern.permute.xlu0 0
  %1081 = vperm.xlu0 %1080, %v826
  %v1082 = vpop.permute.xlu0 %1081
  %1083 = vset.pattern.permute.xlu0 0
  %1084 = vperm.xlu0 %1083, %v827
  %v1085 = vpop.permute.xlu0 %1084
  %1086 = vset.pattern.permute.xlu0 0
  %1087 = vperm.xlu0 %1086, %v828
  %v1088 = vpop.permute.xlu0 %1087
  %1089 = vset.pattern.permute.xlu0 0
  %1090 = vperm.xlu0 %1089, %v829
  %v1091 = vpop.permute.xlu0 %1090
  %1092 = vset.pattern.permute.xlu0 0
  %1093 = vperm.xlu0 %1092, %v830
  %v1094 = vpop.permute.xlu0 %1093
  %1095 = vset.pattern.permute.xlu0 0
  %1096 = vperm.xlu0 %1095, %v831
  %v1097 = vpop.permute.xlu0 %1096
  %1098 = vset.pattern.permute.xlu0 0
  %1099 = vperm.xlu0 %1098, %v832
  %v1100 = vpop.permute.xlu0 %1099
  %1101 = vset.pattern.permute.xlu0 0
  %1102 = vperm.xlu0 %1101, %v833
  %v1103 = vpop.permute.xlu0 %1102
  %1104 = vset.pattern.permute.xlu0 0
  %1105 = vperm.xlu0 %1104, %v834
  %v1106 = vpop.permute.xlu0 %1105
  %1107 = vset.pattern.permute.xlu0 0
  %1108 = vperm.xlu0 %1107, %v835
  %v1109 = vpop.permute.xlu0 %1108
  %1110 = vset.pattern.permute.xlu0 0
  %1111 = vperm.xlu0 %1110, %v836
  %v1112 = vpop.permute.xlu0 %1111
  %1113 = vset.pattern.permute.xlu0 0
  %1114 = vperm.xlu0 %1113, %v837
  %v1115 = vpop.permute.xlu0 %1114
  %1116 = vset.pattern.permute.xlu0 0
  %1117 = vperm.xlu0 %1116, %v838
  %v1118 = vpop.permute.xlu0 %1117
  %1119 = vset.pattern.permute.xlu0 0
  %1120 = vperm.xlu0 %1119, %v839
  %v1121 = vpop.permute.xlu0 %1120
  %1122 = vset.pattern.permute.xlu0 0
  %1123 = vperm.xlu0 %1122, %v840
  %v1124 = vpop.permute.xlu0 %1123
  %1125 = vset.pattern.permute.xlu0 0
  %1126 = vperm.xlu0 %1125, %v841
  %v1127 = vpop.permute.xlu0 %1126
  %1128 = vset.pattern.permute.xlu0 0
  %1129 = vperm.xlu0 %1128, %v842
  %v1130 = vpop.permute.xlu0 %1129
  %1131 = vset.pattern.permute.xlu0 0
  %1132 = vperm.xlu0 %1131, %v843
  %v1133 = vpop.permute.xlu0 %1132
  %vm1134 = vcmp.eq.s32.totalorder %v1040, %v845
  %vm1135 = vcmp.eq.s32.totalorder %v1043, %v845
  %vm1136 = vcmp.eq.s32.totalorder %v1046, %v845
  %vm1137 = vcmp.eq.s32.totalorder %v1049, %v845
  %vm1138 = vcmp.eq.s32.totalorder %v1052, %v845
  %vm1139 = vcmp.eq.s32.totalorder %v1055, %v845
  %vm1140 = vcmp.eq.s32.totalorder %v1058, %v845
  %vm1141 = vcmp.eq.s32.totalorder %v1061, %v845
  %vm1142 = vcmp.eq.s32.totalorder %v1064, %v845
  %vm1143 = vcmp.eq.s32.totalorder %v1067, %v845
  %vm1144 = vcmp.eq.s32.totalorder %v1070, %v845
  %vm1145 = vcmp.eq.s32.totalorder %v1073, %v845
  %vm1146 = vcmp.eq.s32.totalorder %v1076, %v845
  %vm1147 = vcmp.eq.s32.totalorder %v1079, %v845
  %vm1148 = vcmp.eq.s32.totalorder %v1082, %v845
  %vm1149 = vcmp.eq.s32.totalorder %v1085, %v845
  %vm1150 = vcmp.eq.s32.totalorder %v1088, %v845
  %vm1151 = vcmp.eq.s32.totalorder %v1091, %v845
  %vm1152 = vcmp.eq.s32.totalorder %v1094, %v845
  %vm1153 = vcmp.eq.s32.totalorder %v1097, %v845
  %vm1154 = vcmp.eq.s32.totalorder %v1100, %v845
  %vm1155 = vcmp.eq.s32.totalorder %v1103, %v845
  %vm1156 = vcmp.eq.s32.totalorder %v1106, %v845
  %vm1157 = vcmp.eq.s32.totalorder %v1109, %v845
  %vm1158 = vcmp.eq.s32.totalorder %v1112, %v845
  %vm1159 = vcmp.eq.s32.totalorder %v1115, %v845
  %vm1160 = vcmp.eq.s32.totalorder %v1118, %v845
  %vm1161 = vcmp.eq.s32.totalorder %v1121, %v845
  %vm1162 = vcmp.eq.s32.totalorder %v1124, %v845
  %vm1163 = vcmp.eq.s32.totalorder %v1127, %v845
  %vm1164 = vcmp.eq.s32.totalorder %v1130, %v845
  %vm1165 = vcmp.eq.s32.totalorder %v1133, %v845
  %v1166 = vsel %vm1134, 1, 0
  %v1167 = vsel %vm1135, 1, 0
  %v1168 = vsel %vm1136, 1, 0
  %v1169 = vsel %vm1137, 1, 0
  %v1170 = vsel %vm1138, 1, 0
  %v1171 = vsel %vm1139, 1, 0
  %v1172 = vsel %vm1140, 1, 0
  %v1173 = vsel %vm1141, 1, 0
  %v1174 = vsel %vm1142, 1, 0
  %v1175 = vsel %vm1143, 1, 0
  %v1176 = vsel %vm1144, 1, 0
  %v1177 = vsel %vm1145, 1, 0
  %v1178 = vsel %vm1146, 1, 0
  %v1179 = vsel %vm1147, 1, 0
  %v1180 = vsel %vm1148, 1, 0
  %v1181 = vsel %vm1149, 1, 0
  %v1182 = vsel %vm1150, 1, 0
  %v1183 = vsel %vm1151, 1, 0
  %v1184 = vsel %vm1152, 1, 0
  %v1185 = vsel %vm1153, 1, 0
  %v1186 = vsel %vm1154, 1, 0
  %v1187 = vsel %vm1155, 1, 0
  %v1188 = vsel %vm1156, 1, 0
  %v1189 = vsel %vm1157, 1, 0
  %v1190 = vsel %vm1158, 1, 0
  %v1191 = vsel %vm1159, 1, 0
  %v1192 = vsel %vm1160, 1, 0
  %v1193 = vsel %vm1161, 1, 0
  %v1194 = vsel %vm1162, 1, 0
  %v1195 = vsel %vm1163, 1, 0
  %v1196 = vsel %vm1164, 1, 0
  %v1197 = vsel %vm1165, 1, 0
  %v1198 = vcvt.s32.f32 %v1166
  %v1199 = vcvt.s32.f32 %v1167
  %v1200 = vcvt.s32.f32 %v1168
  %v1201 = vcvt.s32.f32 %v1169
  %v1202 = vcvt.s32.f32 %v1170
  %v1203 = vcvt.s32.f32 %v1171
  %v1204 = vcvt.s32.f32 %v1172
  %v1205 = vcvt.s32.f32 %v1173
  %v1206 = vcvt.s32.f32 %v1174
  %v1207 = vcvt.s32.f32 %v1175
  %v1208 = vcvt.s32.f32 %v1176
  %v1209 = vcvt.s32.f32 %v1177
  %v1210 = vcvt.s32.f32 %v1178
  %v1211 = vcvt.s32.f32 %v1179
  %v1212 = vcvt.s32.f32 %v1180
  %v1213 = vcvt.s32.f32 %v1181
  %v1214 = vcvt.s32.f32 %v1182
  %v1215 = vcvt.s32.f32 %v1183
  %v1216 = vcvt.s32.f32 %v1184
  %v1217 = vcvt.s32.f32 %v1185
  %v1218 = vcvt.s32.f32 %v1186
  %v1219 = vcvt.s32.f32 %v1187
  %v1220 = vcvt.s32.f32 %v1188
  %v1221 = vcvt.s32.f32 %v1189
  %v1222 = vcvt.s32.f32 %v1190
  %v1223 = vcvt.s32.f32 %v1191
  %v1224 = vcvt.s32.f32 %v1192
  %v1225 = vcvt.s32.f32 %v1193
  %v1226 = vcvt.s32.f32 %v1194
  %v1227 = vcvt.s32.f32 %v1195
  %v1228 = vcvt.s32.f32 %v1196
  %v1229 = vcvt.s32.f32 %v1197
  %v1230 = vld [vmem:[#allocation2] sm:$0xff]
  %v1231 = vld [vmem:[#allocation2 + $0x8] sm:$0xff]
  %v1232 = vld [vmem:[#allocation2 + $0x10] sm:$0xff]
  %v1233 = vld [vmem:[#allocation2 + $0x18] sm:$0xff]
  %v1234 = vld [vmem:[#allocation2 + $0x20] sm:$0xff]
  %v1235 = vld [vmem:[#allocation2 + $0x28] sm:$0xff]
  %v1236 = vld [vmem:[#allocation2 + $0x30] sm:$0xff]
  %v1237 = vld [vmem:[#allocation2 + $0x38] sm:$0xff]
  %v1238 = vld [vmem:[#allocation2 + $0x40] sm:$0xff]
  %v1239 = vld [vmem:[#allocation2 + $0x48] sm:$0xff]
  %v1240 = vld [vmem:[#allocation2 + $0x50] sm:$0xff]
  %v1241 = vld [vmem:[#allocation2 + $0x58] sm:$0xff]
  %v1242 = vld [vmem:[#allocation2 + $0x60] sm:$0xff]
  %v1243 = vld [vmem:[#allocation2 + $0x68] sm:$0xff]
  %v1244 = vld [vmem:[#allocation2 + $0x70] sm:$0xff]
  %v1245 = vld [vmem:[#allocation2 + $0x78] sm:$0xff]
  %v1246 = vld [vmem:[#allocation4] sm:$0xff]
  %v1247 = vld [vmem:[#allocation4 + $0x8] sm:$0xff]
  %v1248 = vld [vmem:[#allocation4 + $0x10] sm:$0xff]
  %v1249 = vld [vmem:[#allocation4 + $0x18] sm:$0xff]
  %v1250 = vld [vmem:[#allocation4 + $0x20] sm:$0xff]
  %v1251 = vld [vmem:[#allocation4 + $0x28] sm:$0xff]
  %v1252 = vld [vmem:[#allocation4 + $0x30] sm:$0xff]
  %v1253 = vld [vmem:[#allocation4 + $0x38] sm:$0xff]
  %v1254 = vld [vmem:[#allocation4 + $0x40] sm:$0xff]
  %v1255 = vld [vmem:[#allocation4 + $0x48] sm:$0xff]
  %v1256 = vld [vmem:[#allocation4 + $0x50] sm:$0xff]
  %v1257 = vld [vmem:[#allocation4 + $0x58] sm:$0xff]
  %v1258 = vld [vmem:[#allocation4 + $0x60] sm:$0xff]
  %v1259 = vld [vmem:[#allocation4 + $0x68] sm:$0xff]
  %v1260 = vld [vmem:[#allocation4 + $0x70] sm:$0xff]
  %v1261 = vld [vmem:[#allocation4 + $0x78] sm:$0xff]
  %1262 = vmatprep.subr.mxu0 0.0
  %1263 = vmatpush1.msra.mxu0 %v1246
  %1264 = vmatprep.subr.mxu0 0.0
  %1265 = vmatpush1.msra.mxu0 %v1247
  %1266 = vmatprep.subr.mxu0 0.0
  %1267 = vmatpush1.msra.mxu0 %v1248
  %1268 = vmatprep.subr.mxu0 0.0
  %1269 = vmatpush1.msra.mxu0 %v1249
  %1270 = vmatprep.subr.mxu0 0.0
  %1271 = vmatpush1.msra.mxu0 %v1250
  %1272 = vmatprep.subr.mxu0 0.0
  %1273 = vmatpush1.msra.mxu0 %v1251
  %1274 = vmatprep.subr.mxu0 0.0
  %1275 = vmatpush1.msra.mxu0 %v1252
  %1276 = vmatprep.subr.mxu0 0.0
  %1277 = vmatpush1.msra.mxu0 %v1253
  %1278 = vmatprep.subr.mxu0 0.0
  %1279 = vmatpush1.msra.mxu0 %v1254
  %1280 = vmatprep.subr.mxu0 0.0
  %1281 = vmatpush1.msra.mxu0 %v1255
  %1282 = vmatprep.subr.mxu0 0.0
  %1283 = vmatpush1.msra.mxu0 %v1256
  %1284 = vmatprep.subr.mxu0 0.0
  %1285 = vmatpush1.msra.mxu0 %v1257
  %1286 = vmatprep.subr.mxu0 0.0
  %1287 = vmatpush1.msra.mxu0 %v1258
  %1288 = vmatprep.subr.mxu0 0.0
  %1289 = vmatpush1.msra.mxu0 %v1259
  %1290 = vmatprep.subr.mxu0 0.0
  %1291 = vmatpush1.msra.mxu0 %v1260
  %1292 = vmatprep.subr.mxu0 0.0
  %1293 = vmatpush1.msra.mxu0 %v1261
  %1294 = vmatprep.subr.mxu0 0.0
  %1295 = vmatpush1.msra.mxu0 0.0
  %1296 = vmatprep.subr.mxu0 0.0
  %1297 = vmatpush1.msra.mxu0 0.0
  %1298 = vmatprep.subr.mxu0 0.0
  %1299 = vmatpush1.msra.mxu0 0.0
  %1300 = vmatprep.subr.mxu0 0.0
  %1301 = vmatpush1.msra.mxu0 0.0
  %1302 = vmatprep.subr.mxu0 0.0
  %1303 = vmatpush1.msra.mxu0 0.0
  %1304 = vmatprep.subr.mxu0 0.0
  %1305 = vmatpush1.msra.mxu0 0.0
  %1306 = vmatprep.subr.mxu0 0.0
  %1307 = vmatpush1.msra.mxu0 0.0
  %1308 = vmatprep.subr.mxu0 0.0
  %1309 = vmatpush1.msra.mxu0 0.0
  %1310 = vmatprep.subr.mxu0 0.0
  %1311 = vmatpush1.msra.mxu0 0.0
  %1312 = vmatprep.subr.mxu0 0.0
  %1313 = vmatpush1.msra.mxu0 0.0
  %1314 = vmatprep.subr.mxu0 0.0
  %1315 = vmatpush1.msra.mxu0 0.0
  %1316 = vmatprep.subr.mxu0 0.0
  %1317 = vmatpush1.msra.mxu0 0.0
  %1318 = vmatprep.subr.mxu0 0.0
  %1319 = vmatpush1.msra.mxu0 0.0
  %1320 = vmatprep.subr.mxu0 0.0
  %1321 = vmatpush1.msra.mxu0 0.0
  %1322 = vmatprep.subr.mxu0 0.0
  %1323 = vmatpush1.msra.mxu0 0.0
  %1324 = vmatprep.subr.mxu0 0.0
  %1325 = vmatpush1.msra.mxu0 0.0
  %1326 = vmatprep.mubr.f32.mxu0 0.0
  %1327 = vmatmul.mubr.f32.gmra.mrb[0].mxu0 %v1198
  %v1328 = vpop.f32.mrb[0].mxu0
  %v1329 = vadd.f32 0.0, %v1328
  %v1330 = vpop.f32.mrb[0].mxu0
  %1331 = vmatprep.mubr.f32.mxu0 0.0
  %1332 = vmatmul.mubr.f32.gmra.mrb[0].mxu0 %v1199
  %v1333 = vpop.f32.mrb[0].mxu0
  %v1334 = vadd.f32 0.0, %v1333
  %v1335 = vpop.f32.mrb[0].mxu0
  %1336 = vmatprep.mubr.f32.mxu0 0.0
  %1337 = vmatmul.mubr.f32.gmra.mrb[0].mxu0 %v1200
  %v1338 = vpop.f32.mrb[0].mxu0
  %v1339 = vadd.f32 0.0, %v1338
  %v1340 = vpop.f32.mrb[0].mxu0
  %1341 = vmatprep.mubr.f32.mxu0 0.0
  %1342 = vmatmul.mubr.f32.gmra.mrb[0].mxu0 %v1201
  %v1343 = vpop.f32.mrb[0].mxu0
  %v1344 = vadd.f32 0.0, %v1343
  %v1345 = vpop.f32.mrb[0].mxu0
  %1346 = vmatprep.mubr.f32.mxu0 0.0
  %1347 = vmatmul.mubr.f32.gmra.mrb[0].mxu0 %v1202
  %v1348 = vpop.f32.mrb[0].mxu0
  %v1349 = vadd.f32 0.0, %v1348
  %v1350 = vpop.f32.mrb[0].mxu0
  %1351 = vmatprep.mubr.f32.mxu0 0.0
  %1352 = vmatmul.mubr.f32.gmra.mrb[0].mxu0 %v1203
  %v1353 = vpop.f32.mrb[0].mxu0
  %v1354 = vadd.f32 0.0, %v1353
  %v1355 = vpop.f32.mrb[0].mxu0
  %1356 = vmatprep.mubr.f32.mxu0 0.0
  %1357 = vmatmul.mubr.f32.gmra.mrb[0].mxu0 %v1204
  %v1358 = vpop.f32.mrb[0].mxu0
  %v1359 = vadd.f32 0.0, %v1358
  %v1360 = vpop.f32.mrb[0].mxu0
  %1361 = vmatprep.mubr.f32.mxu0 0.0
  %1362 = vmatmul.mubr.f32.gmra.mrb[0].mxu0 %v1205
  %v1363 = vpop.f32.mrb[0].mxu0
  %v1364 = vadd.f32 0.0, %v1363
  %v1365 = vpop.f32.mrb[0].mxu0
  %1366 = vmatprep.mubr.f32.mxu0 0.0
  %1367 = vmatmul.mubr.f32.gmra.mrb[0].mxu0 %v1206
  %v1368 = vpop.f32.mrb[0].mxu0
  %v1369 = vadd.f32 0.0, %v1368
  %v1370 = vpop.f32.mrb[0].mxu0
  %1371 = vmatprep.mubr.f32.mxu0 0.0
  %1372 = vmatmul.mubr.f32.gmra.mrb[0].mxu0 %v1207
  %v1373 = vpop.f32.mrb[0].mxu0
  %v1374 = vadd.f32 0.0, %v1373
  %v1375 = vpop.f32.mrb[0].mxu0
  %1376 = vmatprep.mubr.f32.mxu0 0.0
  %1377 = vmatmul.mubr.f32.gmra.mrb[0].mxu0 %v1208
  %v1378 = vpop.f32.mrb[0].mxu0
  %v1379 = vadd.f32 0.0, %v1378
  %v1380 = vpop.f32.mrb[0].mxu0
  %1381 = vmatprep.mubr.f32.mxu0 0.0
  %1382 = vmatmul.mubr.f32.gmra.mrb[0].mxu0 %v1209
  %v1383 = vpop.f32.mrb[0].mxu0
  %v1384 = vadd.f32 0.0, %v1383
  %v1385 = vpop.f32.mrb[0].mxu0
  %1386 = vmatprep.mubr.f32.mxu0 0.0
  %1387 = vmatmul.mubr.f32.gmra.mrb[0].mxu0 %v1210
  %v1388 = vpop.f32.mrb[0].mxu0
  %v1389 = vadd.f32 0.0, %v1388
  %v1390 = vpop.f32.mrb[0].mxu0
  %1391 = vmatprep.mubr.f32.mxu0 0.0
  %1392 = vmatmul.mubr.f32.gmra.mrb[0].mxu0 %v1211
  %v1393 = vpop.f32.mrb[0].mxu0
  %v1394 = vadd.f32 0.0, %v1393
  %v1395 = vpop.f32.mrb[0].mxu0
  %1396 = vmatprep.mubr.f32.mxu0 0.0
  %1397 = vmatmul.mubr.f32.gmra.mrb[0].mxu0 %v1212
  %v1398 = vpop.f32.mrb[0].mxu0
  %v1399 = vadd.f32 0.0, %v1398
  %v1400 = vpop.f32.mrb[0].mxu0
  %1401 = vmatprep.mubr.f32.mxu0 0.0
  %1402 = vmatmul.mubr.f32.gmra.mrb[0].mxu0 %v1213
  %v1403 = vpop.f32.mrb[0].mxu0
  %v1404 = vadd.f32 0.0, %v1403
  %v1405 = vpop.f32.mrb[0].mxu0
  %1406 = vmatprep.mubr.f32.mxu0 0.0
  %1407 = vmatmul.mubr.f32.gmra.mrb[0].mxu0 %v1214
  %v1408 = vpop.f32.mrb[0].mxu0
  %v1409 = vadd.f32 0.0, %v1408
  %v1410 = vpop.f32.mrb[0].mxu0
  %1411 = vmatprep.mubr.f32.mxu0 0.0
  %1412 = vmatmul.mubr.f32.gmra.mrb[0].mxu0 %v1215
  %v1413 = vpop.f32.mrb[0].mxu0
  %v1414 = vadd.f32 0.0, %v1413
  %v1415 = vpop.f32.mrb[0].mxu0
  %1416 = vmatprep.mubr.f32.mxu0 0.0
  %1417 = vmatmul.mubr.f32.gmra.mrb[0].mxu0 %v1216
  %v1418 = vpop.f32.mrb[0].mxu0
  %v1419 = vadd.f32 0.0, %v1418
  %v1420 = vpop.f32.mrb[0].mxu0
  %1421 = vmatprep.mubr.f32.mxu0 0.0
  %1422 = vmatmul.mubr.f32.gmra.mrb[0].mxu0 %v1217
  %v1423 = vpop.f32.mrb[0].mxu0
  %v1424 = vadd.f32 0.0, %v1423
  %v1425 = vpop.f32.mrb[0].mxu0
  %1426 = vmatprep.mubr.f32.mxu0 0.0
  %1427 = vmatmul.mubr.f32.gmra.mrb[0].mxu0 %v1218
  %v1428 = vpop.f32.mrb[0].mxu0
  %v1429 = vadd.f32 0.0, %v1428
  %v1430 = vpop.f32.mrb[0].mxu0
  %1431 = vmatprep.mubr.f32.mxu0 0.0
  %1432 = vmatmul.mubr.f32.gmra.mrb[0].mxu0 %v1219
  %v1433 = vpop.f32.mrb[0].mxu0
  %v1434 = vadd.f32 0.0, %v1433
  %v1435 = vpop.f32.mrb[0].mxu0
  %1436 = vmatprep.mubr.f32.mxu0 0.0
  %1437 = vmatmul.mubr.f32.gmra.mrb[0].mxu0 %v1220
  %v1438 = vpop.f32.mrb[0].mxu0
  %v1439 = vadd.f32 0.0, %v1438
  %v1440 = vpop.f32.mrb[0].mxu0
  %1441 = vmatprep.mubr.f32.mxu0 0.0
  %1442 = vmatmul.mubr.f32.gmra.mrb[0].mxu0 %v1221
  %v1443 = vpop.f32.mrb[0].mxu0
  %v1444 = vadd.f32 0.0, %v1443
  %v1445 = vpop.f32.mrb[0].mxu0
  %1446 = vmatprep.mubr.f32.mxu0 0.0
  %1447 = vmatmul.mubr.f32.gmra.mrb[0].mxu0 %v1222
  %v1448 = vpop.f32.mrb[0].mxu0
  %v1449 = vadd.f32 0.0, %v1448
  %v1450 = vpop.f32.mrb[0].mxu0
  %1451 = vmatprep.mubr.f32.mxu0 0.0
  %1452 = vmatmul.mubr.f32.gmra.mrb[0].mxu0 %v1223
  %v1453 = vpop.f32.mrb[0].mxu0
  %v1454 = vadd.f32 0.0, %v1453
  %v1455 = vpop.f32.mrb[0].mxu0
  %1456 = vmatprep.mubr.f32.mxu0 0.0
  %1457 = vmatmul.mubr.f32.gmra.mrb[0].mxu0 %v1224
  %v1458 = vpop.f32.mrb[0].mxu0
  %v1459 = vadd.f32 0.0, %v1458
  %v1460 = vpop.f32.mrb[0].mxu0
  %1461 = vmatprep.mubr.f32.mxu0 0.0
  %1462 = vmatmul.mubr.f32.gmra.mrb[0].mxu0 %v1225
  %v1463 = vpop.f32.mrb[0].mxu0
  %v1464 = vadd.f32 0.0, %v1463
  %v1465 = vpop.f32.mrb[0].mxu0
  %1466 = vmatprep.mubr.f32.mxu0 0.0
  %1467 = vmatmul.mubr.f32.gmra.mrb[0].mxu0 %v1226
  %v1468 = vpop.f32.mrb[0].mxu0
  %v1469 = vadd.f32 0.0, %v1468
  %v1470 = vpop.f32.mrb[0].mxu0
  %1471 = vmatprep.mubr.f32.mxu0 0.0
  %1472 = vmatmul.mubr.f32.gmra.mrb[0].mxu0 %v1227
  %v1473 = vpop.f32.mrb[0].mxu0
  %v1474 = vadd.f32 0.0, %v1473
  %v1475 = vpop.f32.mrb[0].mxu0
  %1476 = vmatprep.mubr.f32.mxu0 0.0
  %1477 = vmatmul.mubr.f32.gmra.mrb[0].mxu0 %v1228
  %v1478 = vpop.f32.mrb[0].mxu0
  %v1479 = vadd.f32 0.0, %v1478
  %v1480 = vpop.f32.mrb[0].mxu0
  %1481 = vmatprep.mubr.f32.mxu0 0.0
  %1482 = vmatmul.mubr.f32.gmra.mrb[0].mxu0 %v1229
  %v1483 = vpop.f32.mrb[0].mxu0
  %v1484 = vadd.f32 0.0, %v1483
  %v1485 = vpop.f32.mrb[0].mxu0
  %1486 = vdwg.mxu0
  %v1487 = vld [vmem:[%s2] sm:$0xff]
  %v1488 = vld [vmem:[%s2 + $0x8] sm:$0xff]
  %v1489 = vld [vmem:[%s2 + $0x10] sm:$0xff]
  %v1490 = vld [vmem:[%s2 + $0x18] sm:$0xff]
  %v1491 = vld [vmem:[%s2 + $0x20] sm:$0xff]
  %v1492 = vld [vmem:[%s2 + $0x28] sm:$0xff]
  %v1493 = vld [vmem:[%s2 + $0x30] sm:$0xff]
  %v1494 = vld [vmem:[%s2 + $0x38] sm:$0xff]
  %v1495 = vld [vmem:[%s2 + $0x40] sm:$0xff]
  %v1496 = vld [vmem:[%s2 + $0x48] sm:$0xff]
  %v1497 = vld [vmem:[%s2 + $0x50] sm:$0xff]
  %v1498 = vld [vmem:[%s2 + $0x58] sm:$0xff]
  %v1499 = vld [vmem:[%s2 + $0x60] sm:$0xff]
  %v1500 = vld [vmem:[%s2 + $0x68] sm:$0xff]
  %v1501 = vld [vmem:[%s2 + $0x70] sm:$0xff]
  %v1502 = vld [vmem:[%s2 + $0x78] sm:$0xff]
  %v1503 = vld [vmem:[%s2 + $0x80] sm:$0xff]
  %v1504 = vld [vmem:[%s2 + $0x88] sm:$0xff]
  %v1505 = vld [vmem:[%s2 + $0x90] sm:$0xff]
  %v1506 = vld [vmem:[%s2 + $0x98] sm:$0xff]
  %v1507 = vld [vmem:[%s2 + $0xa0] sm:$0xff]
  %v1508 = vld [vmem:[%s2 + $0xa8] sm:$0xff]
  %v1509 = vld [vmem:[%s2 + $0xb0] sm:$0xff]
  %v1510 = vld [vmem:[%s2 + $0xb8] sm:$0xff]
  %v1511 = vld [vmem:[%s2 + $0xc0] sm:$0xff]
  %v1512 = vld [vmem:[%s2 + $0xc8] sm:$0xff]
  %v1513 = vld [vmem:[%s2 + $0xd0] sm:$0xff]
  %v1514 = vld [vmem:[%s2 + $0xd8] sm:$0xff]
  %v1515 = vld [vmem:[%s2 + $0xe0] sm:$0xff]
  %v1516 = vld [vmem:[%s2 + $0xe8] sm:$0xff]
  %v1517 = vld [vmem:[%s2 + $0xf0] sm:$0xff]
  %v1518 = vld [vmem:[%s2 + $0xf8] sm:$0xff]
  %v1519 = vld [vmem:[%s7] sm:$0x1]
  %1521 = vset.pattern.permute.xlu0 0
  %1522 = vperm.xlu0 %1521, %v1487
  %v1523 = vpop.permute.xlu0 %1522
  %1526 = vset.pattern.permute.xlu0 0
  %1527 = vperm.xlu0 %1526, %v1488
  %v1528 = vpop.permute.xlu0 %1527
  %1531 = vset.pattern.permute.xlu0 0
  %1532 = vperm.xlu0 %1531, %v1489
  %v1533 = vpop.permute.xlu0 %1532
  %1536 = vset.pattern.permute.xlu0 0
  %1537 = vperm.xlu0 %1536, %v1490
  %v1538 = vpop.permute.xlu0 %1537
  %1541 = vset.pattern.permute.xlu0 0
  %1542 = vperm.xlu0 %1541, %v1491
  %v1543 = vpop.permute.xlu0 %1542
  %1546 = vset.pattern.permute.xlu0 0
  %1547 = vperm.xlu0 %1546, %v1492
  %v1548 = vpop.permute.xlu0 %1547
  %1551 = vset.pattern.permute.xlu0 0
  %1552 = vperm.xlu0 %1551, %v1493
  %v1553 = vpop.permute.xlu0 %1552
  %1556 = vset.pattern.permute.xlu0 0
  %1557 = vperm.xlu0 %1556, %v1494
  %v1558 = vpop.permute.xlu0 %1557
  %1561 = vset.pattern.permute.xlu0 0
  %1562 = vperm.xlu0 %1561, %v1495
  %v1563 = vpop.permute.xlu0 %1562
  %1566 = vset.pattern.permute.xlu0 0
  %1567 = vperm.xlu0 %1566, %v1496
  %v1568 = vpop.permute.xlu0 %1567
  %1571 = vset.pattern.permute.xlu0 0
  %1572 = vperm.xlu0 %1571, %v1497
  %v1573 = vpop.permute.xlu0 %1572
  %1576 = vset.pattern.permute.xlu0 0
  %1577 = vperm.xlu0 %1576, %v1498
  %v1578 = vpop.permute.xlu0 %1577
  %1581 = vset.pattern.permute.xlu0 0
  %1582 = vperm.xlu0 %1581, %v1499
  %v1583 = vpop.permute.xlu0 %1582
  %1586 = vset.pattern.permute.xlu0 0
  %1587 = vperm.xlu0 %1586, %v1500
  %v1588 = vpop.permute.xlu0 %1587
  %1591 = vset.pattern.permute.xlu0 0
  %1592 = vperm.xlu0 %1591, %v1501
  %v1593 = vpop.permute.xlu0 %1592
  %1596 = vset.pattern.permute.xlu0 0
  %1597 = vperm.xlu0 %1596, %v1502
  %v1598 = vpop.permute.xlu0 %1597
  %1601 = vset.pattern.permute.xlu0 0
  %1602 = vperm.xlu0 %1601, %v1503
  %v1603 = vpop.permute.xlu0 %1602
  %1606 = vset.pattern.permute.xlu0 0
  %1607 = vperm.xlu0 %1606, %v1504
  %v1608 = vpop.permute.xlu0 %1607
  %1611 = vset.pattern.permute.xlu0 0
  %1612 = vperm.xlu0 %1611, %v1505
  %v1613 = vpop.permute.xlu0 %1612
  %1616 = vset.pattern.permute.xlu0 0
  %1617 = vperm.xlu0 %1616, %v1506
  %v1618 = vpop.permute.xlu0 %1617
  %1621 = vset.pattern.permute.xlu0 0
  %1622 = vperm.xlu0 %1621, %v1507
  %v1623 = vpop.permute.xlu0 %1622
  %1626 = vset.pattern.permute.xlu0 0
  %1627 = vperm.xlu0 %1626, %v1508
  %v1628 = vpop.permute.xlu0 %1627
  %1631 = vset.pattern.permute.xlu0 0
  %1632 = vperm.xlu0 %1631, %v1509
  %v1633 = vpop.permute.xlu0 %1632
  %1636 = vset.pattern.permute.xlu0 0
  %1637 = vperm.xlu0 %1636, %v1510
  %v1638 = vpop.permute.xlu0 %1637
  %1641 = vset.pattern.permute.xlu0 0
  %1642 = vperm.xlu0 %1641, %v1511
  %v1643 = vpop.permute.xlu0 %1642
  %1646 = vset.pattern.permute.xlu0 0
  %1647 = vperm.xlu0 %1646, %v1512
  %v1648 = vpop.permute.xlu0 %1647
  %1651 = vset.pattern.permute.xlu0 0
  %1652 = vperm.xlu0 %1651, %v1513
  %v1653 = vpop.permute.xlu0 %1652
  %1656 = vset.pattern.permute.xlu0 0
  %1657 = vperm.xlu0 %1656, %v1514
  %v1658 = vpop.permute.xlu0 %1657
  %1661 = vset.pattern.permute.xlu0 0
  %1662 = vperm.xlu0 %1661, %v1515
  %v1663 = vpop.permute.xlu0 %1662
  %1666 = vset.pattern.permute.xlu0 0
  %1667 = vperm.xlu0 %1666, %v1516
  %v1668 = vpop.permute.xlu0 %1667
  %1671 = vset.pattern.permute.xlu0 0
  %1672 = vperm.xlu0 %1671, %v1517
  %v1673 = vpop.permute.xlu0 %1672
  %1676 = vset.pattern.permute.xlu0 0
  %1677 = vperm.xlu0 %1676, %v1518
  %v1678 = vpop.permute.xlu0 %1677
  %v1681 = vlaneseq
  %v1682 = vshrl.u32 %v1681, 7
  %v1683 = vsub.s32 0, %v1682
  %v1684 = vrot.slane %v1519, %v1683
  %v1686 = vmul.f32 %v1523, %v1684
  %v1687 = vmul.f32 %v1528, %v1684
  %v1688 = vmul.f32 %v1533, %v1684
  %v1689 = vmul.f32 %v1538, %v1684
  %v1690 = vmul.f32 %v1543, %v1684
  %v1691 = vmul.f32 %v1548, %v1684
  %v1692 = vmul.f32 %v1553, %v1684
  %v1693 = vmul.f32 %v1558, %v1684
  %v1694 = vmul.f32 %v1563, %v1684
  %v1695 = vmul.f32 %v1568, %v1684
  %v1696 = vmul.f32 %v1573, %v1684
  %v1697 = vmul.f32 %v1578, %v1684
  %v1698 = vmul.f32 %v1583, %v1684
  %v1699 = vmul.f32 %v1588, %v1684
  %v1700 = vmul.f32 %v1593, %v1684
  %v1701 = vmul.f32 %v1598, %v1684
  %v1702 = vmul.f32 %v1603, %v1684
  %v1703 = vmul.f32 %v1608, %v1684
  %v1704 = vmul.f32 %v1613, %v1684
  %v1705 = vmul.f32 %v1618, %v1684
  %v1706 = vmul.f32 %v1623, %v1684
  %v1707 = vmul.f32 %v1628, %v1684
  %v1708 = vmul.f32 %v1633, %v1684
  %v1709 = vmul.f32 %v1638, %v1684
  %v1710 = vmul.f32 %v1643, %v1684
  %v1711 = vmul.f32 %v1648, %v1684
  %v1712 = vmul.f32 %v1653, %v1684
  %v1713 = vmul.f32 %v1658, %v1684
  %v1714 = vmul.f32 %v1663, %v1684
  %v1715 = vmul.f32 %v1668, %v1684
  %v1716 = vmul.f32 %v1673, %v1684
  %v1717 = vmul.f32 %v1678, %v1684
  %1718 = vmatprep.subr.mxu0 0.0
  %1719 = vmatpush1.msra.mxu0 %v1230
  %1720 = vmatprep.subr.mxu0 0.0
  %1721 = vmatpush1.msra.mxu0 %v1231
  %1722 = vmatprep.subr.mxu0 0.0
  %1723 = vmatpush1.msra.mxu0 %v1232
  %1724 = vmatprep.subr.mxu0 0.0
  %1725 = vmatpush1.msra.mxu0 %v1233
  %1726 = vmatprep.subr.mxu0 0.0
  %1727 = vmatpush1.msra.mxu0 %v1234
  %1728 = vmatprep.subr.mxu0 0.0
  %1729 = vmatpush1.msra.mxu0 %v1235
  %1730 = vmatprep.subr.mxu0 0.0
  %1731 = vmatpush1.msra.mxu0 %v1236
  %1732 = vmatprep.subr.mxu0 0.0
  %1733 = vmatpush1.msra.mxu0 %v1237
  %1734 = vmatprep.subr.mxu0 0.0
  %1735 = vmatpush1.msra.mxu0 %v1238
  %1736 = vmatprep.subr.mxu0 0.0
  %1737 = vmatpush1.msra.mxu0 %v1239
  %1738 = vmatprep.subr.mxu0 0.0
  %1739 = vmatpush1.msra.mxu0 %v1240
  %1740 = vmatprep.subr.mxu0 0.0
  %1741 = vmatpush1.msra.mxu0 %v1241
  %1742 = vmatprep.subr.mxu0 0.0
  %1743 = vmatpush1.msra.mxu0 %v1242
  %1744 = vmatprep.subr.mxu0 0.0
  %1745 = vmatpush1.msra.mxu0 %v1243
  %1746 = vmatprep.subr.mxu0 0.0
  %1747 = vmatpush1.msra.mxu0 %v1244
  %1748 = vmatprep.subr.mxu0 0.0
  %1749 = vmatpush1.msra.mxu0 %v1245
  %1750 = vmatprep.subr.mxu0 0.0
  %1751 = vmatpush1.msra.mxu0 0.0
  %1752 = vmatprep.subr.mxu0 0.0
  %1753 = vmatpush1.msra.mxu0 0.0
  %1754 = vmatprep.subr.mxu0 0.0
  %1755 = vmatpush1.msra.mxu0 0.0
  %1756 = vmatprep.subr.mxu0 0.0
  %1757 = vmatpush1.msra.mxu0 0.0
  %1758 = vmatprep.subr.mxu0 0.0
  %1759 = vmatpush1.msra.mxu0 0.0
  %1760 = vmatprep.subr.mxu0 0.0
  %1761 = vmatpush1.msra.mxu0 0.0
  %1762 = vmatprep.subr.mxu0 0.0
  %1763 = vmatpush1.msra.mxu0 0.0
  %1764 = vmatprep.subr.mxu0 0.0
  %1765 = vmatpush1.msra.mxu0 0.0
  %1766 = vmatprep.subr.mxu0 0.0
  %1767 = vmatpush1.msra.mxu0 0.0
  %1768 = vmatprep.subr.mxu0 0.0
  %1769 = vmatpush1.msra.mxu0 0.0
  %1770 = vmatprep.subr.mxu0 0.0
  %1771 = vmatpush1.msra.mxu0 0.0
  %1772 = vmatprep.subr.mxu0 0.0
  %1773 = vmatpush1.msra.mxu0 0.0
  %1774 = vmatprep.subr.mxu0 0.0
  %1775 = vmatpush1.msra.mxu0 0.0
  %1776 = vmatprep.subr.mxu0 0.0
  %1777 = vmatpush1.msra.mxu0 0.0
  %1778 = vmatprep.subr.mxu0 0.0
  %1779 = vmatpush1.msra.mxu0 0.0
  %1780 = vmatprep.subr.mxu0 0.0
  %1781 = vmatpush1.msra.mxu0 0.0
  %1782 = vmatprep.mubr.f32.mxu0 0.0
  %1783 = vmatmul.mubr.f32.gmra.mrb[0].mxu0 %v1006
  %v1784 = vpop.f32.mrb[0].mxu0
  %v1785 = vadd.f32 %v1329, %v1784
  %v1786 = vpop.f32.mrb[0].mxu0
  %1787 = vmatprep.mubr.f32.mxu0 0.0
  %1788 = vmatmul.mubr.f32.gmra.mrb[0].mxu0 %v1007
  %v1789 = vpop.f32.mrb[0].mxu0
  %v1790 = vadd.f32 %v1334, %v1789
  %v1791 = vpop.f32.mrb[0].mxu0
  %1792 = vmatprep.mubr.f32.mxu0 0.0
  %1793 = vmatmul.mubr.f32.gmra.mrb[0].mxu0 %v1008
  %v1794 = vpop.f32.mrb[0].mxu0
  %v1795 = vadd.f32 %v1339, %v1794
  %v1796 = vpop.f32.mrb[0].mxu0
  %1797 = vmatprep.mubr.f32.mxu0 0.0
  %1798 = vmatmul.mubr.f32.gmra.mrb[0].mxu0 %v1009
  %v1799 = vpop.f32.mrb[0].mxu0
  %v1800 = vadd.f32 %v1344, %v1799
  %v1801 = vpop.f32.mrb[0].mxu0
  %1802 = vmatprep.mubr.f32.mxu0 0.0
  %1803 = vmatmul.mubr.f32.gmra.mrb[0].mxu0 %v1010
  %v1804 = vpop.f32.mrb[0].mxu0
  %v1805 = vadd.f32 %v1349, %v1804
  %v1806 = vpop.f32.mrb[0].mxu0
  %1807 = vmatprep.mubr.f32.mxu0 0.0
  %1808 = vmatmul.mubr.f32.gmra.mrb[0].mxu0 %v1011
  %v1809 = vpop.f32.mrb[0].mxu0
  %v1810 = vadd.f32 %v1354, %v1809
  %v1811 = vpop.f32.mrb[0].mxu0
  %1812 = vmatprep.mubr.f32.mxu0 0.0
  %1813 = vmatmul.mubr.f32.gmra.mrb[0].mxu0 %v1012
  %v1814 = vpop.f32.mrb[0].mxu0
  %v1815 = vadd.f32 %v1359, %v1814
  %v1816 = vpop.f32.mrb[0].mxu0
  %1817 = vmatprep.mubr.f32.mxu0 0.0
  %1818 = vmatmul.mubr.f32.gmra.mrb[0].mxu0 %v1013
  %v1819 = vpop.f32.mrb[0].mxu0
  %v1820 = vadd.f32 %v1364, %v1819
  %v1821 = vpop.f32.mrb[0].mxu0
  %1822 = vmatprep.mubr.f32.mxu0 0.0
  %1823 = vmatmul.mubr.f32.gmra.mrb[0].mxu0 %v1014
  %v1824 = vpop.f32.mrb[0].mxu0
  %v1825 = vadd.f32 %v1369, %v1824
  %v1826 = vpop.f32.mrb[0].mxu0
  %1827 = vmatprep.mubr.f32.mxu0 0.0
  %1828 = vmatmul.mubr.f32.gmra.mrb[0].mxu0 %v1015
  %v1829 = vpop.f32.mrb[0].mxu0
  %v1830 = vadd.f32 %v1374, %v1829
  %v1831 = vpop.f32.mrb[0].mxu0
  %1832 = vmatprep.mubr.f32.mxu0 0.0
  %1833 = vmatmul.mubr.f32.gmra.mrb[0].mxu0 %v1016
  %v1834 = vpop.f32.mrb[0].mxu0
  %v1835 = vadd.f32 %v1379, %v1834
  %v1836 = vpop.f32.mrb[0].mxu0
  %1837 = vmatprep.mubr.f32.mxu0 0.0
  %1838 = vmatmul.mubr.f32.gmra.mrb[0].mxu0 %v1017
  %v1839 = vpop.f32.mrb[0].mxu0
  %v1840 = vadd.f32 %v1384, %v1839
  %v1841 = vpop.f32.mrb[0].mxu0
  %1842 = vmatprep.mubr.f32.mxu0 0.0
  %1843 = vmatmul.mubr.f32.gmra.mrb[0].mxu0 %v1018
  %v1844 = vpop.f32.mrb[0].mxu0
  %v1845 = vadd.f32 %v1389, %v1844
  %v1846 = vpop.f32.mrb[0].mxu0
  %1847 = vmatprep.mubr.f32.mxu0 0.0
  %1848 = vmatmul.mubr.f32.gmra.mrb[0].mxu0 %v1019
  %v1849 = vpop.f32.mrb[0].mxu0
  %v1850 = vadd.f32 %v1394, %v1849
  %v1851 = vpop.f32.mrb[0].mxu0
  %1852 = vmatprep.mubr.f32.mxu0 0.0
  %1853 = vmatmul.mubr.f32.gmra.mrb[0].mxu0 %v1020
  %v1854 = vpop.f32.mrb[0].mxu0
  %v1855 = vadd.f32 %v1399, %v1854
  %v1856 = vpop.f32.mrb[0].mxu0
  %1857 = vmatprep.mubr.f32.mxu0 0.0
  %1858 = vmatmul.mubr.f32.gmra.mrb[0].mxu0 %v1021
  %v1859 = vpop.f32.mrb[0].mxu0
  %v1860 = vadd.f32 %v1404, %v1859
  %v1861 = vpop.f32.mrb[0].mxu0
  %1862 = vmatprep.mubr.f32.mxu0 0.0
  %1863 = vmatmul.mubr.f32.gmra.mrb[0].mxu0 %v1022
  %v1864 = vpop.f32.mrb[0].mxu0
  %v1865 = vadd.f32 %v1409, %v1864
  %v1866 = vpop.f32.mrb[0].mxu0
  %1867 = vmatprep.mubr.f32.mxu0 0.0
  %1868 = vmatmul.mubr.f32.gmra.mrb[0].mxu0 %v1023
  %v1869 = vpop.f32.mrb[0].mxu0
  %v1870 = vadd.f32 %v1414, %v1869
  %v1871 = vpop.f32.mrb[0].mxu0
  %1872 = vmatprep.mubr.f32.mxu0 0.0
  %1873 = vmatmul.mubr.f32.gmra.mrb[0].mxu0 %v1024
  %v1874 = vpop.f32.mrb[0].mxu0
  %v1875 = vadd.f32 %v1419, %v1874
  %v1876 = vpop.f32.mrb[0].mxu0
  %1877 = vmatprep.mubr.f32.mxu0 0.0
  %1878 = vmatmul.mubr.f32.gmra.mrb[0].mxu0 %v1025
  %v1879 = vpop.f32.mrb[0].mxu0
  %v1880 = vadd.f32 %v1424, %v1879
  %v1881 = vpop.f32.mrb[0].mxu0
  %1882 = vmatprep.mubr.f32.mxu0 0.0
  %1883 = vmatmul.mubr.f32.gmra.mrb[0].mxu0 %v1026
  %v1884 = vpop.f32.mrb[0].mxu0
  %v1885 = vadd.f32 %v1429, %v1884
  %v1886 = vpop.f32.mrb[0].mxu0
  %1887 = vmatprep.mubr.f32.mxu0 0.0
  %1888 = vmatmul.mubr.f32.gmra.mrb[0].mxu0 %v1027
  %v1889 = vpop.f32.mrb[0].mxu0
  %v1890 = vadd.f32 %v1434, %v1889
  %v1891 = vpop.f32.mrb[0].mxu0
  %1892 = vmatprep.mubr.f32.mxu0 0.0
  %1893 = vmatmul.mubr.f32.gmra.mrb[0].mxu0 %v1028
  %v1894 = vpop.f32.mrb[0].mxu0
  %v1895 = vadd.f32 %v1439, %v1894
  %v1896 = vpop.f32.mrb[0].mxu0
  %1897 = vmatprep.mubr.f32.mxu0 0.0
  %1898 = vmatmul.mubr.f32.gmra.mrb[0].mxu0 %v1029
  %v1899 = vpop.f32.mrb[0].mxu0
  %v1900 = vadd.f32 %v1444, %v1899
  %v1901 = vpop.f32.mrb[0].mxu0
  %1902 = vmatprep.mubr.f32.mxu0 0.0
  %1903 = vmatmul.mubr.f32.gmra.mrb[0].mxu0 %v1030
  %v1904 = vpop.f32.mrb[0].mxu0
  %v1905 = vadd.f32 %v1449, %v1904
  %v1906 = vpop.f32.mrb[0].mxu0
  %1907 = vmatprep.mubr.f32.mxu0 0.0
  %1908 = vmatmul.mubr.f32.gmra.mrb[0].mxu0 %v1031
  %v1909 = vpop.f32.mrb[0].mxu0
  %v1910 = vadd.f32 %v1454, %v1909
  %v1911 = vpop.f32.mrb[0].mxu0
  %1912 = vmatprep.mubr.f32.mxu0 0.0
  %1913 = vmatmul.mubr.f32.gmra.mrb[0].mxu0 %v1032
  %v1914 = vpop.f32.mrb[0].mxu0
  %v1915 = vadd.f32 %v1459, %v1914
  %v1916 = vpop.f32.mrb[0].mxu0
  %1917 = vmatprep.mubr.f32.mxu0 0.0
  %1918 = vmatmul.mubr.f32.gmra.mrb[0].mxu0 %v1033
  %v1919 = vpop.f32.mrb[0].mxu0
  %v1920 = vadd.f32 %v1464, %v1919
  %v1921 = vpop.f32.mrb[0].mxu0
  %1922 = vmatprep.mubr.f32.mxu0 0.0
  %1923 = vmatmul.mubr.f32.gmra.mrb[0].mxu0 %v1034
  %v1924 = vpop.f32.mrb[0].mxu0
  %v1925 = vadd.f32 %v1469, %v1924
  %v1926 = vpop.f32.mrb[0].mxu0
  %1927 = vmatprep.mubr.f32.mxu0 0.0
  %1928 = vmatmul.mubr.f32.gmra.mrb[0].mxu0 %v1035
  %v1929 = vpop.f32.mrb[0].mxu0
  %v1930 = vadd.f32 %v1474, %v1929
  %v1931 = vpop.f32.mrb[0].mxu0
  %1932 = vmatprep.mubr.f32.mxu0 0.0
  %1933 = vmatmul.mubr.f32.gmra.mrb[0].mxu0 %v1036
  %v1934 = vpop.f32.mrb[0].mxu0
  %v1935 = vadd.f32 %v1479, %v1934
  %v1936 = vpop.f32.mrb[0].mxu0
  %1937 = vmatprep.mubr.f32.mxu0 0.0
  %1938 = vmatmul.mubr.f32.gmra.mrb[0].mxu0 %v1037
  %v1939 = vpop.f32.mrb[0].mxu0
  %v1940 = vadd.f32 %v1484, %v1939
  %v1941 = vpop.f32.mrb[0].mxu0
  %1942 = vdwg.mxu0
  %v1943 = vadd.f32 %v1785, %v1686
  %v1944 = vadd.f32 %v1790, %v1687
  %v1945 = vadd.f32 %v1795, %v1688
  %v1946 = vadd.f32 %v1800, %v1689
  %v1947 = vadd.f32 %v1805, %v1690
  %v1948 = vadd.f32 %v1810, %v1691
  %v1949 = vadd.f32 %v1815, %v1692
  %v1950 = vadd.f32 %v1820, %v1693
  %v1951 = vadd.f32 %v1825, %v1694
  %v1952 = vadd.f32 %v1830, %v1695
  %v1953 = vadd.f32 %v1835, %v1696
  %v1954 = vadd.f32 %v1840, %v1697
  %v1955 = vadd.f32 %v1845, %v1698
  %v1956 = vadd.f32 %v1850, %v1699
  %v1957 = vadd.f32 %v1855, %v1700
  %v1958 = vadd.f32 %v1860, %v1701
  %v1959 = vadd.f32 %v1865, %v1702
  %v1960 = vadd.f32 %v1870, %v1703
  %v1961 = vadd.f32 %v1875, %v1704
  %v1962 = vadd.f32 %v1880, %v1705
  %v1963 = vadd.f32 %v1885, %v1706
  %v1964 = vadd.f32 %v1890, %v1707
  %v1965 = vadd.f32 %v1895, %v1708
  %v1966 = vadd.f32 %v1900, %v1709
  %v1967 = vadd.f32 %v1905, %v1710
  %v1968 = vadd.f32 %v1910, %v1711
  %v1969 = vadd.f32 %v1915, %v1712
  %v1970 = vadd.f32 %v1920, %v1713
  %v1971 = vadd.f32 %v1925, %v1714
  %v1972 = vadd.f32 %v1930, %v1715
  %v1973 = vadd.f32 %v1935, %v1716
  %v1974 = vadd.f32 %v1940, %v1717
  %v1975 = vmax.f32 %v1943, 0.0
  %v1976 = vmax.f32 %v1944, 0.0
  %v1977 = vmax.f32 %v1945, 0.0
  %v1978 = vmax.f32 %v1946, 0.0
  %v1979 = vmax.f32 %v1947, 0.0
  %v1980 = vmax.f32 %v1948, 0.0
  %v1981 = vmax.f32 %v1949, 0.0
  %v1982 = vmax.f32 %v1950, 0.0
  %v1983 = vmax.f32 %v1951, 0.0
  %v1984 = vmax.f32 %v1952, 0.0
  %v1985 = vmax.f32 %v1953, 0.0
  %v1986 = vmax.f32 %v1954, 0.0
  %v1987 = vmax.f32 %v1955, 0.0
  %v1988 = vmax.f32 %v1956, 0.0
  %v1989 = vmax.f32 %v1957, 0.0
  %v1990 = vmax.f32 %v1958, 0.0
  %v1991 = vmax.f32 %v1959, 0.0
  %v1992 = vmax.f32 %v1960, 0.0
  %v1993 = vmax.f32 %v1961, 0.0
  %v1994 = vmax.f32 %v1962, 0.0
  %v1995 = vmax.f32 %v1963, 0.0
  %v1996 = vmax.f32 %v1964, 0.0
  %v1997 = vmax.f32 %v1965, 0.0
  %v1998 = vmax.f32 %v1966, 0.0
  %v1999 = vmax.f32 %v1967, 0.0
  %v2000 = vmax.f32 %v1968, 0.0
  %v2001 = vmax.f32 %v1969, 0.0
  %v2002 = vmax.f32 %v1970, 0.0
  %v2003 = vmax.f32 %v1971, 0.0
  %v2004 = vmax.f32 %v1972, 0.0
  %v2005 = vmax.f32 %v1973, 0.0
  %v2006 = vmax.f32 %v1974, 0.0
  %v2007 = vld [vmem:[%s9] sm:$0xff]
  %v2008 = vld [vmem:[%s9 + $0x8] sm:$0xff]
  %v2009 = vld [vmem:[%s9 + $0x10] sm:$0xff]
  %v2010 = vld [vmem:[%s9 + $0x18] sm:$0xff]
  %v2011 = vld [vmem:[%s9 + $0x20] sm:$0xff]
  %v2012 = vld [vmem:[%s9 + $0x28] sm:$0xff]
  %v2013 = vld [vmem:[%s9 + $0x30] sm:$0xff]
  %v2014 = vld [vmem:[%s9 + $0x38] sm:$0xff]
  %v2015 = vld [vmem:[%s10] sm:$0x1]
  %v2017 = vlaneseq
  %v2018 = vshrl.u32 %v2017, 7
  %v2019 = vsub.s32 0, %v2018
  %v2020 = vrot.slane %v2015, %v2019
  %vm2022 = vcmask 523264
  %v2024 = vsel %vm2022, %v1975, 0
  %v2027 = vsel %vm2022, %v1976, 0
  %v2030 = vsel %vm2022, %v1977, 0
  %v2033 = vsel %vm2022, %v1978, 0
  %v2036 = vsel %vm2022, %v1979, 0
  %v2039 = vsel %vm2022, %v1980, 0
  %v2042 = vsel %vm2022, %v1981, 0
  %v2045 = vsel %vm2022, %v1982, 0
  %v2048 = vsel %vm2022, %v1983, 0
  %v2051 = vsel %vm2022, %v1984, 0
  %v2054 = vsel %vm2022, %v1985, 0
  %v2057 = vsel %vm2022, %v1986, 0
  %v2060 = vsel %vm2022, %v1987, 0
  %v2063 = vsel %vm2022, %v1988, 0
  %v2066 = vsel %vm2022, %v1989, 0
  %v2069 = vsel %vm2022, %v1990, 0
  %v2072 = vsel %vm2022, %v1991, 0
  %v2075 = vsel %vm2022, %v1992, 0
  %v2078 = vsel %vm2022, %v1993, 0
  %v2081 = vsel %vm2022, %v1994, 0
  %v2084 = vsel %vm2022, %v1995, 0
  %v2087 = vsel %vm2022, %v1996, 0
  %v2090 = vsel %vm2022, %v1997, 0
  %v2093 = vsel %vm2022, %v1998, 0
  %v2096 = vsel %vm2022, %v1999, 0
  %v2099 = vsel %vm2022, %v2000, 0
  %v2102 = vsel %vm2022, %v2001, 0
  %v2105 = vsel %vm2022, %v2002, 0
  %v2108 = vsel %vm2022, %v2003, 0
  %v2111 = vsel %vm2022, %v2004, 0
  %v2114 = vsel %vm2022, %v2005, 0
  %v2117 = vsel %vm2022, %v2006, 0
  %2119 = vmatprep.subr.mxu0 0.0
  %2120 = vmatpush1.msra.mxu0 %v2007
  %2121 = vmatprep.subr.mxu0 0.0
  %2122 = vmatpush1.msra.mxu0 %v2008
  %2123 = vmatprep.subr.mxu0 0.0
  %2124 = vmatpush1.msra.mxu0 %v2009
  %2125 = vmatprep.subr.mxu0 0.0
  %2126 = vmatpush1.msra.mxu0 %v2010
  %2127 = vmatprep.subr.mxu0 0.0
  %2128 = vmatpush1.msra.mxu0 %v2011
  %2129 = vmatprep.subr.mxu0 0.0
  %2130 = vmatpush1.msra.mxu0 %v2012
  %2131 = vmatprep.subr.mxu0 0.0
  %2132 = vmatpush1.msra.mxu0 %v2013
  %2133 = vmatprep.subr.mxu0 0.0
  %2134 = vmatpush1.msra.mxu0 %v2014
  %2135 = vmatprep.subr.mxu0 0.0
  %2136 = vmatpush1.msra.mxu0 0.0
  %2137 = vmatprep.subr.mxu0 0.0
  %2138 = vmatpush1.msra.mxu0 0.0
  %2139 = vmatprep.subr.mxu0 0.0
  %2140 = vmatpush1.msra.mxu0 0.0
  %2141 = vmatprep.subr.mxu0 0.0
  %2142 = vmatpush1.msra.mxu0 0.0
  %2143 = vmatprep.subr.mxu0 0.0
  %2144 = vmatpush1.msra.mxu0 0.0
  %2145 = vmatprep.subr.mxu0 0.0
  %2146 = vmatpush1.msra.mxu0 0.0
  %2147 = vmatprep.subr.mxu0 0.0
  %2148 = vmatpush1.msra.mxu0 0.0
  %2149 = vmatprep.subr.mxu0 0.0
  %2150 = vmatpush1.msra.mxu0 0.0
  %2151 = vmatprep.subr.mxu0 0.0
  %2152 = vmatpush1.msra.mxu0 0.0
  %2153 = vmatprep.subr.mxu0 0.0
  %2154 = vmatpush1.msra.mxu0 0.0
  %2155 = vmatprep.subr.mxu0 0.0
  %2156 = vmatpush1.msra.mxu0 0.0
  %2157 = vmatprep.subr.mxu0 0.0
  %2158 = vmatpush1.msra.mxu0 0.0
  %2159 = vmatprep.subr.mxu0 0.0
  %2160 = vmatpush1.msra.mxu0 0.0
  %2161 = vmatprep.subr.mxu0 0.0
  %2162 = vmatpush1.msra.mxu0 0.0
  %2163 = vmatprep.subr.mxu0 0.0
  %2164 = vmatpush1.msra.mxu0 0.0
  %2165 = vmatprep.subr.mxu0 0.0
  %2166 = vmatpush1.msra.mxu0 0.0
  %2167 = vmatprep.subr.mxu0 0.0
  %2168 = vmatpush1.msra.mxu0 0.0
  %2169 = vmatprep.subr.mxu0 0.0
  %2170 = vmatpush1.msra.mxu0 0.0
  %2171 = vmatprep.subr.mxu0 0.0
  %2172 = vmatpush1.msra.mxu0 0.0
  %2173 = vmatprep.subr.mxu0 0.0
  %2174 = vmatpush1.msra.mxu0 0.0
  %2175 = vmatprep.subr.mxu0 0.0
  %2176 = vmatpush1.msra.mxu0 0.0
  %2177 = vmatprep.subr.mxu0 0.0
  %2178 = vmatpush1.msra.mxu0 0.0
  %2179 = vmatprep.subr.mxu0 0.0
  %2180 = vmatpush1.msra.mxu0 0.0
  %2181 = vmatprep.subr.mxu0 0.0
  %2182 = vmatpush1.msra.mxu0 0.0
  %2183 = vmatprep.mubr.f32.mxu0 0.0
  %2184 = vmatmul.mubr.f32.gmra.mrb[0].mxu0 %v2024
  %v2185 = vpop.f32.mrb[0].mxu0
  %v2186 = vadd.f32 %v2020, %v2185
  %v2187 = vpop.f32.mrb[0].mxu0
  %2188 = vmatprep.mubr.f32.mxu0 0.0
  %2189 = vmatmul.mubr.f32.gmra.mrb[0].mxu0 %v2027
  %v2190 = vpop.f32.mrb[0].mxu0
  %v2191 = vadd.f32 %v2020, %v2190
  %v2192 = vpop.f32.mrb[0].mxu0
  %2193 = vmatprep.mubr.f32.mxu0 0.0
  %2194 = vmatmul.mubr.f32.gmra.mrb[0].mxu0 %v2030
  %v2195 = vpop.f32.mrb[0].mxu0
  %v2196 = vadd.f32 %v2020, %v2195
  %v2197 = vpop.f32.mrb[0].mxu0
  %2198 = vmatprep.mubr.f32.mxu0 0.0
  %2199 = vmatmul.mubr.f32.gmra.mrb[0].mxu0 %v2033
  %v2200 = vpop.f32.mrb[0].mxu0
  %v2201 = vadd.f32 %v2020, %v2200
  %v2202 = vpop.f32.mrb[0].mxu0
  %2203 = vmatprep.mubr.f32.mxu0 0.0
  %2204 = vmatmul.mubr.f32.gmra.mrb[0].mxu0 %v2036
  %v2205 = vpop.f32.mrb[0].mxu0
  %v2206 = vadd.f32 %v2020, %v2205
  %v2207 = vpop.f32.mrb[0].mxu0
  %2208 = vmatprep.mubr.f32.mxu0 0.0
  %2209 = vmatmul.mubr.f32.gmra.mrb[0].mxu0 %v2039
  %v2210 = vpop.f32.mrb[0].mxu0
  %v2211 = vadd.f32 %v2020, %v2210
  %v2212 = vpop.f32.mrb[0].mxu0
  %2213 = vmatprep.mubr.f32.mxu0 0.0
  %2214 = vmatmul.mubr.f32.gmra.mrb[0].mxu0 %v2042
  %v2215 = vpop.f32.mrb[0].mxu0
  %v2216 = vadd.f32 %v2020, %v2215
  %v2217 = vpop.f32.mrb[0].mxu0
  %2218 = vmatprep.mubr.f32.mxu0 0.0
  %2219 = vmatmul.mubr.f32.gmra.mrb[0].mxu0 %v2045
  %v2220 = vpop.f32.mrb[0].mxu0
  %v2221 = vadd.f32 %v2020, %v2220
  %v2222 = vpop.f32.mrb[0].mxu0
  %2223 = vmatprep.mubr.f32.mxu0 0.0
  %2224 = vmatmul.mubr.f32.gmra.mrb[0].mxu0 %v2048
  %v2225 = vpop.f32.mrb[0].mxu0
  %v2226 = vadd.f32 %v2020, %v2225
  %v2227 = vpop.f32.mrb[0].mxu0
  %2228 = vmatprep.mubr.f32.mxu0 0.0
  %2229 = vmatmul.mubr.f32.gmra.mrb[0].mxu0 %v2051
  %v2230 = vpop.f32.mrb[0].mxu0
  %v2231 = vadd.f32 %v2020, %v2230
  %v2232 = vpop.f32.mrb[0].mxu0
  %2233 = vmatprep.mubr.f32.mxu0 0.0
  %2234 = vmatmul.mubr.f32.gmra.mrb[0].mxu0 %v2054
  %v2235 = vpop.f32.mrb[0].mxu0
  %v2236 = vadd.f32 %v2020, %v2235
  %v2237 = vpop.f32.mrb[0].mxu0
  %2238 = vmatprep.mubr.f32.mxu0 0.0
  %2239 = vmatmul.mubr.f32.gmra.mrb[0].mxu0 %v2057
  %v2240 = vpop.f32.mrb[0].mxu0
  %v2241 = vadd.f32 %v2020, %v2240
  %v2242 = vpop.f32.mrb[0].mxu0
  %2243 = vmatprep.mubr.f32.mxu0 0.0
  %2244 = vmatmul.mubr.f32.gmra.mrb[0].mxu0 %v2060
  %v2245 = vpop.f32.mrb[0].mxu0
  %v2246 = vadd.f32 %v2020, %v2245
  %v2247 = vpop.f32.mrb[0].mxu0
  %2248 = vmatprep.mubr.f32.mxu0 0.0
  %2249 = vmatmul.mubr.f32.gmra.mrb[0].mxu0 %v2063
  %v2250 = vpop.f32.mrb[0].mxu0
  %v2251 = vadd.f32 %v2020, %v2250
  %v2252 = vpop.f32.mrb[0].mxu0
  %2253 = vmatprep.mubr.f32.mxu0 0.0
  %2254 = vmatmul.mubr.f32.gmra.mrb[0].mxu0 %v2066
  %v2255 = vpop.f32.mrb[0].mxu0
  %v2256 = vadd.f32 %v2020, %v2255
  %v2257 = vpop.f32.mrb[0].mxu0
  %2258 = vmatprep.mubr.f32.mxu0 0.0
  %2259 = vmatmul.mubr.f32.gmra.mrb[0].mxu0 %v2069
  %v2260 = vpop.f32.mrb[0].mxu0
  %v2261 = vadd.f32 %v2020, %v2260
  %v2262 = vpop.f32.mrb[0].mxu0
  %2263 = vmatprep.mubr.f32.mxu0 0.0
  %2264 = vmatmul.mubr.f32.gmra.mrb[0].mxu0 %v2072
  %v2265 = vpop.f32.mrb[0].mxu0
  %v2266 = vadd.f32 %v2020, %v2265
  %v2267 = vpop.f32.mrb[0].mxu0
  %2268 = vmatprep.mubr.f32.mxu0 0.0
  %2269 = vmatmul.mubr.f32.gmra.mrb[0].mxu0 %v2075
  %v2270 = vpop.f32.mrb[0].mxu0
  %v2271 = vadd.f32 %v2020, %v2270
  %v2272 = vpop.f32.mrb[0].mxu0
  %2273 = vmatprep.mubr.f32.mxu0 0.0
  %2274 = vmatmul.mubr.f32.gmra.mrb[0].mxu0 %v2078
  %v2275 = vpop.f32.mrb[0].mxu0
  %v2276 = vadd.f32 %v2020, %v2275
  %v2277 = vpop.f32.mrb[0].mxu0
  %2278 = vmatprep.mubr.f32.mxu0 0.0
  %2279 = vmatmul.mubr.f32.gmra.mrb[0].mxu0 %v2081
  %v2280 = vpop.f32.mrb[0].mxu0
  %v2281 = vadd.f32 %v2020, %v2280
  %v2282 = vpop.f32.mrb[0].mxu0
  %2283 = vmatprep.mubr.f32.mxu0 0.0
  %2284 = vmatmul.mubr.f32.gmra.mrb[0].mxu0 %v2084
  %v2285 = vpop.f32.mrb[0].mxu0
  %v2286 = vadd.f32 %v2020, %v2285
  %v2287 = vpop.f32.mrb[0].mxu0
  %2288 = vmatprep.mubr.f32.mxu0 0.0
  %2289 = vmatmul.mubr.f32.gmra.mrb[0].mxu0 %v2087
  %v2290 = vpop.f32.mrb[0].mxu0
  %v2291 = vadd.f32 %v2020, %v2290
  %v2292 = vpop.f32.mrb[0].mxu0
  %2293 = vmatprep.mubr.f32.mxu0 0.0
  %2294 = vmatmul.mubr.f32.gmra.mrb[0].mxu0 %v2090
  %v2295 = vpop.f32.mrb[0].mxu0
  %v2296 = vadd.f32 %v2020, %v2295
  %v2297 = vpop.f32.mrb[0].mxu0
  %2298 = vmatprep.mubr.f32.mxu0 0.0
  %2299 = vmatmul.mubr.f32.gmra.mrb[0].mxu0 %v2093
  %v2300 = vpop.f32.mrb[0].mxu0
  %v2301 = vadd.f32 %v2020, %v2300
  %v2302 = vpop.f32.mrb[0].mxu0
  %2303 = vmatprep.mubr.f32.mxu0 0.0
  %2304 = vmatmul.mubr.f32.gmra.mrb[0].mxu0 %v2096
  %v2305 = vpop.f32.mrb[0].mxu0
  %v2306 = vadd.f32 %v2020, %v2305
  %v2307 = vpop.f32.mrb[0].mxu0
  %2308 = vmatprep.mubr.f32.mxu0 0.0
  %2309 = vmatmul.mubr.f32.gmra.mrb[0].mxu0 %v2099
  %v2310 = vpop.f32.mrb[0].mxu0
  %v2311 = vadd.f32 %v2020, %v2310
  %v2312 = vpop.f32.mrb[0].mxu0
  %2313 = vmatprep.mubr.f32.mxu0 0.0
  %2314 = vmatmul.mubr.f32.gmra.mrb[0].mxu0 %v2102
  %v2315 = vpop.f32.mrb[0].mxu0
  %v2316 = vadd.f32 %v2020, %v2315
  %v2317 = vpop.f32.mrb[0].mxu0
  %2318 = vmatprep.mubr.f32.mxu0 0.0
  %2319 = vmatmul.mubr.f32.gmra.mrb[0].mxu0 %v2105
  %v2320 = vpop.f32.mrb[0].mxu0
  %v2321 = vadd.f32 %v2020, %v2320
  %v2322 = vpop.f32.mrb[0].mxu0
  %2323 = vmatprep.mubr.f32.mxu0 0.0
  %2324 = vmatmul.mubr.f32.gmra.mrb[0].mxu0 %v2108
  %v2325 = vpop.f32.mrb[0].mxu0
  %v2326 = vadd.f32 %v2020, %v2325
  %v2327 = vpop.f32.mrb[0].mxu0
  %2328 = vmatprep.mubr.f32.mxu0 0.0
  %2329 = vmatmul.mubr.f32.gmra.mrb[0].mxu0 %v2111
  %v2330 = vpop.f32.mrb[0].mxu0
  %v2331 = vadd.f32 %v2020, %v2330
  %v2332 = vpop.f32.mrb[0].mxu0
  %2333 = vmatprep.mubr.f32.mxu0 0.0
  %2334 = vmatmul.mubr.f32.gmra.mrb[0].mxu0 %v2114
  %v2335 = vpop.f32.mrb[0].mxu0
  %v2336 = vadd.f32 %v2020, %v2335
  %v2337 = vpop.f32.mrb[0].mxu0
  %2338 = vmatprep.mubr.f32.mxu0 0.0
  %2339 = vmatmul.mubr.f32.gmra.mrb[0].mxu0 %v2117
  %v2340 = vpop.f32.mrb[0].mxu0
  %v2341 = vadd.f32 %v2020, %v2340
  %v2342 = vpop.f32.mrb[0].mxu0
  %2343 = vdwg.mxu0
  %v2344 = vld [vmem:[#allocation5] sm:$0xff]
  %v2345 = vld [vmem:[#allocation5 + $0x8] sm:$0xff]
  %v2346 = vld [vmem:[#allocation5 + $0x10] sm:$0xff]
  %v2347 = vld [vmem:[#allocation5 + $0x18] sm:$0xff]
  %v2348 = vld [vmem:[#allocation5 + $0x20] sm:$0xff]
  %v2349 = vld [vmem:[#allocation5 + $0x28] sm:$0xff]
  %v2350 = vld [vmem:[#allocation5 + $0x30] sm:$0xff]
  %v2351 = vld [vmem:[#allocation5 + $0x38] sm:$0xff]
  %v2352 = vld [vmem:[#allocation5 + $0x40] sm:$0xff]
  %v2353 = vld [vmem:[#allocation5 + $0x48] sm:$0xff]
  %v2354 = vld [vmem:[#allocation5 + $0x50] sm:$0xff]
  %v2355 = vld [vmem:[#allocation5 + $0x58] sm:$0xff]
  %v2356 = vld [vmem:[#allocation5 + $0x60] sm:$0xff]
  %v2357 = vld [vmem:[#allocation5 + $0x68] sm:$0xff]
  %v2358 = vld [vmem:[#allocation5 + $0x70] sm:$0xff]
  %v2359 = vld [vmem:[#allocation5 + $0x78] sm:$0xff]
  %2360 = vxpose.xlu0.b32.start [1/16] %v1006, 128
  %2361 = vxpose.xlu0.b32.cont [2/16] %v1007, 128
  %2362 = vxpose.xlu0.b32.cont [3/16] %v1008, 128
  %2363 = vxpose.xlu0.b32.cont [4/16] %v1009, 128
  %2364 = vxpose.xlu0.b32.cont [5/16] %v1010, 128
  %2365 = vxpose.xlu0.b32.cont [6/16] %v1011, 128
  %2366 = vxpose.xlu0.b32.cont [7/16] %v1012, 128
  %2367 = vxpose.xlu0.b32.cont [8/16] %v1013, 128
  %2368 = vxpose.xlu0.b32.cont [9/16] %v1014, 128
  %2369 = vxpose.xlu0.b32.cont [10/16] %v1015, 128
  %2370 = vxpose.xlu0.b32.cont [11/16] %v1016, 128
  %2371 = vxpose.xlu0.b32.cont [12/16] %v1017, 128
  %2372 = vxpose.xlu0.b32.cont [13/16] %v1018, 128
  %2373 = vxpose.xlu0.b32.cont [14/16] %v1019, 128
  %2374 = vxpose.xlu0.b32.cont [15/16] %v1020, 128
  %2375 = vxpose.xlu0.b32.end [16/16] %v1021, 128
  %v2376 = vpop.trf.xlu0
  %v2377 = vpop.trf.xlu0
  %v2378 = vpop.trf.xlu0
  %v2379 = vpop.trf.xlu0
  %v2380 = vpop.trf.xlu0
  %v2381 = vpop.trf.xlu0
  %v2382 = vpop.trf.xlu0
  %v2383 = vpop.trf.xlu0
  %v2384 = vpop.trf.xlu0
  %v2385 = vpop.trf.xlu0
  %v2386 = vpop.trf.xlu0
  %v2387 = vpop.trf.xlu0
  %v2388 = vpop.trf.xlu0
  %v2389 = vpop.trf.xlu0
  %v2390 = vpop.trf.xlu0
  %v2391 = vpop.trf.xlu0
  %2392 = vxpose.xlu0.b32.start [1/16] %v1022, 128
  %2393 = vxpose.xlu0.b32.cont [2/16] %v1023, 128
  %2394 = vxpose.xlu0.b32.cont [3/16] %v1024, 128
  %2395 = vxpose.xlu0.b32.cont [4/16] %v1025, 128
  %2396 = vxpose.xlu0.b32.cont [5/16] %v1026, 128
  %2397 = vxpose.xlu0.b32.cont [6/16] %v1027, 128
  %2398 = vxpose.xlu0.b32.cont [7/16] %v1028, 128
  %2399 = vxpose.xlu0.b32.cont [8/16] %v1029, 128
  %2400 = vxpose.xlu0.b32.cont [9/16] %v1030, 128
  %2401 = vxpose.xlu0.b32.cont [10/16] %v1031, 128
  %2402 = vxpose.xlu0.b32.cont [11/16] %v1032, 128
  %2403 = vxpose.xlu0.b32.cont [12/16] %v1033, 128
  %2404 = vxpose.xlu0.b32.cont [13/16] %v1034, 128
  %2405 = vxpose.xlu0.b32.cont [14/16] %v1035, 128
  %2406 = vxpose.xlu0.b32.cont [15/16] %v1036, 128
  %2407 = vxpose.xlu0.b32.end [16/16] %v1037, 128
  %v2408 = vpop.trf.xlu0
  %v2409 = vpop.trf.xlu0
  %v2410 = vpop.trf.xlu0
  %v2411 = vpop.trf.xlu0
  %v2412 = vpop.trf.xlu0
  %v2413 = vpop.trf.xlu0
  %v2414 = vpop.trf.xlu0
  %v2415 = vpop.trf.xlu0
  %v2416 = vpop.trf.xlu0
  %v2417 = vpop.trf.xlu0
  %v2418 = vpop.trf.xlu0
  %v2419 = vpop.trf.xlu0
  %v2420 = vpop.trf.xlu0
  %v2421 = vpop.trf.xlu0
  %v2422 = vpop.trf.xlu0
  %v2423 = vpop.trf.xlu0
  %2424 = vmatprep.subr.mxu0 0.0
  %2425 = vmatpush1.msra.mxu0 %v2186
  %2426 = vmatprep.subr.mxu0 0.0
  %2427 = vmatpush1.msra.mxu0 %v2191
  %2428 = vmatprep.subr.mxu0 0.0
  %2429 = vmatpush1.msra.mxu0 %v2196
  %2430 = vmatprep.subr.mxu0 0.0
  %2431 = vmatpush1.msra.mxu0 %v2201
  %2432 = vmatprep.subr.mxu0 0.0
  %2433 = vmatpush1.msra.mxu0 %v2206
  %2434 = vmatprep.subr.mxu0 0.0
  %2435 = vmatpush1.msra.mxu0 %v2211
  %2436 = vmatprep.subr.mxu0 0.0
  %2437 = vmatpush1.msra.mxu0 %v2216
  %2438 = vmatprep.subr.mxu0 0.0
  %2439 = vmatpush1.msra.mxu0 %v2221
  %2440 = vmatprep.subr.mxu0 0.0
  %2441 = vmatpush1.msra.mxu0 %v2226
  %2442 = vmatprep.subr.mxu0 0.0
  %2443 = vmatpush1.msra.mxu0 %v2231
  %2444 = vmatprep.subr.mxu0 0.0
  %2445 = vmatpush1.msra.mxu0 %v2236
  %2446 = vmatprep.subr.mxu0 0.0
  %2447 = vmatpush1.msra.mxu0 %v2241
  %2448 = vmatprep.subr.mxu0 0.0
  %2449 = vmatpush1.msra.mxu0 %v2246
  %2450 = vmatprep.subr.mxu0 0.0
  %2451 = vmatpush1.msra.mxu0 %v2251
  %2452 = vmatprep.subr.mxu0 0.0
  %2453 = vmatpush1.msra.mxu0 %v2256
  %2454 = vmatprep.subr.mxu0 0.0
  %2455 = vmatpush1.msra.mxu0 %v2261
  %2456 = vmatprep.subr.mxu0 0.0
  %2457 = vmatpush1.msra.mxu0 %v2266
  %2458 = vmatprep.subr.mxu0 0.0
  %2459 = vmatpush1.msra.mxu0 %v2271
  %2460 = vmatprep.subr.mxu0 0.0
  %2461 = vmatpush1.msra.mxu0 %v2276
  %2462 = vmatprep.subr.mxu0 0.0
  %2463 = vmatpush1.msra.mxu0 %v2281
  %2464 = vmatprep.subr.mxu0 0.0
  %2465 = vmatpush1.msra.mxu0 %v2286
  %2466 = vmatprep.subr.mxu0 0.0
  %2467 = vmatpush1.msra.mxu0 %v2291
  %2468 = vmatprep.subr.mxu0 0.0
  %2469 = vmatpush1.msra.mxu0 %v2296
  %2470 = vmatprep.subr.mxu0 0.0
  %2471 = vmatpush1.msra.mxu0 %v2301
  %2472 = vmatprep.subr.mxu0 0.0
  %2473 = vmatpush1.msra.mxu0 %v2306
  %2474 = vmatprep.subr.mxu0 0.0
  %2475 = vmatpush1.msra.mxu0 %v2311
  %2476 = vmatprep.subr.mxu0 0.0
  %2477 = vmatpush1.msra.mxu0 %v2316
  %2478 = vmatprep.subr.mxu0 0.0
  %2479 = vmatpush1.msra.mxu0 %v2321
  %2480 = vmatprep.subr.mxu0 0.0
  %2481 = vmatpush1.msra.mxu0 %v2326
  %2482 = vmatprep.subr.mxu0 0.0
  %2483 = vmatpush1.msra.mxu0 %v2331
  %2484 = vmatprep.subr.mxu0 0.0
  %2485 = vmatpush1.msra.mxu0 %v2336
  %2486 = vmatprep.subr.mxu0 0.0
  %2487 = vmatpush1.msra.mxu0 %v2341
  %2488 = vmatprep.mubr.f32.mxu0 %v2408
  %2489 = vmatmul.mubr.f32.gmra.mrb[0].mxu0 %v2376
  %v2490 = vpop.f32.mrb[0].mxu0
  %v2491 = vadd.f32 0.0, %v2490
  %v2492 = vpop.f32.mrb[0].mxu0
  %2493 = vmatprep.mubr.f32.mxu0 %v2409
  %2494 = vmatmul.mubr.f32.gmra.mrb[0].mxu0 %v2377
  %v2495 = vpop.f32.mrb[0].mxu0
  %v2496 = vadd.f32 0.0, %v2495
  %v2497 = vpop.f32.mrb[0].mxu0
  %2498 = vmatprep.mubr.f32.mxu0 %v2410
  %2499 = vmatmul.mubr.f32.gmra.mrb[0].mxu0 %v2378
  %v2500 = vpop.f32.mrb[0].mxu0
  %v2501 = vadd.f32 0.0, %v2500
  %v2502 = vpop.f32.mrb[0].mxu0
  %2503 = vmatprep.mubr.f32.mxu0 %v2411
  %2504 = vmatmul.mubr.f32.gmra.mrb[0].mxu0 %v2379
  %v2505 = vpop.f32.mrb[0].mxu0
  %v2506 = vadd.f32 0.0, %v2505
  %v2507 = vpop.f32.mrb[0].mxu0
  %2508 = vmatprep.mubr.f32.mxu0 %v2412
  %2509 = vmatmul.mubr.f32.gmra.mrb[0].mxu0 %v2380
  %v2510 = vpop.f32.mrb[0].mxu0
  %v2511 = vadd.f32 0.0, %v2510
  %v2512 = vpop.f32.mrb[0].mxu0
  %2513 = vmatprep.mubr.f32.mxu0 %v2413
  %2514 = vmatmul.mubr.f32.gmra.mrb[0].mxu0 %v2381
  %v2515 = vpop.f32.mrb[0].mxu0
  %v2516 = vadd.f32 0.0, %v2515
  %v2517 = vpop.f32.mrb[0].mxu0
  %2518 = vmatprep.mubr.f32.mxu0 %v2414
  %2519 = vmatmul.mubr.f32.gmra.mrb[0].mxu0 %v2382
  %v2520 = vpop.f32.mrb[0].mxu0
  %v2521 = vadd.f32 0.0, %v2520
  %v2522 = vpop.f32.mrb[0].mxu0
  %2523 = vmatprep.mubr.f32.mxu0 %v2415
  %2524 = vmatmul.mubr.f32.gmra.mrb[0].mxu0 %v2383
  %v2525 = vpop.f32.mrb[0].mxu0
  %v2526 = vadd.f32 0.0, %v2525
  %v2527 = vpop.f32.mrb[0].mxu0
  %2528 = vmatprep.mubr.f32.mxu0 %v2416
  %2529 = vmatmul.mubr.f32.gmra.mrb[0].mxu0 %v2384
  %v2530 = vpop.f32.mrb[0].mxu0
  %v2531 = vadd.f32 0.0, %v2530
  %v2532 = vpop.f32.mrb[0].mxu0
  %2533 = vmatprep.mubr.f32.mxu0 %v2417
  %2534 = vmatmul.mubr.f32.gmra.mrb[0].mxu0 %v2385
  %v2535 = vpop.f32.mrb[0].mxu0
  %v2536 = vadd.f32 0.0, %v2535
  %v2537 = vpop.f32.mrb[0].mxu0
  %2538 = vmatprep.mubr.f32.mxu0 %v2418
  %2539 = vmatmul.mubr.f32.gmra.mrb[0].mxu0 %v2386
  %v2540 = vpop.f32.mrb[0].mxu0
  %v2541 = vadd.f32 0.0, %v2540
  %v2542 = vpop.f32.mrb[0].mxu0
  %2543 = vmatprep.mubr.f32.mxu0 %v2419
  %2544 = vmatmul.mubr.f32.gmra.mrb[0].mxu0 %v2387
  %v2545 = vpop.f32.mrb[0].mxu0
  %v2546 = vadd.f32 0.0, %v2545
  %v2547 = vpop.f32.mrb[0].mxu0
  %2548 = vmatprep.mubr.f32.mxu0 %v2420
  %2549 = vmatmul.mubr.f32.gmra.mrb[0].mxu0 %v2388
  %v2550 = vpop.f32.mrb[0].mxu0
  %v2551 = vadd.f32 0.0, %v2550
  %v2552 = vpop.f32.mrb[0].mxu0
  %2553 = vmatprep.mubr.f32.mxu0 %v2421
  %2554 = vmatmul.mubr.f32.gmra.mrb[0].mxu0 %v2389
  %v2555 = vpop.f32.mrb[0].mxu0
  %v2556 = vadd.f32 0.0, %v2555
  %v2557 = vpop.f32.mrb[0].mxu0
  %2558 = vmatprep.mubr.f32.mxu0 %v2422
  %2559 = vmatmul.mubr.f32.gmra.mrb[0].mxu0 %v2390
  %v2560 = vpop.f32.mrb[0].mxu0
  %v2561 = vadd.f32 0.0, %v2560
  %v2562 = vpop.f32.mrb[0].mxu0
  %2563 = vmatprep.mubr.f32.mxu0 %v2423
  %2564 = vmatmul.mubr.f32.gmra.mrb[0].mxu0 %v2391
  %v2565 = vpop.f32.mrb[0].mxu0
  %v2566 = vadd.f32 0.0, %v2565
  %v2567 = vpop.f32.mrb[0].mxu0
  %2568 = vdwg.mxu0
  %v2569 = vadd.f32 %v2344, %v2491
  %v2570 = vadd.f32 %v2345, %v2496
  %v2571 = vadd.f32 %v2346, %v2501
  %v2572 = vadd.f32 %v2347, %v2506
  %v2573 = vadd.f32 %v2348, %v2511
  %v2574 = vadd.f32 %v2349, %v2516
  %v2575 = vadd.f32 %v2350, %v2521
  %v2576 = vadd.f32 %v2351, %v2526
  %v2577 = vadd.f32 %v2352, %v2531
  %v2578 = vadd.f32 %v2353, %v2536
  %v2579 = vadd.f32 %v2354, %v2541
  %v2580 = vadd.f32 %v2355, %v2546
  %v2581 = vadd.f32 %v2356, %v2551
  %v2582 = vadd.f32 %v2357, %v2556
  %v2583 = vadd.f32 %v2358, %v2561
  %v2584 = vadd.f32 %v2359, %v2566
  %2585 = vst.msk [vmem:[#allocation5] sm:$0xff] %vm2022, %v2569
  %2586 = vst.msk [vmem:[#allocation5 + $0x8] sm:$0xff] %vm2022, %v2570
  %2587 = vst.msk [vmem:[#allocation5 + $0x10] sm:$0xff] %vm2022, %v2571
  %2588 = vst.msk [vmem:[#allocation5 + $0x18] sm:$0xff] %vm2022, %v2572
  %2589 = vst.msk [vmem:[#allocation5 + $0x20] sm:$0xff] %vm2022, %v2573
  %2590 = vst.msk [vmem:[#allocation5 + $0x28] sm:$0xff] %vm2022, %v2574
  %2591 = vst.msk [vmem:[#allocation5 + $0x30] sm:$0xff] %vm2022, %v2575
  %2592 = vst.msk [vmem:[#allocation5 + $0x38] sm:$0xff] %vm2022, %v2576
  %2593 = vst.msk [vmem:[#allocation5 + $0x40] sm:$0xff] %vm2022, %v2577
  %2594 = vst.msk [vmem:[#allocation5 + $0x48] sm:$0xff] %vm2022, %v2578
  %2595 = vst.msk [vmem:[#allocation5 + $0x50] sm:$0xff] %vm2022, %v2579
  %2596 = vst.msk [vmem:[#allocation5 + $0x58] sm:$0xff] %vm2022, %v2580
  %2597 = vst.msk [vmem:[#allocation5 + $0x60] sm:$0xff] %vm2022, %v2581
  %2598 = vst.msk [vmem:[#allocation5 + $0x68] sm:$0xff] %vm2022, %v2582
  %2599 = vst.msk [vmem:[#allocation5 + $0x70] sm:$0xff] %vm2022, %v2583
  %2600 = vst.msk [vmem:[#allocation5 + $0x78] sm:$0xff] %vm2022, %v2584
  // Predicated region
  $region70: #{gnn_policy_forward.6} parent=0 // pred_check
    %p2601 = pneg %p53
  $region71: #{gnn_policy_forward.6} parent=0 // pred_check_branch
    %2603 = sbr.rel (%p2601) target = $region73
  $region72: #{gnn_policy_forward.6} parent=0 // pred_region
    %v2604 = vld [vmem:[#allocation5] sm:$0xff]
    %v2605 = vld [vmem:[#allocation5 + $0x8] sm:$0xff]
    %v2606 = vld [vmem:[#allocation5 + $0x10] sm:$0xff]
    %v2607 = vld [vmem:[#allocation5 + $0x18] sm:$0xff]
    %v2608 = vld [vmem:[#allocation5 + $0x20] sm:$0xff]
    %v2609 = vld [vmem:[#allocation5 + $0x28] sm:$0xff]
    %v2610 = vld [vmem:[#allocation5 + $0x30] sm:$0xff]
    %v2611 = vld [vmem:[#allocation5 + $0x38] sm:$0xff]
    %v2612 = vld [vmem:[#allocation5 + $0x40] sm:$0xff]
    %v2613 = vld [vmem:[#allocation5 + $0x48] sm:$0xff]
    %v2614 = vld [vmem:[#allocation5 + $0x50] sm:$0xff]
    %v2615 = vld [vmem:[#allocation5 + $0x58] sm:$0xff]
    %v2616 = vld [vmem:[#allocation5 + $0x60] sm:$0xff]
    %v2617 = vld [vmem:[#allocation5 + $0x68] sm:$0xff]
    %v2618 = vld [vmem:[#allocation5 + $0x70] sm:$0xff]
    %v2619 = vld [vmem:[#allocation5 + $0x78] sm:$0xff]
    %v2620 = vld [vmem:[%s11] sm:$0xff]
    %v2621 = vld [vmem:[%s11 + $0x8] sm:$0xff]
    %v2622 = vld [vmem:[%s11 + $0x10] sm:$0xff]
    %v2623 = vld [vmem:[%s11 + $0x18] sm:$0xff]
    %v2624 = vld [vmem:[%s11 + $0x20] sm:$0xff]
    %v2625 = vld [vmem:[%s11 + $0x28] sm:$0xff]
    %v2626 = vld [vmem:[%s11 + $0x30] sm:$0xff]
    %v2627 = vld [vmem:[%s11 + $0x38] sm:$0xff]
    %v2628 = vld [vmem:[#allocation3] sm:$0xff]
    %v2629 = vld [vmem:[#allocation3 + $0x8] sm:$0xff]
    %v2630 = vld [vmem:[#allocation3 + $0x10] sm:$0xff]
    %v2631 = vld [vmem:[#allocation3 + $0x18] sm:$0xff]
    %v2632 = vld [vmem:[#allocation3 + $0x20] sm:$0xff]
    %v2633 = vld [vmem:[#allocation3 + $0x28] sm:$0xff]
    %v2634 = vld [vmem:[#allocation3 + $0x30] sm:$0xff]
    %v2635 = vld [vmem:[#allocation3 + $0x38] sm:$0xff]
    %v2636 = vld [vmem:[#allocation3 + $0x40] sm:$0xff]
    %v2637 = vld [vmem:[#allocation3 + $0x48] sm:$0xff]
    %v2638 = vld [vmem:[#allocation3 + $0x50] sm:$0xff]
    %v2639 = vld [vmem:[#allocation3 + $0x58] sm:$0xff]
    %v2640 = vld [vmem:[#allocation3 + $0x60] sm:$0xff]
    %v2641 = vld [vmem:[#allocation3 + $0x68] sm:$0xff]
    %v2642 = vld [vmem:[#allocation3 + $0x70] sm:$0xff]
    %v2643 = vld [vmem:[#allocation3 + $0x78] sm:$0xff]
    %v2645 = vsel %vm2022, %v2604, 0
    %v2648 = vsel %vm2022, %v2605, 0
    %v2651 = vsel %vm2022, %v2606, 0
    %v2654 = vsel %vm2022, %v2607, 0
    %v2657 = vsel %vm2022, %v2608, 0
    %v2660 = vsel %vm2022, %v2609, 0
    %v2663 = vsel %vm2022, %v2610, 0
    %v2666 = vsel %vm2022, %v2611, 0
    %v2669 = vsel %vm2022, %v2612, 0
    %v2672 = vsel %vm2022, %v2613, 0
    %v2675 = vsel %vm2022, %v2614, 0
    %v2678 = vsel %vm2022, %v2615, 0
    %v2681 = vsel %vm2022, %v2616, 0
    %v2684 = vsel %vm2022, %v2617, 0
    %v2687 = vsel %vm2022, %v2618, 0
    %v2690 = vsel %vm2022, %v2619, 0
    %2692 = vmatprep.subr.mxu0 0.0
    %2693 = vmatpush1.msra.mxu0 %v2620
    %2694 = vmatprep.subr.mxu0 0.0
    %2695 = vmatpush1.msra.mxu0 %v2621
    %2696 = vmatprep.subr.mxu0 0.0
    %2697 = vmatpush1.msra.mxu0 %v2622
    %2698 = vmatprep.subr.mxu0 0.0
    %2699 = vmatpush1.msra.mxu0 %v2623
    %2700 = vmatprep.subr.mxu0 0.0
    %2701 = vmatpush1.msra.mxu0 %v2624
    %2702 = vmatprep.subr.mxu0 0.0
    %2703 = vmatpush1.msra.mxu0 %v2625
    %2704 = vmatprep.subr.mxu0 0.0
    %2705 = vmatpush1.msra.mxu0 %v2626
    %2706 = vmatprep.subr.mxu0 0.0
    %2707 = vmatpush1.msra.mxu0 %v2627
    %2708 = vmatprep.subr.mxu0 0.0
    %2709 = vmatpush1.msra.mxu0 0.0
    %2710 = vmatprep.subr.mxu0 0.0
    %2711 = vmatpush1.msra.mxu0 0.0
    %2712 = vmatprep.subr.mxu0 0.0
    %2713 = vmatpush1.msra.mxu0 0.0
    %2714 = vmatprep.subr.mxu0 0.0
    %2715 = vmatpush1.msra.mxu0 0.0
    %2716 = vmatprep.subr.mxu0 0.0
    %2717 = vmatpush1.msra.mxu0 0.0
    %2718 = vmatprep.subr.mxu0 0.0
    %2719 = vmatpush1.msra.mxu0 0.0
    %2720 = vmatprep.subr.mxu0 0.0
    %2721 = vmatpush1.msra.mxu0 0.0
    %2722 = vmatprep.subr.mxu0 0.0
    %2723 = vmatpush1.msra.mxu0 0.0
    %2724 = vmatprep.subr.mxu0 0.0
    %2725 = vmatpush1.msra.mxu0 0.0
    %2726 = vmatprep.subr.mxu0 0.0
    %2727 = vmatpush1.msra.mxu0 0.0
    %2728 = vmatprep.subr.mxu0 0.0
    %2729 = vmatpush1.msra.mxu0 0.0
    %2730 = vmatprep.subr.mxu0 0.0
    %2731 = vmatpush1.msra.mxu0 0.0
    %2732 = vmatprep.subr.mxu0 0.0
    %2733 = vmatpush1.msra.mxu0 0.0
    %2734 = vmatprep.subr.mxu0 0.0
    %2735 = vmatpush1.msra.mxu0 0.0
    %2736 = vmatprep.subr.mxu0 0.0
    %2737 = vmatpush1.msra.mxu0 0.0
    %2738 = vmatprep.subr.mxu0 0.0
    %2739 = vmatpush1.msra.mxu0 0.0
    %2740 = vmatprep.subr.mxu0 0.0
    %2741 = vmatpush1.msra.mxu0 0.0
    %2742 = vmatprep.subr.mxu0 0.0
    %2743 = vmatpush1.msra.mxu0 0.0
    %2744 = vmatprep.subr.mxu0 0.0
    %2745 = vmatpush1.msra.mxu0 0.0
    %2746 = vmatprep.subr.mxu0 0.0
    %2747 = vmatpush1.msra.mxu0 0.0
    %2748 = vmatprep.subr.mxu0 0.0
    %2749 = vmatpush1.msra.mxu0 0.0
    %2750 = vmatprep.subr.mxu0 0.0
    %2751 = vmatpush1.msra.mxu0 0.0
    %2752 = vmatprep.subr.mxu0 0.0
    %2753 = vmatpush1.msra.mxu0 0.0
    %2754 = vmatprep.subr.mxu0 0.0
    %2755 = vmatpush1.msra.mxu0 0.0
    %2756 = vmatprep.mubr.f32.mxu0 0.0
    %2757 = vmatmul.mubr.f32.gmra.mrb[0].mxu0 %v2645
    %v2758 = vpop.f32.mrb[0].mxu0
    %v2759 = vadd.f32 %v2628, %v2758
    %v2760 = vpop.f32.mrb[0].mxu0
    %2761 = vmatprep.mubr.f32.mxu0 0.0
    %2762 = vmatmul.mubr.f32.gmra.mrb[0].mxu0 %v2648
    %v2763 = vpop.f32.mrb[0].mxu0
    %v2764 = vadd.f32 %v2629, %v2763
    %v2765 = vpop.f32.mrb[0].mxu0
    %2766 = vmatprep.mubr.f32.mxu0 0.0
    %2767 = vmatmul.mubr.f32.gmra.mrb[0].mxu0 %v2651
    %v2768 = vpop.f32.mrb[0].mxu0
    %v2769 = vadd.f32 %v2630, %v2768
    %v2770 = vpop.f32.mrb[0].mxu0
    %2771 = vmatprep.mubr.f32.mxu0 0.0
    %2772 = vmatmul.mubr.f32.gmra.mrb[0].mxu0 %v2654
    %v2773 = vpop.f32.mrb[0].mxu0
    %v2774 = vadd.f32 %v2631, %v2773
    %v2775 = vpop.f32.mrb[0].mxu0
    %2776 = vmatprep.mubr.f32.mxu0 0.0
    %2777 = vmatmul.mubr.f32.gmra.mrb[0].mxu0 %v2657
    %v2778 = vpop.f32.mrb[0].mxu0
    %v2779 = vadd.f32 %v2632, %v2778
    %v2780 = vpop.f32.mrb[0].mxu0
    %2781 = vmatprep.mubr.f32.mxu0 0.0
    %2782 = vmatmul.mubr.f32.gmra.mrb[0].mxu0 %v2660
    %v2783 = vpop.f32.mrb[0].mxu0
    %v2784 = vadd.f32 %v2633, %v2783
    %v2785 = vpop.f32.mrb[0].mxu0
    %2786 = vmatprep.mubr.f32.mxu0 0.0
    %2787 = vmatmul.mubr.f32.gmra.mrb[0].mxu0 %v2663
    %v2788 = vpop.f32.mrb[0].mxu0
    %v2789 = vadd.f32 %v2634, %v2788
    %v2790 = vpop.f32.mrb[0].mxu0
    %2791 = vmatprep.mubr.f32.mxu0 0.0
    %2792 = vmatmul.mubr.f32.gmra.mrb[0].mxu0 %v2666
    %v2793 = vpop.f32.mrb[0].mxu0
    %v2794 = vadd.f32 %v2635, %v2793
    %v2795 = vpop.f32.mrb[0].mxu0
    %2796 = vmatprep.mubr.f32.mxu0 0.0
    %2797 = vmatmul.mubr.f32.gmra.mrb[0].mxu0 %v2669
    %v2798 = vpop.f32.mrb[0].mxu0
    %v2799 = vadd.f32 %v2636, %v2798
    %v2800 = vpop.f32.mrb[0].mxu0
    %2801 = vmatprep.mubr.f32.mxu0 0.0
    %2802 = vmatmul.mubr.f32.gmra.mrb[0].mxu0 %v2672
    %v2803 = vpop.f32.mrb[0].mxu0
    %v2804 = vadd.f32 %v2637, %v2803
    %v2805 = vpop.f32.mrb[0].mxu0
    %2806 = vmatprep.mubr.f32.mxu0 0.0
    %2807 = vmatmul.mubr.f32.gmra.mrb[0].mxu0 %v2675
    %v2808 = vpop.f32.mrb[0].mxu0
    %v2809 = vadd.f32 %v2638, %v2808
    %v2810 = vpop.f32.mrb[0].mxu0
    %2811 = vmatprep.mubr.f32.mxu0 0.0
    %2812 = vmatmul.mubr.f32.gmra.mrb[0].mxu0 %v2678
    %v2813 = vpop.f32.mrb[0].mxu0
    %v2814 = vadd.f32 %v2639, %v2813
    %v2815 = vpop.f32.mrb[0].mxu0
    %2816 = vmatprep.mubr.f32.mxu0 0.0
    %2817 = vmatmul.mubr.f32.gmra.mrb[0].mxu0 %v2681
    %v2818 = vpop.f32.mrb[0].mxu0
    %v2819 = vadd.f32 %v2640, %v2818
    %v2820 = vpop.f32.mrb[0].mxu0
    %2821 = vmatprep.mubr.f32.mxu0 0.0
    %2822 = vmatmul.mubr.f32.gmra.mrb[0].mxu0 %v2684
    %v2823 = vpop.f32.mrb[0].mxu0
    %v2824 = vadd.f32 %v2641, %v2823
    %v2825 = vpop.f32.mrb[0].mxu0
    %2826 = vmatprep.mubr.f32.mxu0 0.0
    %2827 = vmatmul.mubr.f32.gmra.mrb[0].mxu0 %v2687
    %v2828 = vpop.f32.mrb[0].mxu0
    %v2829 = vadd.f32 %v2642, %v2828
    %v2830 = vpop.f32.mrb[0].mxu0
    %2831 = vmatprep.mubr.f32.mxu0 0.0
    %2832 = vmatmul.mubr.f32.gmra.mrb[0].mxu0 %v2690
    %v2833 = vpop.f32.mrb[0].mxu0
    %v2834 = vadd.f32 %v2643, %v2833
    %v2835 = vpop.f32.mrb[0].mxu0
    %2836 = vdwg.mxu0
    %v2837 = vld [vmem:[%s13] sm:$0x1]
    %v2839 = vlaneseq
    %v2840 = vshrl.u32 %v2839, 7
    %v2841 = vsub.s32 0, %v2840
    %v2842 = vrot.slane %v2837, %v2841
    %v2844 = vadd.f32 %v2759, %v2842
    %v2845 = vadd.f32 %v2764, %v2842
    %v2846 = vadd.f32 %v2769, %v2842
    %v2847 = vadd.f32 %v2774, %v2842
    %v2848 = vadd.f32 %v2779, %v2842
    %v2849 = vadd.f32 %v2784, %v2842
    %v2850 = vadd.f32 %v2789, %v2842
    %v2851 = vadd.f32 %v2794, %v2842
    %v2852 = vadd.f32 %v2799, %v2842
    %v2853 = vadd.f32 %v2804, %v2842
    %v2854 = vadd.f32 %v2809, %v2842
    %v2855 = vadd.f32 %v2814, %v2842
    %v2856 = vadd.f32 %v2819, %v2842
    %v2857 = vadd.f32 %v2824, %v2842
    %v2858 = vadd.f32 %v2829, %v2842
    %v2859 = vadd.f32 %v2834, %v2842
    %v2860 = vmax.f32 %v2844, 0.0
    %v2861 = vmax.f32 %v2845, 0.0
    %v2862 = vmax.f32 %v2846, 0.0
    %v2863 = vmax.f32 %v2847, 0.0
    %v2864 = vmax.f32 %v2848, 0.0
    %v2865 = vmax.f32 %v2849, 0.0
    %v2866 = vmax.f32 %v2850, 0.0
    %v2867 = vmax.f32 %v2851, 0.0
    %v2868 = vmax.f32 %v2852, 0.0
    %v2869 = vmax.f32 %v2853, 0.0
    %v2870 = vmax.f32 %v2854, 0.0
    %v2871 = vmax.f32 %v2855, 0.0
    %v2872 = vmax.f32 %v2856, 0.0
    %v2873 = vmax.f32 %v2857, 0.0
    %v2874 = vmax.f32 %v2858, 0.0
    %v2875 = vmax.f32 %v2859, 0.0
    %v2876 = vld [vmem:[%s14] sm:$0xff]
    %v2877 = vld [vmem:[%s14 + $0x8] sm:$0xff]
    %v2878 = vld [vmem:[%s14 + $0x10] sm:$0xff]
    %v2879 = vld [vmem:[%s14 + $0x18] sm:$0xff]
    %v2880 = vld [vmem:[%s14 + $0x20] sm:$0xff]
    %v2881 = vld [vmem:[%s14 + $0x28] sm:$0xff]
    %v2882 = vld [vmem:[%s14 + $0x30] sm:$0xff]
    %v2883 = vld [vmem:[%s14 + $0x38] sm:$0xff]
    %v2884 = vld [vmem:[%s15] sm:$0x1]
    %v2886 = vlaneseq
    %v2887 = vshrl.u32 %v2886, 7
    %v2888 = vsub.s32 0, %v2887
    %v2889 = vrot.slane %v2884, %v2888
    %v2892 = vsel %vm2022, %v2860, 0
    %v2895 = vsel %vm2022, %v2861, 0
    %v2898 = vsel %vm2022, %v2862, 0
    %v2901 = vsel %vm2022, %v2863, 0
    %v2904 = vsel %vm2022, %v2864, 0
    %v2907 = vsel %vm2022, %v2865, 0
    %v2910 = vsel %vm2022, %v2866, 0
    %v2913 = vsel %vm2022, %v2867, 0
    %v2916 = vsel %vm2022, %v2868, 0
    %v2919 = vsel %vm2022, %v2869, 0
    %v2922 = vsel %vm2022, %v2870, 0
    %v2925 = vsel %vm2022, %v2871, 0
    %v2928 = vsel %vm2022, %v2872, 0
    %v2931 = vsel %vm2022, %v2873, 0
    %v2934 = vsel %vm2022, %v2874, 0
    %v2937 = vsel %vm2022, %v2875, 0
    %2939 = vmatprep.subr.mxu0 0.0
    %2940 = vmatpush1.msra.mxu0 %v2876
    %2941 = vmatprep.subr.mxu0 0.0
    %2942 = vmatpush1.msra.mxu0 %v2877
    %2943 = vmatprep.subr.mxu0 0.0
    %2944 = vmatpush1.msra.mxu0 %v2878
    %2945 = vmatprep.subr.mxu0 0.0
    %2946 = vmatpush1.msra.mxu0 %v2879
    %2947 = vmatprep.subr.mxu0 0.0
    %2948 = vmatpush1.msra.mxu0 %v2880
    %2949 = vmatprep.subr.mxu0 0.0
    %2950 = vmatpush1.msra.mxu0 %v2881
    %2951 = vmatprep.subr.mxu0 0.0
    %2952 = vmatpush1.msra.mxu0 %v2882
    %2953 = vmatprep.subr.mxu0 0.0
    %2954 = vmatpush1.msra.mxu0 %v2883
    %2955 = vmatprep.subr.mxu0 0.0
    %2956 = vmatpush1.msra.mxu0 0.0
    %2957 = vmatprep.subr.mxu0 0.0
    %2958 = vmatpush1.msra.mxu0 0.0
    %2959 = vmatprep.subr.mxu0 0.0
    %2960 = vmatpush1.msra.mxu0 0.0
    %2961 = vmatprep.subr.mxu0 0.0
    %2962 = vmatpush1.msra.mxu0 0.0
    %2963 = vmatprep.subr.mxu0 0.0
    %2964 = vmatpush1.msra.mxu0 0.0
    %2965 = vmatprep.subr.mxu0 0.0
    %2966 = vmatpush1.msra.mxu0 0.0
    %2967 = vmatprep.subr.mxu0 0.0
    %2968 = vmatpush1.msra.mxu0 0.0
    %2969 = vmatprep.subr.mxu0 0.0
    %2970 = vmatpush1.msra.mxu0 0.0
    %2971 = vmatprep.subr.mxu0 0.0
    %2972 = vmatpush1.msra.mxu0 0.0
    %2973 = vmatprep.subr.mxu0 0.0
    %2974 = vmatpush1.msra.mxu0 0.0
    %2975 = vmatprep.subr.mxu0 0.0
    %2976 = vmatpush1.msra.mxu0 0.0
    %2977 = vmatprep.subr.mxu0 0.0
    %2978 = vmatpush1.msra.mxu0 0.0
    %2979 = vmatprep.subr.mxu0 0.0
    %2980 = vmatpush1.msra.mxu0 0.0
    %2981 = vmatprep.subr.mxu0 0.0
    %2982 = vmatpush1.msra.mxu0 0.0
    %2983 = vmatprep.subr.mxu0 0.0
    %2984 = vmatpush1.msra.mxu0 0.0
    %2985 = vmatprep.subr.mxu0 0.0
    %2986 = vmatpush1.msra.mxu0 0.0
    %2987 = vmatprep.subr.mxu0 0.0
    %2988 = vmatpush1.msra.mxu0 0.0
    %2989 = vmatprep.subr.mxu0 0.0
    %2990 = vmatpush1.msra.mxu0 0.0
    %2991 = vmatprep.subr.mxu0 0.0
    %2992 = vmatpush1.msra.mxu0 0.0
    %2993 = vmatprep.subr.mxu0 0.0
    %2994 = vmatpush1.msra.mxu0 0.0
    %2995 = vmatprep.subr.mxu0 0.0
    %2996 = vmatpush1.msra.mxu0 0.0
    %2997 = vmatprep.subr.mxu0 0.0
    %2998 = vmatpush1.msra.mxu0 0.0
    %2999 = vmatprep.subr.mxu0 0.0
    %3000 = vmatpush1.msra.mxu0 0.0
    %3001 = vmatprep.subr.mxu0 0.0
    %3002 = vmatpush1.msra.mxu0 0.0
    %3003 = vmatprep.mubr.f32.mxu0 0.0
    %3004 = vmatmul.mubr.f32.gmra.mrb[0].mxu0 %v2892
    %v3005 = vpop.f32.mrb[0].mxu0
    %v3006 = vadd.f32 %v2889, %v3005
    %v3007 = vpop.f32.mrb[0].mxu0
    %3008 = vmatprep.mubr.f32.mxu0 0.0
    %3009 = vmatmul.mubr.f32.gmra.mrb[0].mxu0 %v2895
    %v3010 = vpop.f32.mrb[0].mxu0
    %v3011 = vadd.f32 %v2889, %v3010
    %v3012 = vpop.f32.mrb[0].mxu0
    %3013 = vmatprep.mubr.f32.mxu0 0.0
    %3014 = vmatmul.mubr.f32.gmra.mrb[0].mxu0 %v2898
    %v3015 = vpop.f32.mrb[0].mxu0
    %v3016 = vadd.f32 %v2889, %v3015
    %v3017 = vpop.f32.mrb[0].mxu0
    %3018 = vmatprep.mubr.f32.mxu0 0.0
    %3019 = vmatmul.mubr.f32.gmra.mrb[0].mxu0 %v2901
    %v3020 = vpop.f32.mrb[0].mxu0
    %v3021 = vadd.f32 %v2889, %v3020
    %v3022 = vpop.f32.mrb[0].mxu0
    %3023 = vmatprep.mubr.f32.mxu0 0.0
    %3024 = vmatmul.mubr.f32.gmra.mrb[0].mxu0 %v2904
    %v3025 = vpop.f32.mrb[0].mxu0
    %v3026 = vadd.f32 %v2889, %v3025
    %v3027 = vpop.f32.mrb[0].mxu0
    %3028 = vmatprep.mubr.f32.mxu0 0.0
    %3029 = vmatmul.mubr.f32.gmra.mrb[0].mxu0 %v2907
    %v3030 = vpop.f32.mrb[0].mxu0
    %v3031 = vadd.f32 %v2889, %v3030
    %v3032 = vpop.f32.mrb[0].mxu0
    %3033 = vmatprep.mubr.f32.mxu0 0.0
    %3034 = vmatmul.mubr.f32.gmra.mrb[0].mxu0 %v2910
    %v3035 = vpop.f32.mrb[0].mxu0
    %v3036 = vadd.f32 %v2889, %v3035
    %v3037 = vpop.f32.mrb[0].mxu0
    %3038 = vmatprep.mubr.f32.mxu0 0.0
    %3039 = vmatmul.mubr.f32.gmra.mrb[0].mxu0 %v2913
    %v3040 = vpop.f32.mrb[0].mxu0
    %v3041 = vadd.f32 %v2889, %v3040
    %v3042 = vpop.f32.mrb[0].mxu0
    %3043 = vmatprep.mubr.f32.mxu0 0.0
    %3044 = vmatmul.mubr.f32.gmra.mrb[0].mxu0 %v2916
    %v3045 = vpop.f32.mrb[0].mxu0
    %v3046 = vadd.f32 %v2889, %v3045
    %v3047 = vpop.f32.mrb[0].mxu0
    %3048 = vmatprep.mubr.f32.mxu0 0.0
    %3049 = vmatmul.mubr.f32.gmra.mrb[0].mxu0 %v2919
    %v3050 = vpop.f32.mrb[0].mxu0
    %v3051 = vadd.f32 %v2889, %v3050
    %v3052 = vpop.f32.mrb[0].mxu0
    %3053 = vmatprep.mubr.f32.mxu0 0.0
    %3054 = vmatmul.mubr.f32.gmra.mrb[0].mxu0 %v2922
    %v3055 = vpop.f32.mrb[0].mxu0
    %v3056 = vadd.f32 %v2889, %v3055
    %v3057 = vpop.f32.mrb[0].mxu0
    %3058 = vmatprep.mubr.f32.mxu0 0.0
    %3059 = vmatmul.mubr.f32.gmra.mrb[0].mxu0 %v2925
    %v3060 = vpop.f32.mrb[0].mxu0
    %v3061 = vadd.f32 %v2889, %v3060
    %v3062 = vpop.f32.mrb[0].mxu0
    %3063 = vmatprep.mubr.f32.mxu0 0.0
    %3064 = vmatmul.mubr.f32.gmra.mrb[0].mxu0 %v2928
    %v3065 = vpop.f32.mrb[0].mxu0
    %v3066 = vadd.f32 %v2889, %v3065
    %v3067 = vpop.f32.mrb[0].mxu0
    %3068 = vmatprep.mubr.f32.mxu0 0.0
    %3069 = vmatmul.mubr.f32.gmra.mrb[0].mxu0 %v2931
    %v3070 = vpop.f32.mrb[0].mxu0
    %v3071 = vadd.f32 %v2889, %v3070
    %v3072 = vpop.f32.mrb[0].mxu0
    %3073 = vmatprep.mubr.f32.mxu0 0.0
    %3074 = vmatmul.mubr.f32.gmra.mrb[0].mxu0 %v2934
    %v3075 = vpop.f32.mrb[0].mxu0
    %v3076 = vadd.f32 %v2889, %v3075
    %v3077 = vpop.f32.mrb[0].mxu0
    %3078 = vmatprep.mubr.f32.mxu0 0.0
    %3079 = vmatmul.mubr.f32.gmra.mrb[0].mxu0 %v2937
    %v3080 = vpop.f32.mrb[0].mxu0
    %v3081 = vadd.f32 %v2889, %v3080
    %v3082 = vpop.f32.mrb[0].mxu0
    %3083 = vdwg.mxu0
    %3084 = vst.msk [vmem:[%s16] sm:$0xff] %vm2022, %v3006
    %3085 = vst.msk [vmem:[%s16 + $0x8] sm:$0xff] %vm2022, %v3011
    %3086 = vst.msk [vmem:[%s16 + $0x10] sm:$0xff] %vm2022, %v3016
    %3087 = vst.msk [vmem:[%s16 + $0x18] sm:$0xff] %vm2022, %v3021
    %3088 = vst.msk [vmem:[%s16 + $0x20] sm:$0xff] %vm2022, %v3026
    %3089 = vst.msk [vmem:[%s16 + $0x28] sm:$0xff] %vm2022, %v3031
    %3090 = vst.msk [vmem:[%s16 + $0x30] sm:$0xff] %vm2022, %v3036
    %3091 = vst.msk [vmem:[%s16 + $0x38] sm:$0xff] %vm2022, %v3041
    %3092 = vst.msk [vmem:[%s16 + $0x40] sm:$0xff] %vm2022, %v3046
    %3093 = vst.msk [vmem:[%s16 + $0x48] sm:$0xff] %vm2022, %v3051
    %3094 = vst.msk [vmem:[%s16 + $0x50] sm:$0xff] %vm2022, %v3056
    %3095 = vst.msk [vmem:[%s16 + $0x58] sm:$0xff] %vm2022, %v3061
    %3096 = vst.msk [vmem:[%s16 + $0x60] sm:$0xff] %vm2022, %v3066
    %3097 = vst.msk [vmem:[%s16 + $0x68] sm:$0xff] %vm2022, %v3071
    %3098 = vst.msk [vmem:[%s16 + $0x70] sm:$0xff] %vm2022, %v3076
    %3099 = vst.msk [vmem:[%s16 + $0x78] sm:$0xff] %vm2022, %v3081
  $region73: #{gnn_policy_forward.6} parent=0 // pred_fallthru
    _
  // Predicated region
  $region74: #{gnn_policy_forward.6} parent=0 // pred_check
    _
  $region75: #{gnn_policy_forward.6} parent=0 // pred_check_branch
    %3101 = sbr.rel (0) target = $region77
  $region76: #{gnn_policy_forward.6} parent=0 // pred_region
    _
  $region77: #{gnn_policy_forward.6} parent=0 // pred_fallthru
    _
  // Predicated region
  $region78: #{gnn_policy_forward.6} parent=0 // pred_check
    _
  $region79: #{gnn_policy_forward.6} parent=0 // pred_check_branch
    %3103 = sbr.rel (0) target = $region81
  $region80: #{gnn_policy_forward.6} parent=0 // pred_region
    _
  $region81: #{gnn_policy_forward.6} parent=0 // pred_fallthru
    _

// kernel: gnn_policy_forward.7
$region0: #{gnn_policy_forward.7}
  #allocation0 [shape = 'u32[]', space=smem, size = 0x4, offset = 0x4, fixed_abs, tag = 'smem constant byte address 0x4 - core index']
  #allocation1 [shape = 'u32[144,128]{1,0:T(1,128)}', space=vmem, size = 0x12000, scoped, tag = 'internal scratch']
  #allocation2 [shape = 'f32[128,64]{1,0:T(8,128)}', space=vmem, size = 0x10000, scoped, tag = 'scratch operand']
  #allocation3 [shape = 'f32[128,64]{1,0:T(8,128)}', space=vmem, size = 0x10000, scoped, tag = 'scratch operand']
  #allocation4 [shape = 'f32[128,64]{1,0:T(8,128)}', space=vmem, size = 0x10000, scoped, tag = 'scratch operand']
  #allocation5 [shape = 'f32[128,64]{1,0:T(8,128)}', space=vmem, size = 0x10000, scoped, tag = 'scratch operand']
  %s0 = inlined_call_operand.vmem [shape: f32[128,64], index: 0, kind: input, shape index: {}]
  %s1 = inlined_call_operand.vmem [shape: f32[128,64], index: 1, kind: input, shape index: {}]
  %s2 = inlined_call_operand.vmem [shape: f32[256,1], index: 2, kind: input, shape index: {}]
  %s3 = inlined_call_operand.vmem [shape: s32[256,1], index: 3, kind: input, shape index: {}]
  %s4 = inlined_call_operand.vmem [shape: s32[256,1], index: 4, kind: input, shape index: {}]
  %s5 = inlined_call_operand.vmem [shape: f32[64,64], index: 5, kind: input, shape index: {}]
  %s6 = inlined_call_operand.vmem [shape: f32[1,64], index: 6, kind: input, shape index: {}]
  %s7 = inlined_call_operand.vmem [shape: f32[1,64], index: 7, kind: input, shape index: {}]
  %s8 = inlined_call_operand.vmem [shape: f32[64,64], index: 8, kind: input, shape index: {}]
  %s9 = inlined_call_operand.vmem [shape: f32[64,64], index: 9, kind: input, shape index: {}]
  %s10 = inlined_call_operand.vmem [shape: f32[1,64], index: 10, kind: input, shape index: {}]
  %s11 = inlined_call_operand.vmem [shape: f32[64,64], index: 11, kind: input, shape index: {}]
  %s12 = inlined_call_operand.vmem [shape: f32[64,64], index: 12, kind: input, shape index: {}]
  %s13 = inlined_call_operand.vmem [shape: f32[1,64], index: 13, kind: input, shape index: {}]
  %s14 = inlined_call_operand.vmem [shape: f32[64,64], index: 14, kind: input, shape index: {}]
  %s15 = inlined_call_operand.vmem [shape: f32[1,64], index: 15, kind: input, shape index: {}]
  %s16 = inlined_call_operand.vmem [shape: f32[64,64], index: 16, kind: input, shape index: {}]
  %s17 = inlined_call_operand.vmem [shape: f32[1,64], index: 17, kind: input, shape index: {}]
  %s18 = inlined_call_operand.vmem [shape: f32[64,1], index: 18, kind: input, shape index: {}]
  %s19 = inlined_call_operand.vmem [shape: f32[128,1], index: 19, kind: output, shape index: {}]
  %s20 = sld [smem:[#allocation0]]
  $region94: #{gnn_policy_forward.7} parent=0
    _
  %s22 = ssub.s32 1, %s20
  %s23 = scalar_select 0, %s22, %s20
  // Predicated region
  $region2: #{gnn_policy_forward.7} parent=0 // pred_check
    _
  $region3: #{gnn_policy_forward.7} parent=0 // pred_check_branch
    %25 = sbr.rel (0) target = $region5
  $region4: #{gnn_policy_forward.7} parent=0 // pred_region
    _
  $region5: #{gnn_policy_forward.7} parent=0 // pred_fallthru
    _
  // Predicated region
  $region6: #{gnn_policy_forward.7} parent=0 // pred_check
    _
  $region7: #{gnn_policy_forward.7} parent=0 // pred_check_branch
    %27 = sbr.rel (0) target = $region9
  $region8: #{gnn_policy_forward.7} parent=0 // pred_region
    _
  $region9: #{gnn_policy_forward.7} parent=0 // pred_fallthru
    _
  // Predicated region
  $region10: #{gnn_policy_forward.7} parent=0 // pred_check
    _
  $region11: #{gnn_policy_forward.7} parent=0 // pred_check_branch
    %29 = sbr.rel (0) target = $region13
  $region12: #{gnn_policy_forward.7} parent=0 // pred_region
    _
  $region13: #{gnn_policy_forward.7} parent=0 // pred_fallthru
    _
  // Predicated region
  $region14: #{gnn_policy_forward.7} parent=0 // pred_check
    _
  $region15: #{gnn_policy_forward.7} parent=0 // pred_check_branch
    %31 = sbr.rel (0) target = $region17
  $region16: #{gnn_policy_forward.7} parent=0 // pred_region
    _
  $region17: #{gnn_policy_forward.7} parent=0 // pred_fallthru
    _
  // Predicated region
  $region18: #{gnn_policy_forward.7} parent=0 // pred_check
    _
  $region19: #{gnn_policy_forward.7} parent=0 // pred_check_branch
    %33 = sbr.rel (0) target = $region21
  $region20: #{gnn_policy_forward.7} parent=0 // pred_region
    _
  $region21: #{gnn_policy_forward.7} parent=0 // pred_fallthru
    _
  // Predicated region
  $region22: #{gnn_policy_forward.7} parent=0 // pred_check
    _
  $region23: #{gnn_policy_forward.7} parent=0 // pred_check_branch
    %35 = sbr.rel (0) target = $region25
  $region24: #{gnn_policy_forward.7} parent=0 // pred_region
    _
  $region25: #{gnn_policy_forward.7} parent=0 // pred_fallthru
    _
  // Predicated region
  $region26: #{gnn_policy_forward.7} parent=0 // pred_check
    _
  $region27: #{gnn_policy_forward.7} parent=0 // pred_check_branch
    %37 = sbr.rel (0) target = $region29
  $region28: #{gnn_policy_forward.7} parent=0 // pred_region
    _
  $region29: #{gnn_policy_forward.7} parent=0 // pred_fallthru
    _
  // Predicated region
  $region30: #{gnn_policy_forward.7} parent=0 // pred_check
    _
  $region31: #{gnn_policy_forward.7} parent=0 // pred_check_branch
    %39 = sbr.rel (0) target = $region33
  $region32: #{gnn_policy_forward.7} parent=0 // pred_region
    _
  $region33: #{gnn_policy_forward.7} parent=0 // pred_fallthru
    _
  // Predicated region
  $region34: #{gnn_policy_forward.7} parent=0 // pred_check
    _
  $region35: #{gnn_policy_forward.7} parent=0 // pred_check_branch
    %41 = sbr.rel (0) target = $region37
  $region36: #{gnn_policy_forward.7} parent=0 // pred_region
    _
  $region37: #{gnn_policy_forward.7} parent=0 // pred_fallthru
    _
  // Predicated region
  $region38: #{gnn_policy_forward.7} parent=0 // pred_check
    _
  $region39: #{gnn_policy_forward.7} parent=0 // pred_check_branch
    %43 = sbr.rel (0) target = $region41
  $region40: #{gnn_policy_forward.7} parent=0 // pred_region
    _
  $region41: #{gnn_policy_forward.7} parent=0 // pred_fallthru
    _
  // Predicated region
  $region42: #{gnn_policy_forward.7} parent=0 // pred_check
    _
  $region43: #{gnn_policy_forward.7} parent=0 // pred_check_branch
    %45 = sbr.rel (0) target = $region45
  $region44: #{gnn_policy_forward.7} parent=0 // pred_region
    _
  $region45: #{gnn_policy_forward.7} parent=0 // pred_fallthru
    _
  // Predicated region
  $region46: #{gnn_policy_forward.7} parent=0 // pred_check
    _
  $region47: #{gnn_policy_forward.7} parent=0 // pred_check_branch
    %47 = sbr.rel (0) target = $region49
  $region48: #{gnn_policy_forward.7} parent=0 // pred_region
    _
  $region49: #{gnn_policy_forward.7} parent=0 // pred_fallthru
    _
  // Predicated region
  $region50: #{gnn_policy_forward.7} parent=0 // pred_check
    _
  $region51: #{gnn_policy_forward.7} parent=0 // pred_check_branch
    %49 = sbr.rel (0) target = $region53
  $region52: #{gnn_policy_forward.7} parent=0 // pred_region
    _
  $region53: #{gnn_policy_forward.7} parent=0 // pred_fallthru
    _
  // Predicated region
  $region54: #{gnn_policy_forward.7} parent=0 // pred_check
    _
  $region55: #{gnn_policy_forward.7} parent=0 // pred_check_branch
    %51 = sbr.rel (0) target = $region57
  $region56: #{gnn_policy_forward.7} parent=0 // pred_region
    _
  $region57: #{gnn_policy_forward.7} parent=0 // pred_fallthru
    _
  // Predicated region
  $region58: #{gnn_policy_forward.7} parent=0 // pred_check
    _
  $region59: #{gnn_policy_forward.7} parent=0 // pred_check_branch
    %53 = sbr.rel (0) target = $region61
  $region60: #{gnn_policy_forward.7} parent=0 // pred_region
    _
  $region61: #{gnn_policy_forward.7} parent=0 // pred_fallthru
    _
  // Predicated region
  $region62: #{gnn_policy_forward.7} parent=0 // pred_check
    _
  $region63: #{gnn_policy_forward.7} parent=0 // pred_check_branch
    %55 = sbr.rel (0) target = $region65
  $region64: #{gnn_policy_forward.7} parent=0 // pred_region
    _
  $region65: #{gnn_policy_forward.7} parent=0 // pred_fallthru
    _
  // Predicated region
  $region66: #{gnn_policy_forward.7} parent=0 // pred_check
    _
  $region67: #{gnn_policy_forward.7} parent=0 // pred_check_branch
    %57 = sbr.rel (0) target = $region69
  $region68: #{gnn_policy_forward.7} parent=0 // pred_region
    _
  $region69: #{gnn_policy_forward.7} parent=0 // pred_fallthru
    _
  // Predicated region
  $region70: #{gnn_policy_forward.7} parent=0 // pred_check
    _
  $region71: #{gnn_policy_forward.7} parent=0 // pred_check_branch
    %59 = sbr.rel (0) target = $region73
  $region72: #{gnn_policy_forward.7} parent=0 // pred_region
    _
  $region73: #{gnn_policy_forward.7} parent=0 // pred_fallthru
    _
  // Predicated region
  $region74: #{gnn_policy_forward.7} parent=0 // pred_check
    _
  $region75: #{gnn_policy_forward.7} parent=0 // pred_check_branch
    %61 = sbr.rel (0) target = $region77
  $region76: #{gnn_policy_forward.7} parent=0 // pred_region
    _
  $region77: #{gnn_policy_forward.7} parent=0 // pred_fallthru
    _
  %p62 = scmp.eq.s32.totalorder 0, 0
  // Predicated region
  $region78: #{gnn_policy_forward.7} parent=0 // pred_check
    %p63 = pneg %p62
  $region79: #{gnn_policy_forward.7} parent=0 // pred_check_branch
    %65 = sbr.rel (%p63) target = $region81
  $region80: #{gnn_policy_forward.7} parent=0 // pred_region
    %v66 = vld [vmem:[%s1] sm:$0xff]
    %v67 = vld [vmem:[%s1 + $0x8] sm:$0xff]
    %v68 = vld [vmem:[%s1 + $0x10] sm:$0xff]
    %v69 = vld [vmem:[%s1 + $0x18] sm:$0xff]
    %v70 = vld [vmem:[%s1 + $0x20] sm:$0xff]
    %v71 = vld [vmem:[%s1 + $0x28] sm:$0xff]
    %v72 = vld [vmem:[%s1 + $0x30] sm:$0xff]
    %v73 = vld [vmem:[%s1 + $0x38] sm:$0xff]
    %v74 = vld [vmem:[%s1 + $0x40] sm:$0xff]
    %v75 = vld [vmem:[%s1 + $0x48] sm:$0xff]
    %v76 = vld [vmem:[%s1 + $0x50] sm:$0xff]
    %v77 = vld [vmem:[%s1 + $0x58] sm:$0xff]
    %v78 = vld [vmem:[%s1 + $0x60] sm:$0xff]
    %v79 = vld [vmem:[%s1 + $0x68] sm:$0xff]
    %v80 = vld [vmem:[%s1 + $0x70] sm:$0xff]
    %v81 = vld [vmem:[%s1 + $0x78] sm:$0xff]
    %v82 = vld [vmem:[%s5] sm:$0xff]
    %v83 = vld [vmem:[%s5 + $0x8] sm:$0xff]
    %v84 = vld [vmem:[%s5 + $0x10] sm:$0xff]
    %v85 = vld [vmem:[%s5 + $0x18] sm:$0xff]
    %v86 = vld [vmem:[%s5 + $0x20] sm:$0xff]
    %v87 = vld [vmem:[%s5 + $0x28] sm:$0xff]
    %v88 = vld [vmem:[%s5 + $0x30] sm:$0xff]
    %v89 = vld [vmem:[%s5 + $0x38] sm:$0xff]
    %v90 = vld [vmem:[%s6] sm:$0x1]
    %v92 = vlaneseq
    %v93 = vshrl.u32 %v92, 7
    %v94 = vsub.s32 0, %v93
    %v95 = vrot.slane %v90, %v94
    %vm97 = vcmask 523264
    %v99 = vsel %vm97, %v66, 0
    %v102 = vsel %vm97, %v67, 0
    %v105 = vsel %vm97, %v68, 0
    %v108 = vsel %vm97, %v69, 0
    %v111 = vsel %vm97, %v70, 0
    %v114 = vsel %vm97, %v71, 0
    %v117 = vsel %vm97, %v72, 0
    %v120 = vsel %vm97, %v73, 0
    %v123 = vsel %vm97, %v74, 0
    %v126 = vsel %vm97, %v75, 0
    %v129 = vsel %vm97, %v76, 0
    %v132 = vsel %vm97, %v77, 0
    %v135 = vsel %vm97, %v78, 0
    %v138 = vsel %vm97, %v79, 0
    %v141 = vsel %vm97, %v80, 0
    %v144 = vsel %vm97, %v81, 0
    %146 = vmatprep.subr.mxu0 0.0
    %147 = vmatpush1.msra.mxu0 %v82
    %148 = vmatprep.subr.mxu0 0.0
    %149 = vmatpush1.msra.mxu0 %v83
    %150 = vmatprep.subr.mxu0 0.0
    %151 = vmatpush1.msra.mxu0 %v84
    %152 = vmatprep.subr.mxu0 0.0
    %153 = vmatpush1.msra.mxu0 %v85
    %154 = vmatprep.subr.mxu0 0.0
    %155 = vmatpush1.msra.mxu0 %v86
    %156 = vmatprep.subr.mxu0 0.0
    %157 = vmatpush1.msra.mxu0 %v87
    %158 = vmatprep.subr.mxu0 0.0
    %159 = vmatpush1.msra.mxu0 %v88
    %160 = vmatprep.subr.mxu0 0.0
    %161 = vmatpush1.msra.mxu0 %v89
    %162 = vmatprep.subr.mxu0 0.0
    %163 = vmatpush1.msra.mxu0 0.0
    %164 = vmatprep.subr.mxu0 0.0
    %165 = vmatpush1.msra.mxu0 0.0
    %166 = vmatprep.subr.mxu0 0.0
    %167 = vmatpush1.msra.mxu0 0.0
    %168 = vmatprep.subr.mxu0 0.0
    %169 = vmatpush1.msra.mxu0 0.0
    %170 = vmatprep.subr.mxu0 0.0
    %171 = vmatpush1.msra.mxu0 0.0
    %172 = vmatprep.subr.mxu0 0.0
    %173 = vmatpush1.msra.mxu0 0.0
    %174 = vmatprep.subr.mxu0 0.0
    %175 = vmatpush1.msra.mxu0 0.0
    %176 = vmatprep.subr.mxu0 0.0
    %177 = vmatpush1.msra.mxu0 0.0
    %178 = vmatprep.subr.mxu0 0.0
    %179 = vmatpush1.msra.mxu0 0.0
    %180 = vmatprep.subr.mxu0 0.0
    %181 = vmatpush1.msra.mxu0 0.0
    %182 = vmatprep.subr.mxu0 0.0
    %183 = vmatpush1.msra.mxu0 0.0
    %184 = vmatprep.subr.mxu0 0.0
    %185 = vmatpush1.msra.mxu0 0.0
    %186 = vmatprep.subr.mxu0 0.0
    %187 = vmatpush1.msra.mxu0 0.0
    %188 = vmatprep.subr.mxu0 0.0
    %189 = vmatpush1.msra.mxu0 0.0
    %190 = vmatprep.subr.mxu0 0.0
    %191 = vmatpush1.msra.mxu0 0.0
    %192 = vmatprep.subr.mxu0 0.0
    %193 = vmatpush1.msra.mxu0 0.0
    %194 = vmatprep.subr.mxu0 0.0
    %195 = vmatpush1.msra.mxu0 0.0
    %196 = vmatprep.subr.mxu0 0.0
    %197 = vmatpush1.msra.mxu0 0.0
    %198 = vmatprep.subr.mxu0 0.0
    %199 = vmatpush1.msra.mxu0 0.0
    %200 = vmatprep.subr.mxu0 0.0
    %201 = vmatpush1.msra.mxu0 0.0
    %202 = vmatprep.subr.mxu0 0.0
    %203 = vmatpush1.msra.mxu0 0.0
    %204 = vmatprep.subr.mxu0 0.0
    %205 = vmatpush1.msra.mxu0 0.0
    %206 = vmatprep.subr.mxu0 0.0
    %207 = vmatpush1.msra.mxu0 0.0
    %208 = vmatprep.subr.mxu0 0.0
    %209 = vmatpush1.msra.mxu0 0.0
    %210 = vmatprep.mubr.f32.mxu0 0.0
    %211 = vmatmul.mubr.f32.gmra.mrb[0].mxu0 %v99
    %v212 = vpop.f32.mrb[0].mxu0
    %v213 = vadd.f32 %v95, %v212
    %v214 = vpop.f32.mrb[0].mxu0
    %215 = vmatprep.mubr.f32.mxu0 0.0
    %216 = vmatmul.mubr.f32.gmra.mrb[0].mxu0 %v102
    %v217 = vpop.f32.mrb[0].mxu0
    %v218 = vadd.f32 %v95, %v217
    %v219 = vpop.f32.mrb[0].mxu0
    %220 = vmatprep.mubr.f32.mxu0 0.0
    %221 = vmatmul.mubr.f32.gmra.mrb[0].mxu0 %v105
    %v222 = vpop.f32.mrb[0].mxu0
    %v223 = vadd.f32 %v95, %v222
    %v224 = vpop.f32.mrb[0].mxu0
    %225 = vmatprep.mubr.f32.mxu0 0.0
    %226 = vmatmul.mubr.f32.gmra.mrb[0].mxu0 %v108
    %v227 = vpop.f32.mrb[0].mxu0
    %v228 = vadd.f32 %v95, %v227
    %v229 = vpop.f32.mrb[0].mxu0
    %230 = vmatprep.mubr.f32.mxu0 0.0
    %231 = vmatmul.mubr.f32.gmra.mrb[0].mxu0 %v111
    %v232 = vpop.f32.mrb[0].mxu0
    %v233 = vadd.f32 %v95, %v232
    %v234 = vpop.f32.mrb[0].mxu0
    %235 = vmatprep.mubr.f32.mxu0 0.0
    %236 = vmatmul.mubr.f32.gmra.mrb[0].mxu0 %v114
    %v237 = vpop.f32.mrb[0].mxu0
    %v238 = vadd.f32 %v95, %v237
    %v239 = vpop.f32.mrb[0].mxu0
    %240 = vmatprep.mubr.f32.mxu0 0.0
    %241 = vmatmul.mubr.f32.gmra.mrb[0].mxu0 %v117
    %v242 = vpop.f32.mrb[0].mxu0
    %v243 = vadd.f32 %v95, %v242
    %v244 = vpop.f32.mrb[0].mxu0
    %245 = vmatprep.mubr.f32.mxu0 0.0
    %246 = vmatmul.mubr.f32.gmra.mrb[0].mxu0 %v120
    %v247 = vpop.f32.mrb[0].mxu0
    %v248 = vadd.f32 %v95, %v247
    %v249 = vpop.f32.mrb[0].mxu0
    %250 = vmatprep.mubr.f32.mxu0 0.0
    %251 = vmatmul.mubr.f32.gmra.mrb[0].mxu0 %v123
    %v252 = vpop.f32.mrb[0].mxu0
    %v253 = vadd.f32 %v95, %v252
    %v254 = vpop.f32.mrb[0].mxu0
    %255 = vmatprep.mubr.f32.mxu0 0.0
    %256 = vmatmul.mubr.f32.gmra.mrb[0].mxu0 %v126
    %v257 = vpop.f32.mrb[0].mxu0
    %v258 = vadd.f32 %v95, %v257
    %v259 = vpop.f32.mrb[0].mxu0
    %260 = vmatprep.mubr.f32.mxu0 0.0
    %261 = vmatmul.mubr.f32.gmra.mrb[0].mxu0 %v129
    %v262 = vpop.f32.mrb[0].mxu0
    %v263 = vadd.f32 %v95, %v262
    %v264 = vpop.f32.mrb[0].mxu0
    %265 = vmatprep.mubr.f32.mxu0 0.0
    %266 = vmatmul.mubr.f32.gmra.mrb[0].mxu0 %v132
    %v267 = vpop.f32.mrb[0].mxu0
    %v268 = vadd.f32 %v95, %v267
    %v269 = vpop.f32.mrb[0].mxu0
    %270 = vmatprep.mubr.f32.mxu0 0.0
    %271 = vmatmul.mubr.f32.gmra.mrb[0].mxu0 %v135
    %v272 = vpop.f32.mrb[0].mxu0
    %v273 = vadd.f32 %v95, %v272
    %v274 = vpop.f32.mrb[0].mxu0
    %275 = vmatprep.mubr.f32.mxu0 0.0
    %276 = vmatmul.mubr.f32.gmra.mrb[0].mxu0 %v138
    %v277 = vpop.f32.mrb[0].mxu0
    %v278 = vadd.f32 %v95, %v277
    %v279 = vpop.f32.mrb[0].mxu0
    %280 = vmatprep.mubr.f32.mxu0 0.0
    %281 = vmatmul.mubr.f32.gmra.mrb[0].mxu0 %v141
    %v282 = vpop.f32.mrb[0].mxu0
    %v283 = vadd.f32 %v95, %v282
    %v284 = vpop.f32.mrb[0].mxu0
    %285 = vmatprep.mubr.f32.mxu0 0.0
    %286 = vmatmul.mubr.f32.gmra.mrb[0].mxu0 %v144
    %v287 = vpop.f32.mrb[0].mxu0
    %v288 = vadd.f32 %v95, %v287
    %v289 = vpop.f32.mrb[0].mxu0
    %290 = vdwg.mxu0
    %291 = vst.msk [vmem:[#allocation2] sm:$0xff] %vm97, %v213
    %292 = vst.msk [vmem:[#allocation2 + $0x8] sm:$0xff] %vm97, %v218
    %293 = vst.msk [vmem:[#allocation2 + $0x10] sm:$0xff] %vm97, %v223
    %294 = vst.msk [vmem:[#allocation2 + $0x18] sm:$0xff] %vm97, %v228
    %295 = vst.msk [vmem:[#allocation2 + $0x20] sm:$0xff] %vm97, %v233
    %296 = vst.msk [vmem:[#allocation2 + $0x28] sm:$0xff] %vm97, %v238
    %297 = vst.msk [vmem:[#allocation2 + $0x30] sm:$0xff] %vm97, %v243
    %298 = vst.msk [vmem:[#allocation2 + $0x38] sm:$0xff] %vm97, %v248
    %299 = vst.msk [vmem:[#allocation2 + $0x40] sm:$0xff] %vm97, %v253
    %300 = vst.msk [vmem:[#allocation2 + $0x48] sm:$0xff] %vm97, %v258
    %301 = vst.msk [vmem:[#allocation2 + $0x50] sm:$0xff] %vm97, %v263
    %302 = vst.msk [vmem:[#allocation2 + $0x58] sm:$0xff] %vm97, %v268
    %303 = vst.msk [vmem:[#allocation2 + $0x60] sm:$0xff] %vm97, %v273
    %304 = vst.msk [vmem:[#allocation2 + $0x68] sm:$0xff] %vm97, %v278
    %305 = vst.msk [vmem:[#allocation2 + $0x70] sm:$0xff] %vm97, %v283
    %306 = vst.msk [vmem:[#allocation2 + $0x78] sm:$0xff] %vm97, %v288
    %v307 = vld [vmem:[%s1] sm:$0xff]
    %v308 = vld [vmem:[%s1 + $0x8] sm:$0xff]
    %v309 = vld [vmem:[%s1 + $0x10] sm:$0xff]
    %v310 = vld [vmem:[%s1 + $0x18] sm:$0xff]
    %v311 = vld [vmem:[%s1 + $0x20] sm:$0xff]
    %v312 = vld [vmem:[%s1 + $0x28] sm:$0xff]
    %v313 = vld [vmem:[%s1 + $0x30] sm:$0xff]
    %v314 = vld [vmem:[%s1 + $0x38] sm:$0xff]
    %v315 = vld [vmem:[%s1 + $0x40] sm:$0xff]
    %v316 = vld [vmem:[%s1 + $0x48] sm:$0xff]
    %v317 = vld [vmem:[%s1 + $0x50] sm:$0xff]
    %v318 = vld [vmem:[%s1 + $0x58] sm:$0xff]
    %v319 = vld [vmem:[%s1 + $0x60] sm:$0xff]
    %v320 = vld [vmem:[%s1 + $0x68] sm:$0xff]
    %v321 = vld [vmem:[%s1 + $0x70] sm:$0xff]
    %v322 = vld [vmem:[%s1 + $0x78] sm:$0xff]
    %v323 = vld [vmem:[%s12] sm:$0xff]
    %v324 = vld [vmem:[%s12 + $0x8] sm:$0xff]
    %v325 = vld [vmem:[%s12 + $0x10] sm:$0xff]
    %v326 = vld [vmem:[%s12 + $0x18] sm:$0xff]
    %v327 = vld [vmem:[%s12 + $0x20] sm:$0xff]
    %v328 = vld [vmem:[%s12 + $0x28] sm:$0xff]
    %v329 = vld [vmem:[%s12 + $0x30] sm:$0xff]
    %v330 = vld [vmem:[%s12 + $0x38] sm:$0xff]
    %v332 = vsel %vm97, %v307, 0
    %v335 = vsel %vm97, %v308, 0
    %v338 = vsel %vm97, %v309, 0
    %v341 = vsel %vm97, %v310, 0
    %v344 = vsel %vm97, %v311, 0
    %v347 = vsel %vm97, %v312, 0
    %v350 = vsel %vm97, %v313, 0
    %v353 = vsel %vm97, %v314, 0
    %v356 = vsel %vm97, %v315, 0
    %v359 = vsel %vm97, %v316, 0
    %v362 = vsel %vm97, %v317, 0
    %v365 = vsel %vm97, %v318, 0
    %v368 = vsel %vm97, %v319, 0
    %v371 = vsel %vm97, %v320, 0
    %v374 = vsel %vm97, %v321, 0
    %v377 = vsel %vm97, %v322, 0
    %379 = vmatprep.subr.mxu0 0.0
    %380 = vmatpush1.msra.mxu0 %v323
    %381 = vmatprep.subr.mxu0 0.0
    %382 = vmatpush1.msra.mxu0 %v324
    %383 = vmatprep.subr.mxu0 0.0
    %384 = vmatpush1.msra.mxu0 %v325
    %385 = vmatprep.subr.mxu0 0.0
    %386 = vmatpush1.msra.mxu0 %v326
    %387 = vmatprep.subr.mxu0 0.0
    %388 = vmatpush1.msra.mxu0 %v327
    %389 = vmatprep.subr.mxu0 0.0
    %390 = vmatpush1.msra.mxu0 %v328
    %391 = vmatprep.subr.mxu0 0.0
    %392 = vmatpush1.msra.mxu0 %v329
    %393 = vmatprep.subr.mxu0 0.0
    %394 = vmatpush1.msra.mxu0 %v330
    %395 = vmatprep.subr.mxu0 0.0
    %396 = vmatpush1.msra.mxu0 0.0
    %397 = vmatprep.subr.mxu0 0.0
    %398 = vmatpush1.msra.mxu0 0.0
    %399 = vmatprep.subr.mxu0 0.0
    %400 = vmatpush1.msra.mxu0 0.0
    %401 = vmatprep.subr.mxu0 0.0
    %402 = vmatpush1.msra.mxu0 0.0
    %403 = vmatprep.subr.mxu0 0.0
    %404 = vmatpush1.msra.mxu0 0.0
    %405 = vmatprep.subr.mxu0 0.0
    %406 = vmatpush1.msra.mxu0 0.0
    %407 = vmatprep.subr.mxu0 0.0
    %408 = vmatpush1.msra.mxu0 0.0
    %409 = vmatprep.subr.mxu0 0.0
    %410 = vmatpush1.msra.mxu0 0.0
    %411 = vmatprep.subr.mxu0 0.0
    %412 = vmatpush1.msra.mxu0 0.0
    %413 = vmatprep.subr.mxu0 0.0
    %414 = vmatpush1.msra.mxu0 0.0
    %415 = vmatprep.subr.mxu0 0.0
    %416 = vmatpush1.msra.mxu0 0.0
    %417 = vmatprep.subr.mxu0 0.0
    %418 = vmatpush1.msra.mxu0 0.0
    %419 = vmatprep.subr.mxu0 0.0
    %420 = vmatpush1.msra.mxu0 0.0
    %421 = vmatprep.subr.mxu0 0.0
    %422 = vmatpush1.msra.mxu0 0.0
    %423 = vmatprep.subr.mxu0 0.0
    %424 = vmatpush1.msra.mxu0 0.0
    %425 = vmatprep.subr.mxu0 0.0
    %426 = vmatpush1.msra.mxu0 0.0
    %427 = vmatprep.subr.mxu0 0.0
    %428 = vmatpush1.msra.mxu0 0.0
    %429 = vmatprep.subr.mxu0 0.0
    %430 = vmatpush1.msra.mxu0 0.0
    %431 = vmatprep.subr.mxu0 0.0
    %432 = vmatpush1.msra.mxu0 0.0
    %433 = vmatprep.subr.mxu0 0.0
    %434 = vmatpush1.msra.mxu0 0.0
    %435 = vmatprep.subr.mxu0 0.0
    %436 = vmatpush1.msra.mxu0 0.0
    %437 = vmatprep.subr.mxu0 0.0
    %438 = vmatpush1.msra.mxu0 0.0
    %439 = vmatprep.subr.mxu0 0.0
    %440 = vmatpush1.msra.mxu0 0.0
    %441 = vmatprep.subr.mxu0 0.0
    %442 = vmatpush1.msra.mxu0 0.0
    %443 = vmatprep.mubr.f32.mxu0 0.0
    %444 = vmatmul.mubr.f32.gmra.mrb[0].mxu0 %v332
    %v445 = vpop.f32.mrb[0].mxu0
    %v446 = vadd.f32 0.0, %v445
    %v447 = vpop.f32.mrb[0].mxu0
    %448 = vmatprep.mubr.f32.mxu0 0.0
    %449 = vmatmul.mubr.f32.gmra.mrb[0].mxu0 %v335
    %v450 = vpop.f32.mrb[0].mxu0
    %v451 = vadd.f32 0.0, %v450
    %v452 = vpop.f32.mrb[0].mxu0
    %453 = vmatprep.mubr.f32.mxu0 0.0
    %454 = vmatmul.mubr.f32.gmra.mrb[0].mxu0 %v338
    %v455 = vpop.f32.mrb[0].mxu0
    %v456 = vadd.f32 0.0, %v455
    %v457 = vpop.f32.mrb[0].mxu0
    %458 = vmatprep.mubr.f32.mxu0 0.0
    %459 = vmatmul.mubr.f32.gmra.mrb[0].mxu0 %v341
    %v460 = vpop.f32.mrb[0].mxu0
    %v461 = vadd.f32 0.0, %v460
    %v462 = vpop.f32.mrb[0].mxu0
    %463 = vmatprep.mubr.f32.mxu0 0.0
    %464 = vmatmul.mubr.f32.gmra.mrb[0].mxu0 %v344
    %v465 = vpop.f32.mrb[0].mxu0
    %v466 = vadd.f32 0.0, %v465
    %v467 = vpop.f32.mrb[0].mxu0
    %468 = vmatprep.mubr.f32.mxu0 0.0
    %469 = vmatmul.mubr.f32.gmra.mrb[0].mxu0 %v347
    %v470 = vpop.f32.mrb[0].mxu0
    %v471 = vadd.f32 0.0, %v470
    %v472 = vpop.f32.mrb[0].mxu0
    %473 = vmatprep.mubr.f32.mxu0 0.0
    %474 = vmatmul.mubr.f32.gmra.mrb[0].mxu0 %v350
    %v475 = vpop.f32.mrb[0].mxu0
    %v476 = vadd.f32 0.0, %v475
    %v477 = vpop.f32.mrb[0].mxu0
    %478 = vmatprep.mubr.f32.mxu0 0.0
    %479 = vmatmul.mubr.f32.gmra.mrb[0].mxu0 %v353
    %v480 = vpop.f32.mrb[0].mxu0
    %v481 = vadd.f32 0.0, %v480
    %v482 = vpop.f32.mrb[0].mxu0
    %483 = vmatprep.mubr.f32.mxu0 0.0
    %484 = vmatmul.mubr.f32.gmra.mrb[0].mxu0 %v356
    %v485 = vpop.f32.mrb[0].mxu0
    %v486 = vadd.f32 0.0, %v485
    %v487 = vpop.f32.mrb[0].mxu0
    %488 = vmatprep.mubr.f32.mxu0 0.0
    %489 = vmatmul.mubr.f32.gmra.mrb[0].mxu0 %v359
    %v490 = vpop.f32.mrb[0].mxu0
    %v491 = vadd.f32 0.0, %v490
    %v492 = vpop.f32.mrb[0].mxu0
    %493 = vmatprep.mubr.f32.mxu0 0.0
    %494 = vmatmul.mubr.f32.gmra.mrb[0].mxu0 %v362
    %v495 = vpop.f32.mrb[0].mxu0
    %v496 = vadd.f32 0.0, %v495
    %v497 = vpop.f32.mrb[0].mxu0
    %498 = vmatprep.mubr.f32.mxu0 0.0
    %499 = vmatmul.mubr.f32.gmra.mrb[0].mxu0 %v365
    %v500 = vpop.f32.mrb[0].mxu0
    %v501 = vadd.f32 0.0, %v500
    %v502 = vpop.f32.mrb[0].mxu0
    %503 = vmatprep.mubr.f32.mxu0 0.0
    %504 = vmatmul.mubr.f32.gmra.mrb[0].mxu0 %v368
    %v505 = vpop.f32.mrb[0].mxu0
    %v506 = vadd.f32 0.0, %v505
    %v507 = vpop.f32.mrb[0].mxu0
    %508 = vmatprep.mubr.f32.mxu0 0.0
    %509 = vmatmul.mubr.f32.gmra.mrb[0].mxu0 %v371
    %v510 = vpop.f32.mrb[0].mxu0
    %v511 = vadd.f32 0.0, %v510
    %v512 = vpop.f32.mrb[0].mxu0
    %513 = vmatprep.mubr.f32.mxu0 0.0
    %514 = vmatmul.mubr.f32.gmra.mrb[0].mxu0 %v374
    %v515 = vpop.f32.mrb[0].mxu0
    %v516 = vadd.f32 0.0, %v515
    %v517 = vpop.f32.mrb[0].mxu0
    %518 = vmatprep.mubr.f32.mxu0 0.0
    %519 = vmatmul.mubr.f32.gmra.mrb[0].mxu0 %v377
    %v520 = vpop.f32.mrb[0].mxu0
    %v521 = vadd.f32 0.0, %v520
    %v522 = vpop.f32.mrb[0].mxu0
    %523 = vdwg.mxu0
    %524 = vst.msk [vmem:[#allocation3] sm:$0xff] %vm97, %v446
    %525 = vst.msk [vmem:[#allocation3 + $0x8] sm:$0xff] %vm97, %v451
    %526 = vst.msk [vmem:[#allocation3 + $0x10] sm:$0xff] %vm97, %v456
    %527 = vst.msk [vmem:[#allocation3 + $0x18] sm:$0xff] %vm97, %v461
    %528 = vst.msk [vmem:[#allocation3 + $0x20] sm:$0xff] %vm97, %v466
    %529 = vst.msk [vmem:[#allocation3 + $0x28] sm:$0xff] %vm97, %v471
    %530 = vst.msk [vmem:[#allocation3 + $0x30] sm:$0xff] %vm97, %v476
    %531 = vst.msk [vmem:[#allocation3 + $0x38] sm:$0xff] %vm97, %v481
    %532 = vst.msk [vmem:[#allocation3 + $0x40] sm:$0xff] %vm97, %v486
    %533 = vst.msk [vmem:[#allocation3 + $0x48] sm:$0xff] %vm97, %v491
    %534 = vst.msk [vmem:[#allocation3 + $0x50] sm:$0xff] %vm97, %v496
    %535 = vst.msk [vmem:[#allocation3 + $0x58] sm:$0xff] %vm97, %v501
    %536 = vst.msk [vmem:[#allocation3 + $0x60] sm:$0xff] %vm97, %v506
    %537 = vst.msk [vmem:[#allocation3 + $0x68] sm:$0xff] %vm97, %v511
    %538 = vst.msk [vmem:[#allocation3 + $0x70] sm:$0xff] %vm97, %v516
    %539 = vst.msk [vmem:[#allocation3 + $0x78] sm:$0xff] %vm97, %v521
    %v540 = vld [vmem:[%s0] sm:$0xff]
    %v541 = vld [vmem:[%s0 + $0x8] sm:$0xff]
    %v542 = vld [vmem:[%s0 + $0x10] sm:$0xff]
    %v543 = vld [vmem:[%s0 + $0x18] sm:$0xff]
    %v544 = vld [vmem:[%s0 + $0x20] sm:$0xff]
    %v545 = vld [vmem:[%s0 + $0x28] sm:$0xff]
    %v546 = vld [vmem:[%s0 + $0x30] sm:$0xff]
    %v547 = vld [vmem:[%s0 + $0x38] sm:$0xff]
    %v548 = vld [vmem:[%s0 + $0x40] sm:$0xff]
    %v549 = vld [vmem:[%s0 + $0x48] sm:$0xff]
    %v550 = vld [vmem:[%s0 + $0x50] sm:$0xff]
    %v551 = vld [vmem:[%s0 + $0x58] sm:$0xff]
    %v552 = vld [vmem:[%s0 + $0x60] sm:$0xff]
    %v553 = vld [vmem:[%s0 + $0x68] sm:$0xff]
    %v554 = vld [vmem:[%s0 + $0x70] sm:$0xff]
    %v555 = vld [vmem:[%s0 + $0x78] sm:$0xff]
    %v556 = vld [vmem:[%s8] sm:$0xff]
    %v557 = vld [vmem:[%s8 + $0x8] sm:$0xff]
    %v558 = vld [vmem:[%s8 + $0x10] sm:$0xff]
    %v559 = vld [vmem:[%s8 + $0x18] sm:$0xff]
    %v560 = vld [vmem:[%s8 + $0x20] sm:$0xff]
    %v561 = vld [vmem:[%s8 + $0x28] sm:$0xff]
    %v562 = vld [vmem:[%s8 + $0x30] sm:$0xff]
    %v563 = vld [vmem:[%s8 + $0x38] sm:$0xff]
    %v565 = vsel %vm97, %v540, 0
    %v568 = vsel %vm97, %v541, 0
    %v571 = vsel %vm97, %v542, 0
    %v574 = vsel %vm97, %v543, 0
    %v577 = vsel %vm97, %v544, 0
    %v580 = vsel %vm97, %v545, 0
    %v583 = vsel %vm97, %v546, 0
    %v586 = vsel %vm97, %v547, 0
    %v589 = vsel %vm97, %v548, 0
    %v592 = vsel %vm97, %v549, 0
    %v595 = vsel %vm97, %v550, 0
    %v598 = vsel %vm97, %v551, 0
    %v601 = vsel %vm97, %v552, 0
    %v604 = vsel %vm97, %v553, 0
    %v607 = vsel %vm97, %v554, 0
    %v610 = vsel %vm97, %v555, 0
    %612 = vmatprep.subr.mxu0 0.0
    %613 = vmatpush1.msra.mxu0 %v556
    %614 = vmatprep.subr.mxu0 0.0
    %615 = vmatpush1.msra.mxu0 %v557
    %616 = vmatprep.subr.mxu0 0.0
    %617 = vmatpush1.msra.mxu0 %v558
    %618 = vmatprep.subr.mxu0 0.0
    %619 = vmatpush1.msra.mxu0 %v559
    %620 = vmatprep.subr.mxu0 0.0
    %621 = vmatpush1.msra.mxu0 %v560
    %622 = vmatprep.subr.mxu0 0.0
    %623 = vmatpush1.msra.mxu0 %v561
    %624 = vmatprep.subr.mxu0 0.0
    %625 = vmatpush1.msra.mxu0 %v562
    %626 = vmatprep.subr.mxu0 0.0
    %627 = vmatpush1.msra.mxu0 %v563
    %628 = vmatprep.subr.mxu0 0.0
    %629 = vmatpush1.msra.mxu0 0.0
    %630 = vmatprep.subr.mxu0 0.0
    %631 = vmatpush1.msra.mxu0 0.0
    %632 = vmatprep.subr.mxu0 0.0
    %633 = vmatpush1.msra.mxu0 0.0
    %634 = vmatprep.subr.mxu0 0.0
    %635 = vmatpush1.msra.mxu0 0.0
    %636 = vmatprep.subr.mxu0 0.0
    %637 = vmatpush1.msra.mxu0 0.0
    %638 = vmatprep.subr.mxu0 0.0
    %639 = vmatpush1.msra.mxu0 0.0
    %640 = vmatprep.subr.mxu0 0.0
    %641 = vmatpush1.msra.mxu0 0.0
    %642 = vmatprep.subr.mxu0 0.0
    %643 = vmatpush1.msra.mxu0 0.0
    %644 = vmatprep.subr.mxu0 0.0
    %645 = vmatpush1.msra.mxu0 0.0
    %646 = vmatprep.subr.mxu0 0.0
    %647 = vmatpush1.msra.mxu0 0.0
    %648 = vmatprep.subr.mxu0 0.0
    %649 = vmatpush1.msra.mxu0 0.0
    %650 = vmatprep.subr.mxu0 0.0
    %651 = vmatpush1.msra.mxu0 0.0
    %652 = vmatprep.subr.mxu0 0.0
    %653 = vmatpush1.msra.mxu0 0.0
    %654 = vmatprep.subr.mxu0 0.0
    %655 = vmatpush1.msra.mxu0 0.0
    %656 = vmatprep.subr.mxu0 0.0
    %657 = vmatpush1.msra.mxu0 0.0
    %658 = vmatprep.subr.mxu0 0.0
    %659 = vmatpush1.msra.mxu0 0.0
    %660 = vmatprep.subr.mxu0 0.0
    %661 = vmatpush1.msra.mxu0 0.0
    %662 = vmatprep.subr.mxu0 0.0
    %663 = vmatpush1.msra.mxu0 0.0
    %664 = vmatprep.subr.mxu0 0.0
    %665 = vmatpush1.msra.mxu0 0.0
    %666 = vmatprep.subr.mxu0 0.0
    %667 = vmatpush1.msra.mxu0 0.0
    %668 = vmatprep.subr.mxu0 0.0
    %669 = vmatpush1.msra.mxu0 0.0
    %670 = vmatprep.subr.mxu0 0.0
    %671 = vmatpush1.msra.mxu0 0.0
    %672 = vmatprep.subr.mxu0 0.0
    %673 = vmatpush1.msra.mxu0 0.0
    %674 = vmatprep.subr.mxu0 0.0
    %675 = vmatpush1.msra.mxu0 0.0
    %676 = vmatprep.mubr.f32.mxu0 0.0
    %677 = vmatmul.mubr.f32.gmra.mrb[0].mxu0 %v565
    %v678 = vpop.f32.mrb[0].mxu0
    %v679 = vadd.f32 0.0, %v678
    %v680 = vpop.f32.mrb[0].mxu0
    %681 = vmatprep.mubr.f32.mxu0 0.0
    %682 = vmatmul.mubr.f32.gmra.mrb[0].mxu0 %v568
    %v683 = vpop.f32.mrb[0].mxu0
    %v684 = vadd.f32 0.0, %v683
    %v685 = vpop.f32.mrb[0].mxu0
    %686 = vmatprep.mubr.f32.mxu0 0.0
    %687 = vmatmul.mubr.f32.gmra.mrb[0].mxu0 %v571
    %v688 = vpop.f32.mrb[0].mxu0
    %v689 = vadd.f32 0.0, %v688
    %v690 = vpop.f32.mrb[0].mxu0
    %691 = vmatprep.mubr.f32.mxu0 0.0
    %692 = vmatmul.mubr.f32.gmra.mrb[0].mxu0 %v574
    %v693 = vpop.f32.mrb[0].mxu0
    %v694 = vadd.f32 0.0, %v693
    %v695 = vpop.f32.mrb[0].mxu0
    %696 = vmatprep.mubr.f32.mxu0 0.0
    %697 = vmatmul.mubr.f32.gmra.mrb[0].mxu0 %v577
    %v698 = vpop.f32.mrb[0].mxu0
    %v699 = vadd.f32 0.0, %v698
    %v700 = vpop.f32.mrb[0].mxu0
    %701 = vmatprep.mubr.f32.mxu0 0.0
    %702 = vmatmul.mubr.f32.gmra.mrb[0].mxu0 %v580
    %v703 = vpop.f32.mrb[0].mxu0
    %v704 = vadd.f32 0.0, %v703
    %v705 = vpop.f32.mrb[0].mxu0
    %706 = vmatprep.mubr.f32.mxu0 0.0
    %707 = vmatmul.mubr.f32.gmra.mrb[0].mxu0 %v583
    %v708 = vpop.f32.mrb[0].mxu0
    %v709 = vadd.f32 0.0, %v708
    %v710 = vpop.f32.mrb[0].mxu0
    %711 = vmatprep.mubr.f32.mxu0 0.0
    %712 = vmatmul.mubr.f32.gmra.mrb[0].mxu0 %v586
    %v713 = vpop.f32.mrb[0].mxu0
    %v714 = vadd.f32 0.0, %v713
    %v715 = vpop.f32.mrb[0].mxu0
    %716 = vmatprep.mubr.f32.mxu0 0.0
    %717 = vmatmul.mubr.f32.gmra.mrb[0].mxu0 %v589
    %v718 = vpop.f32.mrb[0].mxu0
    %v719 = vadd.f32 0.0, %v718
    %v720 = vpop.f32.mrb[0].mxu0
    %721 = vmatprep.mubr.f32.mxu0 0.0
    %722 = vmatmul.mubr.f32.gmra.mrb[0].mxu0 %v592
    %v723 = vpop.f32.mrb[0].mxu0
    %v724 = vadd.f32 0.0, %v723
    %v725 = vpop.f32.mrb[0].mxu0
    %726 = vmatprep.mubr.f32.mxu0 0.0
    %727 = vmatmul.mubr.f32.gmra.mrb[0].mxu0 %v595
    %v728 = vpop.f32.mrb[0].mxu0
    %v729 = vadd.f32 0.0, %v728
    %v730 = vpop.f32.mrb[0].mxu0
    %731 = vmatprep.mubr.f32.mxu0 0.0
    %732 = vmatmul.mubr.f32.gmra.mrb[0].mxu0 %v598
    %v733 = vpop.f32.mrb[0].mxu0
    %v734 = vadd.f32 0.0, %v733
    %v735 = vpop.f32.mrb[0].mxu0
    %736 = vmatprep.mubr.f32.mxu0 0.0
    %737 = vmatmul.mubr.f32.gmra.mrb[0].mxu0 %v601
    %v738 = vpop.f32.mrb[0].mxu0
    %v739 = vadd.f32 0.0, %v738
    %v740 = vpop.f32.mrb[0].mxu0
    %741 = vmatprep.mubr.f32.mxu0 0.0
    %742 = vmatmul.mubr.f32.gmra.mrb[0].mxu0 %v604
    %v743 = vpop.f32.mrb[0].mxu0
    %v744 = vadd.f32 0.0, %v743
    %v745 = vpop.f32.mrb[0].mxu0
    %746 = vmatprep.mubr.f32.mxu0 0.0
    %747 = vmatmul.mubr.f32.gmra.mrb[0].mxu0 %v607
    %v748 = vpop.f32.mrb[0].mxu0
    %v749 = vadd.f32 0.0, %v748
    %v750 = vpop.f32.mrb[0].mxu0
    %751 = vmatprep.mubr.f32.mxu0 0.0
    %752 = vmatmul.mubr.f32.gmra.mrb[0].mxu0 %v610
    %v753 = vpop.f32.mrb[0].mxu0
    %v754 = vadd.f32 0.0, %v753
    %v755 = vpop.f32.mrb[0].mxu0
    %756 = vdwg.mxu0
    %757 = vst.msk [vmem:[#allocation4] sm:$0xff] %vm97, %v679
    %758 = vst.msk [vmem:[#allocation4 + $0x8] sm:$0xff] %vm97, %v684
    %759 = vst.msk [vmem:[#allocation4 + $0x10] sm:$0xff] %vm97, %v689
    %760 = vst.msk [vmem:[#allocation4 + $0x18] sm:$0xff] %vm97, %v694
    %761 = vst.msk [vmem:[#allocation4 + $0x20] sm:$0xff] %vm97, %v699
    %762 = vst.msk [vmem:[#allocation4 + $0x28] sm:$0xff] %vm97, %v704
    %763 = vst.msk [vmem:[#allocation4 + $0x30] sm:$0xff] %vm97, %v709
    %764 = vst.msk [vmem:[#allocation4 + $0x38] sm:$0xff] %vm97, %v714
    %765 = vst.msk [vmem:[#allocation4 + $0x40] sm:$0xff] %vm97, %v719
    %766 = vst.msk [vmem:[#allocation4 + $0x48] sm:$0xff] %vm97, %v724
    %767 = vst.msk [vmem:[#allocation4 + $0x50] sm:$0xff] %vm97, %v729
    %768 = vst.msk [vmem:[#allocation4 + $0x58] sm:$0xff] %vm97, %v734
    %769 = vst.msk [vmem:[#allocation4 + $0x60] sm:$0xff] %vm97, %v739
    %770 = vst.msk [vmem:[#allocation4 + $0x68] sm:$0xff] %vm97, %v744
    %771 = vst.msk [vmem:[#allocation4 + $0x70] sm:$0xff] %vm97, %v749
    %772 = vst.msk [vmem:[#allocation4 + $0x78] sm:$0xff] %vm97, %v754
    %773 = vst.msk [vmem:[#allocation5] sm:$0xff] %vm97, 0.0
    %774 = vst.msk [vmem:[#allocation5 + $0x8] sm:$0xff] %vm97, 0.0
    %775 = vst.msk [vmem:[#allocation5 + $0x10] sm:$0xff] %vm97, 0.0
    %776 = vst.msk [vmem:[#allocation5 + $0x18] sm:$0xff] %vm97, 0.0
    %777 = vst.msk [vmem:[#allocation5 + $0x20] sm:$0xff] %vm97, 0.0
    %778 = vst.msk [vmem:[#allocation5 + $0x28] sm:$0xff] %vm97, 0.0
    %779 = vst.msk [vmem:[#allocation5 + $0x30] sm:$0xff] %vm97, 0.0
    %780 = vst.msk [vmem:[#allocation5 + $0x38] sm:$0xff] %vm97, 0.0
    %781 = vst.msk [vmem:[#allocation5 + $0x40] sm:$0xff] %vm97, 0.0
    %782 = vst.msk [vmem:[#allocation5 + $0x48] sm:$0xff] %vm97, 0.0
    %783 = vst.msk [vmem:[#allocation5 + $0x50] sm:$0xff] %vm97, 0.0
    %784 = vst.msk [vmem:[#allocation5 + $0x58] sm:$0xff] %vm97, 0.0
    %785 = vst.msk [vmem:[#allocation5 + $0x60] sm:$0xff] %vm97, 0.0
    %786 = vst.msk [vmem:[#allocation5 + $0x68] sm:$0xff] %vm97, 0.0
    %787 = vst.msk [vmem:[#allocation5 + $0x70] sm:$0xff] %vm97, 0.0
    %788 = vst.msk [vmem:[#allocation5 + $0x78] sm:$0xff] %vm97, 0.0
  $region81: #{gnn_policy_forward.7} parent=0 // pred_fallthru
    _
  %v789 = vld [vmem:[%s4] sm:$0xff]
  %v790 = vld [vmem:[%s4 + $0x8] sm:$0xff]
  %v791 = vld [vmem:[%s4 + $0x10] sm:$0xff]
  %v792 = vld [vmem:[%s4 + $0x18] sm:$0xff]
  %v793 = vld [vmem:[%s4 + $0x20] sm:$0xff]
  %v794 = vld [vmem:[%s4 + $0x28] sm:$0xff]
  %v795 = vld [vmem:[%s4 + $0x30] sm:$0xff]
  %v796 = vld [vmem:[%s4 + $0x38] sm:$0xff]
  %v797 = vld [vmem:[%s4 + $0x40] sm:$0xff]
  %v798 = vld [vmem:[%s4 + $0x48] sm:$0xff]
  %v799 = vld [vmem:[%s4 + $0x50] sm:$0xff]
  %v800 = vld [vmem:[%s4 + $0x58] sm:$0xff]
  %v801 = vld [vmem:[%s4 + $0x60] sm:$0xff]
  %v802 = vld [vmem:[%s4 + $0x68] sm:$0xff]
  %v803 = vld [vmem:[%s4 + $0x70] sm:$0xff]
  %v804 = vld [vmem:[%s4 + $0x78] sm:$0xff]
  %v805 = vld [vmem:[%s4 + $0x80] sm:$0xff]
  %v806 = vld [vmem:[%s4 + $0x88] sm:$0xff]
  %v807 = vld [vmem:[%s4 + $0x90] sm:$0xff]
  %v808 = vld [vmem:[%s4 + $0x98] sm:$0xff]
  %v809 = vld [vmem:[%s4 + $0xa0] sm:$0xff]
  %v810 = vld [vmem:[%s4 + $0xa8] sm:$0xff]
  %v811 = vld [vmem:[%s4 + $0xb0] sm:$0xff]
  %v812 = vld [vmem:[%s4 + $0xb8] sm:$0xff]
  %v813 = vld [vmem:[%s4 + $0xc0] sm:$0xff]
  %v814 = vld [vmem:[%s4 + $0xc8] sm:$0xff]
  %v815 = vld [vmem:[%s4 + $0xd0] sm:$0xff]
  %v816 = vld [vmem:[%s4 + $0xd8] sm:$0xff]
  %v817 = vld [vmem:[%s4 + $0xe0] sm:$0xff]
  %v818 = vld [vmem:[%s4 + $0xe8] sm:$0xff]
  %v819 = vld [vmem:[%s4 + $0xf0] sm:$0xff]
  %v820 = vld [vmem:[%s4 + $0xf8] sm:$0xff]
  %v821 = vld [vmem:[%s3] sm:$0xff]
  %v822 = vld [vmem:[%s3 + $0x8] sm:$0xff]
  %v823 = vld [vmem:[%s3 + $0x10] sm:$0xff]
  %v824 = vld [vmem:[%s3 + $0x18] sm:$0xff]
  %v825 = vld [vmem:[%s3 + $0x20] sm:$0xff]
  %v826 = vld [vmem:[%s3 + $0x28] sm:$0xff]
  %v827 = vld [vmem:[%s3 + $0x30] sm:$0xff]
  %v828 = vld [vmem:[%s3 + $0x38] sm:$0xff]
  %v829 = vld [vmem:[%s3 + $0x40] sm:$0xff]
  %v830 = vld [vmem:[%s3 + $0x48] sm:$0xff]
  %v831 = vld [vmem:[%s3 + $0x50] sm:$0xff]
  %v832 = vld [vmem:[%s3 + $0x58] sm:$0xff]
  %v833 = vld [vmem:[%s3 + $0x60] sm:$0xff]
  %v834 = vld [vmem:[%s3 + $0x68] sm:$0xff]
  %v835 = vld [vmem:[%s3 + $0x70] sm:$0xff]
  %v836 = vld [vmem:[%s3 + $0x78] sm:$0xff]
  %v837 = vld [vmem:[%s3 + $0x80] sm:$0xff]
  %v838 = vld [vmem:[%s3 + $0x88] sm:$0xff]
  %v839 = vld [vmem:[%s3 + $0x90] sm:$0xff]
  %v840 = vld [vmem:[%s3 + $0x98] sm:$0xff]
  %v841 = vld [vmem:[%s3 + $0xa0] sm:$0xff]
  %v842 = vld [vmem:[%s3 + $0xa8] sm:$0xff]
  %v843 = vld [vmem:[%s3 + $0xb0] sm:$0xff]
  %v844 = vld [vmem:[%s3 + $0xb8] sm:$0xff]
  %v845 = vld [vmem:[%s3 + $0xc0] sm:$0xff]
  %v846 = vld [vmem:[%s3 + $0xc8] sm:$0xff]
  %v847 = vld [vmem:[%s3 + $0xd0] sm:$0xff]
  %v848 = vld [vmem:[%s3 + $0xd8] sm:$0xff]
  %v849 = vld [vmem:[%s3 + $0xe0] sm:$0xff]
  %v850 = vld [vmem:[%s3 + $0xe8] sm:$0xff]
  %v851 = vld [vmem:[%s3 + $0xf0] sm:$0xff]
  %v852 = vld [vmem:[%s3 + $0xf8] sm:$0xff]
  %v853 = vlaneseq
  %v854 = vand.u32 %v853, 127
  %855 = vset.pattern.permute.xlu0 0
  %856 = vperm.xlu0 %855, %v789
  %v857 = vpop.permute.xlu0 %856
  %858 = vset.pattern.permute.xlu0 0
  %859 = vperm.xlu0 %858, %v790
  %v860 = vpop.permute.xlu0 %859
  %861 = vset.pattern.permute.xlu0 0
  %862 = vperm.xlu0 %861, %v791
  %v863 = vpop.permute.xlu0 %862
  %864 = vset.pattern.permute.xlu0 0
  %865 = vperm.xlu0 %864, %v792
  %v866 = vpop.permute.xlu0 %865
  %867 = vset.pattern.permute.xlu0 0
  %868 = vperm.xlu0 %867, %v793
  %v869 = vpop.permute.xlu0 %868
  %870 = vset.pattern.permute.xlu0 0
  %871 = vperm.xlu0 %870, %v794
  %v872 = vpop.permute.xlu0 %871
  %873 = vset.pattern.permute.xlu0 0
  %874 = vperm.xlu0 %873, %v795
  %v875 = vpop.permute.xlu0 %874
  %876 = vset.pattern.permute.xlu0 0
  %877 = vperm.xlu0 %876, %v796
  %v878 = vpop.permute.xlu0 %877
  %879 = vset.pattern.permute.xlu0 0
  %880 = vperm.xlu0 %879, %v797
  %v881 = vpop.permute.xlu0 %880
  %882 = vset.pattern.permute.xlu0 0
  %883 = vperm.xlu0 %882, %v798
  %v884 = vpop.permute.xlu0 %883
  %885 = vset.pattern.permute.xlu0 0
  %886 = vperm.xlu0 %885, %v799
  %v887 = vpop.permute.xlu0 %886
  %888 = vset.pattern.permute.xlu0 0
  %889 = vperm.xlu0 %888, %v800
  %v890 = vpop.permute.xlu0 %889
  %891 = vset.pattern.permute.xlu0 0
  %892 = vperm.xlu0 %891, %v801
  %v893 = vpop.permute.xlu0 %892
  %894 = vset.pattern.permute.xlu0 0
  %895 = vperm.xlu0 %894, %v802
  %v896 = vpop.permute.xlu0 %895
  %897 = vset.pattern.permute.xlu0 0
  %898 = vperm.xlu0 %897, %v803
  %v899 = vpop.permute.xlu0 %898
  %900 = vset.pattern.permute.xlu0 0
  %901 = vperm.xlu0 %900, %v804
  %v902 = vpop.permute.xlu0 %901
  %903 = vset.pattern.permute.xlu0 0
  %904 = vperm.xlu0 %903, %v805
  %v905 = vpop.permute.xlu0 %904
  %906 = vset.pattern.permute.xlu0 0
  %907 = vperm.xlu0 %906, %v806
  %v908 = vpop.permute.xlu0 %907
  %909 = vset.pattern.permute.xlu0 0
  %910 = vperm.xlu0 %909, %v807
  %v911 = vpop.permute.xlu0 %910
  %912 = vset.pattern.permute.xlu0 0
  %913 = vperm.xlu0 %912, %v808
  %v914 = vpop.permute.xlu0 %913
  %915 = vset.pattern.permute.xlu0 0
  %916 = vperm.xlu0 %915, %v809
  %v917 = vpop.permute.xlu0 %916
  %918 = vset.pattern.permute.xlu0 0
  %919 = vperm.xlu0 %918, %v810
  %v920 = vpop.permute.xlu0 %919
  %921 = vset.pattern.permute.xlu0 0
  %922 = vperm.xlu0 %921, %v811
  %v923 = vpop.permute.xlu0 %922
  %924 = vset.pattern.permute.xlu0 0
  %925 = vperm.xlu0 %924, %v812
  %v926 = vpop.permute.xlu0 %925
  %927 = vset.pattern.permute.xlu0 0
  %928 = vperm.xlu0 %927, %v813
  %v929 = vpop.permute.xlu0 %928
  %930 = vset.pattern.permute.xlu0 0
  %931 = vperm.xlu0 %930, %v814
  %v932 = vpop.permute.xlu0 %931
  %933 = vset.pattern.permute.xlu0 0
  %934 = vperm.xlu0 %933, %v815
  %v935 = vpop.permute.xlu0 %934
  %936 = vset.pattern.permute.xlu0 0
  %937 = vperm.xlu0 %936, %v816
  %v938 = vpop.permute.xlu0 %937
  %939 = vset.pattern.permute.xlu0 0
  %940 = vperm.xlu0 %939, %v817
  %v941 = vpop.permute.xlu0 %940
  %942 = vset.pattern.permute.xlu0 0
  %943 = vperm.xlu0 %942, %v818
  %v944 = vpop.permute.xlu0 %943
  %945 = vset.pattern.permute.xlu0 0
  %946 = vperm.xlu0 %945, %v819
  %v947 = vpop.permute.xlu0 %946
  %948 = vset.pattern.permute.xlu0 0
  %949 = vperm.xlu0 %948, %v820
  %v950 = vpop.permute.xlu0 %949
  %vm951 = vcmp.eq.s32.totalorder %v857, %v854
  %vm952 = vcmp.eq.s32.totalorder %v860, %v854
  %vm953 = vcmp.eq.s32.totalorder %v863, %v854
  %vm954 = vcmp.eq.s32.totalorder %v866, %v854
  %vm955 = vcmp.eq.s32.totalorder %v869, %v854
  %vm956 = vcmp.eq.s32.totalorder %v872, %v854
  %vm957 = vcmp.eq.s32.totalorder %v875, %v854
  %vm958 = vcmp.eq.s32.totalorder %v878, %v854
  %vm959 = vcmp.eq.s32.totalorder %v881, %v854
  %vm960 = vcmp.eq.s32.totalorder %v884, %v854
  %vm961 = vcmp.eq.s32.totalorder %v887, %v854
  %vm962 = vcmp.eq.s32.totalorder %v890, %v854
  %vm963 = vcmp.eq.s32.totalorder %v893, %v854
  %vm964 = vcmp.eq.s32.totalorder %v896, %v854
  %vm965 = vcmp.eq.s32.totalorder %v899, %v854
  %vm966 = vcmp.eq.s32.totalorder %v902, %v854
  %vm967 = vcmp.eq.s32.totalorder %v905, %v854
  %vm968 = vcmp.eq.s32.totalorder %v908, %v854
  %vm969 = vcmp.eq.s32.totalorder %v911, %v854
  %vm970 = vcmp.eq.s32.totalorder %v914, %v854
  %vm971 = vcmp.eq.s32.totalorder %v917, %v854
  %vm972 = vcmp.eq.s32.totalorder %v920, %v854
  %vm973 = vcmp.eq.s32.totalorder %v923, %v854
  %vm974 = vcmp.eq.s32.totalorder %v926, %v854
  %vm975 = vcmp.eq.s32.totalorder %v929, %v854
  %vm976 = vcmp.eq.s32.totalorder %v932, %v854
  %vm977 = vcmp.eq.s32.totalorder %v935, %v854
  %vm978 = vcmp.eq.s32.totalorder %v938, %v854
  %vm979 = vcmp.eq.s32.totalorder %v941, %v854
  %vm980 = vcmp.eq.s32.totalorder %v944, %v854
  %vm981 = vcmp.eq.s32.totalorder %v947, %v854
  %vm982 = vcmp.eq.s32.totalorder %v950, %v854
  %v983 = vsel %vm951, 1, 0
  %v984 = vsel %vm952, 1, 0
  %v985 = vsel %vm953, 1, 0
  %v986 = vsel %vm954, 1, 0
  %v987 = vsel %vm955, 1, 0
  %v988 = vsel %vm956, 1, 0
  %v989 = vsel %vm957, 1, 0
  %v990 = vsel %vm958, 1, 0
  %v991 = vsel %vm959, 1, 0
  %v992 = vsel %vm960, 1, 0
  %v993 = vsel %vm961, 1, 0
  %v994 = vsel %vm962, 1, 0
  %v995 = vsel %vm963, 1, 0
  %v996 = vsel %vm964, 1, 0
  %v997 = vsel %vm965, 1, 0
  %v998 = vsel %vm966, 1, 0
  %v999 = vsel %vm967, 1, 0
  %v1000 = vsel %vm968, 1, 0
  %v1001 = vsel %vm969, 1, 0
  %v1002 = vsel %vm970, 1, 0
  %v1003 = vsel %vm971, 1, 0
  %v1004 = vsel %vm972, 1, 0
  %v1005 = vsel %vm973, 1, 0
  %v1006 = vsel %vm974, 1, 0
  %v1007 = vsel %vm975, 1, 0
  %v1008 = vsel %vm976, 1, 0
  %v1009 = vsel %vm977, 1, 0
  %v1010 = vsel %vm978, 1, 0
  %v1011 = vsel %vm979, 1, 0
  %v1012 = vsel %vm980, 1, 0
  %v1013 = vsel %vm981, 1, 0
  %v1014 = vsel %vm982, 1, 0
  %v1015 = vcvt.s32.f32 %v983
  %v1016 = vcvt.s32.f32 %v984
  %v1017 = vcvt.s32.f32 %v985
  %v1018 = vcvt.s32.f32 %v986
  %v1019 = vcvt.s32.f32 %v987
  %v1020 = vcvt.s32.f32 %v988
  %v1021 = vcvt.s32.f32 %v989
  %v1022 = vcvt.s32.f32 %v990
  %v1023 = vcvt.s32.f32 %v991
  %v1024 = vcvt.s32.f32 %v992
  %v1025 = vcvt.s32.f32 %v993
  %v1026 = vcvt.s32.f32 %v994
  %v1027 = vcvt.s32.f32 %v995
  %v1028 = vcvt.s32.f32 %v996
  %v1029 = vcvt.s32.f32 %v997
  %v1030 = vcvt.s32.f32 %v998
  %v1031 = vcvt.s32.f32 %v999
  %v1032 = vcvt.s32.f32 %v1000
  %v1033 = vcvt.s32.f32 %v1001
  %v1034 = vcvt.s32.f32 %v1002
  %v1035 = vcvt.s32.f32 %v1003
  %v1036 = vcvt.s32.f32 %v1004
  %v1037 = vcvt.s32.f32 %v1005
  %v1038 = vcvt.s32.f32 %v1006
  %v1039 = vcvt.s32.f32 %v1007
  %v1040 = vcvt.s32.f32 %v1008
  %v1041 = vcvt.s32.f32 %v1009
  %v1042 = vcvt.s32.f32 %v1010
  %v1043 = vcvt.s32.f32 %v1011
  %v1044 = vcvt.s32.f32 %v1012
  %v1045 = vcvt.s32.f32 %v1013
  %v1046 = vcvt.s32.f32 %v1014
  %1047 = vset.pattern.permute.xlu0 0
  %1048 = vperm.xlu0 %1047, %v821
  %v1049 = vpop.permute.xlu0 %1048
  %1050 = vset.pattern.permute.xlu0 0
  %1051 = vperm.xlu0 %1050, %v822
  %v1052 = vpop.permute.xlu0 %1051
  %1053 = vset.pattern.permute.xlu0 0
  %1054 = vperm.xlu0 %1053, %v823
  %v1055 = vpop.permute.xlu0 %1054
  %1056 = vset.pattern.permute.xlu0 0
  %1057 = vperm.xlu0 %1056, %v824
  %v1058 = vpop.permute.xlu0 %1057
  %1059 = vset.pattern.permute.xlu0 0
  %1060 = vperm.xlu0 %1059, %v825
  %v1061 = vpop.permute.xlu0 %1060
  %1062 = vset.pattern.permute.xlu0 0
  %1063 = vperm.xlu0 %1062, %v826
  %v1064 = vpop.permute.xlu0 %1063
  %1065 = vset.pattern.permute.xlu0 0
  %1066 = vperm.xlu0 %1065, %v827
  %v1067 = vpop.permute.xlu0 %1066
  %1068 = vset.pattern.permute.xlu0 0
  %1069 = vperm.xlu0 %1068, %v828
  %v1070 = vpop.permute.xlu0 %1069
  %1071 = vset.pattern.permute.xlu0 0
  %1072 = vperm.xlu0 %1071, %v829
  %v1073 = vpop.permute.xlu0 %1072
  %1074 = vset.pattern.permute.xlu0 0
  %1075 = vperm.xlu0 %1074, %v830
  %v1076 = vpop.permute.xlu0 %1075
  %1077 = vset.pattern.permute.xlu0 0
  %1078 = vperm.xlu0 %1077, %v831
  %v1079 = vpop.permute.xlu0 %1078
  %1080 = vset.pattern.permute.xlu0 0
  %1081 = vperm.xlu0 %1080, %v832
  %v1082 = vpop.permute.xlu0 %1081
  %1083 = vset.pattern.permute.xlu0 0
  %1084 = vperm.xlu0 %1083, %v833
  %v1085 = vpop.permute.xlu0 %1084
  %1086 = vset.pattern.permute.xlu0 0
  %1087 = vperm.xlu0 %1086, %v834
  %v1088 = vpop.permute.xlu0 %1087
  %1089 = vset.pattern.permute.xlu0 0
  %1090 = vperm.xlu0 %1089, %v835
  %v1091 = vpop.permute.xlu0 %1090
  %1092 = vset.pattern.permute.xlu0 0
  %1093 = vperm.xlu0 %1092, %v836
  %v1094 = vpop.permute.xlu0 %1093
  %1095 = vset.pattern.permute.xlu0 0
  %1096 = vperm.xlu0 %1095, %v837
  %v1097 = vpop.permute.xlu0 %1096
  %1098 = vset.pattern.permute.xlu0 0
  %1099 = vperm.xlu0 %1098, %v838
  %v1100 = vpop.permute.xlu0 %1099
  %1101 = vset.pattern.permute.xlu0 0
  %1102 = vperm.xlu0 %1101, %v839
  %v1103 = vpop.permute.xlu0 %1102
  %1104 = vset.pattern.permute.xlu0 0
  %1105 = vperm.xlu0 %1104, %v840
  %v1106 = vpop.permute.xlu0 %1105
  %1107 = vset.pattern.permute.xlu0 0
  %1108 = vperm.xlu0 %1107, %v841
  %v1109 = vpop.permute.xlu0 %1108
  %1110 = vset.pattern.permute.xlu0 0
  %1111 = vperm.xlu0 %1110, %v842
  %v1112 = vpop.permute.xlu0 %1111
  %1113 = vset.pattern.permute.xlu0 0
  %1114 = vperm.xlu0 %1113, %v843
  %v1115 = vpop.permute.xlu0 %1114
  %1116 = vset.pattern.permute.xlu0 0
  %1117 = vperm.xlu0 %1116, %v844
  %v1118 = vpop.permute.xlu0 %1117
  %1119 = vset.pattern.permute.xlu0 0
  %1120 = vperm.xlu0 %1119, %v845
  %v1121 = vpop.permute.xlu0 %1120
  %1122 = vset.pattern.permute.xlu0 0
  %1123 = vperm.xlu0 %1122, %v846
  %v1124 = vpop.permute.xlu0 %1123
  %1125 = vset.pattern.permute.xlu0 0
  %1126 = vperm.xlu0 %1125, %v847
  %v1127 = vpop.permute.xlu0 %1126
  %1128 = vset.pattern.permute.xlu0 0
  %1129 = vperm.xlu0 %1128, %v848
  %v1130 = vpop.permute.xlu0 %1129
  %1131 = vset.pattern.permute.xlu0 0
  %1132 = vperm.xlu0 %1131, %v849
  %v1133 = vpop.permute.xlu0 %1132
  %1134 = vset.pattern.permute.xlu0 0
  %1135 = vperm.xlu0 %1134, %v850
  %v1136 = vpop.permute.xlu0 %1135
  %1137 = vset.pattern.permute.xlu0 0
  %1138 = vperm.xlu0 %1137, %v851
  %v1139 = vpop.permute.xlu0 %1138
  %1140 = vset.pattern.permute.xlu0 0
  %1141 = vperm.xlu0 %1140, %v852
  %v1142 = vpop.permute.xlu0 %1141
  %vm1143 = vcmp.eq.s32.totalorder %v1049, %v854
  %vm1144 = vcmp.eq.s32.totalorder %v1052, %v854
  %vm1145 = vcmp.eq.s32.totalorder %v1055, %v854
  %vm1146 = vcmp.eq.s32.totalorder %v1058, %v854
  %vm1147 = vcmp.eq.s32.totalorder %v1061, %v854
  %vm1148 = vcmp.eq.s32.totalorder %v1064, %v854
  %vm1149 = vcmp.eq.s32.totalorder %v1067, %v854
  %vm1150 = vcmp.eq.s32.totalorder %v1070, %v854
  %vm1151 = vcmp.eq.s32.totalorder %v1073, %v854
  %vm1152 = vcmp.eq.s32.totalorder %v1076, %v854
  %vm1153 = vcmp.eq.s32.totalorder %v1079, %v854
  %vm1154 = vcmp.eq.s32.totalorder %v1082, %v854
  %vm1155 = vcmp.eq.s32.totalorder %v1085, %v854
  %vm1156 = vcmp.eq.s32.totalorder %v1088, %v854
  %vm1157 = vcmp.eq.s32.totalorder %v1091, %v854
  %vm1158 = vcmp.eq.s32.totalorder %v1094, %v854
  %vm1159 = vcmp.eq.s32.totalorder %v1097, %v854
  %vm1160 = vcmp.eq.s32.totalorder %v1100, %v854
  %vm1161 = vcmp.eq.s32.totalorder %v1103, %v854
  %vm1162 = vcmp.eq.s32.totalorder %v1106, %v854
  %vm1163 = vcmp.eq.s32.totalorder %v1109, %v854
  %vm1164 = vcmp.eq.s32.totalorder %v1112, %v854
  %vm1165 = vcmp.eq.s32.totalorder %v1115, %v854
  %vm1166 = vcmp.eq.s32.totalorder %v1118, %v854
  %vm1167 = vcmp.eq.s32.totalorder %v1121, %v854
  %vm1168 = vcmp.eq.s32.totalorder %v1124, %v854
  %vm1169 = vcmp.eq.s32.totalorder %v1127, %v854
  %vm1170 = vcmp.eq.s32.totalorder %v1130, %v854
  %vm1171 = vcmp.eq.s32.totalorder %v1133, %v854
  %vm1172 = vcmp.eq.s32.totalorder %v1136, %v854
  %vm1173 = vcmp.eq.s32.totalorder %v1139, %v854
  %vm1174 = vcmp.eq.s32.totalorder %v1142, %v854
  %v1175 = vsel %vm1143, 1, 0
  %v1176 = vsel %vm1144, 1, 0
  %v1177 = vsel %vm1145, 1, 0
  %v1178 = vsel %vm1146, 1, 0
  %v1179 = vsel %vm1147, 1, 0
  %v1180 = vsel %vm1148, 1, 0
  %v1181 = vsel %vm1149, 1, 0
  %v1182 = vsel %vm1150, 1, 0
  %v1183 = vsel %vm1151, 1, 0
  %v1184 = vsel %vm1152, 1, 0
  %v1185 = vsel %vm1153, 1, 0
  %v1186 = vsel %vm1154, 1, 0
  %v1187 = vsel %vm1155, 1, 0
  %v1188 = vsel %vm1156, 1, 0
  %v1189 = vsel %vm1157, 1, 0
  %v1190 = vsel %vm1158, 1, 0
  %v1191 = vsel %vm1159, 1, 0
  %v1192 = vsel %vm1160, 1, 0
  %v1193 = vsel %vm1161, 1, 0
  %v1194 = vsel %vm1162, 1, 0
  %v1195 = vsel %vm1163, 1, 0
  %v1196 = vsel %vm1164, 1, 0
  %v1197 = vsel %vm1165, 1, 0
  %v1198 = vsel %vm1166, 1, 0
  %v1199 = vsel %vm1167, 1, 0
  %v1200 = vsel %vm1168, 1, 0
  %v1201 = vsel %vm1169, 1, 0
  %v1202 = vsel %vm1170, 1, 0
  %v1203 = vsel %vm1171, 1, 0
  %v1204 = vsel %vm1172, 1, 0
  %v1205 = vsel %vm1173, 1, 0
  %v1206 = vsel %vm1174, 1, 0
  %v1207 = vcvt.s32.f32 %v1175
  %v1208 = vcvt.s32.f32 %v1176
  %v1209 = vcvt.s32.f32 %v1177
  %v1210 = vcvt.s32.f32 %v1178
  %v1211 = vcvt.s32.f32 %v1179
  %v1212 = vcvt.s32.f32 %v1180
  %v1213 = vcvt.s32.f32 %v1181
  %v1214 = vcvt.s32.f32 %v1182
  %v1215 = vcvt.s32.f32 %v1183
  %v1216 = vcvt.s32.f32 %v1184
  %v1217 = vcvt.s32.f32 %v1185
  %v1218 = vcvt.s32.f32 %v1186
  %v1219 = vcvt.s32.f32 %v1187
  %v1220 = vcvt.s32.f32 %v1188
  %v1221 = vcvt.s32.f32 %v1189
  %v1222 = vcvt.s32.f32 %v1190
  %v1223 = vcvt.s32.f32 %v1191
  %v1224 = vcvt.s32.f32 %v1192
  %v1225 = vcvt.s32.f32 %v1193
  %v1226 = vcvt.s32.f32 %v1194
  %v1227 = vcvt.s32.f32 %v1195
  %v1228 = vcvt.s32.f32 %v1196
  %v1229 = vcvt.s32.f32 %v1197
  %v1230 = vcvt.s32.f32 %v1198
  %v1231 = vcvt.s32.f32 %v1199
  %v1232 = vcvt.s32.f32 %v1200
  %v1233 = vcvt.s32.f32 %v1201
  %v1234 = vcvt.s32.f32 %v1202
  %v1235 = vcvt.s32.f32 %v1203
  %v1236 = vcvt.s32.f32 %v1204
  %v1237 = vcvt.s32.f32 %v1205
  %v1238 = vcvt.s32.f32 %v1206
  %v1239 = vld [vmem:[#allocation2] sm:$0xff]
  %v1240 = vld [vmem:[#allocation2 + $0x8] sm:$0xff]
  %v1241 = vld [vmem:[#allocation2 + $0x10] sm:$0xff]
  %v1242 = vld [vmem:[#allocation2 + $0x18] sm:$0xff]
  %v1243 = vld [vmem:[#allocation2 + $0x20] sm:$0xff]
  %v1244 = vld [vmem:[#allocation2 + $0x28] sm:$0xff]
  %v1245 = vld [vmem:[#allocation2 + $0x30] sm:$0xff]
  %v1246 = vld [vmem:[#allocation2 + $0x38] sm:$0xff]
  %v1247 = vld [vmem:[#allocation2 + $0x40] sm:$0xff]
  %v1248 = vld [vmem:[#allocation2 + $0x48] sm:$0xff]
  %v1249 = vld [vmem:[#allocation2 + $0x50] sm:$0xff]
  %v1250 = vld [vmem:[#allocation2 + $0x58] sm:$0xff]
  %v1251 = vld [vmem:[#allocation2 + $0x60] sm:$0xff]
  %v1252 = vld [vmem:[#allocation2 + $0x68] sm:$0xff]
  %v1253 = vld [vmem:[#allocation2 + $0x70] sm:$0xff]
  %v1254 = vld [vmem:[#allocation2 + $0x78] sm:$0xff]
  %v1255 = vld [vmem:[#allocation4] sm:$0xff]
  %v1256 = vld [vmem:[#allocation4 + $0x8] sm:$0xff]
  %v1257 = vld [vmem:[#allocation4 + $0x10] sm:$0xff]
  %v1258 = vld [vmem:[#allocation4 + $0x18] sm:$0xff]
  %v1259 = vld [vmem:[#allocation4 + $0x20] sm:$0xff]
  %v1260 = vld [vmem:[#allocation4 + $0x28] sm:$0xff]
  %v1261 = vld [vmem:[#allocation4 + $0x30] sm:$0xff]
  %v1262 = vld [vmem:[#allocation4 + $0x38] sm:$0xff]
  %v1263 = vld [vmem:[#allocation4 + $0x40] sm:$0xff]
  %v1264 = vld [vmem:[#allocation4 + $0x48] sm:$0xff]
  %v1265 = vld [vmem:[#allocation4 + $0x50] sm:$0xff]
  %v1266 = vld [vmem:[#allocation4 + $0x58] sm:$0xff]
  %v1267 = vld [vmem:[#allocation4 + $0x60] sm:$0xff]
  %v1268 = vld [vmem:[#allocation4 + $0x68] sm:$0xff]
  %v1269 = vld [vmem:[#allocation4 + $0x70] sm:$0xff]
  %v1270 = vld [vmem:[#allocation4 + $0x78] sm:$0xff]
  %1271 = vmatprep.subr.mxu0 0.0
  %1272 = vmatpush1.msra.mxu0 %v1255
  %1273 = vmatprep.subr.mxu0 0.0
  %1274 = vmatpush1.msra.mxu0 %v1256
  %1275 = vmatprep.subr.mxu0 0.0
  %1276 = vmatpush1.msra.mxu0 %v1257
  %1277 = vmatprep.subr.mxu0 0.0
  %1278 = vmatpush1.msra.mxu0 %v1258
  %1279 = vmatprep.subr.mxu0 0.0
  %1280 = vmatpush1.msra.mxu0 %v1259
  %1281 = vmatprep.subr.mxu0 0.0
  %1282 = vmatpush1.msra.mxu0 %v1260
  %1283 = vmatprep.subr.mxu0 0.0
  %1284 = vmatpush1.msra.mxu0 %v1261
  %1285 = vmatprep.subr.mxu0 0.0
  %1286 = vmatpush1.msra.mxu0 %v1262
  %1287 = vmatprep.subr.mxu0 0.0
  %1288 = vmatpush1.msra.mxu0 %v1263
  %1289 = vmatprep.subr.mxu0 0.0
  %1290 = vmatpush1.msra.mxu0 %v1264
  %1291 = vmatprep.subr.mxu0 0.0
  %1292 = vmatpush1.msra.mxu0 %v1265
  %1293 = vmatprep.subr.mxu0 0.0
  %1294 = vmatpush1.msra.mxu0 %v1266
  %1295 = vmatprep.subr.mxu0 0.0
  %1296 = vmatpush1.msra.mxu0 %v1267
  %1297 = vmatprep.subr.mxu0 0.0
  %1298 = vmatpush1.msra.mxu0 %v1268
  %1299 = vmatprep.subr.mxu0 0.0
  %1300 = vmatpush1.msra.mxu0 %v1269
  %1301 = vmatprep.subr.mxu0 0.0
  %1302 = vmatpush1.msra.mxu0 %v1270
  %1303 = vmatprep.subr.mxu0 0.0
  %1304 = vmatpush1.msra.mxu0 0.0
  %1305 = vmatprep.subr.mxu0 0.0
  %1306 = vmatpush1.msra.mxu0 0.0
  %1307 = vmatprep.subr.mxu0 0.0
  %1308 = vmatpush1.msra.mxu0 0.0
  %1309 = vmatprep.subr.mxu0 0.0
  %1310 = vmatpush1.msra.mxu0 0.0
  %1311 = vmatprep.subr.mxu0 0.0
  %1312 = vmatpush1.msra.mxu0 0.0
  %1313 = vmatprep.subr.mxu0 0.0
  %1314 = vmatpush1.msra.mxu0 0.0
  %1315 = vmatprep.subr.mxu0 0.0
  %1316 = vmatpush1.msra.mxu0 0.0
  %1317 = vmatprep.subr.mxu0 0.0
  %1318 = vmatpush1.msra.mxu0 0.0
  %1319 = vmatprep.subr.mxu0 0.0
  %1320 = vmatpush1.msra.mxu0 0.0
  %1321 = vmatprep.subr.mxu0 0.0
  %1322 = vmatpush1.msra.mxu0 0.0
  %1323 = vmatprep.subr.mxu0 0.0
  %1324 = vmatpush1.msra.mxu0 0.0
  %1325 = vmatprep.subr.mxu0 0.0
  %1326 = vmatpush1.msra.mxu0 0.0
  %1327 = vmatprep.subr.mxu0 0.0
  %1328 = vmatpush1.msra.mxu0 0.0
  %1329 = vmatprep.subr.mxu0 0.0
  %1330 = vmatpush1.msra.mxu0 0.0
  %1331 = vmatprep.subr.mxu0 0.0
  %1332 = vmatpush1.msra.mxu0 0.0
  %1333 = vmatprep.subr.mxu0 0.0
  %1334 = vmatpush1.msra.mxu0 0.0
  %1335 = vmatprep.mubr.f32.mxu0 0.0
  %1336 = vmatmul.mubr.f32.gmra.mrb[0].mxu0 %v1207
  %v1337 = vpop.f32.mrb[0].mxu0
  %v1338 = vadd.f32 0.0, %v1337
  %v1339 = vpop.f32.mrb[0].mxu0
  %1340 = vmatprep.mubr.f32.mxu0 0.0
  %1341 = vmatmul.mubr.f32.gmra.mrb[0].mxu0 %v1208
  %v1342 = vpop.f32.mrb[0].mxu0
  %v1343 = vadd.f32 0.0, %v1342
  %v1344 = vpop.f32.mrb[0].mxu0
  %1345 = vmatprep.mubr.f32.mxu0 0.0
  %1346 = vmatmul.mubr.f32.gmra.mrb[0].mxu0 %v1209
  %v1347 = vpop.f32.mrb[0].mxu0
  %v1348 = vadd.f32 0.0, %v1347
  %v1349 = vpop.f32.mrb[0].mxu0
  %1350 = vmatprep.mubr.f32.mxu0 0.0
  %1351 = vmatmul.mubr.f32.gmra.mrb[0].mxu0 %v1210
  %v1352 = vpop.f32.mrb[0].mxu0
  %v1353 = vadd.f32 0.0, %v1352
  %v1354 = vpop.f32.mrb[0].mxu0
  %1355 = vmatprep.mubr.f32.mxu0 0.0
  %1356 = vmatmul.mubr.f32.gmra.mrb[0].mxu0 %v1211
  %v1357 = vpop.f32.mrb[0].mxu0
  %v1358 = vadd.f32 0.0, %v1357
  %v1359 = vpop.f32.mrb[0].mxu0
  %1360 = vmatprep.mubr.f32.mxu0 0.0
  %1361 = vmatmul.mubr.f32.gmra.mrb[0].mxu0 %v1212
  %v1362 = vpop.f32.mrb[0].mxu0
  %v1363 = vadd.f32 0.0, %v1362
  %v1364 = vpop.f32.mrb[0].mxu0
  %1365 = vmatprep.mubr.f32.mxu0 0.0
  %1366 = vmatmul.mubr.f32.gmra.mrb[0].mxu0 %v1213
  %v1367 = vpop.f32.mrb[0].mxu0
  %v1368 = vadd.f32 0.0, %v1367
  %v1369 = vpop.f32.mrb[0].mxu0
  %1370 = vmatprep.mubr.f32.mxu0 0.0
  %1371 = vmatmul.mubr.f32.gmra.mrb[0].mxu0 %v1214
  %v1372 = vpop.f32.mrb[0].mxu0
  %v1373 = vadd.f32 0.0, %v1372
  %v1374 = vpop.f32.mrb[0].mxu0
  %1375 = vmatprep.mubr.f32.mxu0 0.0
  %1376 = vmatmul.mubr.f32.gmra.mrb[0].mxu0 %v1215
  %v1377 = vpop.f32.mrb[0].mxu0
  %v1378 = vadd.f32 0.0, %v1377
  %v1379 = vpop.f32.mrb[0].mxu0
  %1380 = vmatprep.mubr.f32.mxu0 0.0
  %1381 = vmatmul.mubr.f32.gmra.mrb[0].mxu0 %v1216
  %v1382 = vpop.f32.mrb[0].mxu0
  %v1383 = vadd.f32 0.0, %v1382
  %v1384 = vpop.f32.mrb[0].mxu0
  %1385 = vmatprep.mubr.f32.mxu0 0.0
  %1386 = vmatmul.mubr.f32.gmra.mrb[0].mxu0 %v1217
  %v1387 = vpop.f32.mrb[0].mxu0
  %v1388 = vadd.f32 0.0, %v1387
  %v1389 = vpop.f32.mrb[0].mxu0
  %1390 = vmatprep.mubr.f32.mxu0 0.0
  %1391 = vmatmul.mubr.f32.gmra.mrb[0].mxu0 %v1218
  %v1392 = vpop.f32.mrb[0].mxu0
  %v1393 = vadd.f32 0.0, %v1392
  %v1394 = vpop.f32.mrb[0].mxu0
  %1395 = vmatprep.mubr.f32.mxu0 0.0
  %1396 = vmatmul.mubr.f32.gmra.mrb[0].mxu0 %v1219
  %v1397 = vpop.f32.mrb[0].mxu0
  %v1398 = vadd.f32 0.0, %v1397
  %v1399 = vpop.f32.mrb[0].mxu0
  %1400 = vmatprep.mubr.f32.mxu0 0.0
  %1401 = vmatmul.mubr.f32.gmra.mrb[0].mxu0 %v1220
  %v1402 = vpop.f32.mrb[0].mxu0
  %v1403 = vadd.f32 0.0, %v1402
  %v1404 = vpop.f32.mrb[0].mxu0
  %1405 = vmatprep.mubr.f32.mxu0 0.0
  %1406 = vmatmul.mubr.f32.gmra.mrb[0].mxu0 %v1221
  %v1407 = vpop.f32.mrb[0].mxu0
  %v1408 = vadd.f32 0.0, %v1407
  %v1409 = vpop.f32.mrb[0].mxu0
  %1410 = vmatprep.mubr.f32.mxu0 0.0
  %1411 = vmatmul.mubr.f32.gmra.mrb[0].mxu0 %v1222
  %v1412 = vpop.f32.mrb[0].mxu0
  %v1413 = vadd.f32 0.0, %v1412
  %v1414 = vpop.f32.mrb[0].mxu0
  %1415 = vmatprep.mubr.f32.mxu0 0.0
  %1416 = vmatmul.mubr.f32.gmra.mrb[0].mxu0 %v1223
  %v1417 = vpop.f32.mrb[0].mxu0
  %v1418 = vadd.f32 0.0, %v1417
  %v1419 = vpop.f32.mrb[0].mxu0
  %1420 = vmatprep.mubr.f32.mxu0 0.0
  %1421 = vmatmul.mubr.f32.gmra.mrb[0].mxu0 %v1224
  %v1422 = vpop.f32.mrb[0].mxu0
  %v1423 = vadd.f32 0.0, %v1422
  %v1424 = vpop.f32.mrb[0].mxu0
  %1425 = vmatprep.mubr.f32.mxu0 0.0
  %1426 = vmatmul.mubr.f32.gmra.mrb[0].mxu0 %v1225
  %v1427 = vpop.f32.mrb[0].mxu0
  %v1428 = vadd.f32 0.0, %v1427
  %v1429 = vpop.f32.mrb[0].mxu0
  %1430 = vmatprep.mubr.f32.mxu0 0.0
  %1431 = vmatmul.mubr.f32.gmra.mrb[0].mxu0 %v1226
  %v1432 = vpop.f32.mrb[0].mxu0
  %v1433 = vadd.f32 0.0, %v1432
  %v1434 = vpop.f32.mrb[0].mxu0
  %1435 = vmatprep.mubr.f32.mxu0 0.0
  %1436 = vmatmul.mubr.f32.gmra.mrb[0].mxu0 %v1227
  %v1437 = vpop.f32.mrb[0].mxu0
  %v1438 = vadd.f32 0.0, %v1437
  %v1439 = vpop.f32.mrb[0].mxu0
  %1440 = vmatprep.mubr.f32.mxu0 0.0
  %1441 = vmatmul.mubr.f32.gmra.mrb[0].mxu0 %v1228
  %v1442 = vpop.f32.mrb[0].mxu0
  %v1443 = vadd.f32 0.0, %v1442
  %v1444 = vpop.f32.mrb[0].mxu0
  %1445 = vmatprep.mubr.f32.mxu0 0.0
  %1446 = vmatmul.mubr.f32.gmra.mrb[0].mxu0 %v1229
  %v1447 = vpop.f32.mrb[0].mxu0
  %v1448 = vadd.f32 0.0, %v1447
  %v1449 = vpop.f32.mrb[0].mxu0
  %1450 = vmatprep.mubr.f32.mxu0 0.0
  %1451 = vmatmul.mubr.f32.gmra.mrb[0].mxu0 %v1230
  %v1452 = vpop.f32.mrb[0].mxu0
  %v1453 = vadd.f32 0.0, %v1452
  %v1454 = vpop.f32.mrb[0].mxu0
  %1455 = vmatprep.mubr.f32.mxu0 0.0
  %1456 = vmatmul.mubr.f32.gmra.mrb[0].mxu0 %v1231
  %v1457 = vpop.f32.mrb[0].mxu0
  %v1458 = vadd.f32 0.0, %v1457
  %v1459 = vpop.f32.mrb[0].mxu0
  %1460 = vmatprep.mubr.f32.mxu0 0.0
  %1461 = vmatmul.mubr.f32.gmra.mrb[0].mxu0 %v1232
  %v1462 = vpop.f32.mrb[0].mxu0
  %v1463 = vadd.f32 0.0, %v1462
  %v1464 = vpop.f32.mrb[0].mxu0
  %1465 = vmatprep.mubr.f32.mxu0 0.0
  %1466 = vmatmul.mubr.f32.gmra.mrb[0].mxu0 %v1233
  %v1467 = vpop.f32.mrb[0].mxu0
  %v1468 = vadd.f32 0.0, %v1467
  %v1469 = vpop.f32.mrb[0].mxu0
  %1470 = vmatprep.mubr.f32.mxu0 0.0
  %1471 = vmatmul.mubr.f32.gmra.mrb[0].mxu0 %v1234
  %v1472 = vpop.f32.mrb[0].mxu0
  %v1473 = vadd.f32 0.0, %v1472
  %v1474 = vpop.f32.mrb[0].mxu0
  %1475 = vmatprep.mubr.f32.mxu0 0.0
  %1476 = vmatmul.mubr.f32.gmra.mrb[0].mxu0 %v1235
  %v1477 = vpop.f32.mrb[0].mxu0
  %v1478 = vadd.f32 0.0, %v1477
  %v1479 = vpop.f32.mrb[0].mxu0
  %1480 = vmatprep.mubr.f32.mxu0 0.0
  %1481 = vmatmul.mubr.f32.gmra.mrb[0].mxu0 %v1236
  %v1482 = vpop.f32.mrb[0].mxu0
  %v1483 = vadd.f32 0.0, %v1482
  %v1484 = vpop.f32.mrb[0].mxu0
  %1485 = vmatprep.mubr.f32.mxu0 0.0
  %1486 = vmatmul.mubr.f32.gmra.mrb[0].mxu0 %v1237
  %v1487 = vpop.f32.mrb[0].mxu0
  %v1488 = vadd.f32 0.0, %v1487
  %v1489 = vpop.f32.mrb[0].mxu0
  %1490 = vmatprep.mubr.f32.mxu0 0.0
  %1491 = vmatmul.mubr.f32.gmra.mrb[0].mxu0 %v1238
  %v1492 = vpop.f32.mrb[0].mxu0
  %v1493 = vadd.f32 0.0, %v1492
  %v1494 = vpop.f32.mrb[0].mxu0
  %1495 = vdwg.mxu0
  %v1496 = vld [vmem:[%s2] sm:$0xff]
  %v1497 = vld [vmem:[%s2 + $0x8] sm:$0xff]
  %v1498 = vld [vmem:[%s2 + $0x10] sm:$0xff]
  %v1499 = vld [vmem:[%s2 + $0x18] sm:$0xff]
  %v1500 = vld [vmem:[%s2 + $0x20] sm:$0xff]
  %v1501 = vld [vmem:[%s2 + $0x28] sm:$0xff]
  %v1502 = vld [vmem:[%s2 + $0x30] sm:$0xff]
  %v1503 = vld [vmem:[%s2 + $0x38] sm:$0xff]
  %v1504 = vld [vmem:[%s2 + $0x40] sm:$0xff]
  %v1505 = vld [vmem:[%s2 + $0x48] sm:$0xff]
  %v1506 = vld [vmem:[%s2 + $0x50] sm:$0xff]
  %v1507 = vld [vmem:[%s2 + $0x58] sm:$0xff]
  %v1508 = vld [vmem:[%s2 + $0x60] sm:$0xff]
  %v1509 = vld [vmem:[%s2 + $0x68] sm:$0xff]
  %v1510 = vld [vmem:[%s2 + $0x70] sm:$0xff]
  %v1511 = vld [vmem:[%s2 + $0x78] sm:$0xff]
  %v1512 = vld [vmem:[%s2 + $0x80] sm:$0xff]
  %v1513 = vld [vmem:[%s2 + $0x88] sm:$0xff]
  %v1514 = vld [vmem:[%s2 + $0x90] sm:$0xff]
  %v1515 = vld [vmem:[%s2 + $0x98] sm:$0xff]
  %v1516 = vld [vmem:[%s2 + $0xa0] sm:$0xff]
  %v1517 = vld [vmem:[%s2 + $0xa8] sm:$0xff]
  %v1518 = vld [vmem:[%s2 + $0xb0] sm:$0xff]
  %v1519 = vld [vmem:[%s2 + $0xb8] sm:$0xff]
  %v1520 = vld [vmem:[%s2 + $0xc0] sm:$0xff]
  %v1521 = vld [vmem:[%s2 + $0xc8] sm:$0xff]
  %v1522 = vld [vmem:[%s2 + $0xd0] sm:$0xff]
  %v1523 = vld [vmem:[%s2 + $0xd8] sm:$0xff]
  %v1524 = vld [vmem:[%s2 + $0xe0] sm:$0xff]
  %v1525 = vld [vmem:[%s2 + $0xe8] sm:$0xff]
  %v1526 = vld [vmem:[%s2 + $0xf0] sm:$0xff]
  %v1527 = vld [vmem:[%s2 + $0xf8] sm:$0xff]
  %v1528 = vld [vmem:[%s7] sm:$0x1]
  %1530 = vset.pattern.permute.xlu0 0
  %1531 = vperm.xlu0 %1530, %v1496
  %v1532 = vpop.permute.xlu0 %1531
  %1535 = vset.pattern.permute.xlu0 0
  %1536 = vperm.xlu0 %1535, %v1497
  %v1537 = vpop.permute.xlu0 %1536
  %1540 = vset.pattern.permute.xlu0 0
  %1541 = vperm.xlu0 %1540, %v1498
  %v1542 = vpop.permute.xlu0 %1541
  %1545 = vset.pattern.permute.xlu0 0
  %1546 = vperm.xlu0 %1545, %v1499
  %v1547 = vpop.permute.xlu0 %1546
  %1550 = vset.pattern.permute.xlu0 0
  %1551 = vperm.xlu0 %1550, %v1500
  %v1552 = vpop.permute.xlu0 %1551
  %1555 = vset.pattern.permute.xlu0 0
  %1556 = vperm.xlu0 %1555, %v1501
  %v1557 = vpop.permute.xlu0 %1556
  %1560 = vset.pattern.permute.xlu0 0
  %1561 = vperm.xlu0 %1560, %v1502
  %v1562 = vpop.permute.xlu0 %1561
  %1565 = vset.pattern.permute.xlu0 0
  %1566 = vperm.xlu0 %1565, %v1503
  %v1567 = vpop.permute.xlu0 %1566
  %1570 = vset.pattern.permute.xlu0 0
  %1571 = vperm.xlu0 %1570, %v1504
  %v1572 = vpop.permute.xlu0 %1571
  %1575 = vset.pattern.permute.xlu0 0
  %1576 = vperm.xlu0 %1575, %v1505
  %v1577 = vpop.permute.xlu0 %1576
  %1580 = vset.pattern.permute.xlu0 0
  %1581 = vperm.xlu0 %1580, %v1506
  %v1582 = vpop.permute.xlu0 %1581
  %1585 = vset.pattern.permute.xlu0 0
  %1586 = vperm.xlu0 %1585, %v1507
  %v1587 = vpop.permute.xlu0 %1586
  %1590 = vset.pattern.permute.xlu0 0
  %1591 = vperm.xlu0 %1590, %v1508
  %v1592 = vpop.permute.xlu0 %1591
  %1595 = vset.pattern.permute.xlu0 0
  %1596 = vperm.xlu0 %1595, %v1509
  %v1597 = vpop.permute.xlu0 %1596
  %1600 = vset.pattern.permute.xlu0 0
  %1601 = vperm.xlu0 %1600, %v1510
  %v1602 = vpop.permute.xlu0 %1601
  %1605 = vset.pattern.permute.xlu0 0
  %1606 = vperm.xlu0 %1605, %v1511
  %v1607 = vpop.permute.xlu0 %1606
  %1610 = vset.pattern.permute.xlu0 0
  %1611 = vperm.xlu0 %1610, %v1512
  %v1612 = vpop.permute.xlu0 %1611
  %1615 = vset.pattern.permute.xlu0 0
  %1616 = vperm.xlu0 %1615, %v1513
  %v1617 = vpop.permute.xlu0 %1616
  %1620 = vset.pattern.permute.xlu0 0
  %1621 = vperm.xlu0 %1620, %v1514
  %v1622 = vpop.permute.xlu0 %1621
  %1625 = vset.pattern.permute.xlu0 0
  %1626 = vperm.xlu0 %1625, %v1515
  %v1627 = vpop.permute.xlu0 %1626
  %1630 = vset.pattern.permute.xlu0 0
  %1631 = vperm.xlu0 %1630, %v1516
  %v1632 = vpop.permute.xlu0 %1631
  %1635 = vset.pattern.permute.xlu0 0
  %1636 = vperm.xlu0 %1635, %v1517
  %v1637 = vpop.permute.xlu0 %1636
  %1640 = vset.pattern.permute.xlu0 0
  %1641 = vperm.xlu0 %1640, %v1518
  %v1642 = vpop.permute.xlu0 %1641
  %1645 = vset.pattern.permute.xlu0 0
  %1646 = vperm.xlu0 %1645, %v1519
  %v1647 = vpop.permute.xlu0 %1646
  %1650 = vset.pattern.permute.xlu0 0
  %1651 = vperm.xlu0 %1650, %v1520
  %v1652 = vpop.permute.xlu0 %1651
  %1655 = vset.pattern.permute.xlu0 0
  %1656 = vperm.xlu0 %1655, %v1521
  %v1657 = vpop.permute.xlu0 %1656
  %1660 = vset.pattern.permute.xlu0 0
  %1661 = vperm.xlu0 %1660, %v1522
  %v1662 = vpop.permute.xlu0 %1661
  %1665 = vset.pattern.permute.xlu0 0
  %1666 = vperm.xlu0 %1665, %v1523
  %v1667 = vpop.permute.xlu0 %1666
  %1670 = vset.pattern.permute.xlu0 0
  %1671 = vperm.xlu0 %1670, %v1524
  %v1672 = vpop.permute.xlu0 %1671
  %1675 = vset.pattern.permute.xlu0 0
  %1676 = vperm.xlu0 %1675, %v1525
  %v1677 = vpop.permute.xlu0 %1676
  %1680 = vset.pattern.permute.xlu0 0
  %1681 = vperm.xlu0 %1680, %v1526
  %v1682 = vpop.permute.xlu0 %1681
  %1685 = vset.pattern.permute.xlu0 0
  %1686 = vperm.xlu0 %1685, %v1527
  %v1687 = vpop.permute.xlu0 %1686
  %v1690 = vlaneseq
  %v1691 = vshrl.u32 %v1690, 7
  %v1692 = vsub.s32 0, %v1691
  %v1693 = vrot.slane %v1528, %v1692
  %v1695 = vmul.f32 %v1532, %v1693
  %v1696 = vmul.f32 %v1537, %v1693
  %v1697 = vmul.f32 %v1542, %v1693
  %v1698 = vmul.f32 %v1547, %v1693
  %v1699 = vmul.f32 %v1552, %v1693
  %v1700 = vmul.f32 %v1557, %v1693
  %v1701 = vmul.f32 %v1562, %v1693
  %v1702 = vmul.f32 %v1567, %v1693
  %v1703 = vmul.f32 %v1572, %v1693
  %v1704 = vmul.f32 %v1577, %v1693
  %v1705 = vmul.f32 %v1582, %v1693
  %v1706 = vmul.f32 %v1587, %v1693
  %v1707 = vmul.f32 %v1592, %v1693
  %v1708 = vmul.f32 %v1597, %v1693
  %v1709 = vmul.f32 %v1602, %v1693
  %v1710 = vmul.f32 %v1607, %v1693
  %v1711 = vmul.f32 %v1612, %v1693
  %v1712 = vmul.f32 %v1617, %v1693
  %v1713 = vmul.f32 %v1622, %v1693
  %v1714 = vmul.f32 %v1627, %v1693
  %v1715 = vmul.f32 %v1632, %v1693
  %v1716 = vmul.f32 %v1637, %v1693
  %v1717 = vmul.f32 %v1642, %v1693
  %v1718 = vmul.f32 %v1647, %v1693
  %v1719 = vmul.f32 %v1652, %v1693
  %v1720 = vmul.f32 %v1657, %v1693
  %v1721 = vmul.f32 %v1662, %v1693
  %v1722 = vmul.f32 %v1667, %v1693
  %v1723 = vmul.f32 %v1672, %v1693
  %v1724 = vmul.f32 %v1677, %v1693
  %v1725 = vmul.f32 %v1682, %v1693
  %v1726 = vmul.f32 %v1687, %v1693
  %1727 = vmatprep.subr.mxu0 0.0
  %1728 = vmatpush1.msra.mxu0 %v1239
  %1729 = vmatprep.subr.mxu0 0.0
  %1730 = vmatpush1.msra.mxu0 %v1240
  %1731 = vmatprep.subr.mxu0 0.0
  %1732 = vmatpush1.msra.mxu0 %v1241
  %1733 = vmatprep.subr.mxu0 0.0
  %1734 = vmatpush1.msra.mxu0 %v1242
  %1735 = vmatprep.subr.mxu0 0.0
  %1736 = vmatpush1.msra.mxu0 %v1243
  %1737 = vmatprep.subr.mxu0 0.0
  %1738 = vmatpush1.msra.mxu0 %v1244
  %1739 = vmatprep.subr.mxu0 0.0
  %1740 = vmatpush1.msra.mxu0 %v1245
  %1741 = vmatprep.subr.mxu0 0.0
  %1742 = vmatpush1.msra.mxu0 %v1246
  %1743 = vmatprep.subr.mxu0 0.0
  %1744 = vmatpush1.msra.mxu0 %v1247
  %1745 = vmatprep.subr.mxu0 0.0
  %1746 = vmatpush1.msra.mxu0 %v1248
  %1747 = vmatprep.subr.mxu0 0.0
  %1748 = vmatpush1.msra.mxu0 %v1249
  %1749 = vmatprep.subr.mxu0 0.0
  %1750 = vmatpush1.msra.mxu0 %v1250
  %1751 = vmatprep.subr.mxu0 0.0
  %1752 = vmatpush1.msra.mxu0 %v1251
  %1753 = vmatprep.subr.mxu0 0.0
  %1754 = vmatpush1.msra.mxu0 %v1252
  %1755 = vmatprep.subr.mxu0 0.0
  %1756 = vmatpush1.msra.mxu0 %v1253
  %1757 = vmatprep.subr.mxu0 0.0
  %1758 = vmatpush1.msra.mxu0 %v1254
  %1759 = vmatprep.subr.mxu0 0.0
  %1760 = vmatpush1.msra.mxu0 0.0
  %1761 = vmatprep.subr.mxu0 0.0
  %1762 = vmatpush1.msra.mxu0 0.0
  %1763 = vmatprep.subr.mxu0 0.0
  %1764 = vmatpush1.msra.mxu0 0.0
  %1765 = vmatprep.subr.mxu0 0.0
  %1766 = vmatpush1.msra.mxu0 0.0
  %1767 = vmatprep.subr.mxu0 0.0
  %1768 = vmatpush1.msra.mxu0 0.0
  %1769 = vmatprep.subr.mxu0 0.0
  %1770 = vmatpush1.msra.mxu0 0.0
  %1771 = vmatprep.subr.mxu0 0.0
  %1772 = vmatpush1.msra.mxu0 0.0
  %1773 = vmatprep.subr.mxu0 0.0
  %1774 = vmatpush1.msra.mxu0 0.0
  %1775 = vmatprep.subr.mxu0 0.0
  %1776 = vmatpush1.msra.mxu0 0.0
  %1777 = vmatprep.subr.mxu0 0.0
  %1778 = vmatpush1.msra.mxu0 0.0
  %1779 = vmatprep.subr.mxu0 0.0
  %1780 = vmatpush1.msra.mxu0 0.0
  %1781 = vmatprep.subr.mxu0 0.0
  %1782 = vmatpush1.msra.mxu0 0.0
  %1783 = vmatprep.subr.mxu0 0.0
  %1784 = vmatpush1.msra.mxu0 0.0
  %1785 = vmatprep.subr.mxu0 0.0
  %1786 = vmatpush1.msra.mxu0 0.0
  %1787 = vmatprep.subr.mxu0 0.0
  %1788 = vmatpush1.msra.mxu0 0.0
  %1789 = vmatprep.subr.mxu0 0.0
  %1790 = vmatpush1.msra.mxu0 0.0
  %1791 = vmatprep.mubr.f32.mxu0 0.0
  %1792 = vmatmul.mubr.f32.gmra.mrb[0].mxu0 %v1015
  %v1793 = vpop.f32.mrb[0].mxu0
  %v1794 = vadd.f32 %v1338, %v1793
  %v1795 = vpop.f32.mrb[0].mxu0
  %1796 = vmatprep.mubr.f32.mxu0 0.0
  %1797 = vmatmul.mubr.f32.gmra.mrb[0].mxu0 %v1016
  %v1798 = vpop.f32.mrb[0].mxu0
  %v1799 = vadd.f32 %v1343, %v1798
  %v1800 = vpop.f32.mrb[0].mxu0
  %1801 = vmatprep.mubr.f32.mxu0 0.0
  %1802 = vmatmul.mubr.f32.gmra.mrb[0].mxu0 %v1017
  %v1803 = vpop.f32.mrb[0].mxu0
  %v1804 = vadd.f32 %v1348, %v1803
  %v1805 = vpop.f32.mrb[0].mxu0
  %1806 = vmatprep.mubr.f32.mxu0 0.0
  %1807 = vmatmul.mubr.f32.gmra.mrb[0].mxu0 %v1018
  %v1808 = vpop.f32.mrb[0].mxu0
  %v1809 = vadd.f32 %v1353, %v1808
  %v1810 = vpop.f32.mrb[0].mxu0
  %1811 = vmatprep.mubr.f32.mxu0 0.0
  %1812 = vmatmul.mubr.f32.gmra.mrb[0].mxu0 %v1019
  %v1813 = vpop.f32.mrb[0].mxu0
  %v1814 = vadd.f32 %v1358, %v1813
  %v1815 = vpop.f32.mrb[0].mxu0
  %1816 = vmatprep.mubr.f32.mxu0 0.0
  %1817 = vmatmul.mubr.f32.gmra.mrb[0].mxu0 %v1020
  %v1818 = vpop.f32.mrb[0].mxu0
  %v1819 = vadd.f32 %v1363, %v1818
  %v1820 = vpop.f32.mrb[0].mxu0
  %1821 = vmatprep.mubr.f32.mxu0 0.0
  %1822 = vmatmul.mubr.f32.gmra.mrb[0].mxu0 %v1021
  %v1823 = vpop.f32.mrb[0].mxu0
  %v1824 = vadd.f32 %v1368, %v1823
  %v1825 = vpop.f32.mrb[0].mxu0
  %1826 = vmatprep.mubr.f32.mxu0 0.0
  %1827 = vmatmul.mubr.f32.gmra.mrb[0].mxu0 %v1022
  %v1828 = vpop.f32.mrb[0].mxu0
  %v1829 = vadd.f32 %v1373, %v1828
  %v1830 = vpop.f32.mrb[0].mxu0
  %1831 = vmatprep.mubr.f32.mxu0 0.0
  %1832 = vmatmul.mubr.f32.gmra.mrb[0].mxu0 %v1023
  %v1833 = vpop.f32.mrb[0].mxu0
  %v1834 = vadd.f32 %v1378, %v1833
  %v1835 = vpop.f32.mrb[0].mxu0
  %1836 = vmatprep.mubr.f32.mxu0 0.0
  %1837 = vmatmul.mubr.f32.gmra.mrb[0].mxu0 %v1024
  %v1838 = vpop.f32.mrb[0].mxu0
  %v1839 = vadd.f32 %v1383, %v1838
  %v1840 = vpop.f32.mrb[0].mxu0
  %1841 = vmatprep.mubr.f32.mxu0 0.0
  %1842 = vmatmul.mubr.f32.gmra.mrb[0].mxu0 %v1025
  %v1843 = vpop.f32.mrb[0].mxu0
  %v1844 = vadd.f32 %v1388, %v1843
  %v1845 = vpop.f32.mrb[0].mxu0
  %1846 = vmatprep.mubr.f32.mxu0 0.0
  %1847 = vmatmul.mubr.f32.gmra.mrb[0].mxu0 %v1026
  %v1848 = vpop.f32.mrb[0].mxu0
  %v1849 = vadd.f32 %v1393, %v1848
  %v1850 = vpop.f32.mrb[0].mxu0
  %1851 = vmatprep.mubr.f32.mxu0 0.0
  %1852 = vmatmul.mubr.f32.gmra.mrb[0].mxu0 %v1027
  %v1853 = vpop.f32.mrb[0].mxu0
  %v1854 = vadd.f32 %v1398, %v1853
  %v1855 = vpop.f32.mrb[0].mxu0
  %1856 = vmatprep.mubr.f32.mxu0 0.0
  %1857 = vmatmul.mubr.f32.gmra.mrb[0].mxu0 %v1028
  %v1858 = vpop.f32.mrb[0].mxu0
  %v1859 = vadd.f32 %v1403, %v1858
  %v1860 = vpop.f32.mrb[0].mxu0
  %1861 = vmatprep.mubr.f32.mxu0 0.0
  %1862 = vmatmul.mubr.f32.gmra.mrb[0].mxu0 %v1029
  %v1863 = vpop.f32.mrb[0].mxu0
  %v1864 = vadd.f32 %v1408, %v1863
  %v1865 = vpop.f32.mrb[0].mxu0
  %1866 = vmatprep.mubr.f32.mxu0 0.0
  %1867 = vmatmul.mubr.f32.gmra.mrb[0].mxu0 %v1030
  %v1868 = vpop.f32.mrb[0].mxu0
  %v1869 = vadd.f32 %v1413, %v1868
  %v1870 = vpop.f32.mrb[0].mxu0
  %1871 = vmatprep.mubr.f32.mxu0 0.0
  %1872 = vmatmul.mubr.f32.gmra.mrb[0].mxu0 %v1031
  %v1873 = vpop.f32.mrb[0].mxu0
  %v1874 = vadd.f32 %v1418, %v1873
  %v1875 = vpop.f32.mrb[0].mxu0
  %1876 = vmatprep.mubr.f32.mxu0 0.0
  %1877 = vmatmul.mubr.f32.gmra.mrb[0].mxu0 %v1032
  %v1878 = vpop.f32.mrb[0].mxu0
  %v1879 = vadd.f32 %v1423, %v1878
  %v1880 = vpop.f32.mrb[0].mxu0
  %1881 = vmatprep.mubr.f32.mxu0 0.0
  %1882 = vmatmul.mubr.f32.gmra.mrb[0].mxu0 %v1033
  %v1883 = vpop.f32.mrb[0].mxu0
  %v1884 = vadd.f32 %v1428, %v1883
  %v1885 = vpop.f32.mrb[0].mxu0
  %1886 = vmatprep.mubr.f32.mxu0 0.0
  %1887 = vmatmul.mubr.f32.gmra.mrb[0].mxu0 %v1034
  %v1888 = vpop.f32.mrb[0].mxu0
  %v1889 = vadd.f32 %v1433, %v1888
  %v1890 = vpop.f32.mrb[0].mxu0
  %1891 = vmatprep.mubr.f32.mxu0 0.0
  %1892 = vmatmul.mubr.f32.gmra.mrb[0].mxu0 %v1035
  %v1893 = vpop.f32.mrb[0].mxu0
  %v1894 = vadd.f32 %v1438, %v1893
  %v1895 = vpop.f32.mrb[0].mxu0
  %1896 = vmatprep.mubr.f32.mxu0 0.0
  %1897 = vmatmul.mubr.f32.gmra.mrb[0].mxu0 %v1036
  %v1898 = vpop.f32.mrb[0].mxu0
  %v1899 = vadd.f32 %v1443, %v1898
  %v1900 = vpop.f32.mrb[0].mxu0
  %1901 = vmatprep.mubr.f32.mxu0 0.0
  %1902 = vmatmul.mubr.f32.gmra.mrb[0].mxu0 %v1037
  %v1903 = vpop.f32.mrb[0].mxu0
  %v1904 = vadd.f32 %v1448, %v1903
  %v1905 = vpop.f32.mrb[0].mxu0
  %1906 = vmatprep.mubr.f32.mxu0 0.0
  %1907 = vmatmul.mubr.f32.gmra.mrb[0].mxu0 %v1038
  %v1908 = vpop.f32.mrb[0].mxu0
  %v1909 = vadd.f32 %v1453, %v1908
  %v1910 = vpop.f32.mrb[0].mxu0
  %1911 = vmatprep.mubr.f32.mxu0 0.0
  %1912 = vmatmul.mubr.f32.gmra.mrb[0].mxu0 %v1039
  %v1913 = vpop.f32.mrb[0].mxu0
  %v1914 = vadd.f32 %v1458, %v1913
  %v1915 = vpop.f32.mrb[0].mxu0
  %1916 = vmatprep.mubr.f32.mxu0 0.0
  %1917 = vmatmul.mubr.f32.gmra.mrb[0].mxu0 %v1040
  %v1918 = vpop.f32.mrb[0].mxu0
  %v1919 = vadd.f32 %v1463, %v1918
  %v1920 = vpop.f32.mrb[0].mxu0
  %1921 = vmatprep.mubr.f32.mxu0 0.0
  %1922 = vmatmul.mubr.f32.gmra.mrb[0].mxu0 %v1041
  %v1923 = vpop.f32.mrb[0].mxu0
  %v1924 = vadd.f32 %v1468, %v1923
  %v1925 = vpop.f32.mrb[0].mxu0
  %1926 = vmatprep.mubr.f32.mxu0 0.0
  %1927 = vmatmul.mubr.f32.gmra.mrb[0].mxu0 %v1042
  %v1928 = vpop.f32.mrb[0].mxu0
  %v1929 = vadd.f32 %v1473, %v1928
  %v1930 = vpop.f32.mrb[0].mxu0
  %1931 = vmatprep.mubr.f32.mxu0 0.0
  %1932 = vmatmul.mubr.f32.gmra.mrb[0].mxu0 %v1043
  %v1933 = vpop.f32.mrb[0].mxu0
  %v1934 = vadd.f32 %v1478, %v1933
  %v1935 = vpop.f32.mrb[0].mxu0
  %1936 = vmatprep.mubr.f32.mxu0 0.0
  %1937 = vmatmul.mubr.f32.gmra.mrb[0].mxu0 %v1044
  %v1938 = vpop.f32.mrb[0].mxu0
  %v1939 = vadd.f32 %v1483, %v1938
  %v1940 = vpop.f32.mrb[0].mxu0
  %1941 = vmatprep.mubr.f32.mxu0 0.0
  %1942 = vmatmul.mubr.f32.gmra.mrb[0].mxu0 %v1045
  %v1943 = vpop.f32.mrb[0].mxu0
  %v1944 = vadd.f32 %v1488, %v1943
  %v1945 = vpop.f32.mrb[0].mxu0
  %1946 = vmatprep.mubr.f32.mxu0 0.0
  %1947 = vmatmul.mubr.f32.gmra.mrb[0].mxu0 %v1046
  %v1948 = vpop.f32.mrb[0].mxu0
  %v1949 = vadd.f32 %v1493, %v1948
  %v1950 = vpop.f32.mrb[0].mxu0
  %1951 = vdwg.mxu0
  %v1952 = vadd.f32 %v1794, %v1695
  %v1953 = vadd.f32 %v1799, %v1696
  %v1954 = vadd.f32 %v1804, %v1697
  %v1955 = vadd.f32 %v1809, %v1698
  %v1956 = vadd.f32 %v1814, %v1699
  %v1957 = vadd.f32 %v1819, %v1700
  %v1958 = vadd.f32 %v1824, %v1701
  %v1959 = vadd.f32 %v1829, %v1702
  %v1960 = vadd.f32 %v1834, %v1703
  %v1961 = vadd.f32 %v1839, %v1704
  %v1962 = vadd.f32 %v1844, %v1705
  %v1963 = vadd.f32 %v1849, %v1706
  %v1964 = vadd.f32 %v1854, %v1707
  %v1965 = vadd.f32 %v1859, %v1708
  %v1966 = vadd.f32 %v1864, %v1709
  %v1967 = vadd.f32 %v1869, %v1710
  %v1968 = vadd.f32 %v1874, %v1711
  %v1969 = vadd.f32 %v1879, %v1712
  %v1970 = vadd.f32 %v1884, %v1713
  %v1971 = vadd.f32 %v1889, %v1714
  %v1972 = vadd.f32 %v1894, %v1715
  %v1973 = vadd.f32 %v1899, %v1716
  %v1974 = vadd.f32 %v1904, %v1717
  %v1975 = vadd.f32 %v1909, %v1718
  %v1976 = vadd.f32 %v1914, %v1719
  %v1977 = vadd.f32 %v1919, %v1720
  %v1978 = vadd.f32 %v1924, %v1721
  %v1979 = vadd.f32 %v1929, %v1722
  %v1980 = vadd.f32 %v1934, %v1723
  %v1981 = vadd.f32 %v1939, %v1724
  %v1982 = vadd.f32 %v1944, %v1725
  %v1983 = vadd.f32 %v1949, %v1726
  %v1984 = vmax.f32 %v1952, 0.0
  %v1985 = vmax.f32 %v1953, 0.0
  %v1986 = vmax.f32 %v1954, 0.0
  %v1987 = vmax.f32 %v1955, 0.0
  %v1988 = vmax.f32 %v1956, 0.0
  %v1989 = vmax.f32 %v1957, 0.0
  %v1990 = vmax.f32 %v1958, 0.0
  %v1991 = vmax.f32 %v1959, 0.0
  %v1992 = vmax.f32 %v1960, 0.0
  %v1993 = vmax.f32 %v1961, 0.0
  %v1994 = vmax.f32 %v1962, 0.0
  %v1995 = vmax.f32 %v1963, 0.0
  %v1996 = vmax.f32 %v1964, 0.0
  %v1997 = vmax.f32 %v1965, 0.0
  %v1998 = vmax.f32 %v1966, 0.0
  %v1999 = vmax.f32 %v1967, 0.0
  %v2000 = vmax.f32 %v1968, 0.0
  %v2001 = vmax.f32 %v1969, 0.0
  %v2002 = vmax.f32 %v1970, 0.0
  %v2003 = vmax.f32 %v1971, 0.0
  %v2004 = vmax.f32 %v1972, 0.0
  %v2005 = vmax.f32 %v1973, 0.0
  %v2006 = vmax.f32 %v1974, 0.0
  %v2007 = vmax.f32 %v1975, 0.0
  %v2008 = vmax.f32 %v1976, 0.0
  %v2009 = vmax.f32 %v1977, 0.0
  %v2010 = vmax.f32 %v1978, 0.0
  %v2011 = vmax.f32 %v1979, 0.0
  %v2012 = vmax.f32 %v1980, 0.0
  %v2013 = vmax.f32 %v1981, 0.0
  %v2014 = vmax.f32 %v1982, 0.0
  %v2015 = vmax.f32 %v1983, 0.0
  %v2016 = vld [vmem:[%s9] sm:$0xff]
  %v2017 = vld [vmem:[%s9 + $0x8] sm:$0xff]
  %v2018 = vld [vmem:[%s9 + $0x10] sm:$0xff]
  %v2019 = vld [vmem:[%s9 + $0x18] sm:$0xff]
  %v2020 = vld [vmem:[%s9 + $0x20] sm:$0xff]
  %v2021 = vld [vmem:[%s9 + $0x28] sm:$0xff]
  %v2022 = vld [vmem:[%s9 + $0x30] sm:$0xff]
  %v2023 = vld [vmem:[%s9 + $0x38] sm:$0xff]
  %v2024 = vld [vmem:[%s10] sm:$0x1]
  %v2026 = vlaneseq
  %v2027 = vshrl.u32 %v2026, 7
  %v2028 = vsub.s32 0, %v2027
  %v2029 = vrot.slane %v2024, %v2028
  %vm2031 = vcmask 523264
  %v2033 = vsel %vm2031, %v1984, 0
  %v2036 = vsel %vm2031, %v1985, 0
  %v2039 = vsel %vm2031, %v1986, 0
  %v2042 = vsel %vm2031, %v1987, 0
  %v2045 = vsel %vm2031, %v1988, 0
  %v2048 = vsel %vm2031, %v1989, 0
  %v2051 = vsel %vm2031, %v1990, 0
  %v2054 = vsel %vm2031, %v1991, 0
  %v2057 = vsel %vm2031, %v1992, 0
  %v2060 = vsel %vm2031, %v1993, 0
  %v2063 = vsel %vm2031, %v1994, 0
  %v2066 = vsel %vm2031, %v1995, 0
  %v2069 = vsel %vm2031, %v1996, 0
  %v2072 = vsel %vm2031, %v1997, 0
  %v2075 = vsel %vm2031, %v1998, 0
  %v2078 = vsel %vm2031, %v1999, 0
  %v2081 = vsel %vm2031, %v2000, 0
  %v2084 = vsel %vm2031, %v2001, 0
  %v2087 = vsel %vm2031, %v2002, 0
  %v2090 = vsel %vm2031, %v2003, 0
  %v2093 = vsel %vm2031, %v2004, 0
  %v2096 = vsel %vm2031, %v2005, 0
  %v2099 = vsel %vm2031, %v2006, 0
  %v2102 = vsel %vm2031, %v2007, 0
  %v2105 = vsel %vm2031, %v2008, 0
  %v2108 = vsel %vm2031, %v2009, 0
  %v2111 = vsel %vm2031, %v2010, 0
  %v2114 = vsel %vm2031, %v2011, 0
  %v2117 = vsel %vm2031, %v2012, 0
  %v2120 = vsel %vm2031, %v2013, 0
  %v2123 = vsel %vm2031, %v2014, 0
  %v2126 = vsel %vm2031, %v2015, 0
  %2128 = vmatprep.subr.mxu0 0.0
  %2129 = vmatpush1.msra.mxu0 %v2016
  %2130 = vmatprep.subr.mxu0 0.0
  %2131 = vmatpush1.msra.mxu0 %v2017
  %2132 = vmatprep.subr.mxu0 0.0
  %2133 = vmatpush1.msra.mxu0 %v2018
  %2134 = vmatprep.subr.mxu0 0.0
  %2135 = vmatpush1.msra.mxu0 %v2019
  %2136 = vmatprep.subr.mxu0 0.0
  %2137 = vmatpush1.msra.mxu0 %v2020
  %2138 = vmatprep.subr.mxu0 0.0
  %2139 = vmatpush1.msra.mxu0 %v2021
  %2140 = vmatprep.subr.mxu0 0.0
  %2141 = vmatpush1.msra.mxu0 %v2022
  %2142 = vmatprep.subr.mxu0 0.0
  %2143 = vmatpush1.msra.mxu0 %v2023
  %2144 = vmatprep.subr.mxu0 0.0
  %2145 = vmatpush1.msra.mxu0 0.0
  %2146 = vmatprep.subr.mxu0 0.0
  %2147 = vmatpush1.msra.mxu0 0.0
  %2148 = vmatprep.subr.mxu0 0.0
  %2149 = vmatpush1.msra.mxu0 0.0
  %2150 = vmatprep.subr.mxu0 0.0
  %2151 = vmatpush1.msra.mxu0 0.0
  %2152 = vmatprep.subr.mxu0 0.0
  %2153 = vmatpush1.msra.mxu0 0.0
  %2154 = vmatprep.subr.mxu0 0.0
  %2155 = vmatpush1.msra.mxu0 0.0
  %2156 = vmatprep.subr.mxu0 0.0
  %2157 = vmatpush1.msra.mxu0 0.0
  %2158 = vmatprep.subr.mxu0 0.0
  %2159 = vmatpush1.msra.mxu0 0.0
  %2160 = vmatprep.subr.mxu0 0.0
  %2161 = vmatpush1.msra.mxu0 0.0
  %2162 = vmatprep.subr.mxu0 0.0
  %2163 = vmatpush1.msra.mxu0 0.0
  %2164 = vmatprep.subr.mxu0 0.0
  %2165 = vmatpush1.msra.mxu0 0.0
  %2166 = vmatprep.subr.mxu0 0.0
  %2167 = vmatpush1.msra.mxu0 0.0
  %2168 = vmatprep.subr.mxu0 0.0
  %2169 = vmatpush1.msra.mxu0 0.0
  %2170 = vmatprep.subr.mxu0 0.0
  %2171 = vmatpush1.msra.mxu0 0.0
  %2172 = vmatprep.subr.mxu0 0.0
  %2173 = vmatpush1.msra.mxu0 0.0
  %2174 = vmatprep.subr.mxu0 0.0
  %2175 = vmatpush1.msra.mxu0 0.0
  %2176 = vmatprep.subr.mxu0 0.0
  %2177 = vmatpush1.msra.mxu0 0.0
  %2178 = vmatprep.subr.mxu0 0.0
  %2179 = vmatpush1.msra.mxu0 0.0
  %2180 = vmatprep.subr.mxu0 0.0
  %2181 = vmatpush1.msra.mxu0 0.0
  %2182 = vmatprep.subr.mxu0 0.0
  %2183 = vmatpush1.msra.mxu0 0.0
  %2184 = vmatprep.subr.mxu0 0.0
  %2185 = vmatpush1.msra.mxu0 0.0
  %2186 = vmatprep.subr.mxu0 0.0
  %2187 = vmatpush1.msra.mxu0 0.0
  %2188 = vmatprep.subr.mxu0 0.0
  %2189 = vmatpush1.msra.mxu0 0.0
  %2190 = vmatprep.subr.mxu0 0.0
  %2191 = vmatpush1.msra.mxu0 0.0
  %2192 = vmatprep.mubr.f32.mxu0 0.0
  %2193 = vmatmul.mubr.f32.gmra.mrb[0].mxu0 %v2033
  %v2194 = vpop.f32.mrb[0].mxu0
  %v2195 = vadd.f32 %v2029, %v2194
  %v2196 = vpop.f32.mrb[0].mxu0
  %2197 = vmatprep.mubr.f32.mxu0 0.0
  %2198 = vmatmul.mubr.f32.gmra.mrb[0].mxu0 %v2036
  %v2199 = vpop.f32.mrb[0].mxu0
  %v2200 = vadd.f32 %v2029, %v2199
  %v2201 = vpop.f32.mrb[0].mxu0
  %2202 = vmatprep.mubr.f32.mxu0 0.0
  %2203 = vmatmul.mubr.f32.gmra.mrb[0].mxu0 %v2039
  %v2204 = vpop.f32.mrb[0].mxu0
  %v2205 = vadd.f32 %v2029, %v2204
  %v2206 = vpop.f32.mrb[0].mxu0
  %2207 = vmatprep.mubr.f32.mxu0 0.0
  %2208 = vmatmul.mubr.f32.gmra.mrb[0].mxu0 %v2042
  %v2209 = vpop.f32.mrb[0].mxu0
  %v2210 = vadd.f32 %v2029, %v2209
  %v2211 = vpop.f32.mrb[0].mxu0
  %2212 = vmatprep.mubr.f32.mxu0 0.0
  %2213 = vmatmul.mubr.f32.gmra.mrb[0].mxu0 %v2045
  %v2214 = vpop.f32.mrb[0].mxu0
  %v2215 = vadd.f32 %v2029, %v2214
  %v2216 = vpop.f32.mrb[0].mxu0
  %2217 = vmatprep.mubr.f32.mxu0 0.0
  %2218 = vmatmul.mubr.f32.gmra.mrb[0].mxu0 %v2048
  %v2219 = vpop.f32.mrb[0].mxu0
  %v2220 = vadd.f32 %v2029, %v2219
  %v2221 = vpop.f32.mrb[0].mxu0
  %2222 = vmatprep.mubr.f32.mxu0 0.0
  %2223 = vmatmul.mubr.f32.gmra.mrb[0].mxu0 %v2051
  %v2224 = vpop.f32.mrb[0].mxu0
  %v2225 = vadd.f32 %v2029, %v2224
  %v2226 = vpop.f32.mrb[0].mxu0
  %2227 = vmatprep.mubr.f32.mxu0 0.0
  %2228 = vmatmul.mubr.f32.gmra.mrb[0].mxu0 %v2054
  %v2229 = vpop.f32.mrb[0].mxu0
  %v2230 = vadd.f32 %v2029, %v2229
  %v2231 = vpop.f32.mrb[0].mxu0
  %2232 = vmatprep.mubr.f32.mxu0 0.0
  %2233 = vmatmul.mubr.f32.gmra.mrb[0].mxu0 %v2057
  %v2234 = vpop.f32.mrb[0].mxu0
  %v2235 = vadd.f32 %v2029, %v2234
  %v2236 = vpop.f32.mrb[0].mxu0
  %2237 = vmatprep.mubr.f32.mxu0 0.0
  %2238 = vmatmul.mubr.f32.gmra.mrb[0].mxu0 %v2060
  %v2239 = vpop.f32.mrb[0].mxu0
  %v2240 = vadd.f32 %v2029, %v2239
  %v2241 = vpop.f32.mrb[0].mxu0
  %2242 = vmatprep.mubr.f32.mxu0 0.0
  %2243 = vmatmul.mubr.f32.gmra.mrb[0].mxu0 %v2063
  %v2244 = vpop.f32.mrb[0].mxu0
  %v2245 = vadd.f32 %v2029, %v2244
  %v2246 = vpop.f32.mrb[0].mxu0
  %2247 = vmatprep.mubr.f32.mxu0 0.0
  %2248 = vmatmul.mubr.f32.gmra.mrb[0].mxu0 %v2066
  %v2249 = vpop.f32.mrb[0].mxu0
  %v2250 = vadd.f32 %v2029, %v2249
  %v2251 = vpop.f32.mrb[0].mxu0
  %2252 = vmatprep.mubr.f32.mxu0 0.0
  %2253 = vmatmul.mubr.f32.gmra.mrb[0].mxu0 %v2069
  %v2254 = vpop.f32.mrb[0].mxu0
  %v2255 = vadd.f32 %v2029, %v2254
  %v2256 = vpop.f32.mrb[0].mxu0
  %2257 = vmatprep.mubr.f32.mxu0 0.0
  %2258 = vmatmul.mubr.f32.gmra.mrb[0].mxu0 %v2072
  %v2259 = vpop.f32.mrb[0].mxu0
  %v2260 = vadd.f32 %v2029, %v2259
  %v2261 = vpop.f32.mrb[0].mxu0
  %2262 = vmatprep.mubr.f32.mxu0 0.0
  %2263 = vmatmul.mubr.f32.gmra.mrb[0].mxu0 %v2075
  %v2264 = vpop.f32.mrb[0].mxu0
  %v2265 = vadd.f32 %v2029, %v2264
  %v2266 = vpop.f32.mrb[0].mxu0
  %2267 = vmatprep.mubr.f32.mxu0 0.0
  %2268 = vmatmul.mubr.f32.gmra.mrb[0].mxu0 %v2078
  %v2269 = vpop.f32.mrb[0].mxu0
  %v2270 = vadd.f32 %v2029, %v2269
  %v2271 = vpop.f32.mrb[0].mxu0
  %2272 = vmatprep.mubr.f32.mxu0 0.0
  %2273 = vmatmul.mubr.f32.gmra.mrb[0].mxu0 %v2081
  %v2274 = vpop.f32.mrb[0].mxu0
  %v2275 = vadd.f32 %v2029, %v2274
  %v2276 = vpop.f32.mrb[0].mxu0
  %2277 = vmatprep.mubr.f32.mxu0 0.0
  %2278 = vmatmul.mubr.f32.gmra.mrb[0].mxu0 %v2084
  %v2279 = vpop.f32.mrb[0].mxu0
  %v2280 = vadd.f32 %v2029, %v2279
  %v2281 = vpop.f32.mrb[0].mxu0
  %2282 = vmatprep.mubr.f32.mxu0 0.0
  %2283 = vmatmul.mubr.f32.gmra.mrb[0].mxu0 %v2087
  %v2284 = vpop.f32.mrb[0].mxu0
  %v2285 = vadd.f32 %v2029, %v2284
  %v2286 = vpop.f32.mrb[0].mxu0
  %2287 = vmatprep.mubr.f32.mxu0 0.0
  %2288 = vmatmul.mubr.f32.gmra.mrb[0].mxu0 %v2090
  %v2289 = vpop.f32.mrb[0].mxu0
  %v2290 = vadd.f32 %v2029, %v2289
  %v2291 = vpop.f32.mrb[0].mxu0
  %2292 = vmatprep.mubr.f32.mxu0 0.0
  %2293 = vmatmul.mubr.f32.gmra.mrb[0].mxu0 %v2093
  %v2294 = vpop.f32.mrb[0].mxu0
  %v2295 = vadd.f32 %v2029, %v2294
  %v2296 = vpop.f32.mrb[0].mxu0
  %2297 = vmatprep.mubr.f32.mxu0 0.0
  %2298 = vmatmul.mubr.f32.gmra.mrb[0].mxu0 %v2096
  %v2299 = vpop.f32.mrb[0].mxu0
  %v2300 = vadd.f32 %v2029, %v2299
  %v2301 = vpop.f32.mrb[0].mxu0
  %2302 = vmatprep.mubr.f32.mxu0 0.0
  %2303 = vmatmul.mubr.f32.gmra.mrb[0].mxu0 %v2099
  %v2304 = vpop.f32.mrb[0].mxu0
  %v2305 = vadd.f32 %v2029, %v2304
  %v2306 = vpop.f32.mrb[0].mxu0
  %2307 = vmatprep.mubr.f32.mxu0 0.0
  %2308 = vmatmul.mubr.f32.gmra.mrb[0].mxu0 %v2102
  %v2309 = vpop.f32.mrb[0].mxu0
  %v2310 = vadd.f32 %v2029, %v2309
  %v2311 = vpop.f32.mrb[0].mxu0
  %2312 = vmatprep.mubr.f32.mxu0 0.0
  %2313 = vmatmul.mubr.f32.gmra.mrb[0].mxu0 %v2105
  %v2314 = vpop.f32.mrb[0].mxu0
  %v2315 = vadd.f32 %v2029, %v2314
  %v2316 = vpop.f32.mrb[0].mxu0
  %2317 = vmatprep.mubr.f32.mxu0 0.0
  %2318 = vmatmul.mubr.f32.gmra.mrb[0].mxu0 %v2108
  %v2319 = vpop.f32.mrb[0].mxu0
  %v2320 = vadd.f32 %v2029, %v2319
  %v2321 = vpop.f32.mrb[0].mxu0
  %2322 = vmatprep.mubr.f32.mxu0 0.0
  %2323 = vmatmul.mubr.f32.gmra.mrb[0].mxu0 %v2111
  %v2324 = vpop.f32.mrb[0].mxu0
  %v2325 = vadd.f32 %v2029, %v2324
  %v2326 = vpop.f32.mrb[0].mxu0
  %2327 = vmatprep.mubr.f32.mxu0 0.0
  %2328 = vmatmul.mubr.f32.gmra.mrb[0].mxu0 %v2114
  %v2329 = vpop.f32.mrb[0].mxu0
  %v2330 = vadd.f32 %v2029, %v2329
  %v2331 = vpop.f32.mrb[0].mxu0
  %2332 = vmatprep.mubr.f32.mxu0 0.0
  %2333 = vmatmul.mubr.f32.gmra.mrb[0].mxu0 %v2117
  %v2334 = vpop.f32.mrb[0].mxu0
  %v2335 = vadd.f32 %v2029, %v2334
  %v2336 = vpop.f32.mrb[0].mxu0
  %2337 = vmatprep.mubr.f32.mxu0 0.0
  %2338 = vmatmul.mubr.f32.gmra.mrb[0].mxu0 %v2120
  %v2339 = vpop.f32.mrb[0].mxu0
  %v2340 = vadd.f32 %v2029, %v2339
  %v2341 = vpop.f32.mrb[0].mxu0
  %2342 = vmatprep.mubr.f32.mxu0 0.0
  %2343 = vmatmul.mubr.f32.gmra.mrb[0].mxu0 %v2123
  %v2344 = vpop.f32.mrb[0].mxu0
  %v2345 = vadd.f32 %v2029, %v2344
  %v2346 = vpop.f32.mrb[0].mxu0
  %2347 = vmatprep.mubr.f32.mxu0 0.0
  %2348 = vmatmul.mubr.f32.gmra.mrb[0].mxu0 %v2126
  %v2349 = vpop.f32.mrb[0].mxu0
  %v2350 = vadd.f32 %v2029, %v2349
  %v2351 = vpop.f32.mrb[0].mxu0
  %2352 = vdwg.mxu0
  %v2353 = vld [vmem:[#allocation5] sm:$0xff]
  %v2354 = vld [vmem:[#allocation5 + $0x8] sm:$0xff]
  %v2355 = vld [vmem:[#allocation5 + $0x10] sm:$0xff]
  %v2356 = vld [vmem:[#allocation5 + $0x18] sm:$0xff]
  %v2357 = vld [vmem:[#allocation5 + $0x20] sm:$0xff]
  %v2358 = vld [vmem:[#allocation5 + $0x28] sm:$0xff]
  %v2359 = vld [vmem:[#allocation5 + $0x30] sm:$0xff]
  %v2360 = vld [vmem:[#allocation5 + $0x38] sm:$0xff]
  %v2361 = vld [vmem:[#allocation5 + $0x40] sm:$0xff]
  %v2362 = vld [vmem:[#allocation5 + $0x48] sm:$0xff]
  %v2363 = vld [vmem:[#allocation5 + $0x50] sm:$0xff]
  %v2364 = vld [vmem:[#allocation5 + $0x58] sm:$0xff]
  %v2365 = vld [vmem:[#allocation5 + $0x60] sm:$0xff]
  %v2366 = vld [vmem:[#allocation5 + $0x68] sm:$0xff]
  %v2367 = vld [vmem:[#allocation5 + $0x70] sm:$0xff]
  %v2368 = vld [vmem:[#allocation5 + $0x78] sm:$0xff]
  %2369 = vxpose.xlu0.b32.start [1/16] %v1015, 128
  %2370 = vxpose.xlu0.b32.cont [2/16] %v1016, 128
  %2371 = vxpose.xlu0.b32.cont [3/16] %v1017, 128
  %2372 = vxpose.xlu0.b32.cont [4/16] %v1018, 128
  %2373 = vxpose.xlu0.b32.cont [5/16] %v1019, 128
  %2374 = vxpose.xlu0.b32.cont [6/16] %v1020, 128
  %2375 = vxpose.xlu0.b32.cont [7/16] %v1021, 128
  %2376 = vxpose.xlu0.b32.cont [8/16] %v1022, 128
  %2377 = vxpose.xlu0.b32.cont [9/16] %v1023, 128
  %2378 = vxpose.xlu0.b32.cont [10/16] %v1024, 128
  %2379 = vxpose.xlu0.b32.cont [11/16] %v1025, 128
  %2380 = vxpose.xlu0.b32.cont [12/16] %v1026, 128
  %2381 = vxpose.xlu0.b32.cont [13/16] %v1027, 128
  %2382 = vxpose.xlu0.b32.cont [14/16] %v1028, 128
  %2383 = vxpose.xlu0.b32.cont [15/16] %v1029, 128
  %2384 = vxpose.xlu0.b32.end [16/16] %v1030, 128
  %v2385 = vpop.trf.xlu0
  %v2386 = vpop.trf.xlu0
  %v2387 = vpop.trf.xlu0
  %v2388 = vpop.trf.xlu0
  %v2389 = vpop.trf.xlu0
  %v2390 = vpop.trf.xlu0
  %v2391 = vpop.trf.xlu0
  %v2392 = vpop.trf.xlu0
  %v2393 = vpop.trf.xlu0
  %v2394 = vpop.trf.xlu0
  %v2395 = vpop.trf.xlu0
  %v2396 = vpop.trf.xlu0
  %v2397 = vpop.trf.xlu0
  %v2398 = vpop.trf.xlu0
  %v2399 = vpop.trf.xlu0
  %v2400 = vpop.trf.xlu0
  %2401 = vxpose.xlu0.b32.start [1/16] %v1031, 128
  %2402 = vxpose.xlu0.b32.cont [2/16] %v1032, 128
  %2403 = vxpose.xlu0.b32.cont [3/16] %v1033, 128
  %2404 = vxpose.xlu0.b32.cont [4/16] %v1034, 128
  %2405 = vxpose.xlu0.b32.cont [5/16] %v1035, 128
  %2406 = vxpose.xlu0.b32.cont [6/16] %v1036, 128
  %2407 = vxpose.xlu0.b32.cont [7/16] %v1037, 128
  %2408 = vxpose.xlu0.b32.cont [8/16] %v1038, 128
  %2409 = vxpose.xlu0.b32.cont [9/16] %v1039, 128
  %2410 = vxpose.xlu0.b32.cont [10/16] %v1040, 128
  %2411 = vxpose.xlu0.b32.cont [11/16] %v1041, 128
  %2412 = vxpose.xlu0.b32.cont [12/16] %v1042, 128
  %2413 = vxpose.xlu0.b32.cont [13/16] %v1043, 128
  %2414 = vxpose.xlu0.b32.cont [14/16] %v1044, 128
  %2415 = vxpose.xlu0.b32.cont [15/16] %v1045, 128
  %2416 = vxpose.xlu0.b32.end [16/16] %v1046, 128
  %v2417 = vpop.trf.xlu0
  %v2418 = vpop.trf.xlu0
  %v2419 = vpop.trf.xlu0
  %v2420 = vpop.trf.xlu0
  %v2421 = vpop.trf.xlu0
  %v2422 = vpop.trf.xlu0
  %v2423 = vpop.trf.xlu0
  %v2424 = vpop.trf.xlu0
  %v2425 = vpop.trf.xlu0
  %v2426 = vpop.trf.xlu0
  %v2427 = vpop.trf.xlu0
  %v2428 = vpop.trf.xlu0
  %v2429 = vpop.trf.xlu0
  %v2430 = vpop.trf.xlu0
  %v2431 = vpop.trf.xlu0
  %v2432 = vpop.trf.xlu0
  %2433 = vmatprep.subr.mxu0 0.0
  %2434 = vmatpush1.msra.mxu0 %v2195
  %2435 = vmatprep.subr.mxu0 0.0
  %2436 = vmatpush1.msra.mxu0 %v2200
  %2437 = vmatprep.subr.mxu0 0.0
  %2438 = vmatpush1.msra.mxu0 %v2205
  %2439 = vmatprep.subr.mxu0 0.0
  %2440 = vmatpush1.msra.mxu0 %v2210
  %2441 = vmatprep.subr.mxu0 0.0
  %2442 = vmatpush1.msra.mxu0 %v2215
  %2443 = vmatprep.subr.mxu0 0.0
  %2444 = vmatpush1.msra.mxu0 %v2220
  %2445 = vmatprep.subr.mxu0 0.0
  %2446 = vmatpush1.msra.mxu0 %v2225
  %2447 = vmatprep.subr.mxu0 0.0
  %2448 = vmatpush1.msra.mxu0 %v2230
  %2449 = vmatprep.subr.mxu0 0.0
  %2450 = vmatpush1.msra.mxu0 %v2235
  %2451 = vmatprep.subr.mxu0 0.0
  %2452 = vmatpush1.msra.mxu0 %v2240
  %2453 = vmatprep.subr.mxu0 0.0
  %2454 = vmatpush1.msra.mxu0 %v2245
  %2455 = vmatprep.subr.mxu0 0.0
  %2456 = vmatpush1.msra.mxu0 %v2250
  %2457 = vmatprep.subr.mxu0 0.0
  %2458 = vmatpush1.msra.mxu0 %v2255
  %2459 = vmatprep.subr.mxu0 0.0
  %2460 = vmatpush1.msra.mxu0 %v2260
  %2461 = vmatprep.subr.mxu0 0.0
  %2462 = vmatpush1.msra.mxu0 %v2265
  %2463 = vmatprep.subr.mxu0 0.0
  %2464 = vmatpush1.msra.mxu0 %v2270
  %2465 = vmatprep.subr.mxu0 0.0
  %2466 = vmatpush1.msra.mxu0 %v2275
  %2467 = vmatprep.subr.mxu0 0.0
  %2468 = vmatpush1.msra.mxu0 %v2280
  %2469 = vmatprep.subr.mxu0 0.0
  %2470 = vmatpush1.msra.mxu0 %v2285
  %2471 = vmatprep.subr.mxu0 0.0
  %2472 = vmatpush1.msra.mxu0 %v2290
  %2473 = vmatprep.subr.mxu0 0.0
  %2474 = vmatpush1.msra.mxu0 %v2295
  %2475 = vmatprep.subr.mxu0 0.0
  %2476 = vmatpush1.msra.mxu0 %v2300
  %2477 = vmatprep.subr.mxu0 0.0
  %2478 = vmatpush1.msra.mxu0 %v2305
  %2479 = vmatprep.subr.mxu0 0.0
  %2480 = vmatpush1.msra.mxu0 %v2310
  %2481 = vmatprep.subr.mxu0 0.0
  %2482 = vmatpush1.msra.mxu0 %v2315
  %2483 = vmatprep.subr.mxu0 0.0
  %2484 = vmatpush1.msra.mxu0 %v2320
  %2485 = vmatprep.subr.mxu0 0.0
  %2486 = vmatpush1.msra.mxu0 %v2325
  %2487 = vmatprep.subr.mxu0 0.0
  %2488 = vmatpush1.msra.mxu0 %v2330
  %2489 = vmatprep.subr.mxu0 0.0
  %2490 = vmatpush1.msra.mxu0 %v2335
  %2491 = vmatprep.subr.mxu0 0.0
  %2492 = vmatpush1.msra.mxu0 %v2340
  %2493 = vmatprep.subr.mxu0 0.0
  %2494 = vmatpush1.msra.mxu0 %v2345
  %2495 = vmatprep.subr.mxu0 0.0
  %2496 = vmatpush1.msra.mxu0 %v2350
  %2497 = vmatprep.mubr.f32.mxu0 %v2417
  %2498 = vmatmul.mubr.f32.gmra.mrb[0].mxu0 %v2385
  %v2499 = vpop.f32.mrb[0].mxu0
  %v2500 = vadd.f32 0.0, %v2499
  %v2501 = vpop.f32.mrb[0].mxu0
  %2502 = vmatprep.mubr.f32.mxu0 %v2418
  %2503 = vmatmul.mubr.f32.gmra.mrb[0].mxu0 %v2386
  %v2504 = vpop.f32.mrb[0].mxu0
  %v2505 = vadd.f32 0.0, %v2504
  %v2506 = vpop.f32.mrb[0].mxu0
  %2507 = vmatprep.mubr.f32.mxu0 %v2419
  %2508 = vmatmul.mubr.f32.gmra.mrb[0].mxu0 %v2387
  %v2509 = vpop.f32.mrb[0].mxu0
  %v2510 = vadd.f32 0.0, %v2509
  %v2511 = vpop.f32.mrb[0].mxu0
  %2512 = vmatprep.mubr.f32.mxu0 %v2420
  %2513 = vmatmul.mubr.f32.gmra.mrb[0].mxu0 %v2388
  %v2514 = vpop.f32.mrb[0].mxu0
  %v2515 = vadd.f32 0.0, %v2514
  %v2516 = vpop.f32.mrb[0].mxu0
  %2517 = vmatprep.mubr.f32.mxu0 %v2421
  %2518 = vmatmul.mubr.f32.gmra.mrb[0].mxu0 %v2389
  %v2519 = vpop.f32.mrb[0].mxu0
  %v2520 = vadd.f32 0.0, %v2519
  %v2521 = vpop.f32.mrb[0].mxu0
  %2522 = vmatprep.mubr.f32.mxu0 %v2422
  %2523 = vmatmul.mubr.f32.gmra.mrb[0].mxu0 %v2390
  %v2524 = vpop.f32.mrb[0].mxu0
  %v2525 = vadd.f32 0.0, %v2524
  %v2526 = vpop.f32.mrb[0].mxu0
  %2527 = vmatprep.mubr.f32.mxu0 %v2423
  %2528 = vmatmul.mubr.f32.gmra.mrb[0].mxu0 %v2391
  %v2529 = vpop.f32.mrb[0].mxu0
  %v2530 = vadd.f32 0.0, %v2529
  %v2531 = vpop.f32.mrb[0].mxu0
  %2532 = vmatprep.mubr.f32.mxu0 %v2424
  %2533 = vmatmul.mubr.f32.gmra.mrb[0].mxu0 %v2392
  %v2534 = vpop.f32.mrb[0].mxu0
  %v2535 = vadd.f32 0.0, %v2534
  %v2536 = vpop.f32.mrb[0].mxu0
  %2537 = vmatprep.mubr.f32.mxu0 %v2425
  %2538 = vmatmul.mubr.f32.gmra.mrb[0].mxu0 %v2393
  %v2539 = vpop.f32.mrb[0].mxu0
  %v2540 = vadd.f32 0.0, %v2539
  %v2541 = vpop.f32.mrb[0].mxu0
  %2542 = vmatprep.mubr.f32.mxu0 %v2426
  %2543 = vmatmul.mubr.f32.gmra.mrb[0].mxu0 %v2394
  %v2544 = vpop.f32.mrb[0].mxu0
  %v2545 = vadd.f32 0.0, %v2544
  %v2546 = vpop.f32.mrb[0].mxu0
  %2547 = vmatprep.mubr.f32.mxu0 %v2427
  %2548 = vmatmul.mubr.f32.gmra.mrb[0].mxu0 %v2395
  %v2549 = vpop.f32.mrb[0].mxu0
  %v2550 = vadd.f32 0.0, %v2549
  %v2551 = vpop.f32.mrb[0].mxu0
  %2552 = vmatprep.mubr.f32.mxu0 %v2428
  %2553 = vmatmul.mubr.f32.gmra.mrb[0].mxu0 %v2396
  %v2554 = vpop.f32.mrb[0].mxu0
  %v2555 = vadd.f32 0.0, %v2554
  %v2556 = vpop.f32.mrb[0].mxu0
  %2557 = vmatprep.mubr.f32.mxu0 %v2429
  %2558 = vmatmul.mubr.f32.gmra.mrb[0].mxu0 %v2397
  %v2559 = vpop.f32.mrb[0].mxu0
  %v2560 = vadd.f32 0.0, %v2559
  %v2561 = vpop.f32.mrb[0].mxu0
  %2562 = vmatprep.mubr.f32.mxu0 %v2430
  %2563 = vmatmul.mubr.f32.gmra.mrb[0].mxu0 %v2398
  %v2564 = vpop.f32.mrb[0].mxu0
  %v2565 = vadd.f32 0.0, %v2564
  %v2566 = vpop.f32.mrb[0].mxu0
  %2567 = vmatprep.mubr.f32.mxu0 %v2431
  %2568 = vmatmul.mubr.f32.gmra.mrb[0].mxu0 %v2399
  %v2569 = vpop.f32.mrb[0].mxu0
  %v2570 = vadd.f32 0.0, %v2569
  %v2571 = vpop.f32.mrb[0].mxu0
  %2572 = vmatprep.mubr.f32.mxu0 %v2432
  %2573 = vmatmul.mubr.f32.gmra.mrb[0].mxu0 %v2400
  %v2574 = vpop.f32.mrb[0].mxu0
  %v2575 = vadd.f32 0.0, %v2574
  %v2576 = vpop.f32.mrb[0].mxu0
  %2577 = vdwg.mxu0
  %v2578 = vadd.f32 %v2353, %v2500
  %v2579 = vadd.f32 %v2354, %v2505
  %v2580 = vadd.f32 %v2355, %v2510
  %v2581 = vadd.f32 %v2356, %v2515
  %v2582 = vadd.f32 %v2357, %v2520
  %v2583 = vadd.f32 %v2358, %v2525
  %v2584 = vadd.f32 %v2359, %v2530
  %v2585 = vadd.f32 %v2360, %v2535
  %v2586 = vadd.f32 %v2361, %v2540
  %v2587 = vadd.f32 %v2362, %v2545
  %v2588 = vadd.f32 %v2363, %v2550
  %v2589 = vadd.f32 %v2364, %v2555
  %v2590 = vadd.f32 %v2365, %v2560
  %v2591 = vadd.f32 %v2366, %v2565
  %v2592 = vadd.f32 %v2367, %v2570
  %v2593 = vadd.f32 %v2368, %v2575
  %2594 = vst.msk [vmem:[#allocation5] sm:$0xff] %vm2031, %v2578
  %2595 = vst.msk [vmem:[#allocation5 + $0x8] sm:$0xff] %vm2031, %v2579
  %2596 = vst.msk [vmem:[#allocation5 + $0x10] sm:$0xff] %vm2031, %v2580
  %2597 = vst.msk [vmem:[#allocation5 + $0x18] sm:$0xff] %vm2031, %v2581
  %2598 = vst.msk [vmem:[#allocation5 + $0x20] sm:$0xff] %vm2031, %v2582
  %2599 = vst.msk [vmem:[#allocation5 + $0x28] sm:$0xff] %vm2031, %v2583
  %2600 = vst.msk [vmem:[#allocation5 + $0x30] sm:$0xff] %vm2031, %v2584
  %2601 = vst.msk [vmem:[#allocation5 + $0x38] sm:$0xff] %vm2031, %v2585
  %2602 = vst.msk [vmem:[#allocation5 + $0x40] sm:$0xff] %vm2031, %v2586
  %2603 = vst.msk [vmem:[#allocation5 + $0x48] sm:$0xff] %vm2031, %v2587
  %2604 = vst.msk [vmem:[#allocation5 + $0x50] sm:$0xff] %vm2031, %v2588
  %2605 = vst.msk [vmem:[#allocation5 + $0x58] sm:$0xff] %vm2031, %v2589
  %2606 = vst.msk [vmem:[#allocation5 + $0x60] sm:$0xff] %vm2031, %v2590
  %2607 = vst.msk [vmem:[#allocation5 + $0x68] sm:$0xff] %vm2031, %v2591
  %2608 = vst.msk [vmem:[#allocation5 + $0x70] sm:$0xff] %vm2031, %v2592
  %2609 = vst.msk [vmem:[#allocation5 + $0x78] sm:$0xff] %vm2031, %v2593
  // Predicated region
  $region82: #{gnn_policy_forward.7} parent=0 // pred_check
    %p2610 = pneg %p62
  $region83: #{gnn_policy_forward.7} parent=0 // pred_check_branch
    %2612 = sbr.rel (%p2610) target = $region85
  $region84: #{gnn_policy_forward.7} parent=0 // pred_region
    %v2613 = vld [vmem:[#allocation5] sm:$0xff]
    %v2614 = vld [vmem:[#allocation5 + $0x8] sm:$0xff]
    %v2615 = vld [vmem:[#allocation5 + $0x10] sm:$0xff]
    %v2616 = vld [vmem:[#allocation5 + $0x18] sm:$0xff]
    %v2617 = vld [vmem:[#allocation5 + $0x20] sm:$0xff]
    %v2618 = vld [vmem:[#allocation5 + $0x28] sm:$0xff]
    %v2619 = vld [vmem:[#allocation5 + $0x30] sm:$0xff]
    %v2620 = vld [vmem:[#allocation5 + $0x38] sm:$0xff]
    %v2621 = vld [vmem:[#allocation5 + $0x40] sm:$0xff]
    %v2622 = vld [vmem:[#allocation5 + $0x48] sm:$0xff]
    %v2623 = vld [vmem:[#allocation5 + $0x50] sm:$0xff]
    %v2624 = vld [vmem:[#allocation5 + $0x58] sm:$0xff]
    %v2625 = vld [vmem:[#allocation5 + $0x60] sm:$0xff]
    %v2626 = vld [vmem:[#allocation5 + $0x68] sm:$0xff]
    %v2627 = vld [vmem:[#allocation5 + $0x70] sm:$0xff]
    %v2628 = vld [vmem:[#allocation5 + $0x78] sm:$0xff]
    %v2629 = vld [vmem:[%s11] sm:$0xff]
    %v2630 = vld [vmem:[%s11 + $0x8] sm:$0xff]
    %v2631 = vld [vmem:[%s11 + $0x10] sm:$0xff]
    %v2632 = vld [vmem:[%s11 + $0x18] sm:$0xff]
    %v2633 = vld [vmem:[%s11 + $0x20] sm:$0xff]
    %v2634 = vld [vmem:[%s11 + $0x28] sm:$0xff]
    %v2635 = vld [vmem:[%s11 + $0x30] sm:$0xff]
    %v2636 = vld [vmem:[%s11 + $0x38] sm:$0xff]
    %v2637 = vld [vmem:[#allocation3] sm:$0xff]
    %v2638 = vld [vmem:[#allocation3 + $0x8] sm:$0xff]
    %v2639 = vld [vmem:[#allocation3 + $0x10] sm:$0xff]
    %v2640 = vld [vmem:[#allocation3 + $0x18] sm:$0xff]
    %v2641 = vld [vmem:[#allocation3 + $0x20] sm:$0xff]
    %v2642 = vld [vmem:[#allocation3 + $0x28] sm:$0xff]
    %v2643 = vld [vmem:[#allocation3 + $0x30] sm:$0xff]
    %v2644 = vld [vmem:[#allocation3 + $0x38] sm:$0xff]
    %v2645 = vld [vmem:[#allocation3 + $0x40] sm:$0xff]
    %v2646 = vld [vmem:[#allocation3 + $0x48] sm:$0xff]
    %v2647 = vld [vmem:[#allocation3 + $0x50] sm:$0xff]
    %v2648 = vld [vmem:[#allocation3 + $0x58] sm:$0xff]
    %v2649 = vld [vmem:[#allocation3 + $0x60] sm:$0xff]
    %v2650 = vld [vmem:[#allocation3 + $0x68] sm:$0xff]
    %v2651 = vld [vmem:[#allocation3 + $0x70] sm:$0xff]
    %v2652 = vld [vmem:[#allocation3 + $0x78] sm:$0xff]
    %v2654 = vsel %vm2031, %v2613, 0
    %v2657 = vsel %vm2031, %v2614, 0
    %v2660 = vsel %vm2031, %v2615, 0
    %v2663 = vsel %vm2031, %v2616, 0
    %v2666 = vsel %vm2031, %v2617, 0
    %v2669 = vsel %vm2031, %v2618, 0
    %v2672 = vsel %vm2031, %v2619, 0
    %v2675 = vsel %vm2031, %v2620, 0
    %v2678 = vsel %vm2031, %v2621, 0
    %v2681 = vsel %vm2031, %v2622, 0
    %v2684 = vsel %vm2031, %v2623, 0
    %v2687 = vsel %vm2031, %v2624, 0
    %v2690 = vsel %vm2031, %v2625, 0
    %v2693 = vsel %vm2031, %v2626, 0
    %v2696 = vsel %vm2031, %v2627, 0
    %v2699 = vsel %vm2031, %v2628, 0
    %2701 = vmatprep.subr.mxu0 0.0
    %2702 = vmatpush1.msra.mxu0 %v2629
    %2703 = vmatprep.subr.mxu0 0.0
    %2704 = vmatpush1.msra.mxu0 %v2630
    %2705 = vmatprep.subr.mxu0 0.0
    %2706 = vmatpush1.msra.mxu0 %v2631
    %2707 = vmatprep.subr.mxu0 0.0
    %2708 = vmatpush1.msra.mxu0 %v2632
    %2709 = vmatprep.subr.mxu0 0.0
    %2710 = vmatpush1.msra.mxu0 %v2633
    %2711 = vmatprep.subr.mxu0 0.0
    %2712 = vmatpush1.msra.mxu0 %v2634
    %2713 = vmatprep.subr.mxu0 0.0
    %2714 = vmatpush1.msra.mxu0 %v2635
    %2715 = vmatprep.subr.mxu0 0.0
    %2716 = vmatpush1.msra.mxu0 %v2636
    %2717 = vmatprep.subr.mxu0 0.0
    %2718 = vmatpush1.msra.mxu0 0.0
    %2719 = vmatprep.subr.mxu0 0.0
    %2720 = vmatpush1.msra.mxu0 0.0
    %2721 = vmatprep.subr.mxu0 0.0
    %2722 = vmatpush1.msra.mxu0 0.0
    %2723 = vmatprep.subr.mxu0 0.0
    %2724 = vmatpush1.msra.mxu0 0.0
    %2725 = vmatprep.subr.mxu0 0.0
    %2726 = vmatpush1.msra.mxu0 0.0
    %2727 = vmatprep.subr.mxu0 0.0
    %2728 = vmatpush1.msra.mxu0 0.0
    %2729 = vmatprep.subr.mxu0 0.0
    %2730 = vmatpush1.msra.mxu0 0.0
    %2731 = vmatprep.subr.mxu0 0.0
    %2732 = vmatpush1.msra.mxu0 0.0
    %2733 = vmatprep.subr.mxu0 0.0
    %2734 = vmatpush1.msra.mxu0 0.0
    %2735 = vmatprep.subr.mxu0 0.0
    %2736 = vmatpush1.msra.mxu0 0.0
    %2737 = vmatprep.subr.mxu0 0.0
    %2738 = vmatpush1.msra.mxu0 0.0
    %2739 = vmatprep.subr.mxu0 0.0
    %2740 = vmatpush1.msra.mxu0 0.0
    %2741 = vmatprep.subr.mxu0 0.0
    %2742 = vmatpush1.msra.mxu0 0.0
    %2743 = vmatprep.subr.mxu0 0.0
    %2744 = vmatpush1.msra.mxu0 0.0
    %2745 = vmatprep.subr.mxu0 0.0
    %2746 = vmatpush1.msra.mxu0 0.0
    %2747 = vmatprep.subr.mxu0 0.0
    %2748 = vmatpush1.msra.mxu0 0.0
    %2749 = vmatprep.subr.mxu0 0.0
    %2750 = vmatpush1.msra.mxu0 0.0
    %2751 = vmatprep.subr.mxu0 0.0
    %2752 = vmatpush1.msra.mxu0 0.0
    %2753 = vmatprep.subr.mxu0 0.0
    %2754 = vmatpush1.msra.mxu0 0.0
    %2755 = vmatprep.subr.mxu0 0.0
    %2756 = vmatpush1.msra.mxu0 0.0
    %2757 = vmatprep.subr.mxu0 0.0
    %2758 = vmatpush1.msra.mxu0 0.0
    %2759 = vmatprep.subr.mxu0 0.0
    %2760 = vmatpush1.msra.mxu0 0.0
    %2761 = vmatprep.subr.mxu0 0.0
    %2762 = vmatpush1.msra.mxu0 0.0
    %2763 = vmatprep.subr.mxu0 0.0
    %2764 = vmatpush1.msra.mxu0 0.0
    %2765 = vmatprep.mubr.f32.mxu0 0.0
    %2766 = vmatmul.mubr.f32.gmra.mrb[0].mxu0 %v2654
    %v2767 = vpop.f32.mrb[0].mxu0
    %v2768 = vadd.f32 %v2637, %v2767
    %v2769 = vpop.f32.mrb[0].mxu0
    %2770 = vmatprep.mubr.f32.mxu0 0.0
    %2771 = vmatmul.mubr.f32.gmra.mrb[0].mxu0 %v2657
    %v2772 = vpop.f32.mrb[0].mxu0
    %v2773 = vadd.f32 %v2638, %v2772
    %v2774 = vpop.f32.mrb[0].mxu0
    %2775 = vmatprep.mubr.f32.mxu0 0.0
    %2776 = vmatmul.mubr.f32.gmra.mrb[0].mxu0 %v2660
    %v2777 = vpop.f32.mrb[0].mxu0
    %v2778 = vadd.f32 %v2639, %v2777
    %v2779 = vpop.f32.mrb[0].mxu0
    %2780 = vmatprep.mubr.f32.mxu0 0.0
    %2781 = vmatmul.mubr.f32.gmra.mrb[0].mxu0 %v2663
    %v2782 = vpop.f32.mrb[0].mxu0
    %v2783 = vadd.f32 %v2640, %v2782
    %v2784 = vpop.f32.mrb[0].mxu0
    %2785 = vmatprep.mubr.f32.mxu0 0.0
    %2786 = vmatmul.mubr.f32.gmra.mrb[0].mxu0 %v2666
    %v2787 = vpop.f32.mrb[0].mxu0
    %v2788 = vadd.f32 %v2641, %v2787
    %v2789 = vpop.f32.mrb[0].mxu0
    %2790 = vmatprep.mubr.f32.mxu0 0.0
    %2791 = vmatmul.mubr.f32.gmra.mrb[0].mxu0 %v2669
    %v2792 = vpop.f32.mrb[0].mxu0
    %v2793 = vadd.f32 %v2642, %v2792
    %v2794 = vpop.f32.mrb[0].mxu0
    %2795 = vmatprep.mubr.f32.mxu0 0.0
    %2796 = vmatmul.mubr.f32.gmra.mrb[0].mxu0 %v2672
    %v2797 = vpop.f32.mrb[0].mxu0
    %v2798 = vadd.f32 %v2643, %v2797
    %v2799 = vpop.f32.mrb[0].mxu0
    %2800 = vmatprep.mubr.f32.mxu0 0.0
    %2801 = vmatmul.mubr.f32.gmra.mrb[0].mxu0 %v2675
    %v2802 = vpop.f32.mrb[0].mxu0
    %v2803 = vadd.f32 %v2644, %v2802
    %v2804 = vpop.f32.mrb[0].mxu0
    %2805 = vmatprep.mubr.f32.mxu0 0.0
    %2806 = vmatmul.mubr.f32.gmra.mrb[0].mxu0 %v2678
    %v2807 = vpop.f32.mrb[0].mxu0
    %v2808 = vadd.f32 %v2645, %v2807
    %v2809 = vpop.f32.mrb[0].mxu0
    %2810 = vmatprep.mubr.f32.mxu0 0.0
    %2811 = vmatmul.mubr.f32.gmra.mrb[0].mxu0 %v2681
    %v2812 = vpop.f32.mrb[0].mxu0
    %v2813 = vadd.f32 %v2646, %v2812
    %v2814 = vpop.f32.mrb[0].mxu0
    %2815 = vmatprep.mubr.f32.mxu0 0.0
    %2816 = vmatmul.mubr.f32.gmra.mrb[0].mxu0 %v2684
    %v2817 = vpop.f32.mrb[0].mxu0
    %v2818 = vadd.f32 %v2647, %v2817
    %v2819 = vpop.f32.mrb[0].mxu0
    %2820 = vmatprep.mubr.f32.mxu0 0.0
    %2821 = vmatmul.mubr.f32.gmra.mrb[0].mxu0 %v2687
    %v2822 = vpop.f32.mrb[0].mxu0
    %v2823 = vadd.f32 %v2648, %v2822
    %v2824 = vpop.f32.mrb[0].mxu0
    %2825 = vmatprep.mubr.f32.mxu0 0.0
    %2826 = vmatmul.mubr.f32.gmra.mrb[0].mxu0 %v2690
    %v2827 = vpop.f32.mrb[0].mxu0
    %v2828 = vadd.f32 %v2649, %v2827
    %v2829 = vpop.f32.mrb[0].mxu0
    %2830 = vmatprep.mubr.f32.mxu0 0.0
    %2831 = vmatmul.mubr.f32.gmra.mrb[0].mxu0 %v2693
    %v2832 = vpop.f32.mrb[0].mxu0
    %v2833 = vadd.f32 %v2650, %v2832
    %v2834 = vpop.f32.mrb[0].mxu0
    %2835 = vmatprep.mubr.f32.mxu0 0.0
    %2836 = vmatmul.mubr.f32.gmra.mrb[0].mxu0 %v2696
    %v2837 = vpop.f32.mrb[0].mxu0
    %v2838 = vadd.f32 %v2651, %v2837
    %v2839 = vpop.f32.mrb[0].mxu0
    %2840 = vmatprep.mubr.f32.mxu0 0.0
    %2841 = vmatmul.mubr.f32.gmra.mrb[0].mxu0 %v2699
    %v2842 = vpop.f32.mrb[0].mxu0
    %v2843 = vadd.f32 %v2652, %v2842
    %v2844 = vpop.f32.mrb[0].mxu0
    %2845 = vdwg.mxu0
    %v2846 = vld [vmem:[%s13] sm:$0x1]
    %v2848 = vlaneseq
    %v2849 = vshrl.u32 %v2848, 7
    %v2850 = vsub.s32 0, %v2849
    %v2851 = vrot.slane %v2846, %v2850
    %v2853 = vadd.f32 %v2768, %v2851
    %v2854 = vadd.f32 %v2773, %v2851
    %v2855 = vadd.f32 %v2778, %v2851
    %v2856 = vadd.f32 %v2783, %v2851
    %v2857 = vadd.f32 %v2788, %v2851
    %v2858 = vadd.f32 %v2793, %v2851
    %v2859 = vadd.f32 %v2798, %v2851
    %v2860 = vadd.f32 %v2803, %v2851
    %v2861 = vadd.f32 %v2808, %v2851
    %v2862 = vadd.f32 %v2813, %v2851
    %v2863 = vadd.f32 %v2818, %v2851
    %v2864 = vadd.f32 %v2823, %v2851
    %v2865 = vadd.f32 %v2828, %v2851
    %v2866 = vadd.f32 %v2833, %v2851
    %v2867 = vadd.f32 %v2838, %v2851
    %v2868 = vadd.f32 %v2843, %v2851
    %v2869 = vmax.f32 %v2853, 0.0
    %v2870 = vmax.f32 %v2854, 0.0
    %v2871 = vmax.f32 %v2855, 0.0
    %v2872 = vmax.f32 %v2856, 0.0
    %v2873 = vmax.f32 %v2857, 0.0
    %v2874 = vmax.f32 %v2858, 0.0
    %v2875 = vmax.f32 %v2859, 0.0
    %v2876 = vmax.f32 %v2860, 0.0
    %v2877 = vmax.f32 %v2861, 0.0
    %v2878 = vmax.f32 %v2862, 0.0
    %v2879 = vmax.f32 %v2863, 0.0
    %v2880 = vmax.f32 %v2864, 0.0
    %v2881 = vmax.f32 %v2865, 0.0
    %v2882 = vmax.f32 %v2866, 0.0
    %v2883 = vmax.f32 %v2867, 0.0
    %v2884 = vmax.f32 %v2868, 0.0
    %v2885 = vld [vmem:[%s14] sm:$0xff]
    %v2886 = vld [vmem:[%s14 + $0x8] sm:$0xff]
    %v2887 = vld [vmem:[%s14 + $0x10] sm:$0xff]
    %v2888 = vld [vmem:[%s14 + $0x18] sm:$0xff]
    %v2889 = vld [vmem:[%s14 + $0x20] sm:$0xff]
    %v2890 = vld [vmem:[%s14 + $0x28] sm:$0xff]
    %v2891 = vld [vmem:[%s14 + $0x30] sm:$0xff]
    %v2892 = vld [vmem:[%s14 + $0x38] sm:$0xff]
    %v2893 = vld [vmem:[%s15] sm:$0x1]
    %v2895 = vlaneseq
    %v2896 = vshrl.u32 %v2895, 7
    %v2897 = vsub.s32 0, %v2896
    %v2898 = vrot.slane %v2893, %v2897
    %v2901 = vsel %vm2031, %v2869, 0
    %v2904 = vsel %vm2031, %v2870, 0
    %v2907 = vsel %vm2031, %v2871, 0
    %v2910 = vsel %vm2031, %v2872, 0
    %v2913 = vsel %vm2031, %v2873, 0
    %v2916 = vsel %vm2031, %v2874, 0
    %v2919 = vsel %vm2031, %v2875, 0
    %v2922 = vsel %vm2031, %v2876, 0
    %v2925 = vsel %vm2031, %v2877, 0
    %v2928 = vsel %vm2031, %v2878, 0
    %v2931 = vsel %vm2031, %v2879, 0
    %v2934 = vsel %vm2031, %v2880, 0
    %v2937 = vsel %vm2031, %v2881, 0
    %v2940 = vsel %vm2031, %v2882, 0
    %v2943 = vsel %vm2031, %v2883, 0
    %v2946 = vsel %vm2031, %v2884, 0
    %2948 = vmatprep.subr.mxu0 0.0
    %2949 = vmatpush1.msra.mxu0 %v2885
    %2950 = vmatprep.subr.mxu0 0.0
    %2951 = vmatpush1.msra.mxu0 %v2886
    %2952 = vmatprep.subr.mxu0 0.0
    %2953 = vmatpush1.msra.mxu0 %v2887
    %2954 = vmatprep.subr.mxu0 0.0
    %2955 = vmatpush1.msra.mxu0 %v2888
    %2956 = vmatprep.subr.mxu0 0.0
    %2957 = vmatpush1.msra.mxu0 %v2889
    %2958 = vmatprep.subr.mxu0 0.0
    %2959 = vmatpush1.msra.mxu0 %v2890
    %2960 = vmatprep.subr.mxu0 0.0
    %2961 = vmatpush1.msra.mxu0 %v2891
    %2962 = vmatprep.subr.mxu0 0.0
    %2963 = vmatpush1.msra.mxu0 %v2892
    %2964 = vmatprep.subr.mxu0 0.0
    %2965 = vmatpush1.msra.mxu0 0.0
    %2966 = vmatprep.subr.mxu0 0.0
    %2967 = vmatpush1.msra.mxu0 0.0
    %2968 = vmatprep.subr.mxu0 0.0
    %2969 = vmatpush1.msra.mxu0 0.0
    %2970 = vmatprep.subr.mxu0 0.0
    %2971 = vmatpush1.msra.mxu0 0.0
    %2972 = vmatprep.subr.mxu0 0.0
    %2973 = vmatpush1.msra.mxu0 0.0
    %2974 = vmatprep.subr.mxu0 0.0
    %2975 = vmatpush1.msra.mxu0 0.0
    %2976 = vmatprep.subr.mxu0 0.0
    %2977 = vmatpush1.msra.mxu0 0.0
    %2978 = vmatprep.subr.mxu0 0.0
    %2979 = vmatpush1.msra.mxu0 0.0
    %2980 = vmatprep.subr.mxu0 0.0
    %2981 = vmatpush1.msra.mxu0 0.0
    %2982 = vmatprep.subr.mxu0 0.0
    %2983 = vmatpush1.msra.mxu0 0.0
    %2984 = vmatprep.subr.mxu0 0.0
    %2985 = vmatpush1.msra.mxu0 0.0
    %2986 = vmatprep.subr.mxu0 0.0
    %2987 = vmatpush1.msra.mxu0 0.0
    %2988 = vmatprep.subr.mxu0 0.0
    %2989 = vmatpush1.msra.mxu0 0.0
    %2990 = vmatprep.subr.mxu0 0.0
    %2991 = vmatpush1.msra.mxu0 0.0
    %2992 = vmatprep.subr.mxu0 0.0
    %2993 = vmatpush1.msra.mxu0 0.0
    %2994 = vmatprep.subr.mxu0 0.0
    %2995 = vmatpush1.msra.mxu0 0.0
    %2996 = vmatprep.subr.mxu0 0.0
    %2997 = vmatpush1.msra.mxu0 0.0
    %2998 = vmatprep.subr.mxu0 0.0
    %2999 = vmatpush1.msra.mxu0 0.0
    %3000 = vmatprep.subr.mxu0 0.0
    %3001 = vmatpush1.msra.mxu0 0.0
    %3002 = vmatprep.subr.mxu0 0.0
    %3003 = vmatpush1.msra.mxu0 0.0
    %3004 = vmatprep.subr.mxu0 0.0
    %3005 = vmatpush1.msra.mxu0 0.0
    %3006 = vmatprep.subr.mxu0 0.0
    %3007 = vmatpush1.msra.mxu0 0.0
    %3008 = vmatprep.subr.mxu0 0.0
    %3009 = vmatpush1.msra.mxu0 0.0
    %3010 = vmatprep.subr.mxu0 0.0
    %3011 = vmatpush1.msra.mxu0 0.0
    %3012 = vmatprep.mubr.f32.mxu0 0.0
    %3013 = vmatmul.mubr.f32.gmra.mrb[0].mxu0 %v2901
    %v3014 = vpop.f32.mrb[0].mxu0
    %v3015 = vadd.f32 %v2898, %v3014
    %v3016 = vpop.f32.mrb[0].mxu0
    %3017 = vmatprep.mubr.f32.mxu0 0.0
    %3018 = vmatmul.mubr.f32.gmra.mrb[0].mxu0 %v2904
    %v3019 = vpop.f32.mrb[0].mxu0
    %v3020 = vadd.f32 %v2898, %v3019
    %v3021 = vpop.f32.mrb[0].mxu0
    %3022 = vmatprep.mubr.f32.mxu0 0.0
    %3023 = vmatmul.mubr.f32.gmra.mrb[0].mxu0 %v2907
    %v3024 = vpop.f32.mrb[0].mxu0
    %v3025 = vadd.f32 %v2898, %v3024
    %v3026 = vpop.f32.mrb[0].mxu0
    %3027 = vmatprep.mubr.f32.mxu0 0.0
    %3028 = vmatmul.mubr.f32.gmra.mrb[0].mxu0 %v2910
    %v3029 = vpop.f32.mrb[0].mxu0
    %v3030 = vadd.f32 %v2898, %v3029
    %v3031 = vpop.f32.mrb[0].mxu0
    %3032 = vmatprep.mubr.f32.mxu0 0.0
    %3033 = vmatmul.mubr.f32.gmra.mrb[0].mxu0 %v2913
    %v3034 = vpop.f32.mrb[0].mxu0
    %v3035 = vadd.f32 %v2898, %v3034
    %v3036 = vpop.f32.mrb[0].mxu0
    %3037 = vmatprep.mubr.f32.mxu0 0.0
    %3038 = vmatmul.mubr.f32.gmra.mrb[0].mxu0 %v2916
    %v3039 = vpop.f32.mrb[0].mxu0
    %v3040 = vadd.f32 %v2898, %v3039
    %v3041 = vpop.f32.mrb[0].mxu0
    %3042 = vmatprep.mubr.f32.mxu0 0.0
    %3043 = vmatmul.mubr.f32.gmra.mrb[0].mxu0 %v2919
    %v3044 = vpop.f32.mrb[0].mxu0
    %v3045 = vadd.f32 %v2898, %v3044
    %v3046 = vpop.f32.mrb[0].mxu0
    %3047 = vmatprep.mubr.f32.mxu0 0.0
    %3048 = vmatmul.mubr.f32.gmra.mrb[0].mxu0 %v2922
    %v3049 = vpop.f32.mrb[0].mxu0
    %v3050 = vadd.f32 %v2898, %v3049
    %v3051 = vpop.f32.mrb[0].mxu0
    %3052 = vmatprep.mubr.f32.mxu0 0.0
    %3053 = vmatmul.mubr.f32.gmra.mrb[0].mxu0 %v2925
    %v3054 = vpop.f32.mrb[0].mxu0
    %v3055 = vadd.f32 %v2898, %v3054
    %v3056 = vpop.f32.mrb[0].mxu0
    %3057 = vmatprep.mubr.f32.mxu0 0.0
    %3058 = vmatmul.mubr.f32.gmra.mrb[0].mxu0 %v2928
    %v3059 = vpop.f32.mrb[0].mxu0
    %v3060 = vadd.f32 %v2898, %v3059
    %v3061 = vpop.f32.mrb[0].mxu0
    %3062 = vmatprep.mubr.f32.mxu0 0.0
    %3063 = vmatmul.mubr.f32.gmra.mrb[0].mxu0 %v2931
    %v3064 = vpop.f32.mrb[0].mxu0
    %v3065 = vadd.f32 %v2898, %v3064
    %v3066 = vpop.f32.mrb[0].mxu0
    %3067 = vmatprep.mubr.f32.mxu0 0.0
    %3068 = vmatmul.mubr.f32.gmra.mrb[0].mxu0 %v2934
    %v3069 = vpop.f32.mrb[0].mxu0
    %v3070 = vadd.f32 %v2898, %v3069
    %v3071 = vpop.f32.mrb[0].mxu0
    %3072 = vmatprep.mubr.f32.mxu0 0.0
    %3073 = vmatmul.mubr.f32.gmra.mrb[0].mxu0 %v2937
    %v3074 = vpop.f32.mrb[0].mxu0
    %v3075 = vadd.f32 %v2898, %v3074
    %v3076 = vpop.f32.mrb[0].mxu0
    %3077 = vmatprep.mubr.f32.mxu0 0.0
    %3078 = vmatmul.mubr.f32.gmra.mrb[0].mxu0 %v2940
    %v3079 = vpop.f32.mrb[0].mxu0
    %v3080 = vadd.f32 %v2898, %v3079
    %v3081 = vpop.f32.mrb[0].mxu0
    %3082 = vmatprep.mubr.f32.mxu0 0.0
    %3083 = vmatmul.mubr.f32.gmra.mrb[0].mxu0 %v2943
    %v3084 = vpop.f32.mrb[0].mxu0
    %v3085 = vadd.f32 %v2898, %v3084
    %v3086 = vpop.f32.mrb[0].mxu0
    %3087 = vmatprep.mubr.f32.mxu0 0.0
    %3088 = vmatmul.mubr.f32.gmra.mrb[0].mxu0 %v2946
    %v3089 = vpop.f32.mrb[0].mxu0
    %v3090 = vadd.f32 %v2898, %v3089
    %v3091 = vpop.f32.mrb[0].mxu0
    %3092 = vdwg.mxu0
    %v3093 = vld [vmem:[%s16] sm:$0xff]
    %v3094 = vld [vmem:[%s16 + $0x8] sm:$0xff]
    %v3095 = vld [vmem:[%s16 + $0x10] sm:$0xff]
    %v3096 = vld [vmem:[%s16 + $0x18] sm:$0xff]
    %v3097 = vld [vmem:[%s16 + $0x20] sm:$0xff]
    %v3098 = vld [vmem:[%s16 + $0x28] sm:$0xff]
    %v3099 = vld [vmem:[%s16 + $0x30] sm:$0xff]
    %v3100 = vld [vmem:[%s16 + $0x38] sm:$0xff]
    %v3101 = vld [vmem:[%s17] sm:$0x1]
    %v3103 = vlaneseq
    %v3104 = vshrl.u32 %v3103, 7
    %v3105 = vsub.s32 0, %v3104
    %v3106 = vrot.slane %v3101, %v3105
    %v3109 = vsel %vm2031, %v3015, 0
    %v3112 = vsel %vm2031, %v3020, 0
    %v3115 = vsel %vm2031, %v3025, 0
    %v3118 = vsel %vm2031, %v3030, 0
    %v3121 = vsel %vm2031, %v3035, 0
    %v3124 = vsel %vm2031, %v3040, 0
    %v3127 = vsel %vm2031, %v3045, 0
    %v3130 = vsel %vm2031, %v3050, 0
    %v3133 = vsel %vm2031, %v3055, 0
    %v3136 = vsel %vm2031, %v3060, 0
    %v3139 = vsel %vm2031, %v3065, 0
    %v3142 = vsel %vm2031, %v3070, 0
    %v3145 = vsel %vm2031, %v3075, 0
    %v3148 = vsel %vm2031, %v3080, 0
    %v3151 = vsel %vm2031, %v3085, 0
    %v3154 = vsel %vm2031, %v3090, 0
    %3156 = vmatprep.subr.mxu0 0.0
    %3157 = vmatpush1.msra.mxu0 %v3093
    %3158 = vmatprep.subr.mxu0 0.0
    %3159 = vmatpush1.msra.mxu0 %v3094
    %3160 = vmatprep.subr.mxu0 0.0
    %3161 = vmatpush1.msra.mxu0 %v3095
    %3162 = vmatprep.subr.mxu0 0.0
    %3163 = vmatpush1.msra.mxu0 %v3096
    %3164 = vmatprep.subr.mxu0 0.0
    %3165 = vmatpush1.msra.mxu0 %v3097
    %3166 = vmatprep.subr.mxu0 0.0
    %3167 = vmatpush1.msra.mxu0 %v3098
    %3168 = vmatprep.subr.mxu0 0.0
    %3169 = vmatpush1.msra.mxu0 %v3099
    %3170 = vmatprep.subr.mxu0 0.0
    %3171 = vmatpush1.msra.mxu0 %v3100
    %3172 = vmatprep.subr.mxu0 0.0
    %3173 = vmatpush1.msra.mxu0 0.0
    %3174 = vmatprep.subr.mxu0 0.0
    %3175 = vmatpush1.msra.mxu0 0.0
    %3176 = vmatprep.subr.mxu0 0.0
    %3177 = vmatpush1.msra.mxu0 0.0
    %3178 = vmatprep.subr.mxu0 0.0
    %3179 = vmatpush1.msra.mxu0 0.0
    %3180 = vmatprep.subr.mxu0 0.0
    %3181 = vmatpush1.msra.mxu0 0.0
    %3182 = vmatprep.subr.mxu0 0.0
    %3183 = vmatpush1.msra.mxu0 0.0
    %3184 = vmatprep.subr.mxu0 0.0
    %3185 = vmatpush1.msra.mxu0 0.0
    %3186 = vmatprep.subr.mxu0 0.0
    %3187 = vmatpush1.msra.mxu0 0.0
    %3188 = vmatprep.subr.mxu0 0.0
    %3189 = vmatpush1.msra.mxu0 0.0
    %3190 = vmatprep.subr.mxu0 0.0
    %3191 = vmatpush1.msra.mxu0 0.0
    %3192 = vmatprep.subr.mxu0 0.0
    %3193 = vmatpush1.msra.mxu0 0.0
    %3194 = vmatprep.subr.mxu0 0.0
    %3195 = vmatpush1.msra.mxu0 0.0
    %3196 = vmatprep.subr.mxu0 0.0
    %3197 = vmatpush1.msra.mxu0 0.0
    %3198 = vmatprep.subr.mxu0 0.0
    %3199 = vmatpush1.msra.mxu0 0.0
    %3200 = vmatprep.subr.mxu0 0.0
    %3201 = vmatpush1.msra.mxu0 0.0
    %3202 = vmatprep.subr.mxu0 0.0
    %3203 = vmatpush1.msra.mxu0 0.0
    %3204 = vmatprep.subr.mxu0 0.0
    %3205 = vmatpush1.msra.mxu0 0.0
    %3206 = vmatprep.subr.mxu0 0.0
    %3207 = vmatpush1.msra.mxu0 0.0
    %3208 = vmatprep.subr.mxu0 0.0
    %3209 = vmatpush1.msra.mxu0 0.0
    %3210 = vmatprep.subr.mxu0 0.0
    %3211 = vmatpush1.msra.mxu0 0.0
    %3212 = vmatprep.subr.mxu0 0.0
    %3213 = vmatpush1.msra.mxu0 0.0
    %3214 = vmatprep.subr.mxu0 0.0
    %3215 = vmatpush1.msra.mxu0 0.0
    %3216 = vmatprep.subr.mxu0 0.0
    %3217 = vmatpush1.msra.mxu0 0.0
    %3218 = vmatprep.subr.mxu0 0.0
    %3219 = vmatpush1.msra.mxu0 0.0
    %3220 = vmatprep.mubr.f32.mxu0 0.0
    %3221 = vmatmul.mubr.f32.gmra.mrb[0].mxu0 %v3109
    %v3222 = vpop.f32.mrb[0].mxu0
    %v3223 = vadd.f32 %v3106, %v3222
    %v3224 = vpop.f32.mrb[0].mxu0
    %3225 = vmatprep.mubr.f32.mxu0 0.0
    %3226 = vmatmul.mubr.f32.gmra.mrb[0].mxu0 %v3112
    %v3227 = vpop.f32.mrb[0].mxu0
    %v3228 = vadd.f32 %v3106, %v3227
    %v3229 = vpop.f32.mrb[0].mxu0
    %3230 = vmatprep.mubr.f32.mxu0 0.0
    %3231 = vmatmul.mubr.f32.gmra.mrb[0].mxu0 %v3115
    %v3232 = vpop.f32.mrb[0].mxu0
    %v3233 = vadd.f32 %v3106, %v3232
    %v3234 = vpop.f32.mrb[0].mxu0
    %3235 = vmatprep.mubr.f32.mxu0 0.0
    %3236 = vmatmul.mubr.f32.gmra.mrb[0].mxu0 %v3118
    %v3237 = vpop.f32.mrb[0].mxu0
    %v3238 = vadd.f32 %v3106, %v3237
    %v3239 = vpop.f32.mrb[0].mxu0
    %3240 = vmatprep.mubr.f32.mxu0 0.0
    %3241 = vmatmul.mubr.f32.gmra.mrb[0].mxu0 %v3121
    %v3242 = vpop.f32.mrb[0].mxu0
    %v3243 = vadd.f32 %v3106, %v3242
    %v3244 = vpop.f32.mrb[0].mxu0
    %3245 = vmatprep.mubr.f32.mxu0 0.0
    %3246 = vmatmul.mubr.f32.gmra.mrb[0].mxu0 %v3124
    %v3247 = vpop.f32.mrb[0].mxu0
    %v3248 = vadd.f32 %v3106, %v3247
    %v3249 = vpop.f32.mrb[0].mxu0
    %3250 = vmatprep.mubr.f32.mxu0 0.0
    %3251 = vmatmul.mubr.f32.gmra.mrb[0].mxu0 %v3127
    %v3252 = vpop.f32.mrb[0].mxu0
    %v3253 = vadd.f32 %v3106, %v3252
    %v3254 = vpop.f32.mrb[0].mxu0
    %3255 = vmatprep.mubr.f32.mxu0 0.0
    %3256 = vmatmul.mubr.f32.gmra.mrb[0].mxu0 %v3130
    %v3257 = vpop.f32.mrb[0].mxu0
    %v3258 = vadd.f32 %v3106, %v3257
    %v3259 = vpop.f32.mrb[0].mxu0
    %3260 = vmatprep.mubr.f32.mxu0 0.0
    %3261 = vmatmul.mubr.f32.gmra.mrb[0].mxu0 %v3133
    %v3262 = vpop.f32.mrb[0].mxu0
    %v3263 = vadd.f32 %v3106, %v3262
    %v3264 = vpop.f32.mrb[0].mxu0
    %3265 = vmatprep.mubr.f32.mxu0 0.0
    %3266 = vmatmul.mubr.f32.gmra.mrb[0].mxu0 %v3136
    %v3267 = vpop.f32.mrb[0].mxu0
    %v3268 = vadd.f32 %v3106, %v3267
    %v3269 = vpop.f32.mrb[0].mxu0
    %3270 = vmatprep.mubr.f32.mxu0 0.0
    %3271 = vmatmul.mubr.f32.gmra.mrb[0].mxu0 %v3139
    %v3272 = vpop.f32.mrb[0].mxu0
    %v3273 = vadd.f32 %v3106, %v3272
    %v3274 = vpop.f32.mrb[0].mxu0
    %3275 = vmatprep.mubr.f32.mxu0 0.0
    %3276 = vmatmul.mubr.f32.gmra.mrb[0].mxu0 %v3142
    %v3277 = vpop.f32.mrb[0].mxu0
    %v3278 = vadd.f32 %v3106, %v3277
    %v3279 = vpop.f32.mrb[0].mxu0
    %3280 = vmatprep.mubr.f32.mxu0 0.0
    %3281 = vmatmul.mubr.f32.gmra.mrb[0].mxu0 %v3145
    %v3282 = vpop.f32.mrb[0].mxu0
    %v3283 = vadd.f32 %v3106, %v3282
    %v3284 = vpop.f32.mrb[0].mxu0
    %3285 = vmatprep.mubr.f32.mxu0 0.0
    %3286 = vmatmul.mubr.f32.gmra.mrb[0].mxu0 %v3148
    %v3287 = vpop.f32.mrb[0].mxu0
    %v3288 = vadd.f32 %v3106, %v3287
    %v3289 = vpop.f32.mrb[0].mxu0
    %3290 = vmatprep.mubr.f32.mxu0 0.0
    %3291 = vmatmul.mubr.f32.gmra.mrb[0].mxu0 %v3151
    %v3292 = vpop.f32.mrb[0].mxu0
    %v3293 = vadd.f32 %v3106, %v3292
    %v3294 = vpop.f32.mrb[0].mxu0
    %3295 = vmatprep.mubr.f32.mxu0 0.0
    %3296 = vmatmul.mubr.f32.gmra.mrb[0].mxu0 %v3154
    %v3297 = vpop.f32.mrb[0].mxu0
    %v3298 = vadd.f32 %v3106, %v3297
    %v3299 = vpop.f32.mrb[0].mxu0
    %3300 = vdwg.mxu0
    %v3301 = vmax.f32 %v3223, 0.0
    %v3302 = vmax.f32 %v3228, 0.0
    %v3303 = vmax.f32 %v3233, 0.0
    %v3304 = vmax.f32 %v3238, 0.0
    %v3305 = vmax.f32 %v3243, 0.0
    %v3306 = vmax.f32 %v3248, 0.0
    %v3307 = vmax.f32 %v3253, 0.0
    %v3308 = vmax.f32 %v3258, 0.0
    %v3309 = vmax.f32 %v3263, 0.0
    %v3310 = vmax.f32 %v3268, 0.0
    %v3311 = vmax.f32 %v3273, 0.0
    %v3312 = vmax.f32 %v3278, 0.0
    %v3313 = vmax.f32 %v3283, 0.0
    %v3314 = vmax.f32 %v3288, 0.0
    %v3315 = vmax.f32 %v3293, 0.0
    %v3316 = vmax.f32 %v3298, 0.0
    %v3317 = vld [vmem:[%s18] sm:$0xff]
    %v3318 = vld [vmem:[%s18 + $0x8] sm:$0xff]
    %v3319 = vld [vmem:[%s18 + $0x10] sm:$0xff]
    %v3320 = vld [vmem:[%s18 + $0x18] sm:$0xff]
    %v3321 = vld [vmem:[%s18 + $0x20] sm:$0xff]
    %v3322 = vld [vmem:[%s18 + $0x28] sm:$0xff]
    %v3323 = vld [vmem:[%s18 + $0x30] sm:$0xff]
    %v3324 = vld [vmem:[%s18 + $0x38] sm:$0xff]
    %v3326 = vsel %vm2031, %v3301, 0
    %v3329 = vsel %vm2031, %v3302, 0
    %v3332 = vsel %vm2031, %v3303, 0
    %v3335 = vsel %vm2031, %v3304, 0
    %v3338 = vsel %vm2031, %v3305, 0
    %v3341 = vsel %vm2031, %v3306, 0
    %v3344 = vsel %vm2031, %v3307, 0
    %v3347 = vsel %vm2031, %v3308, 0
    %v3350 = vsel %vm2031, %v3309, 0
    %v3353 = vsel %vm2031, %v3310, 0
    %v3356 = vsel %vm2031, %v3311, 0
    %v3359 = vsel %vm2031, %v3312, 0
    %v3362 = vsel %vm2031, %v3313, 0
    %v3365 = vsel %vm2031, %v3314, 0
    %v3368 = vsel %vm2031, %v3315, 0
    %v3371 = vsel %vm2031, %v3316, 0
    %3373 = vmatprep.subr.mxu0 0.0
    %3374 = vmatpush1.msra.mxu0 %v3317
    %3375 = vmatprep.subr.mxu0 0.0
    %3376 = vmatpush1.msra.mxu0 %v3318
    %3377 = vmatprep.subr.mxu0 0.0
    %3378 = vmatpush1.msra.mxu0 %v3319
    %3379 = vmatprep.subr.mxu0 0.0
    %3380 = vmatpush1.msra.mxu0 %v3320
    %3381 = vmatprep.subr.mxu0 0.0
    %3382 = vmatpush1.msra.mxu0 %v3321
    %3383 = vmatprep.subr.mxu0 0.0
    %3384 = vmatpush1.msra.mxu0 %v3322
    %3385 = vmatprep.subr.mxu0 0.0
    %3386 = vmatpush1.msra.mxu0 %v3323
    %3387 = vmatprep.subr.mxu0 0.0
    %3388 = vmatpush1.msra.mxu0 %v3324
    %3389 = vmatprep.subr.mxu0 0.0
    %3390 = vmatpush1.msra.mxu0 0.0
    %3391 = vmatprep.subr.mxu0 0.0
    %3392 = vmatpush1.msra.mxu0 0.0
    %3393 = vmatprep.subr.mxu0 0.0
    %3394 = vmatpush1.msra.mxu0 0.0
    %3395 = vmatprep.subr.mxu0 0.0
    %3396 = vmatpush1.msra.mxu0 0.0
    %3397 = vmatprep.subr.mxu0 0.0
    %3398 = vmatpush1.msra.mxu0 0.0
    %3399 = vmatprep.subr.mxu0 0.0
    %3400 = vmatpush1.msra.mxu0 0.0
    %3401 = vmatprep.subr.mxu0 0.0
    %3402 = vmatpush1.msra.mxu0 0.0
    %3403 = vmatprep.subr.mxu0 0.0
    %3404 = vmatpush1.msra.mxu0 0.0
    %3405 = vmatprep.subr.mxu0 0.0
    %3406 = vmatpush1.msra.mxu0 0.0
    %3407 = vmatprep.subr.mxu0 0.0
    %3408 = vmatpush1.msra.mxu0 0.0
    %3409 = vmatprep.subr.mxu0 0.0
    %3410 = vmatpush1.msra.mxu0 0.0
    %3411 = vmatprep.subr.mxu0 0.0
    %3412 = vmatpush1.msra.mxu0 0.0
    %3413 = vmatprep.subr.mxu0 0.0
    %3414 = vmatpush1.msra.mxu0 0.0
    %3415 = vmatprep.subr.mxu0 0.0
    %3416 = vmatpush1.msra.mxu0 0.0
    %3417 = vmatprep.subr.mxu0 0.0
    %3418 = vmatpush1.msra.mxu0 0.0
    %3419 = vmatprep.subr.mxu0 0.0
    %3420 = vmatpush1.msra.mxu0 0.0
    %3421 = vmatprep.subr.mxu0 0.0
    %3422 = vmatpush1.msra.mxu0 0.0
    %3423 = vmatprep.subr.mxu0 0.0
    %3424 = vmatpush1.msra.mxu0 0.0
    %3425 = vmatprep.subr.mxu0 0.0
    %3426 = vmatpush1.msra.mxu0 0.0
    %3427 = vmatprep.subr.mxu0 0.0
    %3428 = vmatpush1.msra.mxu0 0.0
    %3429 = vmatprep.subr.mxu0 0.0
    %3430 = vmatpush1.msra.mxu0 0.0
    %3431 = vmatprep.subr.mxu0 0.0
    %3432 = vmatpush1.msra.mxu0 0.0
    %3433 = vmatprep.subr.mxu0 0.0
    %3434 = vmatpush1.msra.mxu0 0.0
    %3435 = vmatprep.subr.mxu0 0.0
    %3436 = vmatpush1.msra.mxu0 0.0
    %3437 = vmatprep.mubr.f32.mxu0 0.0
    %3438 = vmatmul.mubr.f32.gmra.mrb[0].mxu0 %v3326
    %v3439 = vpop.f32.mrb[0].mxu0
    %v3440 = vadd.f32 0.0, %v3439
    %v3441 = vpop.f32.mrb[0].mxu0
    %3442 = vmatprep.mubr.f32.mxu0 0.0
    %3443 = vmatmul.mubr.f32.gmra.mrb[0].mxu0 %v3329
    %v3444 = vpop.f32.mrb[0].mxu0
    %v3445 = vadd.f32 0.0, %v3444
    %v3446 = vpop.f32.mrb[0].mxu0
    %3447 = vmatprep.mubr.f32.mxu0 0.0
    %3448 = vmatmul.mubr.f32.gmra.mrb[0].mxu0 %v3332
    %v3449 = vpop.f32.mrb[0].mxu0
    %v3450 = vadd.f32 0.0, %v3449
    %v3451 = vpop.f32.mrb[0].mxu0
    %3452 = vmatprep.mubr.f32.mxu0 0.0
    %3453 = vmatmul.mubr.f32.gmra.mrb[0].mxu0 %v3335
    %v3454 = vpop.f32.mrb[0].mxu0
    %v3455 = vadd.f32 0.0, %v3454
    %v3456 = vpop.f32.mrb[0].mxu0
    %3457 = vmatprep.mubr.f32.mxu0 0.0
    %3458 = vmatmul.mubr.f32.gmra.mrb[0].mxu0 %v3338
    %v3459 = vpop.f32.mrb[0].mxu0
    %v3460 = vadd.f32 0.0, %v3459
    %v3461 = vpop.f32.mrb[0].mxu0
    %3462 = vmatprep.mubr.f32.mxu0 0.0
    %3463 = vmatmul.mubr.f32.gmra.mrb[0].mxu0 %v3341
    %v3464 = vpop.f32.mrb[0].mxu0
    %v3465 = vadd.f32 0.0, %v3464
    %v3466 = vpop.f32.mrb[0].mxu0
    %3467 = vmatprep.mubr.f32.mxu0 0.0
    %3468 = vmatmul.mubr.f32.gmra.mrb[0].mxu0 %v3344
    %v3469 = vpop.f32.mrb[0].mxu0
    %v3470 = vadd.f32 0.0, %v3469
    %v3471 = vpop.f32.mrb[0].mxu0
    %3472 = vmatprep.mubr.f32.mxu0 0.0
    %3473 = vmatmul.mubr.f32.gmra.mrb[0].mxu0 %v3347
    %v3474 = vpop.f32.mrb[0].mxu0
    %v3475 = vadd.f32 0.0, %v3474
    %v3476 = vpop.f32.mrb[0].mxu0
    %3477 = vmatprep.mubr.f32.mxu0 0.0
    %3478 = vmatmul.mubr.f32.gmra.mrb[0].mxu0 %v3350
    %v3479 = vpop.f32.mrb[0].mxu0
    %v3480 = vadd.f32 0.0, %v3479
    %v3481 = vpop.f32.mrb[0].mxu0
    %3482 = vmatprep.mubr.f32.mxu0 0.0
    %3483 = vmatmul.mubr.f32.gmra.mrb[0].mxu0 %v3353
    %v3484 = vpop.f32.mrb[0].mxu0
    %v3485 = vadd.f32 0.0, %v3484
    %v3486 = vpop.f32.mrb[0].mxu0
    %3487 = vmatprep.mubr.f32.mxu0 0.0
    %3488 = vmatmul.mubr.f32.gmra.mrb[0].mxu0 %v3356
    %v3489 = vpop.f32.mrb[0].mxu0
    %v3490 = vadd.f32 0.0, %v3489
    %v3491 = vpop.f32.mrb[0].mxu0
    %3492 = vmatprep.mubr.f32.mxu0 0.0
    %3493 = vmatmul.mubr.f32.gmra.mrb[0].mxu0 %v3359
    %v3494 = vpop.f32.mrb[0].mxu0
    %v3495 = vadd.f32 0.0, %v3494
    %v3496 = vpop.f32.mrb[0].mxu0
    %3497 = vmatprep.mubr.f32.mxu0 0.0
    %3498 = vmatmul.mubr.f32.gmra.mrb[0].mxu0 %v3362
    %v3499 = vpop.f32.mrb[0].mxu0
    %v3500 = vadd.f32 0.0, %v3499
    %v3501 = vpop.f32.mrb[0].mxu0
    %3502 = vmatprep.mubr.f32.mxu0 0.0
    %3503 = vmatmul.mubr.f32.gmra.mrb[0].mxu0 %v3365
    %v3504 = vpop.f32.mrb[0].mxu0
    %v3505 = vadd.f32 0.0, %v3504
    %v3506 = vpop.f32.mrb[0].mxu0
    %3507 = vmatprep.mubr.f32.mxu0 0.0
    %3508 = vmatmul.mubr.f32.gmra.mrb[0].mxu0 %v3368
    %v3509 = vpop.f32.mrb[0].mxu0
    %v3510 = vadd.f32 0.0, %v3509
    %v3511 = vpop.f32.mrb[0].mxu0
    %3512 = vmatprep.mubr.f32.mxu0 0.0
    %3513 = vmatmul.mubr.f32.gmra.mrb[0].mxu0 %v3371
    %v3514 = vpop.f32.mrb[0].mxu0
    %v3515 = vadd.f32 0.0, %v3514
    %v3516 = vpop.f32.mrb[0].mxu0
    %3517 = vdwg.mxu0
    %vm3518 = vcmask 7168
    %3519 = vst.msk [vmem:[%s19] sm:$0xff] %vm3518, %v3440
    %3520 = vst.msk [vmem:[%s19 + $0x8] sm:$0xff] %vm3518, %v3445
    %3521 = vst.msk [vmem:[%s19 + $0x10] sm:$0xff] %vm3518, %v3450
    %3522 = vst.msk [vmem:[%s19 + $0x18] sm:$0xff] %vm3518, %v3455
    %3523 = vst.msk [vmem:[%s19 + $0x20] sm:$0xff] %vm3518, %v3460
    %3524 = vst.msk [vmem:[%s19 + $0x28] sm:$0xff] %vm3518, %v3465
    %3525 = vst.msk [vmem:[%s19 + $0x30] sm:$0xff] %vm3518, %v3470
    %3526 = vst.msk [vmem:[%s19 + $0x38] sm:$0xff] %vm3518, %v3475
    %3527 = vst.msk [vmem:[%s19 + $0x40] sm:$0xff] %vm3518, %v3480
    %3528 = vst.msk [vmem:[%s19 + $0x48] sm:$0xff] %vm3518, %v3485
    %3529 = vst.msk [vmem:[%s19 + $0x50] sm:$0xff] %vm3518, %v3490
    %3530 = vst.msk [vmem:[%s19 + $0x58] sm:$0xff] %vm3518, %v3495
    %3531 = vst.msk [vmem:[%s19 + $0x60] sm:$0xff] %vm3518, %v3500
    %3532 = vst.msk [vmem:[%s19 + $0x68] sm:$0xff] %vm3518, %v3505
    %3533 = vst.msk [vmem:[%s19 + $0x70] sm:$0xff] %vm3518, %v3510
    %3534 = vst.msk [vmem:[%s19 + $0x78] sm:$0xff] %vm3518, %v3515
  $region85: #{gnn_policy_forward.7} parent=0 // pred_fallthru
    _
  // Predicated region
  $region86: #{gnn_policy_forward.7} parent=0 // pred_check
    _
  $region87: #{gnn_policy_forward.7} parent=0 // pred_check_branch
    %3536 = sbr.rel (0) target = $region89
  $region88: #{gnn_policy_forward.7} parent=0 // pred_region
    _
  $region89: #{gnn_policy_forward.7} parent=0 // pred_fallthru
    _
  // Predicated region
  $region90: #{gnn_policy_forward.7} parent=0 // pred_check
    _
  $region91: #{gnn_policy_forward.7} parent=0 // pred_check_branch
    %3538 = sbr.rel (0) target = $region93
  $region92: #{gnn_policy_forward.7} parent=0 // pred_region
    _
  $region93: #{gnn_policy_forward.7} parent=0 // pred_fallthru
    _

</llo_original>
